<compile_context>
chip_gen: v5e
topology: v5e:2x2
jax: 0.10.0
libtpu: 0.0.40
codegen_flags: <defaults>
</compile_context>

<pallas_src>
import math

import jax
import jax.numpy as jnp
from jax.experimental import pallas as pl
from jax.experimental.pallas import tpu as pltpu


def _round_up(x, m):
    return (x + m - 1) // m * m


def _layer_geom(H, W):
    """Flat-layout geometry for one conv layer.

    Wp   : padded width (W + 2)
    Lout : number of conv output positions computed (over the padded width)
    Lq   : Lout rounded up to a multiple of 8 (matmul M rows, keeps reshapes layout-trivial)
    P    : flat padded-buffer length, (H+2)*(W+2) + 2 tail elements so the corner taps of
           the (discarded) garbage columns never read out of bounds, rounded to 8.
    """
    Wp = W + 2
    Lout = H * Wp
    Lq = _round_up(max(Lout, 8), 8)
    P = _round_up((H + 2) * Wp + 2, 8)
    return Wp, Lout, Lq, P


def _make_kernel(dims, cins, cout, bt, hw_final):
    """Build the fused 4-layer kernel for static per-layer dims and batch tile bt."""

    def kernel(x_ref, w1, w2, w3, w4, prm_ref, out_ref,
               pad1, pad2, pad3, pad4, pc1, pc2, pc3, pc4):
        pads = (pad1, pad2, pad3, pad4)
        patches = (pc1, pc2, pc3, pc4)
        ws = (w1, w2, w3, w4)

        # ---- Halo-only zeroing of every padded scratch (done every grid step; the
        #      interior is fully overwritten below, so only the border needs zeros).
        for l in range(4):
            H, W = dims[l]
            Wp, _, _, P = _layer_geom(H, W)
            cin = cins[l]
            # top border row + left border of image row 1
            pads[l][:, 0:W + 3, :] = jnp.zeros((bt, W + 3, cin), jnp.bfloat16)
            # (right border of row y, left border of row y+1) are adjacent in flat layout
            for yy in range(1, H):
                o = yy * Wp + W + 1
                pads[l][:, o:o + 2, :] = jnp.zeros((bt, 2, cin), jnp.bfloat16)
            # right border of row H + bottom border row + tail
            o = H * Wp + W + 1
            pads[l][:, o:P, :] = jnp.zeros((bt, P - o, cin), jnp.bfloat16)

        # ---- Layer-1 interior: copy the input rows (cast once to bf16) into the flat pad.
        H0, W0 = dims[0]
        Wp0 = W0 + 2
        x = x_ref[...]
        for yy in range(1, H0 + 1):
            o = yy * Wp0 + 1
            pads[0][:, o:o + W0, :] = x[:, yy - 1, :, :].astype(jnp.bfloat16)

        # ---- 4 x (conv3x3 -> bias -> ReLU -> BN -> maxpool2x2); everything stays in VMEM.
        for l in range(4):
            H, W = dims[l]
            Wp, Lout, Lq, _ = _layer_geom(H, W)
            cin = cins[l]
            Ho, Wo = H // 2, W // 2

            # im2col: 9 contiguous flat-offset taps -> (bt, Lq, 9*cin) bf16 patch buffer.
            for dy in range(3):
                for dx in range(3):
                    t = dy * 3 + dx
                    off = dy * Wp + dx
                    patches[l][:, 0:Lout, t * cin:(t + 1) * cin] = \
                        pads[l][:, off:off + Lout, :]

            # One MXU matmul per layer: (bt*Lq, 9*cin) @ (9*cin, cout), f32 accumulation.
            pm = patches[l][...].reshape(bt * Lq, 9 * cin)
            conv = jnp.dot(pm, ws[l][...], preferred_element_type=jnp.float32)

            p = prm_ref[l]  # (3, cout) f32: rows = [conv bias, bn scale, bn bias]
            act = jnp.maximum(conv + p[0:1, :], 0.0) * p[1:2, :] + p[2:3, :]
            act = act.reshape(bt, Lq, cout)

            # MaxPool 2x2 stride 2 (floor semantics), row by row over the flat layout.
            prows = []
            for r in range(Ho):
                a0 = (2 * r) * Wp
                b0 = (2 * r + 1) * Wp
                m = jnp.maximum(act[:, a0:a0 + 2 * Wo, :], act[:, b0:b0 + 2 * Wo, :])
                m = m.reshape(bt, Wo, 2, cout)
                prows.append(jnp.maximum(m[:, :, 0, :], m[:, :, 1, :]))  # (bt, Wo, cout)

            if l < 3:
                # Pooled rows become the interior of the next layer's padded scratch.
                Wn = dims[l + 1][1]           # == Wo
                Wpn = Wn + 2
                for r in range(Ho):
                    o = (r + 1) * Wpn + 1
                    pads[l + 1][:, o:o + Wn, :] = prows[r].astype(jnp.bfloat16)
            else:
                if hw_final == 1:
                    out_ref[...] = prows[0].astype(out_ref.dtype)          # (bt, 1, cout)
                else:
                    z = jnp.concatenate(prows, axis=1) if len(prows) > 1 else prows[0]
                    # channel-major so the host-side view(N, -1) is a free reshape
                    out_ref[...] = jnp.transpose(z, (0, 2, 1)).astype(out_ref.dtype)

    return kernel


class TREClassifierPallas:
    """JAX/Pallas port of TREClassifier forward (eval mode), fused into one TPU kernel."""

    def __init__(self, layer_size=64, num_channels=1, keep_prob=1.0,
                 image_size=28, key=None, eps=1e-5):
        del keep_prob  # Dropout is identity in eval mode.
        key = jax.random.PRNGKey(0) if key is None else key
        self.layer_size = layer_size
        self.num_channels = num_channels
        self.eps = eps
        self.cins = [num_channels, layer_size, layer_size, layer_size]
        self.raw_params = []      # f32 params for the pure-JAX reference
        self.weights_flat = []    # (9*Cin, Cout) bf16 conv weights, tap-major / cin-minor
        prm_rows = []
        cin = num_channels
        for _ in range(4):
            key, k1, k2, k3, k4, k5, k6 = jax.random.split(key, 7)
            w = 0.1 * jax.random.normal(k1, (3, 3, cin, layer_size), jnp.float32)
            cb = 0.05 * jax.random.normal(k2, (layer_size,), jnp.float32)
            gamma = 1.0 + 0.1 * jax.random.normal(k3, (layer_size,), jnp.float32)
            beta = 0.1 * jax.random.normal(k4, (layer_size,), jnp.float32)
            mean = 0.1 * jax.random.normal(k5, (layer_size,), jnp.float32)
            var = 1.0 + jnp.abs(0.1 * jax.random.normal(k6, (layer_size,), jnp.float32))
            self.raw_params.append((w, cb, gamma, beta, mean, var))
            scale = gamma / jnp.sqrt(var + eps)
            bias = beta - mean * scale
            self.weights_flat.append(w.reshape(9 * cin, layer_size).astype(jnp.bfloat16))
            prm_rows.append(jnp.stack([cb, scale, bias], axis=0))   # (3, C)
            cin = layer_size
        self.prm = jnp.stack(prm_rows, axis=0).astype(jnp.float32)  # (4, 3, C)
        final = int(math.floor(image_size / (2 * 2 * 2 * 2)))
        self.outSize = final * final * layer_size

    @staticmethod
    def _dims(H, W):
        dims = []
        h, w = H, W
        for _ in range(4):
            dims.append((h, w))
            h, w = h // 2, w // 2
        return dims, (h, w)

    def _per_image_vmem_bytes(self, dims):
        total = 0
        C = self.layer_size
        for (hh, ww), cin in zip(dims, self.cins):
            _, _, Lq, P = _layer_geom(hh, ww)
            total += P * cin * 2          # padded activation (bf16)
            total += Lq * 9 * cin * 2     # im2col patch (bf16)
            total += 2 * Lq * C * 4       # conv-output f32 value (+ slack)
        return total

    def forward(self, image_nchw):
        # PyTorch input is NCHW; kernel layout is NHWC (channels on the lane axis).
        x = jnp.transpose(image_nchw, (0, 2, 3, 1)).astype(jnp.float32)
        N, H, W, Cin0 = x.shape
        C = self.layer_size
        dims, (Hf, Wf) = self._dims(H, W)
        hw = Hf * Wf
        assert hw >= 1, "image_size too small for four 2x2 pooling stages"

        # Batch tile from a VMEM budget (divisor of N); keep an even grid of >= 2 steps
        # when the whole batch would otherwise be a single step, so a 2-TC chip can split.
        per_img = self._per_image_vmem_bytes(dims)
        budget = 20 * 1024 * 1024
        divisors = [d for d in range(1, N + 1) if N % d == 0]
        fits = [d for d in divisors if d * per_img <= budget]
        bt = max(fits) if fits else 1
        if N // bt == 1 and N >= 2 and N % 2 == 0:
            bt = N // 2
        nsteps = N // bt

        scratch = []
        for (hh, ww), cin in zip(dims, self.cins):
            _, _, _, P = _layer_geom(hh, ww)
            scratch.append(pltpu.VMEM((bt, P, cin), jnp.bfloat16))      # padded activations
        for (hh, ww), cin in zip(dims, self.cins):
            _, _, Lq, _ = _layer_geom(hh, ww)
            scratch.append(pltpu.VMEM((bt, Lq, 9 * cin), jnp.bfloat16))  # im2col patches

        if hw == 1:
            out_shape = jax.ShapeDtypeStruct((N, 1, C), jnp.float32)
            out_spec = pl.BlockSpec((bt, 1, C), lambda n: (n, 0, 0))
        else:
            out_shape = jax.ShapeDtypeStruct((N, C, hw), jnp.float32)
            out_spec = pl.BlockSpec((bt, C, hw), lambda n: (n, 0, 0))

        kernel = _make_kernel(tuple(dims), tuple(self.cins), C, bt, hw)

        out = pl.pallas_call(
            kernel,
            out_shape=out_shape,
            grid_spec=pltpu.PrefetchScalarGridSpec(
                num_scalar_prefetch=0,
                grid=(nsteps,),
                in_specs=[
                    pl.BlockSpec((bt, H, W, Cin0), lambda n: (n, 0, 0, 0)),
                    pl.BlockSpec(self.weights_flat[0].shape, lambda n: (0, 0)),
                    pl.BlockSpec(self.weights_flat[1].shape, lambda n: (0, 0)),
                    pl.BlockSpec(self.weights_flat[2].shape, lambda n: (0, 0)),
                    pl.BlockSpec(self.weights_flat[3].shape, lambda n: (0, 0)),
                    pl.BlockSpec(self.prm.shape, lambda n: (0, 0, 0)),
                ],
                out_specs=out_spec,
                scratch_shapes=scratch,
            ),
            compiler_params=pltpu.CompilerParams(
                dimension_semantics=("parallel",),
                # above every generation's scoped default, below every physical VMEM size
                vmem_limit_bytes=48 * 1024 * 1024,
            ),
        )(x, *self.weights_flat, self.prm)

        # Kernel already emits channel-major layout, so PyTorch's x.view(N, -1) is a
        # free (metadata-only) reshape here — no extra HBM transpose pass.
        return out.reshape(N, -1)


def _reference_forward(x_nchw, raw_params, eps=1e-5):
    """Pure-JAX reference with the same precision policy as the kernel
    (bf16 conv operands, f32 accumulation, f32 elementwise)."""
    x = jnp.transpose(x_nchw, (0, 2, 3, 1)).astype(jnp.float32)
    for (w, cb, gamma, beta, mean, var) in raw_params:
        y = jax.lax.conv_general_dilated(
            x.astype(jnp.bfloat16), w.astype(jnp.bfloat16),
            window_strides=(1, 1), padding=((1, 1), (1, 1)),
            dimension_numbers=("NHWC", "HWIO", "NHWC"),
            preferred_element_type=jnp.float32)
        y = jnp.maximum(y + cb, 0.0)
        scale = gamma / jnp.sqrt(var + eps)
        y = y * scale + (beta - mean * scale)
        x = jax.lax.reduce_window(y, -jnp.inf, jax.lax.max,
                                  (1, 2, 2, 1), (1, 2, 2, 1), "VALID")
    x = jnp.transpose(x, (0, 3, 1, 2))
    return x.reshape(x.shape[0], -1)


if __name__ == "__main__":
    key = jax.random.PRNGKey(0)
    k_in, k_params = jax.random.split(key)

    batch, num_channels, image_size, layer_size = 2, 4, 16, 32
    x = jax.random.normal(k_in, (batch, num_channels, image_size, image_size),
                          dtype=jnp.float32)

    model = TREClassifierPallas(layer_size=layer_size,
                                num_channels=num_channels,
                                keep_prob=1.0,
                                image_size=image_size,
                                key=k_params)

    out = jax.block_until_ready(model.forward(x))

    assert out.shape == (batch, model.outSize), (out.shape, model.outSize)
    assert bool(jnp.all(jnp.isfinite(out)))

    ref = jax.block_until_ready(_reference_forward(x, model.raw_params, eps=model.eps))
    rel_err = float(jnp.max(jnp.abs(out - ref)) / (jnp.max(jnp.abs(ref)) + 1e-6))
    assert rel_err < 1e-2, rel_err

    print("KERNEL_OK")
</pallas_src>

<mosaic_0001>
module attributes {stable_mosaic.version = 11 : i64} {
  func.func @kernel(%arg0: i32, %arg1: memref<1x16x16x4xf32, #tpu.memory_space<vmem>>, %arg2: memref<36x32xbf16, #tpu.memory_space<vmem>>, %arg3: memref<288x32xbf16, #tpu.memory_space<vmem>>, %arg4: memref<288x32xbf16, #tpu.memory_space<vmem>>, %arg5: memref<288x32xbf16, #tpu.memory_space<vmem>>, %arg6: memref<4x3x32xf32, #tpu.memory_space<vmem>>, %arg7: memref<1x1x32xf32, #tpu.memory_space<vmem>>, %arg8: memref<1x328x4xbf16, #tpu.memory_space<vmem>>, %arg9: memref<1x104x32xbf16, #tpu.memory_space<vmem>>, %arg10: memref<1x40x32xbf16, #tpu.memory_space<vmem>>, %arg11: memref<1x24x32xbf16, #tpu.memory_space<vmem>>, %arg12: memref<1x288x36xbf16, #tpu.memory_space<vmem>>, %arg13: memref<1x80x288xbf16, #tpu.memory_space<vmem>>, %arg14: memref<1x24x288xbf16, #tpu.memory_space<vmem>>, %arg15: memref<1x8x288xbf16, #tpu.memory_space<vmem>>) attributes {dimension_semantics = [#tpu.dimension_semantics<parallel>], iteration_bounds = array<i64: 2>, scalar_prefetch = 0 : i64, scratch_operands = 8 : i64, tpu.core_type = #tpu.core_type<tc>, window_params = [{transform_indices = @transform_0, window_bounds = array<i64: 1, 16, 16, 4>}, {pipeline_mode = #tpu.pipeline_mode<synchronous>, transform_indices = @transform_1, window_bounds = array<i64: 36, 32>}, {pipeline_mode = #tpu.pipeline_mode<synchronous>, transform_indices = @transform_2, window_bounds = array<i64: 288, 32>}, {pipeline_mode = #tpu.pipeline_mode<synchronous>, transform_indices = @transform_3, window_bounds = array<i64: 288, 32>}, {pipeline_mode = #tpu.pipeline_mode<synchronous>, transform_indices = @transform_4, window_bounds = array<i64: 288, 32>}, {pipeline_mode = #tpu.pipeline_mode<synchronous>, transform_indices = @transform_5, window_bounds = array<i64: 4, 3, 32>}, {transform_indices = @transform_6, window_bounds = array<i64: 1, 1, 32>}]} {
    %cst = arith.constant 0.000000e+00 : bf16
    %0 = vector.broadcast %cst : bf16 to vector<1x19x4xbf16>
    %c0 = arith.constant 0 : index
    %c0_0 = arith.constant 0 : index
    %c0_1 = arith.constant 0 : index
    %1 = vector.load %arg8[%c0, %c0_0, %c0_1] : memref<1x328x4xbf16, #tpu.memory_space<vmem>>, vector<1x19x4xbf16>
    tpu.vector_store %arg8[%c0, %c0_0, %c0_1], %0 {strides = array<i32>} : memref<1x328x4xbf16, #tpu.memory_space<vmem>>, vector<1x19x4xbf16>,
    %cst_2 = arith.constant 0.000000e+00 : bf16
    %2 = vector.broadcast %cst_2 : bf16 to vector<1x2x4xbf16>
    %c0_3 = arith.constant 0 : index
    %c35 = arith.constant 35 : index
    %c0_4 = arith.constant 0 : index
    %3 = vector.load %arg8[%c0_3, %c35, %c0_4] : memref<1x328x4xbf16, #tpu.memory_space<vmem>>, vector<1x2x4xbf16>
    tpu.vector_store %arg8[%c0_3, %c35, %c0_4], %2 {strides = array<i32>} : memref<1x328x4xbf16, #tpu.memory_space<vmem>>, vector<1x2x4xbf16>,
    %cst_5 = arith.constant 0.000000e+00 : bf16
    %4 = vector.broadcast %cst_5 : bf16 to vector<1x2x4xbf16>
    %c0_6 = arith.constant 0 : index
    %c53 = arith.constant 53 : index
    %c0_7 = arith.constant 0 : index
    %5 = vector.load %arg8[%c0_6, %c53, %c0_7] : memref<1x328x4xbf16, #tpu.memory_space<vmem>>, vector<1x2x4xbf16>
    tpu.vector_store %arg8[%c0_6, %c53, %c0_7], %4 {strides = array<i32>} : memref<1x328x4xbf16, #tpu.memory_space<vmem>>, vector<1x2x4xbf16>,
    %cst_8 = arith.constant 0.000000e+00 : bf16
    %6 = vector.broadcast %cst_8 : bf16 to vector<1x2x4xbf16>
    %c0_9 = arith.constant 0 : index
    %c71 = arith.constant 71 : index
    %c0_10 = arith.constant 0 : index
    %7 = vector.load %arg8[%c0_9, %c71, %c0_10] : memref<1x328x4xbf16, #tpu.memory_space<vmem>>, vector<1x2x4xbf16>
    tpu.vector_store %arg8[%c0_9, %c71, %c0_10], %6 {strides = array<i32>} : memref<1x328x4xbf16, #tpu.memory_space<vmem>>, vector<1x2x4xbf16>,
    %cst_11 = arith.constant 0.000000e+00 : bf16
    %8 = vector.broadcast %cst_11 : bf16 to vector<1x2x4xbf16>
    %c0_12 = arith.constant 0 : index
    %c89 = arith.constant 89 : index
    %c0_13 = arith.constant 0 : index
    %9 = vector.load %arg8[%c0_12, %c89, %c0_13] : memref<1x328x4xbf16, #tpu.memory_space<vmem>>, vector<1x2x4xbf16>
    tpu.vector_store %arg8[%c0_12, %c89, %c0_13], %8 {strides = array<i32>} : memref<1x328x4xbf16, #tpu.memory_space<vmem>>, vector<1x2x4xbf16>,
    %cst_14 = arith.constant 0.000000e+00 : bf16
    %10 = vector.broadcast %cst_14 : bf16 to vector<1x2x4xbf16>
    %c0_15 = arith.constant 0 : index
    %c107 = arith.constant 107 : index
    %c0_16 = arith.constant 0 : index
    %11 = vector.load %arg8[%c0_15, %c107, %c0_16] : memref<1x328x4xbf16, #tpu.memory_space<vmem>>, vector<1x2x4xbf16>
    tpu.vector_store %arg8[%c0_15, %c107, %c0_16], %10 {strides = array<i32>} : memref<1x328x4xbf16, #tpu.memory_space<vmem>>, vector<1x2x4xbf16>,
    %cst_17 = arith.constant 0.000000e+00 : bf16
    %12 = vector.broadcast %cst_17 : bf16 to vector<1x2x4xbf16>
    %c0_18 = arith.constant 0 : index
    %c125 = arith.constant 125 : index
    %c0_19 = arith.constant 0 : index
    %13 = vector.load %arg8[%c0_18, %c125, %c0_19] : memref<1x328x4xbf16, #tpu.memory_space<vmem>>, vector<1x2x4xbf16>
    tpu.vector_store %arg8[%c0_18, %c125, %c0_19], %12 {strides = array<i32>} : memref<1x328x4xbf16, #tpu.memory_space<vmem>>, vector<1x2x4xbf16>,
    %cst_20 = arith.constant 0.000000e+00 : bf16
    %14 = vector.broadcast %cst_20 : bf16 to vector<1x2x4xbf16>
    %c0_21 = arith.constant 0 : index
    %c143 = arith.constant 143 : index
    %c0_22 = arith.constant 0 : index
    %15 = vector.load %arg8[%c0_21, %c143, %c0_22] : memref<1x328x4xbf16, #tpu.memory_space<vmem>>, vector<1x2x4xbf16>
    tpu.vector_store %arg8[%c0_21, %c143, %c0_22], %14 {strides = array<i32>} : memref<1x328x4xbf16, #tpu.memory_space<vmem>>, vector<1x2x4xbf16>,
    %cst_23 = arith.constant 0.000000e+00 : bf16
    %16 = vector.broadcast %cst_23 : bf16 to vector<1x2x4xbf16>
    %c0_24 = arith.constant 0 : index
    %c161 = arith.constant 161 : index
    %c0_25 = arith.constant 0 : index
    %17 = vector.load %arg8[%c0_24, %c161, %c0_25] : memref<1x328x4xbf16, #tpu.memory_space<vmem>>, vector<1x2x4xbf16>
    tpu.vector_store %arg8[%c0_24, %c161, %c0_25], %16 {strides = array<i32>} : memref<1x328x4xbf16, #tpu.memory_space<vmem>>, vector<1x2x4xbf16>,
    %cst_26 = arith.constant 0.000000e+00 : bf16
    %18 = vector.broadcast %cst_26 : bf16 to vector<1x2x4xbf16>
    %c0_27 = arith.constant 0 : index
    %c179 = arith.constant 179 : index
    %c0_28 = arith.constant 0 : index
    %19 = vector.load %arg8[%c0_27, %c179, %c0_28] : memref<1x328x4xbf16, #tpu.memory_space<vmem>>, vector<1x2x4xbf16>
    tpu.vector_store %arg8[%c0_27, %c179, %c0_28], %18 {strides = array<i32>} : memref<1x328x4xbf16, #tpu.memory_space<vmem>>, vector<1x2x4xbf16>,
    %cst_29 = arith.constant 0.000000e+00 : bf16
    %20 = vector.broadcast %cst_29 : bf16 to vector<1x2x4xbf16>
    %c0_30 = arith.constant 0 : index
    %c197 = arith.constant 197 : index
    %c0_31 = arith.constant 0 : index
    %21 = vector.load %arg8[%c0_30, %c197, %c0_31] : memref<1x328x4xbf16, #tpu.memory_space<vmem>>, vector<1x2x4xbf16>
    tpu.vector_store %arg8[%c0_30, %c197, %c0_31], %20 {strides = array<i32>} : memref<1x328x4xbf16, #tpu.memory_space<vmem>>, vector<1x2x4xbf16>,
    %cst_32 = arith.constant 0.000000e+00 : bf16
    %22 = vector.broadcast %cst_32 : bf16 to vector<1x2x4xbf16>
    %c0_33 = arith.constant 0 : index
    %c215 = arith.constant 215 : index
    %c0_34 = arith.constant 0 : index
    %23 = vector.load %arg8[%c0_33, %c215, %c0_34] : memref<1x328x4xbf16, #tpu.memory_space<vmem>>, vector<1x2x4xbf16>
    tpu.vector_store %arg8[%c0_33, %c215, %c0_34], %22 {strides = array<i32>} : memref<1x328x4xbf16, #tpu.memory_space<vmem>>, vector<1x2x4xbf16>,
    %cst_35 = arith.constant 0.000000e+00 : bf16
    %24 = vector.broadcast %cst_35 : bf16 to vector<1x2x4xbf16>
    %c0_36 = arith.constant 0 : index
    %c233 = arith.constant 233 : index
    %c0_37 = arith.constant 0 : index
    %25 = vector.load %arg8[%c0_36, %c233, %c0_37] : memref<1x328x4xbf16, #tpu.memory_space<vmem>>, vector<1x2x4xbf16>
    tpu.vector_store %arg8[%c0_36, %c233, %c0_37], %24 {strides = array<i32>} : memref<1x328x4xbf16, #tpu.memory_space<vmem>>, vector<1x2x4xbf16>,
    %cst_38 = arith.constant 0.000000e+00 : bf16
    %26 = vector.broadcast %cst_38 : bf16 to vector<1x2x4xbf16>
    %c0_39 = arith.constant 0 : index
    %c251 = arith.constant 251 : index
    %c0_40 = arith.constant 0 : index
    %27 = vector.load %arg8[%c0_39, %c251, %c0_40] : memref<1x328x4xbf16, #tpu.memory_space<vmem>>, vector<1x2x4xbf16>
    tpu.vector_store %arg8[%c0_39, %c251, %c0_40], %26 {strides = array<i32>} : memref<1x328x4xbf16, #tpu.memory_space<vmem>>, vector<1x2x4xbf16>,
    %cst_41 = arith.constant 0.000000e+00 : bf16
    %28 = vector.broadcast %cst_41 : bf16 to vector<1x2x4xbf16>
    %c0_42 = arith.constant 0 : index
    %c269 = arith.constant 269 : index
    %c0_43 = arith.constant 0 : index
    %29 = vector.load %arg8[%c0_42, %c269, %c0_43] : memref<1x328x4xbf16, #tpu.memory_space<vmem>>, vector<1x2x4xbf16>
    tpu.vector_store %arg8[%c0_42, %c269, %c0_43], %28 {strides = array<i32>} : memref<1x328x4xbf16, #tpu.memory_space<vmem>>, vector<1x2x4xbf16>,
    %cst_44 = arith.constant 0.000000e+00 : bf16
    %30 = vector.broadcast %cst_44 : bf16 to vector<1x2x4xbf16>
    %c0_45 = arith.constant 0 : index
    %c287 = arith.constant 287 : index
    %c0_46 = arith.constant 0 : index
    %31 = vector.load %arg8[%c0_45, %c287, %c0_46] : memref<1x328x4xbf16, #tpu.memory_space<vmem>>, vector<1x2x4xbf16>
    tpu.vector_store %arg8[%c0_45, %c287, %c0_46], %30 {strides = array<i32>} : memref<1x328x4xbf16, #tpu.memory_space<vmem>>, vector<1x2x4xbf16>,
    %cst_47 = arith.constant 0.000000e+00 : bf16
    %32 = vector.broadcast %cst_47 : bf16 to vector<1x23x4xbf16>
    %c0_48 = arith.constant 0 : index
    %c305 = arith.constant 305 : index
    %c0_49 = arith.constant 0 : index
    %33 = vector.load %arg8[%c0_48, %c305, %c0_49] : memref<1x328x4xbf16, #tpu.memory_space<vmem>>, vector<1x23x4xbf16>
    tpu.vector_store %arg8[%c0_48, %c305, %c0_49], %32 {strides = array<i32>} : memref<1x328x4xbf16, #tpu.memory_space<vmem>>, vector<1x23x4xbf16>,
    %cst_50 = arith.constant 0.000000e+00 : bf16
    %34 = vector.broadcast %cst_50 : bf16 to vector<1x11x32xbf16>
    %c0_51 = arith.constant 0 : index
    %c0_52 = arith.constant 0 : index
    %c0_53 = arith.constant 0 : index
    %35 = vector.load %arg9[%c0_51, %c0_52, %c0_53] : memref<1x104x32xbf16, #tpu.memory_space<vmem>>, vector<1x11x32xbf16>
    tpu.vector_store %arg9[%c0_51, %c0_52, %c0_53], %34 {strides = array<i32>} : memref<1x104x32xbf16, #tpu.memory_space<vmem>>, vector<1x11x32xbf16>,
    %cst_54 = arith.constant 0.000000e+00 : bf16
    %36 = vector.broadcast %cst_54 : bf16 to vector<1x2x32xbf16>
    %c0_55 = arith.constant 0 : index
    %c19 = arith.constant 19 : index
    %c0_56 = arith.constant 0 : index
    %37 = vector.load %arg9[%c0_55, %c19, %c0_56] : memref<1x104x32xbf16, #tpu.memory_space<vmem>>, vector<1x2x32xbf16>
    tpu.vector_store %arg9[%c0_55, %c19, %c0_56], %36 {strides = array<i32>} : memref<1x104x32xbf16, #tpu.memory_space<vmem>>, vector<1x2x32xbf16>,
    %cst_57 = arith.constant 0.000000e+00 : bf16
    %38 = vector.broadcast %cst_57 : bf16 to vector<1x2x32xbf16>
    %c0_58 = arith.constant 0 : index
    %c29 = arith.constant 29 : index
    %c0_59 = arith.constant 0 : index
    %39 = vector.load %arg9[%c0_58, %c29, %c0_59] : memref<1x104x32xbf16, #tpu.memory_space<vmem>>, vector<1x2x32xbf16>
    tpu.vector_store %arg9[%c0_58, %c29, %c0_59], %38 {strides = array<i32>} : memref<1x104x32xbf16, #tpu.memory_space<vmem>>, vector<1x2x32xbf16>,
    %cst_60 = arith.constant 0.000000e+00 : bf16
    %40 = vector.broadcast %cst_60 : bf16 to vector<1x2x32xbf16>
    %c0_61 = arith.constant 0 : index
    %c39 = arith.constant 39 : index
    %c0_62 = arith.constant 0 : index
    %41 = vector.load %arg9[%c0_61, %c39, %c0_62] : memref<1x104x32xbf16, #tpu.memory_space<vmem>>, vector<1x2x32xbf16>
    tpu.vector_store %arg9[%c0_61, %c39, %c0_62], %40 {strides = array<i32>} : memref<1x104x32xbf16, #tpu.memory_space<vmem>>, vector<1x2x32xbf16>,
    %cst_63 = arith.constant 0.000000e+00 : bf16
    %42 = vector.broadcast %cst_63 : bf16 to vector<1x2x32xbf16>
    %c0_64 = arith.constant 0 : index
    %c49 = arith.constant 49 : index
    %c0_65 = arith.constant 0 : index
    %43 = vector.load %arg9[%c0_64, %c49, %c0_65] : memref<1x104x32xbf16, #tpu.memory_space<vmem>>, vector<1x2x32xbf16>
    tpu.vector_store %arg9[%c0_64, %c49, %c0_65], %42 {strides = array<i32>} : memref<1x104x32xbf16, #tpu.memory_space<vmem>>, vector<1x2x32xbf16>,
    %cst_66 = arith.constant 0.000000e+00 : bf16
    %44 = vector.broadcast %cst_66 : bf16 to vector<1x2x32xbf16>
    %c0_67 = arith.constant 0 : index
    %c59 = arith.constant 59 : index
    %c0_68 = arith.constant 0 : index
    %45 = vector.load %arg9[%c0_67, %c59, %c0_68] : memref<1x104x32xbf16, #tpu.memory_space<vmem>>, vector<1x2x32xbf16>
    tpu.vector_store %arg9[%c0_67, %c59, %c0_68], %44 {strides = array<i32>} : memref<1x104x32xbf16, #tpu.memory_space<vmem>>, vector<1x2x32xbf16>,
    %cst_69 = arith.constant 0.000000e+00 : bf16
    %46 = vector.broadcast %cst_69 : bf16 to vector<1x2x32xbf16>
    %c0_70 = arith.constant 0 : index
    %c69 = arith.constant 69 : index
    %c0_71 = arith.constant 0 : index
    %47 = vector.load %arg9[%c0_70, %c69, %c0_71] : memref<1x104x32xbf16, #tpu.memory_space<vmem>>, vector<1x2x32xbf16>
    tpu.vector_store %arg9[%c0_70, %c69, %c0_71], %46 {strides = array<i32>} : memref<1x104x32xbf16, #tpu.memory_space<vmem>>, vector<1x2x32xbf16>,
    %cst_72 = arith.constant 0.000000e+00 : bf16
    %48 = vector.broadcast %cst_72 : bf16 to vector<1x2x32xbf16>
    %c0_73 = arith.constant 0 : index
    %c79 = arith.constant 79 : index
    %c0_74 = arith.constant 0 : index
    %49 = vector.load %arg9[%c0_73, %c79, %c0_74] : memref<1x104x32xbf16, #tpu.memory_space<vmem>>, vector<1x2x32xbf16>
    tpu.vector_store %arg9[%c0_73, %c79, %c0_74], %48 {strides = array<i32>} : memref<1x104x32xbf16, #tpu.memory_space<vmem>>, vector<1x2x32xbf16>,
    %cst_75 = arith.constant 0.000000e+00 : bf16
    %50 = vector.broadcast %cst_75 : bf16 to vector<1x15x32xbf16>
    %c0_76 = arith.constant 0 : index
    %c89_77 = arith.constant 89 : index
    %c0_78 = arith.constant 0 : index
    %51 = vector.load %arg9[%c0_76, %c89_77, %c0_78] : memref<1x104x32xbf16, #tpu.memory_space<vmem>>, vector<1x15x32xbf16>
    tpu.vector_store %arg9[%c0_76, %c89_77, %c0_78], %50 {strides = array<i32>} : memref<1x104x32xbf16, #tpu.memory_space<vmem>>, vector<1x15x32xbf16>,
    %cst_79 = arith.constant 0.000000e+00 : bf16
    %52 = vector.broadcast %cst_79 : bf16 to vector<1x7x32xbf16>
    %c0_80 = arith.constant 0 : index
    %c0_81 = arith.constant 0 : index
    %c0_82 = arith.constant 0 : index
    %53 = vector.load %arg10[%c0_80, %c0_81, %c0_82] : memref<1x40x32xbf16, #tpu.memory_space<vmem>>, vector<1x7x32xbf16>
    tpu.vector_store %arg10[%c0_80, %c0_81, %c0_82], %52 {strides = array<i32>} : memref<1x40x32xbf16, #tpu.memory_space<vmem>>, vector<1x7x32xbf16>,
    %cst_83 = arith.constant 0.000000e+00 : bf16
    %54 = vector.broadcast %cst_83 : bf16 to vector<1x2x32xbf16>
    %c0_84 = arith.constant 0 : index
    %c11 = arith.constant 11 : index
    %c0_85 = arith.constant 0 : index
    %55 = vector.load %arg10[%c0_84, %c11, %c0_85] : memref<1x40x32xbf16, #tpu.memory_space<vmem>>, vector<1x2x32xbf16>
    tpu.vector_store %arg10[%c0_84, %c11, %c0_85], %54 {strides = array<i32>} : memref<1x40x32xbf16, #tpu.memory_space<vmem>>, vector<1x2x32xbf16>,
    %cst_86 = arith.constant 0.000000e+00 : bf16
    %56 = vector.broadcast %cst_86 : bf16 to vector<1x2x32xbf16>
    %c0_87 = arith.constant 0 : index
    %c17 = arith.constant 17 : index
    %c0_88 = arith.constant 0 : index
    %57 = vector.load %arg10[%c0_87, %c17, %c0_88] : memref<1x40x32xbf16, #tpu.memory_space<vmem>>, vector<1x2x32xbf16>
    tpu.vector_store %arg10[%c0_87, %c17, %c0_88], %56 {strides = array<i32>} : memref<1x40x32xbf16, #tpu.memory_space<vmem>>, vector<1x2x32xbf16>,
    %cst_89 = arith.constant 0.000000e+00 : bf16
    %58 = vector.broadcast %cst_89 : bf16 to vector<1x2x32xbf16>
    %c0_90 = arith.constant 0 : index
    %c23 = arith.constant 23 : index
    %c0_91 = arith.constant 0 : index
    %59 = vector.load %arg10[%c0_90, %c23, %c0_91] : memref<1x40x32xbf16, #tpu.memory_space<vmem>>, vector<1x2x32xbf16>
    tpu.vector_store %arg10[%c0_90, %c23, %c0_91], %58 {strides = array<i32>} : memref<1x40x32xbf16, #tpu.memory_space<vmem>>, vector<1x2x32xbf16>,
    %cst_92 = arith.constant 0.000000e+00 : bf16
    %60 = vector.broadcast %cst_92 : bf16 to vector<1x11x32xbf16>
    %c0_93 = arith.constant 0 : index
    %c29_94 = arith.constant 29 : index
    %c0_95 = arith.constant 0 : index
    %61 = vector.load %arg10[%c0_93, %c29_94, %c0_95] : memref<1x40x32xbf16, #tpu.memory_space<vmem>>, vector<1x11x32xbf16>
    tpu.vector_store %arg10[%c0_93, %c29_94, %c0_95], %60 {strides = array<i32>} : memref<1x40x32xbf16, #tpu.memory_space<vmem>>, vector<1x11x32xbf16>,
    %cst_96 = arith.constant 0.000000e+00 : bf16
    %62 = vector.broadcast %cst_96 : bf16 to vector<1x5x32xbf16>
    %c0_97 = arith.constant 0 : index
    %c0_98 = arith.constant 0 : index
    %c0_99 = arith.constant 0 : index
    %63 = vector.load %arg11[%c0_97, %c0_98, %c0_99] : memref<1x24x32xbf16, #tpu.memory_space<vmem>>, vector<1x5x32xbf16>
    tpu.vector_store %arg11[%c0_97, %c0_98, %c0_99], %62 {strides = array<i32>} : memref<1x24x32xbf16, #tpu.memory_space<vmem>>, vector<1x5x32xbf16>,
    %cst_100 = arith.constant 0.000000e+00 : bf16
    %64 = vector.broadcast %cst_100 : bf16 to vector<1x2x32xbf16>
    %c0_101 = arith.constant 0 : index
    %c7 = arith.constant 7 : index
    %c0_102 = arith.constant 0 : index
    %65 = vector.load %arg11[%c0_101, %c7, %c0_102] : memref<1x24x32xbf16, #tpu.memory_space<vmem>>, vector<1x2x32xbf16>
    tpu.vector_store %arg11[%c0_101, %c7, %c0_102], %64 {strides = array<i32>} : memref<1x24x32xbf16, #tpu.memory_space<vmem>>, vector<1x2x32xbf16>,
    %cst_103 = arith.constant 0.000000e+00 : bf16
    %66 = vector.broadcast %cst_103 : bf16 to vector<1x13x32xbf16>
    %c0_104 = arith.constant 0 : index
    %c11_105 = arith.constant 11 : index
    %c0_106 = arith.constant 0 : index
    %67 = vector.load %arg11[%c0_104, %c11_105, %c0_106] : memref<1x24x32xbf16, #tpu.memory_space<vmem>>, vector<1x13x32xbf16>
    tpu.vector_store %arg11[%c0_104, %c11_105, %c0_106], %66 {strides = array<i32>} : memref<1x24x32xbf16, #tpu.memory_space<vmem>>, vector<1x13x32xbf16>,
    %c0_107 = arith.constant 0 : index
    %c0_108 = arith.constant 0 : index
    %c0_109 = arith.constant 0 : index
    %c0_110 = arith.constant 0 : index
    %68 = vector.load %arg1[%c0_107, %c0_108, %c0_109, %c0_110] : memref<1x16x16x4xf32, #tpu.memory_space<vmem>>, vector<1x16x16x4xf32>
    %69 = vector.extract_strided_slice %68 {offsets = [0, 0, 0, 0], sizes = [1, 1, 16, 4], strides = [1, 1, 1, 1]} : vector<1x16x16x4xf32> to vector<1x1x16x4xf32>
    %70 = vector.shape_cast %69 : vector<1x1x16x4xf32> to vector<1x16x4xf32>
    %71 = arith.truncf %70 : vector<1x16x4xf32> to vector<1x16x4xbf16>
    %c0_111 = arith.constant 0 : index
    %c19_112 = arith.constant 19 : index
    %c0_113 = arith.constant 0 : index
    %72 = vector.load %arg8[%c0_111, %c19_112, %c0_113] : memref<1x328x4xbf16, #tpu.memory_space<vmem>>, vector<1x16x4xbf16>
    tpu.vector_store %arg8[%c0_111, %c19_112, %c0_113], %71 {strides = array<i32>} : memref<1x328x4xbf16, #tpu.memory_space<vmem>>, vector<1x16x4xbf16>,
    %73 = vector.extract_strided_slice %68 {offsets = [0, 1, 0, 0], sizes = [1, 1, 16, 4], strides = [1, 1, 1, 1]} : vector<1x16x16x4xf32> to vector<1x1x16x4xf32>
    %74 = vector.shape_cast %73 : vector<1x1x16x4xf32> to vector<1x16x4xf32>
    %75 = arith.truncf %74 : vector<1x16x4xf32> to vector<1x16x4xbf16>
    %c0_114 = arith.constant 0 : index
    %c37 = arith.constant 37 : index
    %c0_115 = arith.constant 0 : index
    %76 = vector.load %arg8[%c0_114, %c37, %c0_115] : memref<1x328x4xbf16, #tpu.memory_space<vmem>>, vector<1x16x4xbf16>
    tpu.vector_store %arg8[%c0_114, %c37, %c0_115], %75 {strides = array<i32>} : memref<1x328x4xbf16, #tpu.memory_space<vmem>>, vector<1x16x4xbf16>,
    %77 = vector.extract_strided_slice %68 {offsets = [0, 2, 0, 0], sizes = [1, 1, 16, 4], strides = [1, 1, 1, 1]} : vector<1x16x16x4xf32> to vector<1x1x16x4xf32>
    %78 = vector.shape_cast %77 : vector<1x1x16x4xf32> to vector<1x16x4xf32>
    %79 = arith.truncf %78 : vector<1x16x4xf32> to vector<1x16x4xbf16>
    %c0_116 = arith.constant 0 : index
    %c55 = arith.constant 55 : index
    %c0_117 = arith.constant 0 : index
    %80 = vector.load %arg8[%c0_116, %c55, %c0_117] : memref<1x328x4xbf16, #tpu.memory_space<vmem>>, vector<1x16x4xbf16>
    tpu.vector_store %arg8[%c0_116, %c55, %c0_117], %79 {strides = array<i32>} : memref<1x328x4xbf16, #tpu.memory_space<vmem>>, vector<1x16x4xbf16>,
    %81 = vector.extract_strided_slice %68 {offsets = [0, 3, 0, 0], sizes = [1, 1, 16, 4], strides = [1, 1, 1, 1]} : vector<1x16x16x4xf32> to vector<1x1x16x4xf32>
    %82 = vector.shape_cast %81 : vector<1x1x16x4xf32> to vector<1x16x4xf32>
    %83 = arith.truncf %82 : vector<1x16x4xf32> to vector<1x16x4xbf16>
    %c0_118 = arith.constant 0 : index
    %c73 = arith.constant 73 : index
    %c0_119 = arith.constant 0 : index
    %84 = vector.load %arg8[%c0_118, %c73, %c0_119] : memref<1x328x4xbf16, #tpu.memory_space<vmem>>, vector<1x16x4xbf16>
    tpu.vector_store %arg8[%c0_118, %c73, %c0_119], %83 {strides = array<i32>} : memref<1x328x4xbf16, #tpu.memory_space<vmem>>, vector<1x16x4xbf16>,
    %85 = vector.extract_strided_slice %68 {offsets = [0, 4, 0, 0], sizes = [1, 1, 16, 4], strides = [1, 1, 1, 1]} : vector<1x16x16x4xf32> to vector<1x1x16x4xf32>
    %86 = vector.shape_cast %85 : vector<1x1x16x4xf32> to vector<1x16x4xf32>
    %87 = arith.truncf %86 : vector<1x16x4xf32> to vector<1x16x4xbf16>
    %c0_120 = arith.constant 0 : index
    %c91 = arith.constant 91 : index
    %c0_121 = arith.constant 0 : index
    %88 = vector.load %arg8[%c0_120, %c91, %c0_121] : memref<1x328x4xbf16, #tpu.memory_space<vmem>>, vector<1x16x4xbf16>
    tpu.vector_store %arg8[%c0_120, %c91, %c0_121], %87 {strides = array<i32>} : memref<1x328x4xbf16, #tpu.memory_space<vmem>>, vector<1x16x4xbf16>,
    %89 = vector.extract_strided_slice %68 {offsets = [0, 5, 0, 0], sizes = [1, 1, 16, 4], strides = [1, 1, 1, 1]} : vector<1x16x16x4xf32> to vector<1x1x16x4xf32>
    %90 = vector.shape_cast %89 : vector<1x1x16x4xf32> to vector<1x16x4xf32>
    %91 = arith.truncf %90 : vector<1x16x4xf32> to vector<1x16x4xbf16>
    %c0_122 = arith.constant 0 : index
    %c109 = arith.constant 109 : index
    %c0_123 = arith.constant 0 : index
    %92 = vector.load %arg8[%c0_122, %c109, %c0_123] : memref<1x328x4xbf16, #tpu.memory_space<vmem>>, vector<1x16x4xbf16>
    tpu.vector_store %arg8[%c0_122, %c109, %c0_123], %91 {strides = array<i32>} : memref<1x328x4xbf16, #tpu.memory_space<vmem>>, vector<1x16x4xbf16>,
    %93 = vector.extract_strided_slice %68 {offsets = [0, 6, 0, 0], sizes = [1, 1, 16, 4], strides = [1, 1, 1, 1]} : vector<1x16x16x4xf32> to vector<1x1x16x4xf32>
    %94 = vector.shape_cast %93 : vector<1x1x16x4xf32> to vector<1x16x4xf32>
    %95 = arith.truncf %94 : vector<1x16x4xf32> to vector<1x16x4xbf16>
    %c0_124 = arith.constant 0 : index
    %c127 = arith.constant 127 : index
    %c0_125 = arith.constant 0 : index
    %96 = vector.load %arg8[%c0_124, %c127, %c0_125] : memref<1x328x4xbf16, #tpu.memory_space<vmem>>, vector<1x16x4xbf16>
    tpu.vector_store %arg8[%c0_124, %c127, %c0_125], %95 {strides = array<i32>} : memref<1x328x4xbf16, #tpu.memory_space<vmem>>, vector<1x16x4xbf16>,
    %97 = vector.extract_strided_slice %68 {offsets = [0, 7, 0, 0], sizes = [1, 1, 16, 4], strides = [1, 1, 1, 1]} : vector<1x16x16x4xf32> to vector<1x1x16x4xf32>
    %98 = vector.shape_cast %97 : vector<1x1x16x4xf32> to vector<1x16x4xf32>
    %99 = arith.truncf %98 : vector<1x16x4xf32> to vector<1x16x4xbf16>
    %c0_126 = arith.constant 0 : index
    %c145 = arith.constant 145 : index
    %c0_127 = arith.constant 0 : index
    %100 = vector.load %arg8[%c0_126, %c145, %c0_127] : memref<1x328x4xbf16, #tpu.memory_space<vmem>>, vector<1x16x4xbf16>
    tpu.vector_store %arg8[%c0_126, %c145, %c0_127], %99 {strides = array<i32>} : memref<1x328x4xbf16, #tpu.memory_space<vmem>>, vector<1x16x4xbf16>,
    %101 = vector.extract_strided_slice %68 {offsets = [0, 8, 0, 0], sizes = [1, 1, 16, 4], strides = [1, 1, 1, 1]} : vector<1x16x16x4xf32> to vector<1x1x16x4xf32>
    %102 = vector.shape_cast %101 : vector<1x1x16x4xf32> to vector<1x16x4xf32>
    %103 = arith.truncf %102 : vector<1x16x4xf32> to vector<1x16x4xbf16>
    %c0_128 = arith.constant 0 : index
    %c163 = arith.constant 163 : index
    %c0_129 = arith.constant 0 : index
    %104 = vector.load %arg8[%c0_128, %c163, %c0_129] : memref<1x328x4xbf16, #tpu.memory_space<vmem>>, vector<1x16x4xbf16>
    tpu.vector_store %arg8[%c0_128, %c163, %c0_129], %103 {strides = array<i32>} : memref<1x328x4xbf16, #tpu.memory_space<vmem>>, vector<1x16x4xbf16>,
    %105 = vector.extract_strided_slice %68 {offsets = [0, 9, 0, 0], sizes = [1, 1, 16, 4], strides = [1, 1, 1, 1]} : vector<1x16x16x4xf32> to vector<1x1x16x4xf32>
    %106 = vector.shape_cast %105 : vector<1x1x16x4xf32> to vector<1x16x4xf32>
    %107 = arith.truncf %106 : vector<1x16x4xf32> to vector<1x16x4xbf16>
    %c0_130 = arith.constant 0 : index
    %c181 = arith.constant 181 : index
    %c0_131 = arith.constant 0 : index
    %108 = vector.load %arg8[%c0_130, %c181, %c0_131] : memref<1x328x4xbf16, #tpu.memory_space<vmem>>, vector<1x16x4xbf16>
    tpu.vector_store %arg8[%c0_130, %c181, %c0_131], %107 {strides = array<i32>} : memref<1x328x4xbf16, #tpu.memory_space<vmem>>, vector<1x16x4xbf16>,
    %109 = vector.extract_strided_slice %68 {offsets = [0, 10, 0, 0], sizes = [1, 1, 16, 4], strides = [1, 1, 1, 1]} : vector<1x16x16x4xf32> to vector<1x1x16x4xf32>
    %110 = vector.shape_cast %109 : vector<1x1x16x4xf32> to vector<1x16x4xf32>
    %111 = arith.truncf %110 : vector<1x16x4xf32> to vector<1x16x4xbf16>
    %c0_132 = arith.constant 0 : index
    %c199 = arith.constant 199 : index
    %c0_133 = arith.constant 0 : index
    %112 = vector.load %arg8[%c0_132, %c199, %c0_133] : memref<1x328x4xbf16, #tpu.memory_space<vmem>>, vector<1x16x4xbf16>
    tpu.vector_store %arg8[%c0_132, %c199, %c0_133], %111 {strides = array<i32>} : memref<1x328x4xbf16, #tpu.memory_space<vmem>>, vector<1x16x4xbf16>,
    %113 = vector.extract_strided_slice %68 {offsets = [0, 11, 0, 0], sizes = [1, 1, 16, 4], strides = [1, 1, 1, 1]} : vector<1x16x16x4xf32> to vector<1x1x16x4xf32>
    %114 = vector.shape_cast %113 : vector<1x1x16x4xf32> to vector<1x16x4xf32>
    %115 = arith.truncf %114 : vector<1x16x4xf32> to vector<1x16x4xbf16>
    %c0_134 = arith.constant 0 : index
    %c217 = arith.constant 217 : index
    %c0_135 = arith.constant 0 : index
    %116 = vector.load %arg8[%c0_134, %c217, %c0_135] : memref<1x328x4xbf16, #tpu.memory_space<vmem>>, vector<1x16x4xbf16>
    tpu.vector_store %arg8[%c0_134, %c217, %c0_135], %115 {strides = array<i32>} : memref<1x328x4xbf16, #tpu.memory_space<vmem>>, vector<1x16x4xbf16>,
    %117 = vector.extract_strided_slice %68 {offsets = [0, 12, 0, 0], sizes = [1, 1, 16, 4], strides = [1, 1, 1, 1]} : vector<1x16x16x4xf32> to vector<1x1x16x4xf32>
    %118 = vector.shape_cast %117 : vector<1x1x16x4xf32> to vector<1x16x4xf32>
    %119 = arith.truncf %118 : vector<1x16x4xf32> to vector<1x16x4xbf16>
    %c0_136 = arith.constant 0 : index
    %c235 = arith.constant 235 : index
    %c0_137 = arith.constant 0 : index
    %120 = vector.load %arg8[%c0_136, %c235, %c0_137] : memref<1x328x4xbf16, #tpu.memory_space<vmem>>, vector<1x16x4xbf16>
    tpu.vector_store %arg8[%c0_136, %c235, %c0_137], %119 {strides = array<i32>} : memref<1x328x4xbf16, #tpu.memory_space<vmem>>, vector<1x16x4xbf16>,
    %121 = vector.extract_strided_slice %68 {offsets = [0, 13, 0, 0], sizes = [1, 1, 16, 4], strides = [1, 1, 1, 1]} : vector<1x16x16x4xf32> to vector<1x1x16x4xf32>
    %122 = vector.shape_cast %121 : vector<1x1x16x4xf32> to vector<1x16x4xf32>
    %123 = arith.truncf %122 : vector<1x16x4xf32> to vector<1x16x4xbf16>
    %c0_138 = arith.constant 0 : index
    %c253 = arith.constant 253 : index
    %c0_139 = arith.constant 0 : index
    %124 = vector.load %arg8[%c0_138, %c253, %c0_139] : memref<1x328x4xbf16, #tpu.memory_space<vmem>>, vector<1x16x4xbf16>
    tpu.vector_store %arg8[%c0_138, %c253, %c0_139], %123 {strides = array<i32>} : memref<1x328x4xbf16, #tpu.memory_space<vmem>>, vector<1x16x4xbf16>,
    %125 = vector.extract_strided_slice %68 {offsets = [0, 14, 0, 0], sizes = [1, 1, 16, 4], strides = [1, 1, 1, 1]} : vector<1x16x16x4xf32> to vector<1x1x16x4xf32>
    %126 = vector.shape_cast %125 : vector<1x1x16x4xf32> to vector<1x16x4xf32>
    %127 = arith.truncf %126 : vector<1x16x4xf32> to vector<1x16x4xbf16>
    %c0_140 = arith.constant 0 : index
    %c271 = arith.constant 271 : index
    %c0_141 = arith.constant 0 : index
    %128 = vector.load %arg8[%c0_140, %c271, %c0_141] : memref<1x328x4xbf16, #tpu.memory_space<vmem>>, vector<1x16x4xbf16>
    tpu.vector_store %arg8[%c0_140, %c271, %c0_141], %127 {strides = array<i32>} : memref<1x328x4xbf16, #tpu.memory_space<vmem>>, vector<1x16x4xbf16>,
    %129 = vector.extract_strided_slice %68 {offsets = [0, 15, 0, 0], sizes = [1, 1, 16, 4], strides = [1, 1, 1, 1]} : vector<1x16x16x4xf32> to vector<1x1x16x4xf32>
    %130 = vector.shape_cast %129 : vector<1x1x16x4xf32> to vector<1x16x4xf32>
    %131 = arith.truncf %130 : vector<1x16x4xf32> to vector<1x16x4xbf16>
    %c0_142 = arith.constant 0 : index
    %c289 = arith.constant 289 : index
    %c0_143 = arith.constant 0 : index
    %132 = vector.load %arg8[%c0_142, %c289, %c0_143] : memref<1x328x4xbf16, #tpu.memory_space<vmem>>, vector<1x16x4xbf16>
    tpu.vector_store %arg8[%c0_142, %c289, %c0_143], %131 {strides = array<i32>} : memref<1x328x4xbf16, #tpu.memory_space<vmem>>, vector<1x16x4xbf16>,
    %c0_144 = arith.constant 0 : index
    %c0_145 = arith.constant 0 : index
    %c0_146 = arith.constant 0 : index
    %133 = vector.load %arg8[%c0_144, %c0_145, %c0_146] : memref<1x328x4xbf16, #tpu.memory_space<vmem>>, vector<1x288x4xbf16>
    %c0_147 = arith.constant 0 : index
    %c0_148 = arith.constant 0 : index
    %c0_149 = arith.constant 0 : index
    %134 = vector.load %arg12[%c0_147, %c0_148, %c0_149] : memref<1x288x36xbf16, #tpu.memory_space<vmem>>, vector<1x288x4xbf16>
    tpu.vector_store %arg12[%c0_147, %c0_148, %c0_149], %133 {strides = array<i32>} : memref<1x288x36xbf16, #tpu.memory_space<vmem>>, vector<1x288x4xbf16>,
    %c0_150 = arith.constant 0 : index
    %c1 = arith.constant 1 : index
    %c0_151 = arith.constant 0 : index
    %135 = vector.load %arg8[%c0_150, %c1, %c0_151] : memref<1x328x4xbf16, #tpu.memory_space<vmem>>, vector<1x288x4xbf16>
    %c0_152 = arith.constant 0 : index
    %c0_153 = arith.constant 0 : index
    %c4 = arith.constant 4 : index
    %136 = vector.load %arg12[%c0_152, %c0_153, %c4] : memref<1x288x36xbf16, #tpu.memory_space<vmem>>, vector<1x288x4xbf16>
    tpu.vector_store %arg12[%c0_152, %c0_153, %c4], %135 {strides = array<i32>} : memref<1x288x36xbf16, #tpu.memory_space<vmem>>, vector<1x288x4xbf16>,
    %c0_154 = arith.constant 0 : index
    %c2 = arith.constant 2 : index
    %c0_155 = arith.constant 0 : index
    %137 = vector.load %arg8[%c0_154, %c2, %c0_155] : memref<1x328x4xbf16, #tpu.memory_space<vmem>>, vector<1x288x4xbf16>
    %c0_156 = arith.constant 0 : index
    %c0_157 = arith.constant 0 : index
    %c8 = arith.constant 8 : index
    %138 = vector.load %arg12[%c0_156, %c0_157, %c8] : memref<1x288x36xbf16, #tpu.memory_space<vmem>>, vector<1x288x4xbf16>
    tpu.vector_store %arg12[%c0_156, %c0_157, %c8], %137 {strides = array<i32>} : memref<1x288x36xbf16, #tpu.memory_space<vmem>>, vector<1x288x4xbf16>,
    %c0_158 = arith.constant 0 : index
    %c18 = arith.constant 18 : index
    %c0_159 = arith.constant 0 : index
    %139 = vector.load %arg8[%c0_158, %c18, %c0_159] : memref<1x328x4xbf16, #tpu.memory_space<vmem>>, vector<1x288x4xbf16>
    %c0_160 = arith.constant 0 : index
    %c0_161 = arith.constant 0 : index
    %c12 = arith.constant 12 : index
    %140 = vector.load %arg12[%c0_160, %c0_161, %c12] : memref<1x288x36xbf16, #tpu.memory_space<vmem>>, vector<1x288x4xbf16>
    tpu.vector_store %arg12[%c0_160, %c0_161, %c12], %139 {strides = array<i32>} : memref<1x288x36xbf16, #tpu.memory_space<vmem>>, vector<1x288x4xbf16>,
    %c0_162 = arith.constant 0 : index
    %c19_163 = arith.constant 19 : index
    %c0_164 = arith.constant 0 : index
    %141 = vector.load %arg8[%c0_162, %c19_163, %c0_164] : memref<1x328x4xbf16, #tpu.memory_space<vmem>>, vector<1x288x4xbf16>
    %c0_165 = arith.constant 0 : index
    %c0_166 = arith.constant 0 : index
    %c16 = arith.constant 16 : index
    %142 = vector.load %arg12[%c0_165, %c0_166, %c16] : memref<1x288x36xbf16, #tpu.memory_space<vmem>>, vector<1x288x4xbf16>
    tpu.vector_store %arg12[%c0_165, %c0_166, %c16], %141 {strides = array<i32>} : memref<1x288x36xbf16, #tpu.memory_space<vmem>>, vector<1x288x4xbf16>,
    %c0_167 = arith.constant 0 : index
    %c20 = arith.constant 20 : index
    %c0_168 = arith.constant 0 : index
    %143 = vector.load %arg8[%c0_167, %c20, %c0_168] : memref<1x328x4xbf16, #tpu.memory_space<vmem>>, vector<1x288x4xbf16>
    %c0_169 = arith.constant 0 : index
    %c0_170 = arith.constant 0 : index
    %c20_171 = arith.constant 20 : index
    %144 = vector.load %arg12[%c0_169, %c0_170, %c20_171] : memref<1x288x36xbf16, #tpu.memory_space<vmem>>, vector<1x288x4xbf16>
    tpu.vector_store %arg12[%c0_169, %c0_170, %c20_171], %143 {strides = array<i32>} : memref<1x288x36xbf16, #tpu.memory_space<vmem>>, vector<1x288x4xbf16>,
    %c0_172 = arith.constant 0 : index
    %c36 = arith.constant 36 : index
    %c0_173 = arith.constant 0 : index
    %145 = vector.load %arg8[%c0_172, %c36, %c0_173] : memref<1x328x4xbf16, #tpu.memory_space<vmem>>, vector<1x288x4xbf16>
    %c0_174 = arith.constant 0 : index
    %c0_175 = arith.constant 0 : index
    %c24 = arith.constant 24 : index
    %146 = vector.load %arg12[%c0_174, %c0_175, %c24] : memref<1x288x36xbf16, #tpu.memory_space<vmem>>, vector<1x288x4xbf16>
    tpu.vector_store %arg12[%c0_174, %c0_175, %c24], %145 {strides = array<i32>} : memref<1x288x36xbf16, #tpu.memory_space<vmem>>, vector<1x288x4xbf16>,
    %c0_176 = arith.constant 0 : index
    %c37_177 = arith.constant 37 : index
    %c0_178 = arith.constant 0 : index
    %147 = vector.load %arg8[%c0_176, %c37_177, %c0_178] : memref<1x328x4xbf16, #tpu.memory_space<vmem>>, vector<1x288x4xbf16>
    %c0_179 = arith.constant 0 : index
    %c0_180 = arith.constant 0 : index
    %c28 = arith.constant 28 : index
    %148 = vector.load %arg12[%c0_179, %c0_180, %c28] : memref<1x288x36xbf16, #tpu.memory_space<vmem>>, vector<1x288x4xbf16>
    tpu.vector_store %arg12[%c0_179, %c0_180, %c28], %147 {strides = array<i32>} : memref<1x288x36xbf16, #tpu.memory_space<vmem>>, vector<1x288x4xbf16>,
    %c0_181 = arith.constant 0 : index
    %c38 = arith.constant 38 : index
    %c0_182 = arith.constant 0 : index
    %149 = vector.load %arg8[%c0_181, %c38, %c0_182] : memref<1x328x4xbf16, #tpu.memory_space<vmem>>, vector<1x288x4xbf16>
    %c0_183 = arith.constant 0 : index
    %c0_184 = arith.constant 0 : index
    %c32 = arith.constant 32 : index
    %150 = vector.load %arg12[%c0_183, %c0_184, %c32] : memref<1x288x36xbf16, #tpu.memory_space<vmem>>, vector<1x288x4xbf16>
    tpu.vector_store %arg12[%c0_183, %c0_184, %c32], %149 {strides = array<i32>} : memref<1x288x36xbf16, #tpu.memory_space<vmem>>, vector<1x288x4xbf16>,
    %c0_185 = arith.constant 0 : index
    %c0_186 = arith.constant 0 : index
    %c0_187 = arith.constant 0 : index
    %151 = vector.load %arg12[%c0_185, %c0_186, %c0_187] : memref<1x288x36xbf16, #tpu.memory_space<vmem>>, vector<1x288x36xbf16>
    %152 = vector.shape_cast %151 : vector<1x288x36xbf16> to vector<288x36xbf16>
    %c0_188 = arith.constant 0 : index
    %c0_189 = arith.constant 0 : index
    %153 = vector.load %arg2[%c0_188, %c0_189] : memref<36x32xbf16, #tpu.memory_space<vmem>>, vector<36x32xbf16>
    %cst_190 = arith.constant dense<0.000000e+00> : vector<288x32xf32>
    %154 = tpu.matmul %152, %153, %cst_190 {dimension_numbers = #tpu.dot_dimension_numbers<[1], [0], [0], [1], [0, 0, 1, 1], [], []>} : vector<288x36xbf16>, vector<36x32xbf16>, vector<288x32xf32> -> vector<288x32xf32>
    %c0_191 = arith.constant 0 : index
    %c0_192 = arith.constant 0 : index
    %c0_193 = arith.constant 0 : index
    %155 = vector.load %arg6[%c0_191, %c0_192, %c0_193] : memref<4x3x32xf32, #tpu.memory_space<vmem>>, vector<1x3x32xf32>
    %156 = vector.shape_cast %155 : vector<1x3x32xf32> to vector<3x32xf32>
    %157 = vector.extract_strided_slice %156 {offsets = [0, 0], sizes = [1, 32], strides = [1, 1]} : vector<3x32xf32> to vector<1x32xf32>
    %158 = vector.broadcast %157 : vector<1x32xf32> to vector<288x32xf32>
    %159 = arith.addf %154, %158 : vector<288x32xf32>
    %cst_194 = arith.constant 0.000000e+00 : f32
    %160 = vector.broadcast %cst_194 : f32 to vector<288x32xf32>
    %161 = arith.maximumf %159, %160 : vector<288x32xf32>
    %162 = vector.extract_strided_slice %156 {offsets = [1, 0], sizes = [1, 32], strides = [1, 1]} : vector<3x32xf32> to vector<1x32xf32>
    %163 = vector.broadcast %162 : vector<1x32xf32> to vector<288x32xf32>
    %164 = arith.mulf %161, %163 : vector<288x32xf32>
    %165 = vector.extract_strided_slice %156 {offsets = [2, 0], sizes = [1, 32], strides = [1, 1]} : vector<3x32xf32> to vector<1x32xf32>
    %166 = vector.broadcast %165 : vector<1x32xf32> to vector<288x32xf32>
    %167 = arith.addf %164, %166 : vector<288x32xf32>
    %168 = vector.shape_cast %167 : vector<288x32xf32> to vector<1x288x32xf32>
    %169 = vector.extract_strided_slice %168 {offsets = [0, 0, 0], sizes = [1, 16, 32], strides = [1, 1, 1]} : vector<1x288x32xf32> to vector<1x16x32xf32>
    %170 = vector.extract_strided_slice %168 {offsets = [0, 18, 0], sizes = [1, 16, 32], strides = [1, 1, 1]} : vector<1x288x32xf32> to vector<1x16x32xf32>
    %171 = arith.maximumf %169, %170 : vector<1x16x32xf32>
    %172 = vector.shape_cast %171 : vector<1x16x32xf32> to vector<1x8x2x32xf32>
    %173 = vector.extract_strided_slice %172 {offsets = [0, 0, 0, 0], sizes = [1, 8, 1, 32], strides = [1, 1, 1, 1]} : vector<1x8x2x32xf32> to vector<1x8x1x32xf32>
    %174 = vector.shape_cast %173 : vector<1x8x1x32xf32> to vector<1x8x32xf32>
    %175 = vector.extract_strided_slice %172 {offsets = [0, 0, 1, 0], sizes = [1, 8, 1, 32], strides = [1, 1, 1, 1]} : vector<1x8x2x32xf32> to vector<1x8x1x32xf32>
    %176 = vector.shape_cast %175 : vector<1x8x1x32xf32> to vector<1x8x32xf32>
    %177 = arith.maximumf %174, %176 : vector<1x8x32xf32>
    %178 = vector.extract_strided_slice %168 {offsets = [0, 36, 0], sizes = [1, 16, 32], strides = [1, 1, 1]} : vector<1x288x32xf32> to vector<1x16x32xf32>
    %179 = vector.extract_strided_slice %168 {offsets = [0, 54, 0], sizes = [1, 16, 32], strides = [1, 1, 1]} : vector<1x288x32xf32> to vector<1x16x32xf32>
    %180 = arith.maximumf %178, %179 : vector<1x16x32xf32>
    %181 = vector.shape_cast %180 : vector<1x16x32xf32> to vector<1x8x2x32xf32>
    %182 = vector.extract_strided_slice %181 {offsets = [0, 0, 0, 0], sizes = [1, 8, 1, 32], strides = [1, 1, 1, 1]} : vector<1x8x2x32xf32> to vector<1x8x1x32xf32>
    %183 = vector.shape_cast %182 : vector<1x8x1x32xf32> to vector<1x8x32xf32>
    %184 = vector.extract_strided_slice %181 {offsets = [0, 0, 1, 0], sizes = [1, 8, 1, 32], strides = [1, 1, 1, 1]} : vector<1x8x2x32xf32> to vector<1x8x1x32xf32>
    %185 = vector.shape_cast %184 : vector<1x8x1x32xf32> to vector<1x8x32xf32>
    %186 = arith.maximumf %183, %185 : vector<1x8x32xf32>
    %187 = vector.extract_strided_slice %168 {offsets = [0, 72, 0], sizes = [1, 16, 32], strides = [1, 1, 1]} : vector<1x288x32xf32> to vector<1x16x32xf32>
    %188 = vector.extract_strided_slice %168 {offsets = [0, 90, 0], sizes = [1, 16, 32], strides = [1, 1, 1]} : vector<1x288x32xf32> to vector<1x16x32xf32>
    %189 = arith.maximumf %187, %188 : vector<1x16x32xf32>
    %190 = vector.shape_cast %189 : vector<1x16x32xf32> to vector<1x8x2x32xf32>
    %191 = vector.extract_strided_slice %190 {offsets = [0, 0, 0, 0], sizes = [1, 8, 1, 32], strides = [1, 1, 1, 1]} : vector<1x8x2x32xf32> to vector<1x8x1x32xf32>
    %192 = vector.shape_cast %191 : vector<1x8x1x32xf32> to vector<1x8x32xf32>
    %193 = vector.extract_strided_slice %190 {offsets = [0, 0, 1, 0], sizes = [1, 8, 1, 32], strides = [1, 1, 1, 1]} : vector<1x8x2x32xf32> to vector<1x8x1x32xf32>
    %194 = vector.shape_cast %193 : vector<1x8x1x32xf32> to vector<1x8x32xf32>
    %195 = arith.maximumf %192, %194 : vector<1x8x32xf32>
    %196 = vector.extract_strided_slice %168 {offsets = [0, 108, 0], sizes = [1, 16, 32], strides = [1, 1, 1]} : vector<1x288x32xf32> to vector<1x16x32xf32>
    %197 = vector.extract_strided_slice %168 {offsets = [0, 126, 0], sizes = [1, 16, 32], strides = [1, 1, 1]} : vector<1x288x32xf32> to vector<1x16x32xf32>
    %198 = arith.maximumf %196, %197 : vector<1x16x32xf32>
    %199 = vector.shape_cast %198 : vector<1x16x32xf32> to vector<1x8x2x32xf32>
    %200 = vector.extract_strided_slice %199 {offsets = [0, 0, 0, 0], sizes = [1, 8, 1, 32], strides = [1, 1, 1, 1]} : vector<1x8x2x32xf32> to vector<1x8x1x32xf32>
    %201 = vector.shape_cast %200 : vector<1x8x1x32xf32> to vector<1x8x32xf32>
    %202 = vector.extract_strided_slice %199 {offsets = [0, 0, 1, 0], sizes = [1, 8, 1, 32], strides = [1, 1, 1, 1]} : vector<1x8x2x32xf32> to vector<1x8x1x32xf32>
    %203 = vector.shape_cast %202 : vector<1x8x1x32xf32> to vector<1x8x32xf32>
    %204 = arith.maximumf %201, %203 : vector<1x8x32xf32>
    %205 = vector.extract_strided_slice %168 {offsets = [0, 144, 0], sizes = [1, 16, 32], strides = [1, 1, 1]} : vector<1x288x32xf32> to vector<1x16x32xf32>
    %206 = vector.extract_strided_slice %168 {offsets = [0, 162, 0], sizes = [1, 16, 32], strides = [1, 1, 1]} : vector<1x288x32xf32> to vector<1x16x32xf32>
    %207 = arith.maximumf %205, %206 : vector<1x16x32xf32>
    %208 = vector.shape_cast %207 : vector<1x16x32xf32> to vector<1x8x2x32xf32>
    %209 = vector.extract_strided_slice %208 {offsets = [0, 0, 0, 0], sizes = [1, 8, 1, 32], strides = [1, 1, 1, 1]} : vector<1x8x2x32xf32> to vector<1x8x1x32xf32>
    %210 = vector.shape_cast %209 : vector<1x8x1x32xf32> to vector<1x8x32xf32>
    %211 = vector.extract_strided_slice %208 {offsets = [0, 0, 1, 0], sizes = [1, 8, 1, 32], strides = [1, 1, 1, 1]} : vector<1x8x2x32xf32> to vector<1x8x1x32xf32>
    %212 = vector.shape_cast %211 : vector<1x8x1x32xf32> to vector<1x8x32xf32>
    %213 = arith.maximumf %210, %212 : vector<1x8x32xf32>
    %214 = vector.extract_strided_slice %168 {offsets = [0, 180, 0], sizes = [1, 16, 32], strides = [1, 1, 1]} : vector<1x288x32xf32> to vector<1x16x32xf32>
    %215 = vector.extract_strided_slice %168 {offsets = [0, 198, 0], sizes = [1, 16, 32], strides = [1, 1, 1]} : vector<1x288x32xf32> to vector<1x16x32xf32>
    %216 = arith.maximumf %214, %215 : vector<1x16x32xf32>
    %217 = vector.shape_cast %216 : vector<1x16x32xf32> to vector<1x8x2x32xf32>
    %218 = vector.extract_strided_slice %217 {offsets = [0, 0, 0, 0], sizes = [1, 8, 1, 32], strides = [1, 1, 1, 1]} : vector<1x8x2x32xf32> to vector<1x8x1x32xf32>
    %219 = vector.shape_cast %218 : vector<1x8x1x32xf32> to vector<1x8x32xf32>
    %220 = vector.extract_strided_slice %217 {offsets = [0, 0, 1, 0], sizes = [1, 8, 1, 32], strides = [1, 1, 1, 1]} : vector<1x8x2x32xf32> to vector<1x8x1x32xf32>
    %221 = vector.shape_cast %220 : vector<1x8x1x32xf32> to vector<1x8x32xf32>
    %222 = arith.maximumf %219, %221 : vector<1x8x32xf32>
    %223 = vector.extract_strided_slice %168 {offsets = [0, 216, 0], sizes = [1, 16, 32], strides = [1, 1, 1]} : vector<1x288x32xf32> to vector<1x16x32xf32>
    %224 = vector.extract_strided_slice %168 {offsets = [0, 234, 0], sizes = [1, 16, 32], strides = [1, 1, 1]} : vector<1x288x32xf32> to vector<1x16x32xf32>
    %225 = arith.maximumf %223, %224 : vector<1x16x32xf32>
    %226 = vector.shape_cast %225 : vector<1x16x32xf32> to vector<1x8x2x32xf32>
    %227 = vector.extract_strided_slice %226 {offsets = [0, 0, 0, 0], sizes = [1, 8, 1, 32], strides = [1, 1, 1, 1]} : vector<1x8x2x32xf32> to vector<1x8x1x32xf32>
    %228 = vector.shape_cast %227 : vector<1x8x1x32xf32> to vector<1x8x32xf32>
    %229 = vector.extract_strided_slice %226 {offsets = [0, 0, 1, 0], sizes = [1, 8, 1, 32], strides = [1, 1, 1, 1]} : vector<1x8x2x32xf32> to vector<1x8x1x32xf32>
    %230 = vector.shape_cast %229 : vector<1x8x1x32xf32> to vector<1x8x32xf32>
    %231 = arith.maximumf %228, %230 : vector<1x8x32xf32>
    %232 = vector.extract_strided_slice %168 {offsets = [0, 252, 0], sizes = [1, 16, 32], strides = [1, 1, 1]} : vector<1x288x32xf32> to vector<1x16x32xf32>
    %233 = vector.extract_strided_slice %168 {offsets = [0, 270, 0], sizes = [1, 16, 32], strides = [1, 1, 1]} : vector<1x288x32xf32> to vector<1x16x32xf32>
    %234 = arith.maximumf %232, %233 : vector<1x16x32xf32>
    %235 = vector.shape_cast %234 : vector<1x16x32xf32> to vector<1x8x2x32xf32>
    %236 = vector.extract_strided_slice %235 {offsets = [0, 0, 0, 0], sizes = [1, 8, 1, 32], strides = [1, 1, 1, 1]} : vector<1x8x2x32xf32> to vector<1x8x1x32xf32>
    %237 = vector.shape_cast %236 : vector<1x8x1x32xf32> to vector<1x8x32xf32>
    %238 = vector.extract_strided_slice %235 {offsets = [0, 0, 1, 0], sizes = [1, 8, 1, 32], strides = [1, 1, 1, 1]} : vector<1x8x2x32xf32> to vector<1x8x1x32xf32>
    %239 = vector.shape_cast %238 : vector<1x8x1x32xf32> to vector<1x8x32xf32>
    %240 = arith.maximumf %237, %239 : vector<1x8x32xf32>
    %241 = arith.truncf %177 : vector<1x8x32xf32> to vector<1x8x32xbf16>
    %c0_195 = arith.constant 0 : index
    %c11_196 = arith.constant 11 : index
    %c0_197 = arith.constant 0 : index
    %242 = vector.load %arg9[%c0_195, %c11_196, %c0_197] : memref<1x104x32xbf16, #tpu.memory_space<vmem>>, vector<1x8x32xbf16>
    tpu.vector_store %arg9[%c0_195, %c11_196, %c0_197], %241 {strides = array<i32>} : memref<1x104x32xbf16, #tpu.memory_space<vmem>>, vector<1x8x32xbf16>,
    %243 = arith.truncf %186 : vector<1x8x32xf32> to vector<1x8x32xbf16>
    %c0_198 = arith.constant 0 : index
    %c21 = arith.constant 21 : index
    %c0_199 = arith.constant 0 : index
    %244 = vector.load %arg9[%c0_198, %c21, %c0_199] : memref<1x104x32xbf16, #tpu.memory_space<vmem>>, vector<1x8x32xbf16>
    tpu.vector_store %arg9[%c0_198, %c21, %c0_199], %243 {strides = array<i32>} : memref<1x104x32xbf16, #tpu.memory_space<vmem>>, vector<1x8x32xbf16>,
    %245 = arith.truncf %195 : vector<1x8x32xf32> to vector<1x8x32xbf16>
    %c0_200 = arith.constant 0 : index
    %c31 = arith.constant 31 : index
    %c0_201 = arith.constant 0 : index
    %246 = vector.load %arg9[%c0_200, %c31, %c0_201] : memref<1x104x32xbf16, #tpu.memory_space<vmem>>, vector<1x8x32xbf16>
    tpu.vector_store %arg9[%c0_200, %c31, %c0_201], %245 {strides = array<i32>} : memref<1x104x32xbf16, #tpu.memory_space<vmem>>, vector<1x8x32xbf16>,
    %247 = arith.truncf %204 : vector<1x8x32xf32> to vector<1x8x32xbf16>
    %c0_202 = arith.constant 0 : index
    %c41 = arith.constant 41 : index
    %c0_203 = arith.constant 0 : index
    %248 = vector.load %arg9[%c0_202, %c41, %c0_203] : memref<1x104x32xbf16, #tpu.memory_space<vmem>>, vector<1x8x32xbf16>
    tpu.vector_store %arg9[%c0_202, %c41, %c0_203], %247 {strides = array<i32>} : memref<1x104x32xbf16, #tpu.memory_space<vmem>>, vector<1x8x32xbf16>,
    %249 = arith.truncf %213 : vector<1x8x32xf32> to vector<1x8x32xbf16>
    %c0_204 = arith.constant 0 : index
    %c51 = arith.constant 51 : index
    %c0_205 = arith.constant 0 : index
    %250 = vector.load %arg9[%c0_204, %c51, %c0_205] : memref<1x104x32xbf16, #tpu.memory_space<vmem>>, vector<1x8x32xbf16>
    tpu.vector_store %arg9[%c0_204, %c51, %c0_205], %249 {strides = array<i32>} : memref<1x104x32xbf16, #tpu.memory_space<vmem>>, vector<1x8x32xbf16>,
    %251 = arith.truncf %222 : vector<1x8x32xf32> to vector<1x8x32xbf16>
    %c0_206 = arith.constant 0 : index
    %c61 = arith.constant 61 : index
    %c0_207 = arith.constant 0 : index
    %252 = vector.load %arg9[%c0_206, %c61, %c0_207] : memref<1x104x32xbf16, #tpu.memory_space<vmem>>, vector<1x8x32xbf16>
    tpu.vector_store %arg9[%c0_206, %c61, %c0_207], %251 {strides = array<i32>} : memref<1x104x32xbf16, #tpu.memory_space<vmem>>, vector<1x8x32xbf16>,
    %253 = arith.truncf %231 : vector<1x8x32xf32> to vector<1x8x32xbf16>
    %c0_208 = arith.constant 0 : index
    %c71_209 = arith.constant 71 : index
    %c0_210 = arith.constant 0 : index
    %254 = vector.load %arg9[%c0_208, %c71_209, %c0_210] : memref<1x104x32xbf16, #tpu.memory_space<vmem>>, vector<1x8x32xbf16>
    tpu.vector_store %arg9[%c0_208, %c71_209, %c0_210], %253 {strides = array<i32>} : memref<1x104x32xbf16, #tpu.memory_space<vmem>>, vector<1x8x32xbf16>,
    %255 = arith.truncf %240 : vector<1x8x32xf32> to vector<1x8x32xbf16>
    %c0_211 = arith.constant 0 : index
    %c81 = arith.constant 81 : index
    %c0_212 = arith.constant 0 : index
    %256 = vector.load %arg9[%c0_211, %c81, %c0_212] : memref<1x104x32xbf16, #tpu.memory_space<vmem>>, vector<1x8x32xbf16>
    tpu.vector_store %arg9[%c0_211, %c81, %c0_212], %255 {strides = array<i32>} : memref<1x104x32xbf16, #tpu.memory_space<vmem>>, vector<1x8x32xbf16>,
    %c0_213 = arith.constant 0 : index
    %c0_214 = arith.constant 0 : index
    %c0_215 = arith.constant 0 : index
    %257 = vector.load %arg9[%c0_213, %c0_214, %c0_215] : memref<1x104x32xbf16, #tpu.memory_space<vmem>>, vector<1x80x32xbf16>
    %c0_216 = arith.constant 0 : index
    %c0_217 = arith.constant 0 : index
    %c0_218 = arith.constant 0 : index
    %258 = vector.load %arg13[%c0_216, %c0_217, %c0_218] : memref<1x80x288xbf16, #tpu.memory_space<vmem>>, vector<1x80x32xbf16>
    tpu.vector_store %arg13[%c0_216, %c0_217, %c0_218], %257 {strides = array<i32>} : memref<1x80x288xbf16, #tpu.memory_space<vmem>>, vector<1x80x32xbf16>,
    %c0_219 = arith.constant 0 : index
    %c1_220 = arith.constant 1 : index
    %c0_221 = arith.constant 0 : index
    %259 = vector.load %arg9[%c0_219, %c1_220, %c0_221] : memref<1x104x32xbf16, #tpu.memory_space<vmem>>, vector<1x80x32xbf16>
    %c0_222 = arith.constant 0 : index
    %c0_223 = arith.constant 0 : index
    %c32_224 = arith.constant 32 : index
    %260 = vector.load %arg13[%c0_222, %c0_223, %c32_224] : memref<1x80x288xbf16, #tpu.memory_space<vmem>>, vector<1x80x32xbf16>
    tpu.vector_store %arg13[%c0_222, %c0_223, %c32_224], %259 {strides = array<i32>} : memref<1x80x288xbf16, #tpu.memory_space<vmem>>, vector<1x80x32xbf16>,
    %c0_225 = arith.constant 0 : index
    %c2_226 = arith.constant 2 : index
    %c0_227 = arith.constant 0 : index
    %261 = vector.load %arg9[%c0_225, %c2_226, %c0_227] : memref<1x104x32xbf16, #tpu.memory_space<vmem>>, vector<1x80x32xbf16>
    %c0_228 = arith.constant 0 : index
    %c0_229 = arith.constant 0 : index
    %c64 = arith.constant 64 : index
    %262 = vector.load %arg13[%c0_228, %c0_229, %c64] : memref<1x80x288xbf16, #tpu.memory_space<vmem>>, vector<1x80x32xbf16>
    tpu.vector_store %arg13[%c0_228, %c0_229, %c64], %261 {strides = array<i32>} : memref<1x80x288xbf16, #tpu.memory_space<vmem>>, vector<1x80x32xbf16>,
    %c0_230 = arith.constant 0 : index
    %c10 = arith.constant 10 : index
    %c0_231 = arith.constant 0 : index
    %263 = vector.load %arg9[%c0_230, %c10, %c0_231] : memref<1x104x32xbf16, #tpu.memory_space<vmem>>, vector<1x80x32xbf16>
    %c0_232 = arith.constant 0 : index
    %c0_233 = arith.constant 0 : index
    %c96 = arith.constant 96 : index
    %264 = vector.load %arg13[%c0_232, %c0_233, %c96] : memref<1x80x288xbf16, #tpu.memory_space<vmem>>, vector<1x80x32xbf16>
    tpu.vector_store %arg13[%c0_232, %c0_233, %c96], %263 {strides = array<i32>} : memref<1x80x288xbf16, #tpu.memory_space<vmem>>, vector<1x80x32xbf16>,
    %c0_234 = arith.constant 0 : index
    %c11_235 = arith.constant 11 : index
    %c0_236 = arith.constant 0 : index
    %265 = vector.load %arg9[%c0_234, %c11_235, %c0_236] : memref<1x104x32xbf16, #tpu.memory_space<vmem>>, vector<1x80x32xbf16>
    %c0_237 = arith.constant 0 : index
    %c0_238 = arith.constant 0 : index
    %c128 = arith.constant 128 : index
    %266 = vector.load %arg13[%c0_237, %c0_238, %c128] : memref<1x80x288xbf16, #tpu.memory_space<vmem>>, vector<1x80x32xbf16>
    tpu.vector_store %arg13[%c0_237, %c0_238, %c128], %265 {strides = array<i32>} : memref<1x80x288xbf16, #tpu.memory_space<vmem>>, vector<1x80x32xbf16>,
    %c0_239 = arith.constant 0 : index
    %c12_240 = arith.constant 12 : index
    %c0_241 = arith.constant 0 : index
    %267 = vector.load %arg9[%c0_239, %c12_240, %c0_241] : memref<1x104x32xbf16, #tpu.memory_space<vmem>>, vector<1x80x32xbf16>
    %c0_242 = arith.constant 0 : index
    %c0_243 = arith.constant 0 : index
    %c160 = arith.constant 160 : index
    %268 = vector.load %arg13[%c0_242, %c0_243, %c160] : memref<1x80x288xbf16, #tpu.memory_space<vmem>>, vector<1x80x32xbf16>
    tpu.vector_store %arg13[%c0_242, %c0_243, %c160], %267 {strides = array<i32>} : memref<1x80x288xbf16, #tpu.memory_space<vmem>>, vector<1x80x32xbf16>,
    %c0_244 = arith.constant 0 : index
    %c20_245 = arith.constant 20 : index
    %c0_246 = arith.constant 0 : index
    %269 = vector.load %arg9[%c0_244, %c20_245, %c0_246] : memref<1x104x32xbf16, #tpu.memory_space<vmem>>, vector<1x80x32xbf16>
    %c0_247 = arith.constant 0 : index
    %c0_248 = arith.constant 0 : index
    %c192 = arith.constant 192 : index
    %270 = vector.load %arg13[%c0_247, %c0_248, %c192] : memref<1x80x288xbf16, #tpu.memory_space<vmem>>, vector<1x80x32xbf16>
    tpu.vector_store %arg13[%c0_247, %c0_248, %c192], %269 {strides = array<i32>} : memref<1x80x288xbf16, #tpu.memory_space<vmem>>, vector<1x80x32xbf16>,
    %c0_249 = arith.constant 0 : index
    %c21_250 = arith.constant 21 : index
    %c0_251 = arith.constant 0 : index
    %271 = vector.load %arg9[%c0_249, %c21_250, %c0_251] : memref<1x104x32xbf16, #tpu.memory_space<vmem>>, vector<1x80x32xbf16>
    %c0_252 = arith.constant 0 : index
    %c0_253 = arith.constant 0 : index
    %c224 = arith.constant 224 : index
    %272 = vector.load %arg13[%c0_252, %c0_253, %c224] : memref<1x80x288xbf16, #tpu.memory_space<vmem>>, vector<1x80x32xbf16>
    tpu.vector_store %arg13[%c0_252, %c0_253, %c224], %271 {strides = array<i32>} : memref<1x80x288xbf16, #tpu.memory_space<vmem>>, vector<1x80x32xbf16>,
    %c0_254 = arith.constant 0 : index
    %c22 = arith.constant 22 : index
    %c0_255 = arith.constant 0 : index
    %273 = vector.load %arg9[%c0_254, %c22, %c0_255] : memref<1x104x32xbf16, #tpu.memory_space<vmem>>, vector<1x80x32xbf16>
    %c0_256 = arith.constant 0 : index
    %c0_257 = arith.constant 0 : index
    %c256 = arith.constant 256 : index
    %274 = vector.load %arg13[%c0_256, %c0_257, %c256] : memref<1x80x288xbf16, #tpu.memory_space<vmem>>, vector<1x80x32xbf16>
    tpu.vector_store %arg13[%c0_256, %c0_257, %c256], %273 {strides = array<i32>} : memref<1x80x288xbf16, #tpu.memory_space<vmem>>, vector<1x80x32xbf16>,
    %c0_258 = arith.constant 0 : index
    %c0_259 = arith.constant 0 : index
    %c0_260 = arith.constant 0 : index
    %275 = vector.load %arg13[%c0_258, %c0_259, %c0_260] : memref<1x80x288xbf16, #tpu.memory_space<vmem>>, vector<1x80x288xbf16>
    %276 = vector.shape_cast %275 : vector<1x80x288xbf16> to vector<80x288xbf16>
    %c0_261 = arith.constant 0 : index
    %c0_262 = arith.constant 0 : index
    %277 = vector.load %arg3[%c0_261, %c0_262] : memref<288x32xbf16, #tpu.memory_space<vmem>>, vector<288x32xbf16>
    %cst_263 = arith.constant dense<0.000000e+00> : vector<80x32xf32>
    %278 = tpu.matmul %276, %277, %cst_263 {dimension_numbers = #tpu.dot_dimension_numbers<[1], [0], [0], [1], [0, 0, 1, 1], [], []>} : vector<80x288xbf16>, vector<288x32xbf16>, vector<80x32xf32> -> vector<80x32xf32>
    %c1_264 = arith.constant 1 : index
    %c0_265 = arith.constant 0 : index
    %c0_266 = arith.constant 0 : index
    %279 = vector.load %arg6[%c1_264, %c0_265, %c0_266] : memref<4x3x32xf32, #tpu.memory_space<vmem>>, vector<1x3x32xf32>
    %280 = vector.shape_cast %279 : vector<1x3x32xf32> to vector<3x32xf32>
    %281 = vector.extract_strided_slice %280 {offsets = [0, 0], sizes = [1, 32], strides = [1, 1]} : vector<3x32xf32> to vector<1x32xf32>
    %282 = vector.broadcast %281 : vector<1x32xf32> to vector<80x32xf32>
    %283 = arith.addf %278, %282 : vector<80x32xf32>
    %cst_267 = arith.constant 0.000000e+00 : f32
    %284 = vector.broadcast %cst_267 : f32 to vector<80x32xf32>
    %285 = arith.maximumf %283, %284 : vector<80x32xf32>
    %286 = vector.extract_strided_slice %280 {offsets = [1, 0], sizes = [1, 32], strides = [1, 1]} : vector<3x32xf32> to vector<1x32xf32>
    %287 = vector.broadcast %286 : vector<1x32xf32> to vector<80x32xf32>
    %288 = arith.mulf %285, %287 : vector<80x32xf32>
    %289 = vector.extract_strided_slice %280 {offsets = [2, 0], sizes = [1, 32], strides = [1, 1]} : vector<3x32xf32> to vector<1x32xf32>
    %290 = vector.broadcast %289 : vector<1x32xf32> to vector<80x32xf32>
    %291 = arith.addf %288, %290 : vector<80x32xf32>
    %292 = vector.shape_cast %291 : vector<80x32xf32> to vector<1x80x32xf32>
    %293 = vector.extract_strided_slice %292 {offsets = [0, 0, 0], sizes = [1, 8, 32], strides = [1, 1, 1]} : vector<1x80x32xf32> to vector<1x8x32xf32>
    %294 = vector.extract_strided_slice %292 {offsets = [0, 10, 0], sizes = [1, 8, 32], strides = [1, 1, 1]} : vector<1x80x32xf32> to vector<1x8x32xf32>
    %295 = arith.maximumf %293, %294 : vector<1x8x32xf32>
    %296 = vector.shape_cast %295 : vector<1x8x32xf32> to vector<1x4x2x32xf32>
    %297 = vector.extract_strided_slice %296 {offsets = [0, 0, 0, 0], sizes = [1, 4, 1, 32], strides = [1, 1, 1, 1]} : vector<1x4x2x32xf32> to vector<1x4x1x32xf32>
    %298 = vector.shape_cast %297 : vector<1x4x1x32xf32> to vector<1x4x32xf32>
    %299 = vector.extract_strided_slice %296 {offsets = [0, 0, 1, 0], sizes = [1, 4, 1, 32], strides = [1, 1, 1, 1]} : vector<1x4x2x32xf32> to vector<1x4x1x32xf32>
    %300 = vector.shape_cast %299 : vector<1x4x1x32xf32> to vector<1x4x32xf32>
    %301 = arith.maximumf %298, %300 : vector<1x4x32xf32>
    %302 = vector.extract_strided_slice %292 {offsets = [0, 20, 0], sizes = [1, 8, 32], strides = [1, 1, 1]} : vector<1x80x32xf32> to vector<1x8x32xf32>
    %303 = vector.extract_strided_slice %292 {offsets = [0, 30, 0], sizes = [1, 8, 32], strides = [1, 1, 1]} : vector<1x80x32xf32> to vector<1x8x32xf32>
    %304 = arith.maximumf %302, %303 : vector<1x8x32xf32>
    %305 = vector.shape_cast %304 : vector<1x8x32xf32> to vector<1x4x2x32xf32>
    %306 = vector.extract_strided_slice %305 {offsets = [0, 0, 0, 0], sizes = [1, 4, 1, 32], strides = [1, 1, 1, 1]} : vector<1x4x2x32xf32> to vector<1x4x1x32xf32>
    %307 = vector.shape_cast %306 : vector<1x4x1x32xf32> to vector<1x4x32xf32>
    %308 = vector.extract_strided_slice %305 {offsets = [0, 0, 1, 0], sizes = [1, 4, 1, 32], strides = [1, 1, 1, 1]} : vector<1x4x2x32xf32> to vector<1x4x1x32xf32>
    %309 = vector.shape_cast %308 : vector<1x4x1x32xf32> to vector<1x4x32xf32>
    %310 = arith.maximumf %307, %309 : vector<1x4x32xf32>
    %311 = vector.extract_strided_slice %292 {offsets = [0, 40, 0], sizes = [1, 8, 32], strides = [1, 1, 1]} : vector<1x80x32xf32> to vector<1x8x32xf32>
    %312 = vector.extract_strided_slice %292 {offsets = [0, 50, 0], sizes = [1, 8, 32], strides = [1, 1, 1]} : vector<1x80x32xf32> to vector<1x8x32xf32>
    %313 = arith.maximumf %311, %312 : vector<1x8x32xf32>
    %314 = vector.shape_cast %313 : vector<1x8x32xf32> to vector<1x4x2x32xf32>
    %315 = vector.extract_strided_slice %314 {offsets = [0, 0, 0, 0], sizes = [1, 4, 1, 32], strides = [1, 1, 1, 1]} : vector<1x4x2x32xf32> to vector<1x4x1x32xf32>
    %316 = vector.shape_cast %315 : vector<1x4x1x32xf32> to vector<1x4x32xf32>
    %317 = vector.extract_strided_slice %314 {offsets = [0, 0, 1, 0], sizes = [1, 4, 1, 32], strides = [1, 1, 1, 1]} : vector<1x4x2x32xf32> to vector<1x4x1x32xf32>
    %318 = vector.shape_cast %317 : vector<1x4x1x32xf32> to vector<1x4x32xf32>
    %319 = arith.maximumf %316, %318 : vector<1x4x32xf32>
    %320 = vector.extract_strided_slice %292 {offsets = [0, 60, 0], sizes = [1, 8, 32], strides = [1, 1, 1]} : vector<1x80x32xf32> to vector<1x8x32xf32>
    %321 = vector.extract_strided_slice %292 {offsets = [0, 70, 0], sizes = [1, 8, 32], strides = [1, 1, 1]} : vector<1x80x32xf32> to vector<1x8x32xf32>
    %322 = arith.maximumf %320, %321 : vector<1x8x32xf32>
    %323 = vector.shape_cast %322 : vector<1x8x32xf32> to vector<1x4x2x32xf32>
    %324 = vector.extract_strided_slice %323 {offsets = [0, 0, 0, 0], sizes = [1, 4, 1, 32], strides = [1, 1, 1, 1]} : vector<1x4x2x32xf32> to vector<1x4x1x32xf32>
    %325 = vector.shape_cast %324 : vector<1x4x1x32xf32> to vector<1x4x32xf32>
    %326 = vector.extract_strided_slice %323 {offsets = [0, 0, 1, 0], sizes = [1, 4, 1, 32], strides = [1, 1, 1, 1]} : vector<1x4x2x32xf32> to vector<1x4x1x32xf32>
    %327 = vector.shape_cast %326 : vector<1x4x1x32xf32> to vector<1x4x32xf32>
    %328 = arith.maximumf %325, %327 : vector<1x4x32xf32>
    %329 = arith.truncf %301 : vector<1x4x32xf32> to vector<1x4x32xbf16>
    %c0_268 = arith.constant 0 : index
    %c7_269 = arith.constant 7 : index
    %c0_270 = arith.constant 0 : index
    %330 = vector.load %arg10[%c0_268, %c7_269, %c0_270] : memref<1x40x32xbf16, #tpu.memory_space<vmem>>, vector<1x4x32xbf16>
    tpu.vector_store %arg10[%c0_268, %c7_269, %c0_270], %329 {strides = array<i32>} : memref<1x40x32xbf16, #tpu.memory_space<vmem>>, vector<1x4x32xbf16>,
    %331 = arith.truncf %310 : vector<1x4x32xf32> to vector<1x4x32xbf16>
    %c0_271 = arith.constant 0 : index
    %c13 = arith.constant 13 : index
    %c0_272 = arith.constant 0 : index
    %332 = vector.load %arg10[%c0_271, %c13, %c0_272] : memref<1x40x32xbf16, #tpu.memory_space<vmem>>, vector<1x4x32xbf16>
    tpu.vector_store %arg10[%c0_271, %c13, %c0_272], %331 {strides = array<i32>} : memref<1x40x32xbf16, #tpu.memory_space<vmem>>, vector<1x4x32xbf16>,
    %333 = arith.truncf %319 : vector<1x4x32xf32> to vector<1x4x32xbf16>
    %c0_273 = arith.constant 0 : index
    %c19_274 = arith.constant 19 : index
    %c0_275 = arith.constant 0 : index
    %334 = vector.load %arg10[%c0_273, %c19_274, %c0_275] : memref<1x40x32xbf16, #tpu.memory_space<vmem>>, vector<1x4x32xbf16>
    tpu.vector_store %arg10[%c0_273, %c19_274, %c0_275], %333 {strides = array<i32>} : memref<1x40x32xbf16, #tpu.memory_space<vmem>>, vector<1x4x32xbf16>,
    %335 = arith.truncf %328 : vector<1x4x32xf32> to vector<1x4x32xbf16>
    %c0_276 = arith.constant 0 : index
    %c25 = arith.constant 25 : index
    %c0_277 = arith.constant 0 : index
    %336 = vector.load %arg10[%c0_276, %c25, %c0_277] : memref<1x40x32xbf16, #tpu.memory_space<vmem>>, vector<1x4x32xbf16>
    tpu.vector_store %arg10[%c0_276, %c25, %c0_277], %335 {strides = array<i32>} : memref<1x40x32xbf16, #tpu.memory_space<vmem>>, vector<1x4x32xbf16>,
    %c0_278 = arith.constant 0 : index
    %c0_279 = arith.constant 0 : index
    %c0_280 = arith.constant 0 : index
    %337 = vector.load %arg10[%c0_278, %c0_279, %c0_280] : memref<1x40x32xbf16, #tpu.memory_space<vmem>>, vector<1x24x32xbf16>
    %c0_281 = arith.constant 0 : index
    %c0_282 = arith.constant 0 : index
    %c0_283 = arith.constant 0 : index
    %338 = vector.load %arg14[%c0_281, %c0_282, %c0_283] : memref<1x24x288xbf16, #tpu.memory_space<vmem>>, vector<1x24x32xbf16>
    tpu.vector_store %arg14[%c0_281, %c0_282, %c0_283], %337 {strides = array<i32>} : memref<1x24x288xbf16, #tpu.memory_space<vmem>>, vector<1x24x32xbf16>,
    %c0_284 = arith.constant 0 : index
    %c1_285 = arith.constant 1 : index
    %c0_286 = arith.constant 0 : index
    %339 = vector.load %arg10[%c0_284, %c1_285, %c0_286] : memref<1x40x32xbf16, #tpu.memory_space<vmem>>, vector<1x24x32xbf16>
    %c0_287 = arith.constant 0 : index
    %c0_288 = arith.constant 0 : index
    %c32_289 = arith.constant 32 : index
    %340 = vector.load %arg14[%c0_287, %c0_288, %c32_289] : memref<1x24x288xbf16, #tpu.memory_space<vmem>>, vector<1x24x32xbf16>
    tpu.vector_store %arg14[%c0_287, %c0_288, %c32_289], %339 {strides = array<i32>} : memref<1x24x288xbf16, #tpu.memory_space<vmem>>, vector<1x24x32xbf16>,
    %c0_290 = arith.constant 0 : index
    %c2_291 = arith.constant 2 : index
    %c0_292 = arith.constant 0 : index
    %341 = vector.load %arg10[%c0_290, %c2_291, %c0_292] : memref<1x40x32xbf16, #tpu.memory_space<vmem>>, vector<1x24x32xbf16>
    %c0_293 = arith.constant 0 : index
    %c0_294 = arith.constant 0 : index
    %c64_295 = arith.constant 64 : index
    %342 = vector.load %arg14[%c0_293, %c0_294, %c64_295] : memref<1x24x288xbf16, #tpu.memory_space<vmem>>, vector<1x24x32xbf16>
    tpu.vector_store %arg14[%c0_293, %c0_294, %c64_295], %341 {strides = array<i32>} : memref<1x24x288xbf16, #tpu.memory_space<vmem>>, vector<1x24x32xbf16>,
    %c0_296 = arith.constant 0 : index
    %c6 = arith.constant 6 : index
    %c0_297 = arith.constant 0 : index
    %343 = vector.load %arg10[%c0_296, %c6, %c0_297] : memref<1x40x32xbf16, #tpu.memory_space<vmem>>, vector<1x24x32xbf16>
    %c0_298 = arith.constant 0 : index
    %c0_299 = arith.constant 0 : index
    %c96_300 = arith.constant 96 : index
    %344 = vector.load %arg14[%c0_298, %c0_299, %c96_300] : memref<1x24x288xbf16, #tpu.memory_space<vmem>>, vector<1x24x32xbf16>
    tpu.vector_store %arg14[%c0_298, %c0_299, %c96_300], %343 {strides = array<i32>} : memref<1x24x288xbf16, #tpu.memory_space<vmem>>, vector<1x24x32xbf16>,
    %c0_301 = arith.constant 0 : index
    %c7_302 = arith.constant 7 : index
    %c0_303 = arith.constant 0 : index
    %345 = vector.load %arg10[%c0_301, %c7_302, %c0_303] : memref<1x40x32xbf16, #tpu.memory_space<vmem>>, vector<1x24x32xbf16>
    %c0_304 = arith.constant 0 : index
    %c0_305 = arith.constant 0 : index
    %c128_306 = arith.constant 128 : index
    %346 = vector.load %arg14[%c0_304, %c0_305, %c128_306] : memref<1x24x288xbf16, #tpu.memory_space<vmem>>, vector<1x24x32xbf16>
    tpu.vector_store %arg14[%c0_304, %c0_305, %c128_306], %345 {strides = array<i32>} : memref<1x24x288xbf16, #tpu.memory_space<vmem>>, vector<1x24x32xbf16>,
    %c0_307 = arith.constant 0 : index
    %c8_308 = arith.constant 8 : index
    %c0_309 = arith.constant 0 : index
    %347 = vector.load %arg10[%c0_307, %c8_308, %c0_309] : memref<1x40x32xbf16, #tpu.memory_space<vmem>>, vector<1x24x32xbf16>
    %c0_310 = arith.constant 0 : index
    %c0_311 = arith.constant 0 : index
    %c160_312 = arith.constant 160 : index
    %348 = vector.load %arg14[%c0_310, %c0_311, %c160_312] : memref<1x24x288xbf16, #tpu.memory_space<vmem>>, vector<1x24x32xbf16>
    tpu.vector_store %arg14[%c0_310, %c0_311, %c160_312], %347 {strides = array<i32>} : memref<1x24x288xbf16, #tpu.memory_space<vmem>>, vector<1x24x32xbf16>,
    %c0_313 = arith.constant 0 : index
    %c12_314 = arith.constant 12 : index
    %c0_315 = arith.constant 0 : index
    %349 = vector.load %arg10[%c0_313, %c12_314, %c0_315] : memref<1x40x32xbf16, #tpu.memory_space<vmem>>, vector<1x24x32xbf16>
    %c0_316 = arith.constant 0 : index
    %c0_317 = arith.constant 0 : index
    %c192_318 = arith.constant 192 : index
    %350 = vector.load %arg14[%c0_316, %c0_317, %c192_318] : memref<1x24x288xbf16, #tpu.memory_space<vmem>>, vector<1x24x32xbf16>
    tpu.vector_store %arg14[%c0_316, %c0_317, %c192_318], %349 {strides = array<i32>} : memref<1x24x288xbf16, #tpu.memory_space<vmem>>, vector<1x24x32xbf16>,
    %c0_319 = arith.constant 0 : index
    %c13_320 = arith.constant 13 : index
    %c0_321 = arith.constant 0 : index
    %351 = vector.load %arg10[%c0_319, %c13_320, %c0_321] : memref<1x40x32xbf16, #tpu.memory_space<vmem>>, vector<1x24x32xbf16>
    %c0_322 = arith.constant 0 : index
    %c0_323 = arith.constant 0 : index
    %c224_324 = arith.constant 224 : index
    %352 = vector.load %arg14[%c0_322, %c0_323, %c224_324] : memref<1x24x288xbf16, #tpu.memory_space<vmem>>, vector<1x24x32xbf16>
    tpu.vector_store %arg14[%c0_322, %c0_323, %c224_324], %351 {strides = array<i32>} : memref<1x24x288xbf16, #tpu.memory_space<vmem>>, vector<1x24x32xbf16>,
    %c0_325 = arith.constant 0 : index
    %c14 = arith.constant 14 : index
    %c0_326 = arith.constant 0 : index
    %353 = vector.load %arg10[%c0_325, %c14, %c0_326] : memref<1x40x32xbf16, #tpu.memory_space<vmem>>, vector<1x24x32xbf16>
    %c0_327 = arith.constant 0 : index
    %c0_328 = arith.constant 0 : index
    %c256_329 = arith.constant 256 : index
    %354 = vector.load %arg14[%c0_327, %c0_328, %c256_329] : memref<1x24x288xbf16, #tpu.memory_space<vmem>>, vector<1x24x32xbf16>
    tpu.vector_store %arg14[%c0_327, %c0_328, %c256_329], %353 {strides = array<i32>} : memref<1x24x288xbf16, #tpu.memory_space<vmem>>, vector<1x24x32xbf16>,
    %c0_330 = arith.constant 0 : index
    %c0_331 = arith.constant 0 : index
    %c0_332 = arith.constant 0 : index
    %355 = vector.load %arg14[%c0_330, %c0_331, %c0_332] : memref<1x24x288xbf16, #tpu.memory_space<vmem>>, vector<1x24x288xbf16>
    %356 = vector.shape_cast %355 : vector<1x24x288xbf16> to vector<24x288xbf16>
    %c0_333 = arith.constant 0 : index
    %c0_334 = arith.constant 0 : index
    %357 = vector.load %arg4[%c0_333, %c0_334] : memref<288x32xbf16, #tpu.memory_space<vmem>>, vector<288x32xbf16>
    %cst_335 = arith.constant dense<0.000000e+00> : vector<24x32xf32>
    %358 = tpu.matmul %356, %357, %cst_335 {dimension_numbers = #tpu.dot_dimension_numbers<[1], [0], [0], [1], [0, 0, 1, 1], [], []>} : vector<24x288xbf16>, vector<288x32xbf16>, vector<24x32xf32> -> vector<24x32xf32>
    %c2_336 = arith.constant 2 : index
    %c0_337 = arith.constant 0 : index
    %c0_338 = arith.constant 0 : index
    %359 = vector.load %arg6[%c2_336, %c0_337, %c0_338] : memref<4x3x32xf32, #tpu.memory_space<vmem>>, vector<1x3x32xf32>
    %360 = vector.shape_cast %359 : vector<1x3x32xf32> to vector<3x32xf32>
    %361 = vector.extract_strided_slice %360 {offsets = [0, 0], sizes = [1, 32], strides = [1, 1]} : vector<3x32xf32> to vector<1x32xf32>
    %362 = vector.broadcast %361 : vector<1x32xf32> to vector<24x32xf32>
    %363 = arith.addf %358, %362 : vector<24x32xf32>
    %cst_339 = arith.constant 0.000000e+00 : f32
    %364 = vector.broadcast %cst_339 : f32 to vector<24x32xf32>
    %365 = arith.maximumf %363, %364 : vector<24x32xf32>
    %366 = vector.extract_strided_slice %360 {offsets = [1, 0], sizes = [1, 32], strides = [1, 1]} : vector<3x32xf32> to vector<1x32xf32>
    %367 = vector.broadcast %366 : vector<1x32xf32> to vector<24x32xf32>
    %368 = arith.mulf %365, %367 : vector<24x32xf32>
    %369 = vector.extract_strided_slice %360 {offsets = [2, 0], sizes = [1, 32], strides = [1, 1]} : vector<3x32xf32> to vector<1x32xf32>
    %370 = vector.broadcast %369 : vector<1x32xf32> to vector<24x32xf32>
    %371 = arith.addf %368, %370 : vector<24x32xf32>
    %372 = vector.shape_cast %371 : vector<24x32xf32> to vector<1x24x32xf32>
    %373 = vector.extract_strided_slice %372 {offsets = [0, 0, 0], sizes = [1, 4, 32], strides = [1, 1, 1]} : vector<1x24x32xf32> to vector<1x4x32xf32>
    %374 = vector.extract_strided_slice %372 {offsets = [0, 6, 0], sizes = [1, 4, 32], strides = [1, 1, 1]} : vector<1x24x32xf32> to vector<1x4x32xf32>
    %375 = arith.maximumf %373, %374 : vector<1x4x32xf32>
    %376 = vector.shape_cast %375 : vector<1x4x32xf32> to vector<1x2x2x32xf32>
    %377 = vector.extract_strided_slice %376 {offsets = [0, 0, 0, 0], sizes = [1, 2, 1, 32], strides = [1, 1, 1, 1]} : vector<1x2x2x32xf32> to vector<1x2x1x32xf32>
    %378 = vector.shape_cast %377 : vector<1x2x1x32xf32> to vector<1x2x32xf32>
    %379 = vector.extract_strided_slice %376 {offsets = [0, 0, 1, 0], sizes = [1, 2, 1, 32], strides = [1, 1, 1, 1]} : vector<1x2x2x32xf32> to vector<1x2x1x32xf32>
    %380 = vector.shape_cast %379 : vector<1x2x1x32xf32> to vector<1x2x32xf32>
    %381 = arith.maximumf %378, %380 : vector<1x2x32xf32>
    %382 = vector.extract_strided_slice %372 {offsets = [0, 12, 0], sizes = [1, 4, 32], strides = [1, 1, 1]} : vector<1x24x32xf32> to vector<1x4x32xf32>
    %383 = vector.extract_strided_slice %372 {offsets = [0, 18, 0], sizes = [1, 4, 32], strides = [1, 1, 1]} : vector<1x24x32xf32> to vector<1x4x32xf32>
    %384 = arith.maximumf %382, %383 : vector<1x4x32xf32>
    %385 = vector.shape_cast %384 : vector<1x4x32xf32> to vector<1x2x2x32xf32>
    %386 = vector.extract_strided_slice %385 {offsets = [0, 0, 0, 0], sizes = [1, 2, 1, 32], strides = [1, 1, 1, 1]} : vector<1x2x2x32xf32> to vector<1x2x1x32xf32>
    %387 = vector.shape_cast %386 : vector<1x2x1x32xf32> to vector<1x2x32xf32>
    %388 = vector.extract_strided_slice %385 {offsets = [0, 0, 1, 0], sizes = [1, 2, 1, 32], strides = [1, 1, 1, 1]} : vector<1x2x2x32xf32> to vector<1x2x1x32xf32>
    %389 = vector.shape_cast %388 : vector<1x2x1x32xf32> to vector<1x2x32xf32>
    %390 = arith.maximumf %387, %389 : vector<1x2x32xf32>
    %391 = arith.truncf %381 : vector<1x2x32xf32> to vector<1x2x32xbf16>
    %c0_340 = arith.constant 0 : index
    %c5 = arith.constant 5 : index
    %c0_341 = arith.constant 0 : index
    %392 = vector.load %arg11[%c0_340, %c5, %c0_341] : memref<1x24x32xbf16, #tpu.memory_space<vmem>>, vector<1x2x32xbf16>
    tpu.vector_store %arg11[%c0_340, %c5, %c0_341], %391 {strides = array<i32>} : memref<1x24x32xbf16, #tpu.memory_space<vmem>>, vector<1x2x32xbf16>,
    %393 = arith.truncf %390 : vector<1x2x32xf32> to vector<1x2x32xbf16>
    %c0_342 = arith.constant 0 : index
    %c9 = arith.constant 9 : index
    %c0_343 = arith.constant 0 : index
    %394 = vector.load %arg11[%c0_342, %c9, %c0_343] : memref<1x24x32xbf16, #tpu.memory_space<vmem>>, vector<1x2x32xbf16>
    tpu.vector_store %arg11[%c0_342, %c9, %c0_343], %393 {strides = array<i32>} : memref<1x24x32xbf16, #tpu.memory_space<vmem>>, vector<1x2x32xbf16>,
    %c0_344 = arith.constant 0 : index
    %c0_345 = arith.constant 0 : index
    %c0_346 = arith.constant 0 : index
    %395 = vector.load %arg11[%c0_344, %c0_345, %c0_346] : memref<1x24x32xbf16, #tpu.memory_space<vmem>>, vector<1x8x32xbf16>
    %c0_347 = arith.constant 0 : index
    %c0_348 = arith.constant 0 : index
    %c0_349 = arith.constant 0 : index
    %396 = vector.load %arg15[%c0_347, %c0_348, %c0_349] : memref<1x8x288xbf16, #tpu.memory_space<vmem>>, vector<1x8x32xbf16>
    tpu.vector_store %arg15[%c0_347, %c0_348, %c0_349], %395 {strides = array<i32>} : memref<1x8x288xbf16, #tpu.memory_space<vmem>>, vector<1x8x32xbf16>,
    %c0_350 = arith.constant 0 : index
    %c1_351 = arith.constant 1 : index
    %c0_352 = arith.constant 0 : index
    %397 = vector.load %arg11[%c0_350, %c1_351, %c0_352] : memref<1x24x32xbf16, #tpu.memory_space<vmem>>, vector<1x8x32xbf16>
    %c0_353 = arith.constant 0 : index
    %c0_354 = arith.constant 0 : index
    %c32_355 = arith.constant 32 : index
    %398 = vector.load %arg15[%c0_353, %c0_354, %c32_355] : memref<1x8x288xbf16, #tpu.memory_space<vmem>>, vector<1x8x32xbf16>
    tpu.vector_store %arg15[%c0_353, %c0_354, %c32_355], %397 {strides = array<i32>} : memref<1x8x288xbf16, #tpu.memory_space<vmem>>, vector<1x8x32xbf16>,
    %c0_356 = arith.constant 0 : index
    %c2_357 = arith.constant 2 : index
    %c0_358 = arith.constant 0 : index
    %399 = vector.load %arg11[%c0_356, %c2_357, %c0_358] : memref<1x24x32xbf16, #tpu.memory_space<vmem>>, vector<1x8x32xbf16>
    %c0_359 = arith.constant 0 : index
    %c0_360 = arith.constant 0 : index
    %c64_361 = arith.constant 64 : index
    %400 = vector.load %arg15[%c0_359, %c0_360, %c64_361] : memref<1x8x288xbf16, #tpu.memory_space<vmem>>, vector<1x8x32xbf16>
    tpu.vector_store %arg15[%c0_359, %c0_360, %c64_361], %399 {strides = array<i32>} : memref<1x8x288xbf16, #tpu.memory_space<vmem>>, vector<1x8x32xbf16>,
    %c0_362 = arith.constant 0 : index
    %c4_363 = arith.constant 4 : index
    %c0_364 = arith.constant 0 : index
    %401 = vector.load %arg11[%c0_362, %c4_363, %c0_364] : memref<1x24x32xbf16, #tpu.memory_space<vmem>>, vector<1x8x32xbf16>
    %c0_365 = arith.constant 0 : index
    %c0_366 = arith.constant 0 : index
    %c96_367 = arith.constant 96 : index
    %402 = vector.load %arg15[%c0_365, %c0_366, %c96_367] : memref<1x8x288xbf16, #tpu.memory_space<vmem>>, vector<1x8x32xbf16>
    tpu.vector_store %arg15[%c0_365, %c0_366, %c96_367], %401 {strides = array<i32>} : memref<1x8x288xbf16, #tpu.memory_space<vmem>>, vector<1x8x32xbf16>,
    %c0_368 = arith.constant 0 : index
    %c5_369 = arith.constant 5 : index
    %c0_370 = arith.constant 0 : index
    %403 = vector.load %arg11[%c0_368, %c5_369, %c0_370] : memref<1x24x32xbf16, #tpu.memory_space<vmem>>, vector<1x8x32xbf16>
    %c0_371 = arith.constant 0 : index
    %c0_372 = arith.constant 0 : index
    %c128_373 = arith.constant 128 : index
    %404 = vector.load %arg15[%c0_371, %c0_372, %c128_373] : memref<1x8x288xbf16, #tpu.memory_space<vmem>>, vector<1x8x32xbf16>
    tpu.vector_store %arg15[%c0_371, %c0_372, %c128_373], %403 {strides = array<i32>} : memref<1x8x288xbf16, #tpu.memory_space<vmem>>, vector<1x8x32xbf16>,
    %c0_374 = arith.constant 0 : index
    %c6_375 = arith.constant 6 : index
    %c0_376 = arith.constant 0 : index
    %405 = vector.load %arg11[%c0_374, %c6_375, %c0_376] : memref<1x24x32xbf16, #tpu.memory_space<vmem>>, vector<1x8x32xbf16>
    %c0_377 = arith.constant 0 : index
    %c0_378 = arith.constant 0 : index
    %c160_379 = arith.constant 160 : index
    %406 = vector.load %arg15[%c0_377, %c0_378, %c160_379] : memref<1x8x288xbf16, #tpu.memory_space<vmem>>, vector<1x8x32xbf16>
    tpu.vector_store %arg15[%c0_377, %c0_378, %c160_379], %405 {strides = array<i32>} : memref<1x8x288xbf16, #tpu.memory_space<vmem>>, vector<1x8x32xbf16>,
    %c0_380 = arith.constant 0 : index
    %c8_381 = arith.constant 8 : index
    %c0_382 = arith.constant 0 : index
    %407 = vector.load %arg11[%c0_380, %c8_381, %c0_382] : memref<1x24x32xbf16, #tpu.memory_space<vmem>>, vector<1x8x32xbf16>
    %c0_383 = arith.constant 0 : index
    %c0_384 = arith.constant 0 : index
    %c192_385 = arith.constant 192 : index
    %408 = vector.load %arg15[%c0_383, %c0_384, %c192_385] : memref<1x8x288xbf16, #tpu.memory_space<vmem>>, vector<1x8x32xbf16>
    tpu.vector_store %arg15[%c0_383, %c0_384, %c192_385], %407 {strides = array<i32>} : memref<1x8x288xbf16, #tpu.memory_space<vmem>>, vector<1x8x32xbf16>,
    %c0_386 = arith.constant 0 : index
    %c9_387 = arith.constant 9 : index
    %c0_388 = arith.constant 0 : index
    %409 = vector.load %arg11[%c0_386, %c9_387, %c0_388] : memref<1x24x32xbf16, #tpu.memory_space<vmem>>, vector<1x8x32xbf16>
    %c0_389 = arith.constant 0 : index
    %c0_390 = arith.constant 0 : index
    %c224_391 = arith.constant 224 : index
    %410 = vector.load %arg15[%c0_389, %c0_390, %c224_391] : memref<1x8x288xbf16, #tpu.memory_space<vmem>>, vector<1x8x32xbf16>
    tpu.vector_store %arg15[%c0_389, %c0_390, %c224_391], %409 {strides = array<i32>} : memref<1x8x288xbf16, #tpu.memory_space<vmem>>, vector<1x8x32xbf16>,
    %c0_392 = arith.constant 0 : index
    %c10_393 = arith.constant 10 : index
    %c0_394 = arith.constant 0 : index
    %411 = vector.load %arg11[%c0_392, %c10_393, %c0_394] : memref<1x24x32xbf16, #tpu.memory_space<vmem>>, vector<1x8x32xbf16>
    %c0_395 = arith.constant 0 : index
    %c0_396 = arith.constant 0 : index
    %c256_397 = arith.constant 256 : index
    %412 = vector.load %arg15[%c0_395, %c0_396, %c256_397] : memref<1x8x288xbf16, #tpu.memory_space<vmem>>, vector<1x8x32xbf16>
    tpu.vector_store %arg15[%c0_395, %c0_396, %c256_397], %411 {strides = array<i32>} : memref<1x8x288xbf16, #tpu.memory_space<vmem>>, vector<1x8x32xbf16>,
    %c0_398 = arith.constant 0 : index
    %c0_399 = arith.constant 0 : index
    %c0_400 = arith.constant 0 : index
    %413 = vector.load %arg15[%c0_398, %c0_399, %c0_400] : memref<1x8x288xbf16, #tpu.memory_space<vmem>>, vector<1x8x288xbf16>
    %414 = vector.shape_cast %413 : vector<1x8x288xbf16> to vector<8x288xbf16>
    %c0_401 = arith.constant 0 : index
    %c0_402 = arith.constant 0 : index
    %415 = vector.load %arg5[%c0_401, %c0_402] : memref<288x32xbf16, #tpu.memory_space<vmem>>, vector<288x32xbf16>
    %cst_403 = arith.constant dense<0.000000e+00> : vector<8x32xf32>
    %416 = tpu.matmul %414, %415, %cst_403 {dimension_numbers = #tpu.dot_dimension_numbers<[1], [0], [0], [1], [0, 0, 1, 1], [], []>} : vector<8x288xbf16>, vector<288x32xbf16>, vector<8x32xf32> -> vector<8x32xf32>
    %c3 = arith.constant 3 : index
    %c0_404 = arith.constant 0 : index
    %c0_405 = arith.constant 0 : index
    %417 = vector.load %arg6[%c3, %c0_404, %c0_405] : memref<4x3x32xf32, #tpu.memory_space<vmem>>, vector<1x3x32xf32>
    %418 = vector.shape_cast %417 : vector<1x3x32xf32> to vector<3x32xf32>
    %419 = vector.extract_strided_slice %418 {offsets = [0, 0], sizes = [1, 32], strides = [1, 1]} : vector<3x32xf32> to vector<1x32xf32>
    %420 = vector.broadcast %419 : vector<1x32xf32> to vector<8x32xf32>
    %421 = arith.addf %416, %420 : vector<8x32xf32>
    %cst_406 = arith.constant 0.000000e+00 : f32
    %422 = vector.broadcast %cst_406 : f32 to vector<8x32xf32>
    %423 = arith.maximumf %421, %422 : vector<8x32xf32>
    %424 = vector.extract_strided_slice %418 {offsets = [1, 0], sizes = [1, 32], strides = [1, 1]} : vector<3x32xf32> to vector<1x32xf32>
    %425 = vector.broadcast %424 : vector<1x32xf32> to vector<8x32xf32>
    %426 = arith.mulf %423, %425 : vector<8x32xf32>
    %427 = vector.extract_strided_slice %418 {offsets = [2, 0], sizes = [1, 32], strides = [1, 1]} : vector<3x32xf32> to vector<1x32xf32>
    %428 = vector.broadcast %427 : vector<1x32xf32> to vector<8x32xf32>
    %429 = arith.addf %426, %428 : vector<8x32xf32>
    %430 = vector.shape_cast %429 : vector<8x32xf32> to vector<1x8x32xf32>
    %431 = vector.extract_strided_slice %430 {offsets = [0, 0, 0], sizes = [1, 2, 32], strides = [1, 1, 1]} : vector<1x8x32xf32> to vector<1x2x32xf32>
    %432 = vector.extract_strided_slice %430 {offsets = [0, 4, 0], sizes = [1, 2, 32], strides = [1, 1, 1]} : vector<1x8x32xf32> to vector<1x2x32xf32>
    %433 = arith.maximumf %431, %432 : vector<1x2x32xf32>
    %434 = vector.shape_cast %433 : vector<1x2x32xf32> to vector<1x1x2x32xf32>
    %435 = vector.extract_strided_slice %434 {offsets = [0, 0, 0, 0], sizes = [1, 1, 1, 32], strides = [1, 1, 1, 1]} : vector<1x1x2x32xf32> to vector<1x1x1x32xf32>
    %436 = vector.shape_cast %435 : vector<1x1x1x32xf32> to vector<1x1x32xf32>
    %437 = vector.extract_strided_slice %434 {offsets = [0, 0, 1, 0], sizes = [1, 1, 1, 32], strides = [1, 1, 1, 1]} : vector<1x1x2x32xf32> to vector<1x1x1x32xf32>
    %438 = vector.shape_cast %437 : vector<1x1x1x32xf32> to vector<1x1x32xf32>
    %439 = arith.maximumf %436, %438 : vector<1x1x32xf32>
    %c0_407 = arith.constant 0 : index
    %c0_408 = arith.constant 0 : index
    %c0_409 = arith.constant 0 : index
    %440 = vector.load %arg7[%c0_407, %c0_408, %c0_409] : memref<1x1x32xf32, #tpu.memory_space<vmem>>, vector<1x1x32xf32>
    tpu.vector_store %arg7[%c0_407, %c0_408, %c0_409], %439 {strides = array<i32>} : memref<1x1x32xf32, #tpu.memory_space<vmem>>, vector<1x1x32xf32>,
    return
  }
  func.func @transform_0(%arg0: i32) -> (i32, i32, i32, i32) {
    %c0_i32 = arith.constant 0 : i32
    %c0_i32_0 = arith.constant 0 : i32
    %c0_i32_1 = arith.constant 0 : i32
    %c0_i32_2 = arith.constant 0 : i32
    return %arg0, %c0_i32, %c0_i32_0, %c0_i32_1 : i32, i32, i32, i32
  }
  func.func @transform_1(%arg0: i32) -> (i32, i32) {
    %c0_i32 = arith.constant 0 : i32
    %c0_i32_0 = arith.constant 0 : i32
    %c0_i32_1 = arith.constant 0 : i32
    return %c0_i32, %c0_i32_0 : i32, i32
  }
  func.func @transform_2(%arg0: i32) -> (i32, i32) {
    %c0_i32 = arith.constant 0 : i32
    %c0_i32_0 = arith.constant 0 : i32
    %c0_i32_1 = arith.constant 0 : i32
    return %c0_i32, %c0_i32_0 : i32, i32
  }
  func.func @transform_3(%arg0: i32) -> (i32, i32) {
    %c0_i32 = arith.constant 0 : i32
    %c0_i32_0 = arith.constant 0 : i32
    %c0_i32_1 = arith.constant 0 : i32
    return %c0_i32, %c0_i32_0 : i32, i32
  }
  func.func @transform_4(%arg0: i32) -> (i32, i32) {
    %c0_i32 = arith.constant 0 : i32
    %c0_i32_0 = arith.constant 0 : i32
    %c0_i32_1 = arith.constant 0 : i32
    return %c0_i32, %c0_i32_0 : i32, i32
  }
  func.func @transform_5(%arg0: i32) -> (i32, i32, i32) {
    %c0_i32 = arith.constant 0 : i32
    %c0_i32_0 = arith.constant 0 : i32
    %c0_i32_1 = arith.constant 0 : i32
    %c0_i32_2 = arith.constant 0 : i32
    return %c0_i32, %c0_i32_0, %c0_i32_1 : i32, i32, i32
  }
  func.func @transform_6(%arg0: i32) -> (i32, i32, i32) {
    %c0_i32 = arith.constant 0 : i32
    %c0_i32_0 = arith.constant 0 : i32
    %c0_i32_1 = arith.constant 0 : i32
    return %arg0, %c0_i32, %c0_i32_0 : i32, i32, i32
  }
}

</mosaic_0001>

<llo_original>
// kernel: tpu_custom_call.1
$region0: #{tpu_custom_call.1}
  #allocation0 [shape = 'u32[]', space=smem, size = 0x4, offset = 0x4, fixed_abs, tag = 'smem constant byte address 0x4 - core index']
  #allocation1 [shape = 'u32[72,128]{1,0:T(1,128)}', space=vmem, size = 0x9000, scoped, tag = 'internal scratch']
  #allocation2 [shape = 'bf16[1,328,4]{2,1,0:T(8,128)(2,1)}', space=vmem, size = 0x14800, scoped, tag = 'scratch operand']
  #allocation3 [shape = 'bf16[1,104,32]{2,1,0:T(8,128)(2,1)}', space=vmem, size = 0x6800, scoped, tag = 'scratch operand']
  #allocation4 [shape = 'bf16[1,40,32]{2,1,0:T(8,128)(2,1)}', space=vmem, size = 0x2800, scoped, tag = 'scratch operand']
  #allocation5 [shape = 'bf16[1,24,32]{2,1,0:T(8,128)(2,1)}', space=vmem, size = 0x1800, scoped, tag = 'scratch operand']
  #allocation6 [shape = 'bf16[1,288,36]{2,1,0:T(8,128)(2,1)}', space=vmem, size = 0x12000, scoped, tag = 'scratch operand']
  #allocation7 [shape = 'bf16[1,80,288]{2,1,0:T(8,128)(2,1)}', space=vmem, size = 0xf000, scoped, tag = 'scratch operand']
  #allocation8 [shape = 'bf16[1,24,288]{2,1,0:T(8,128)(2,1)}', space=vmem, size = 0x4800, scoped, tag = 'scratch operand']
  #allocation9 [shape = 'bf16[1,8,288]{2,1,0:T(8,128)(2,1)}', space=vmem, size = 0x1800, scoped, tag = 'scratch operand']
  %s0 = inlined_call_operand.vmem [shape: f32[2,16,16,4], index: 0, kind: input, shape index: {}]
  %s1 = inlined_call_operand.vmem [shape: bf16[36,32], index: 1, kind: input, shape index: {}]
  %s2 = inlined_call_operand.vmem [shape: bf16[288,32], index: 2, kind: input, shape index: {}]
  %s3 = inlined_call_operand.vmem [shape: bf16[288,32], index: 3, kind: input, shape index: {}]
  %s4 = inlined_call_operand.vmem [shape: bf16[288,32], index: 4, kind: input, shape index: {}]
  %s5 = inlined_call_operand.vmem [shape: f32[4,3,32], index: 5, kind: input, shape index: {}]
  %s6 = inlined_call_operand.hbm [shape: f32[2,1,32], index: 6, kind: output, shape index: {}]
  %s7 = sld [smem:[#allocation0]]
  $region57: #{tpu_custom_call.1} parent=0
    _
  %s9 = ssub.s32 1, %s7
  %s10 = scalar_select 0, %s9, %s7
  $region1: #{tpu_custom_call.1} parent=0
    #allocation10 [shape = 'u8[1024]{0}', space=vmem, size = 0x400, scoped, tag = 'output window, operand 0']
    #allocation11 [shape = 's32[2]{0}', space=sflag, size = 0x8, scoped, tag = 'scoped memory for tpu_custom_call.1']
    %11 = vsyncpa [#allocation11], 0
    %s12 = scalar_lea.sflag [#allocation11], 1
    %13 = vsyncpa %s12, 0
    loop: start=0, step=1, limit=4
    $region2: #{tpu_custom_call.1} parent=1 // loop_pre_header
      _
    $region3: #{tpu_custom_call.1} parent=1 // loop_header
      %s15 = sphi 0, %s19
      %p16 = scmp.ge.s32.totalorder %s15, 4
      %s25 = sphi 0, %s27
      %s28 = sphi 0, %s25
      %s29 = sphi 0, %s28
      %s45 = sphi 0, %s29
      %s49 = sphi 0, %s49
      %s51 = sphi 0, %s49
      %s52 = sphi 0, %s51
      %s66 = sphi 0, %s52
      %s70 = sphi 0, %s70
      %s72 = sphi 0, %s70
      %s73 = sphi 0, %s72
      %s87 = sphi 0, %s73
      %s91 = sphi 0, %s91
      %s93 = sphi 0, %s91
      %s94 = sphi 0, %s93
      %s108 = sphi 0, %s94
      %s112 = sphi 0, %s112
      %s114 = sphi 0, %s112
      %s115 = sphi 0, %s114
      %s129 = sphi 0, %s115
      %s133 = sphi 0, %s133
      %s135 = sphi 0, %s133
      %s136 = sphi 0, %s135
      %s150 = sphi 0, %s136
      %s156 = sphi 0, %s158
      %s159 = sphi 0, %s156
      %s160 = sphi 0, %s159
      %s176 = sphi 0, %s160
    $region4: #{tpu_custom_call.1} parent=1 // loop_header_branch
      %18 = sbr.rel (%p16) target = $region8
    $region5: #{tpu_custom_call.1} parent=1 // loop_body
      %s20 = ssub.s32 %s15, 1
      %s21 = ssub.s32 %s15, 2
      %s22 = sadd.s32 %s15, 1
      %s23 = ssub.s32 %s15, %s22
      %p24 = scmp.eq.s32.totalorder %s23, 0
      %s26 = sadd.s32 %s25, 1
      %s27 = scalar_select %p24, %s25, %s26
      %p30 = pneg %p24
      %p31 = scmp.eq.s32.totalorder %s15, 1
      %p32 = por %p30, %p31
      %p33 = scmp.ne.s32.totalorder %s25, %s28
      %p34 = scmp.eq.s32.totalorder %s15, 0
      %p35 = por %p33, %p34
      %p36 = scmp.ne.s32.totalorder %s25, %s28
      %p37 = scmp.eq.s32.totalorder %s20, 1
      %p38 = por %p36, %p37
      %p39 = scmp.ne.s32.totalorder %s28, %s29
      %p40 = scmp.eq.s32.totalorder %s20, 0
      %p41 = por %p39, %p40
      %p42 = scmp.ne.s32.totalorder %s28, %s29
      %p43 = scmp.eq.s32.totalorder %s21, 1
      %p44 = por %p42, %p43
      %p46 = scmp.ne.s32.totalorder %s29, %s45
      %p47 = scmp.eq.s32.totalorder %s21, 0
      %p48 = por %p46, %p47
      %s50 = sadd.s32 %s49, 1
      %p53 = scmp.eq.s32.totalorder %s15, 1
      %p54 = scmp.ne.s32.totalorder %s49, %s51
      %p55 = scmp.eq.s32.totalorder %s15, 0
      %p56 = por %p54, %p55
      %p57 = scmp.ne.s32.totalorder %s49, %s51
      %p58 = scmp.eq.s32.totalorder %s20, 1
      %p59 = por %p57, %p58
      %p60 = scmp.ne.s32.totalorder %s51, %s52
      %p61 = scmp.eq.s32.totalorder %s20, 0
      %p62 = por %p60, %p61
      %p63 = scmp.ne.s32.totalorder %s51, %s52
      %p64 = scmp.eq.s32.totalorder %s21, 1
      %p65 = por %p63, %p64
      %p67 = scmp.ne.s32.totalorder %s52, %s66
      %p68 = scmp.eq.s32.totalorder %s21, 0
      %p69 = por %p67, %p68
      %s71 = sadd.s32 %s70, 1
      %p74 = scmp.eq.s32.totalorder %s15, 1
      %p75 = scmp.ne.s32.totalorder %s70, %s72
      %p76 = scmp.eq.s32.totalorder %s15, 0
      %p77 = por %p75, %p76
      %p78 = scmp.ne.s32.totalorder %s70, %s72
      %p79 = scmp.eq.s32.totalorder %s20, 1
      %p80 = por %p78, %p79
      %p81 = scmp.ne.s32.totalorder %s72, %s73
      %p82 = scmp.eq.s32.totalorder %s20, 0
      %p83 = por %p81, %p82
      %p84 = scmp.ne.s32.totalorder %s72, %s73
      %p85 = scmp.eq.s32.totalorder %s21, 1
      %p86 = por %p84, %p85
      %p88 = scmp.ne.s32.totalorder %s73, %s87
      %p89 = scmp.eq.s32.totalorder %s21, 0
      %p90 = por %p88, %p89
      %s92 = sadd.s32 %s91, 1
      %p95 = scmp.eq.s32.totalorder %s15, 1
      %p96 = scmp.ne.s32.totalorder %s91, %s93
      %p97 = scmp.eq.s32.totalorder %s15, 0
      %p98 = por %p96, %p97
      %p99 = scmp.ne.s32.totalorder %s91, %s93
      %p100 = scmp.eq.s32.totalorder %s20, 1
      %p101 = por %p99, %p100
      %p102 = scmp.ne.s32.totalorder %s93, %s94
      %p103 = scmp.eq.s32.totalorder %s20, 0
      %p104 = por %p102, %p103
      %p105 = scmp.ne.s32.totalorder %s93, %s94
      %p106 = scmp.eq.s32.totalorder %s21, 1
      %p107 = por %p105, %p106
      %p109 = scmp.ne.s32.totalorder %s94, %s108
      %p110 = scmp.eq.s32.totalorder %s21, 0
      %p111 = por %p109, %p110
      %s113 = sadd.s32 %s112, 1
      %p116 = scmp.eq.s32.totalorder %s15, 1
      %p117 = scmp.ne.s32.totalorder %s112, %s114
      %p118 = scmp.eq.s32.totalorder %s15, 0
      %p119 = por %p117, %p118
      %p120 = scmp.ne.s32.totalorder %s112, %s114
      %p121 = scmp.eq.s32.totalorder %s20, 1
      %p122 = por %p120, %p121
      %p123 = scmp.ne.s32.totalorder %s114, %s115
      %p124 = scmp.eq.s32.totalorder %s20, 0
      %p125 = por %p123, %p124
      %p126 = scmp.ne.s32.totalorder %s114, %s115
      %p127 = scmp.eq.s32.totalorder %s21, 1
      %p128 = por %p126, %p127
      %p130 = scmp.ne.s32.totalorder %s115, %s129
      %p131 = scmp.eq.s32.totalorder %s21, 0
      %p132 = por %p130, %p131
      %s134 = sadd.s32 %s133, 1
      %p137 = scmp.eq.s32.totalorder %s15, 1
      %p138 = scmp.ne.s32.totalorder %s133, %s135
      %p139 = scmp.eq.s32.totalorder %s15, 0
      %p140 = por %p138, %p139
      %p141 = scmp.ne.s32.totalorder %s133, %s135
      %p142 = scmp.eq.s32.totalorder %s20, 1
      %p143 = por %p141, %p142
      %p144 = scmp.ne.s32.totalorder %s135, %s136
      %p145 = scmp.eq.s32.totalorder %s20, 0
      %p146 = por %p144, %p145
      %p147 = scmp.ne.s32.totalorder %s135, %s136
      %p148 = scmp.eq.s32.totalorder %s21, 1
      %p149 = por %p147, %p148
      %p151 = scmp.ne.s32.totalorder %s136, %s150
      %p152 = scmp.eq.s32.totalorder %s21, 0
      %p153 = por %p151, %p152
      %s154 = ssub.s32 %s15, %s22
      %p155 = scmp.eq.s32.totalorder %s154, 0
      %s157 = sadd.s32 %s156, 1
      %s158 = scalar_select %p155, %s156, %s157
      %p161 = pneg %p155
      %p162 = scmp.eq.s32.totalorder %s15, 1
      %p163 = por %p161, %p162
      %p164 = scmp.ne.s32.totalorder %s156, %s159
      %p165 = scmp.eq.s32.totalorder %s15, 0
      %p166 = por %p164, %p165
      %p167 = scmp.ne.s32.totalorder %s156, %s159
      %p168 = scmp.eq.s32.totalorder %s20, 1
      %p169 = por %p167, %p168
      %p170 = scmp.ne.s32.totalorder %s159, %s160
      %p171 = scmp.eq.s32.totalorder %s20, 0
      %p172 = por %p170, %p171
      %p173 = scmp.ne.s32.totalorder %s159, %s160
      %p174 = scmp.eq.s32.totalorder %s21, 1
      %p175 = por %p173, %p174
      %p177 = scmp.ne.s32.totalorder %s160, %s176
      %p178 = scmp.eq.s32.totalorder %s21, 0
      %p179 = por %p177, %p178
      %p180 = scmp.le.s32.totalorder 1, %s15
      %p181 = scmp.lt.s32.totalorder %s15, 3
      %p182 = pnand %p180, %p181
      %p183 = pneg %p182
      // Predicated region
      $region9: #{tpu_custom_call.1} parent=5 // pred_check
        _
      $region10: #{tpu_custom_call.1} parent=5 // pred_check_branch
        %185 = sbr.rel (%p182) target = $region12
      $region11: #{tpu_custom_call.1} parent=5 // pred_region
        %s186 = ssub.s32 %s15, 1
        // Predicated region
        $region13: #{tpu_custom_call.1} parent=11 // pred_check
          %p187 = pneg %p62
        $region14: #{tpu_custom_call.1} parent=11 // pred_check_branch
          %189 = sbr.rel (%p187) target = $region16
        $region15: #{tpu_custom_call.1} parent=11 // pred_region
          _
        $region16: #{tpu_custom_call.1} parent=11 // pred_fallthru
          _
        // Predicated region
        $region17: #{tpu_custom_call.1} parent=11 // pred_check
          %p190 = pneg %p83
        $region18: #{tpu_custom_call.1} parent=11 // pred_check_branch
          %192 = sbr.rel (%p190) target = $region20
        $region19: #{tpu_custom_call.1} parent=11 // pred_region
          _
        $region20: #{tpu_custom_call.1} parent=11 // pred_fallthru
          _
        // Predicated region
        $region21: #{tpu_custom_call.1} parent=11 // pred_check
          %p193 = pneg %p104
        $region22: #{tpu_custom_call.1} parent=11 // pred_check_branch
          %195 = sbr.rel (%p193) target = $region24
        $region23: #{tpu_custom_call.1} parent=11 // pred_region
          _
        $region24: #{tpu_custom_call.1} parent=11 // pred_fallthru
          _
        // Predicated region
        $region25: #{tpu_custom_call.1} parent=11 // pred_check
          %p196 = pneg %p125
        $region26: #{tpu_custom_call.1} parent=11 // pred_check_branch
          %198 = sbr.rel (%p196) target = $region28
        $region27: #{tpu_custom_call.1} parent=11 // pred_region
          _
        $region28: #{tpu_custom_call.1} parent=11 // pred_fallthru
          _
        // Predicated region
        $region29: #{tpu_custom_call.1} parent=11 // pred_check
          %p199 = pneg %p146
        $region30: #{tpu_custom_call.1} parent=11 // pred_check_branch
          %201 = sbr.rel (%p199) target = $region32
        $region31: #{tpu_custom_call.1} parent=11 // pred_region
          _
        $region32: #{tpu_custom_call.1} parent=11 // pred_fallthru
          _
      $region12: #{tpu_custom_call.1} parent=5 // pred_fallthru
        _
      %p202 = scmp.lt.s32.totalorder %s15, 2
      // Predicated region
      $region33: #{tpu_custom_call.1} parent=5 // pred_check
        %p203 = pneg %p202
      $region34: #{tpu_custom_call.1} parent=5 // pred_check_branch
        %205 = sbr.rel (%p203) target = $region36
      $region35: #{tpu_custom_call.1} parent=5 // pred_region
        // Predicated region
        $region37: #{tpu_custom_call.1} parent=35 // pred_check
          %p206 = pneg %p35
        $region38: #{tpu_custom_call.1} parent=35 // pred_check_branch
          %208 = sbr.rel (%p206) target = $region40
        $region39: #{tpu_custom_call.1} parent=35 // pred_region
          %p209 = scmp.lt.s32.totalorder %s15, 1
          %s210 = scalar_select %p209, %s15, 1
          %s211 = smul.addr %s210, 32
          %s212 = smul.addr %s211, 8
          %s213 = scalar_lea.vmem %s0, %s212
        $region40: #{tpu_custom_call.1} parent=35 // pred_fallthru
          _
      $region36: #{tpu_custom_call.1} parent=5 // pred_fallthru
        _
      %p214 = scmp.le.s32.totalorder 1, %s15
      %p215 = scmp.lt.s32.totalorder %s15, 3
      %p216 = pnand %p214, %p215
      %p217 = pneg %p216
      // Predicated region
      $region41: #{tpu_custom_call.1} parent=5 // pred_check
        _
      $region42: #{tpu_custom_call.1} parent=5 // pred_check_branch
        %219 = sbr.rel (%p216) target = $region44
      $region43: #{tpu_custom_call.1} parent=5 // pred_region
        %s220 = ssub.s32 %s15, 1
        %p221 = scmp.lt.s32.totalorder %s20, 1
        %s222 = scalar_select %p221, %s20, 1
        %s223 = smul.addr %s222, 32
        %s224 = smul.addr %s223, 8
        %s225 = scalar_lea.vmem %s0, %s224
        %p226 = pneg %p41
        %p227 = pneg %p38
        %p228 = pneg %p62
        %p229 = pneg %p59
        %p230 = pneg %p83
        %p231 = pneg %p80
        %p232 = pneg %p104
        %p233 = pneg %p101
        %p234 = pneg %p125
        %p235 = pneg %p122
        %p236 = pneg %p146
        %p237 = pneg %p143
        %p238 = pneg %p172
        %p239 = pneg %p169
        %s240 = sand.u32 %s159, 1
        %s241 = scalar_lea.sflag [#allocation11], %s240
        %s242 = sand.u32 %s159, 1
        %s243 = scalar_lea.vmem [#allocation10], %s242
        %p244 = scmp.lt.s32.totalorder %s20, 1
        %s245 = scalar_select %p244, %s20, 1
        %s246 = smul.addr %s245, 32
        %s247 = smul.addr %s246, 8
        %s248 = scalar_lea.vmem %s0, %s247
        %vm250 = vcmask 27648
        %251 = vst.msk [vmem:[#allocation2] sm:$0xf] %vm250, 0
        %252 = vst.msk [vmem:[#allocation2 + $0x4] sm:$0xf] %vm250, 0
        %vm253 = vcmask 25600
        %vm254 = vsmask.f32 1280
        %vm255 = vmand %vm253, %vm254
        %v256 = vld [vmem:[#allocation2 + $0x8] sm:$0x3]
        %v257 = vsel %vm255, 0, %v256
        %258 = vst [vmem:[#allocation2 + $0x8] sm:$0x3] %v257
        %vm259 = vcmask 26625
        %vm260 = vsmask.f32 2310
        %vm261 = vmand %vm259, %vm260
        %v262 = vld [vmem:[#allocation2 + $0x10] sm:$0x6]
        %v263 = vsel %vm261, 0, %v262
        %264 = vst [vmem:[#allocation2 + $0x10] sm:$0x6] %v263
        %vm265 = vcmask 27650
        %vm266 = vsmask.f32 3338
        %vm267 = vmand %vm265, %vm266
        %v268 = vld [vmem:[#allocation2 + $0x18] sm:$0xc]
        %v269 = vsel %vm267, 0, %v268
        %270 = vst [vmem:[#allocation2 + $0x18] sm:$0xc] %v269
        %vm271 = vcmask 27651
        %vm272 = vsmask.f32 7950
        %vm273 = vmand %vm271, %vm272
        %v274 = vld [vmem:[#allocation2 + $0x20] sm:$0x8]
        %v275 = vsel %vm273, 0, %v274
        %276 = vst [vmem:[#allocation2 + $0x20] sm:$0x8] %v275
        %vm277 = vcmask 24576
        %vm278 = vsmask.f32 256
        %vm279 = vmand %vm277, %vm278
        %v280 = vld [vmem:[#allocation2 + $0x24] sm:$0x1]
        %v281 = vsel %vm279, 0, %v280
        %282 = vst [vmem:[#allocation2 + $0x24] sm:$0x1] %v281
        %vm283 = vsmask.f32 1282
        %vm284 = vmand %vm253, %vm283
        %v285 = vld [vmem:[#allocation2 + $0x2c] sm:$0x3]
        %v286 = vsel %vm284, 0, %v285
        %287 = vst [vmem:[#allocation2 + $0x2c] sm:$0x3] %v286
        %v288 = vld [vmem:[#allocation2 + $0x34] sm:$0x6]
        %v289 = vsel %vm261, 0, %v288
        %290 = vst [vmem:[#allocation2 + $0x34] sm:$0x6] %v289
        %v291 = vld [vmem:[#allocation2 + $0x3c] sm:$0xc]
        %v292 = vsel %vm267, 0, %v291
        %293 = vst [vmem:[#allocation2 + $0x3c] sm:$0xc] %v292
        %v294 = vld [vmem:[#allocation2 + $0x44] sm:$0x8]
        %v295 = vsel %vm273, 0, %v294
        %296 = vst [vmem:[#allocation2 + $0x44] sm:$0x8] %v295
        %v297 = vld [vmem:[#allocation2 + $0x48] sm:$0x1]
        %v298 = vsel %vm279, 0, %v297
        %299 = vst [vmem:[#allocation2 + $0x48] sm:$0x1] %v298
        %v300 = vld [vmem:[#allocation2 + $0x50] sm:$0x3]
        %v301 = vsel %vm284, 0, %v300
        %302 = vst [vmem:[#allocation2 + $0x50] sm:$0x3] %v301
        %v303 = vld [vmem:[#allocation2 + $0x58] sm:$0x6]
        %v304 = vsel %vm261, 0, %v303
        %305 = vst [vmem:[#allocation2 + $0x58] sm:$0x6] %v304
        %v306 = vld [vmem:[#allocation2 + $0x60] sm:$0xc]
        %v307 = vsel %vm267, 0, %v306
        %308 = vst [vmem:[#allocation2 + $0x60] sm:$0xc] %v307
        %v309 = vld [vmem:[#allocation2 + $0x68] sm:$0x8]
        %v310 = vsel %vm273, 0, %v309
        %311 = vst [vmem:[#allocation2 + $0x68] sm:$0x8] %v310
        %v312 = vld [vmem:[#allocation2 + $0x6c] sm:$0x1]
        %v313 = vsel %vm279, 0, %v312
        %314 = vst [vmem:[#allocation2 + $0x6c] sm:$0x1] %v313
        %v315 = vld [vmem:[#allocation2 + $0x74] sm:$0x3]
        %v316 = vsel %vm284, 0, %v315
        %317 = vst [vmem:[#allocation2 + $0x74] sm:$0x3] %v316
        %v318 = vld [vmem:[#allocation2 + $0x7c] sm:$0x6]
        %v319 = vsel %vm261, 0, %v318
        %320 = vst [vmem:[#allocation2 + $0x7c] sm:$0x6] %v319
        %v321 = vld [vmem:[#allocation2 + $0x84] sm:$0xc]
        %v322 = vsel %vm267, 0, %v321
        %323 = vst [vmem:[#allocation2 + $0x84] sm:$0xc] %v322
        %v324 = vld [vmem:[#allocation2 + $0x8c] sm:$0x8]
        %v325 = vsel %vm273, 0, %v324
        %326 = vst [vmem:[#allocation2 + $0x8c] sm:$0x8] %v325
        %v327 = vld [vmem:[#allocation2 + $0x90] sm:$0x1]
        %v328 = vsel %vm279, 0, %v327
        %329 = vst [vmem:[#allocation2 + $0x90] sm:$0x1] %v328
        %vm330 = vcmask 27648
        %vm331 = vsmask.f32 7938
        %vm332 = vmand %vm330, %vm331
        %v333 = vld [vmem:[#allocation2 + $0x98] sm:$0xf]
        %v334 = vsel %vm332, 0, %v333
        %335 = vst [vmem:[#allocation2 + $0x98] sm:$0xf] %v334
        %336 = vst.msk [vmem:[#allocation2 + $0x9c] sm:$0xf] %vm250, 0
        %337 = vst.msk [vmem:[#allocation2 + $0xa0] sm:$0xf] %vm250, 0
        %vm338 = vcmask 257024
        %339 = vst.msk [vmem:[#allocation3] sm:$0xf] %vm338, 0
        %vm340 = vcmask 254976
        %vm341 = vmand %vm340, %vm254
        %v342 = vld [vmem:[#allocation3 + $0x4] sm:$0x3]
        %v343 = vsel %vm341, 0, %v342
        %344 = vst [vmem:[#allocation3 + $0x4] sm:$0x3] %v343
        %vm345 = vcmask 256001
        %vm346 = vmand %vm345, %vm260
        %v347 = vld [vmem:[#allocation3 + $0x8] sm:$0x6]
        %v348 = vsel %vm346, 0, %v347
        %349 = vst [vmem:[#allocation3 + $0x8] sm:$0x6] %v348
        %vm350 = vcmask 257026
        %vm351 = vmand %vm350, %vm266
        %v352 = vld [vmem:[#allocation3 + $0xc] sm:$0xc]
        %v353 = vsel %vm351, 0, %v352
        %354 = vst [vmem:[#allocation3 + $0xc] sm:$0xc] %v353
        %vm355 = vcmask 257027
        %vm356 = vmand %vm355, %vm272
        %v357 = vld [vmem:[#allocation3 + $0x10] sm:$0x8]
        %v358 = vsel %vm356, 0, %v357
        %359 = vst [vmem:[#allocation3 + $0x10] sm:$0x8] %v358
        %vm360 = vcmask 253952
        %vm361 = vmand %vm360, %vm278
        %v362 = vld [vmem:[#allocation3 + $0x14] sm:$0x1]
        %v363 = vsel %vm361, 0, %v362
        %364 = vst [vmem:[#allocation3 + $0x14] sm:$0x1] %v363
        %vm365 = vmand %vm340, %vm283
        %v366 = vld [vmem:[#allocation3 + $0x18] sm:$0x3]
        %v367 = vsel %vm365, 0, %v366
        %368 = vst [vmem:[#allocation3 + $0x18] sm:$0x3] %v367
        %v369 = vld [vmem:[#allocation3 + $0x1c] sm:$0x6]
        %v370 = vsel %vm346, 0, %v369
        %371 = vst [vmem:[#allocation3 + $0x1c] sm:$0x6] %v370
        %v372 = vld [vmem:[#allocation3 + $0x20] sm:$0xc]
        %v373 = vsel %vm351, 0, %v372
        %374 = vst [vmem:[#allocation3 + $0x20] sm:$0xc] %v373
        %v375 = vld [vmem:[#allocation3 + $0x24] sm:$0x8]
        %v376 = vsel %vm356, 0, %v375
        %377 = vst [vmem:[#allocation3 + $0x24] sm:$0x8] %v376
        %v378 = vld [vmem:[#allocation3 + $0x28] sm:$0x1]
        %v379 = vsel %vm361, 0, %v378
        %380 = vst [vmem:[#allocation3 + $0x28] sm:$0x1] %v379
        %vm381 = vcmask 257024
        %vm382 = vmand %vm381, %vm331
        %v383 = vld [vmem:[#allocation3 + $0x2c] sm:$0xf]
        %v384 = vsel %vm382, 0, %v383
        %385 = vst [vmem:[#allocation3 + $0x2c] sm:$0xf] %v384
        %386 = vst.msk [vmem:[#allocation3 + $0x30] sm:$0xf] %vm338, 0
        %vm387 = vsmask.f32 3328
        %vm388 = vmand %vm381, %vm387
        %v389 = vld [vmem:[#allocation4] sm:$0xf]
        %v390 = vsel %vm388, 0, %v389
        %391 = vst [vmem:[#allocation4] sm:$0xf] %v390
        %v392 = vld [vmem:[#allocation4 + $0x4] sm:$0x6]
        %v393 = vsel %vm346, 0, %v392
        %394 = vst [vmem:[#allocation4 + $0x4] sm:$0x6] %v393
        %v395 = vld [vmem:[#allocation4 + $0x8] sm:$0x3]
        %v396 = vsel %vm365, 0, %v395
        %397 = vst [vmem:[#allocation4 + $0x8] sm:$0x3] %v396
        %v398 = vld [vmem:[#allocation4 + $0x8] sm:$0x8]
        %v399 = vsel %vm356, 0, %v398
        %400 = vst [vmem:[#allocation4 + $0x8] sm:$0x8] %v399
        %v401 = vld [vmem:[#allocation4 + $0xc] sm:$0x1]
        %v402 = vsel %vm361, 0, %v401
        %403 = vst [vmem:[#allocation4 + $0xc] sm:$0x1] %v402
        %vm404 = vsmask.f32 7946
        %vm405 = vmand %vm350, %vm404
        %v406 = vld [vmem:[#allocation4 + $0xc] sm:$0xc]
        %v407 = vsel %vm405, 0, %v406
        %408 = vst [vmem:[#allocation4 + $0xc] sm:$0xc] %v407
        %409 = vst.msk [vmem:[#allocation4 + $0x10] sm:$0xf] %vm338, 0
        %vm410 = vcmask 256000
        %vm411 = vsmask.f32 2304
        %vm412 = vmand %vm410, %vm411
        %v413 = vld [vmem:[#allocation5] sm:$0x7]
        %v414 = vsel %vm412, 0, %v413
        %415 = vst [vmem:[#allocation5] sm:$0x7] %v414
        %v416 = vld [vmem:[#allocation5] sm:$0x8]
        %v417 = vsel %vm356, 0, %v416
        %418 = vst [vmem:[#allocation5] sm:$0x8] %v417
        %v419 = vld [vmem:[#allocation5 + $0x4] sm:$0x1]
        %v420 = vsel %vm361, 0, %v419
        %421 = vst [vmem:[#allocation5 + $0x4] sm:$0x1] %v420
        %vm422 = vcmask 257025
        %vm423 = vsmask.f32 7942
        %vm424 = vmand %vm422, %vm423
        %v425 = vld [vmem:[#allocation5 + $0x4] sm:$0xe]
        %v426 = vsel %vm424, 0, %v425
        %427 = vst [vmem:[#allocation5 + $0x4] sm:$0xe] %v426
        %428 = vst.msk [vmem:[#allocation5 + $0x8] sm:$0xf] %vm338, 0
        %v429 = vld [vmem:[%s248] sm:$0xff]
        %v430 = vld [vmem:[%s248 + $0x8] sm:$0xff]
        %v431 = vld [vmem:[%s248 + $0x10] sm:$0xff]
        %v432 = vld [vmem:[%s248 + $0x18] sm:$0xff]
        %v433 = vld [vmem:[%s248 + $0x20] sm:$0xff]
        %v434 = vld [vmem:[%s248 + $0x28] sm:$0xff]
        %v435 = vld [vmem:[%s248 + $0x30] sm:$0xff]
        %v436 = vld [vmem:[%s248 + $0x38] sm:$0xff]
        %v437 = vld [vmem:[%s248 + $0x40] sm:$0xff]
        %v438 = vld [vmem:[%s248 + $0x48] sm:$0xff]
        %v439 = vld [vmem:[%s248 + $0x50] sm:$0xff]
        %v440 = vld [vmem:[%s248 + $0x58] sm:$0xff]
        %v441 = vld [vmem:[%s248 + $0x60] sm:$0xff]
        %v442 = vld [vmem:[%s248 + $0x68] sm:$0xff]
        %v443 = vld [vmem:[%s248 + $0x70] sm:$0xff]
        %v444 = vld [vmem:[%s248 + $0x78] sm:$0xff]
        %v445 = vld [vmem:[%s248 + $0x80] sm:$0xff]
        %v446 = vld [vmem:[%s248 + $0x88] sm:$0xff]
        %v447 = vld [vmem:[%s248 + $0x90] sm:$0xff]
        %v448 = vld [vmem:[%s248 + $0x98] sm:$0xff]
        %v449 = vld [vmem:[%s248 + $0xa0] sm:$0xff]
        %v450 = vld [vmem:[%s248 + $0xa8] sm:$0xff]
        %v451 = vld [vmem:[%s248 + $0xb0] sm:$0xff]
        %v452 = vld [vmem:[%s248 + $0xb8] sm:$0xff]
        %v453 = vld [vmem:[%s248 + $0xc0] sm:$0xff]
        %v454 = vld [vmem:[%s248 + $0xc8] sm:$0xff]
        %v455 = vld [vmem:[%s248 + $0xd0] sm:$0xff]
        %v456 = vld [vmem:[%s248 + $0xd8] sm:$0xff]
        %v457 = vld [vmem:[%s248 + $0xe0] sm:$0xff]
        %v458 = vld [vmem:[%s248 + $0xe8] sm:$0xff]
        %v459 = vld [vmem:[%s248 + $0xf0] sm:$0xff]
        %v460 = vld [vmem:[%s248 + $0xf8] sm:$0xff]
        %v461 = vpack.c.bf16 %v429, %v429
        %v462 = vpack.c.bf16 %v430, %v430
        %vm463 = vsmask.f32 5392
        %vm464 = vmor %vm254, %vm463
        %v466 = vshrl.u32 %v461, 16
        %v468 = vrot.slane %v466, 6
        %v469 = vshll.u32 %v461, 16
        %v471 = vrot.slane %v469, 7
        %v472 = vor.u32 %v468, %v471
        %v473 = vrot.slane %v472, 4
        %v475 = vshrl.u32 %v462, 16
        %v477 = vrot.slane %v475, 6
        %v478 = vshll.u32 %v462, 16
        %v480 = vrot.slane %v478, 7
        %v481 = vor.u32 %v477, %v480
        %v482 = vsel %vm464, %v473, %v481
        %v483 = vrot.slane %v481, 4
        %vm487 = vcmask 27649
        %vm488 = vmand %vm487, %vm423
        %v489 = vld [vmem:[#allocation2 + $0x8] sm:$0xe]
        %v490 = vsel %vm488, %v472, %v489
        %491 = vst [vmem:[#allocation2 + $0x8] sm:$0xe] %v490
        %492 = vst.msk [vmem:[#allocation2 + $0xc] sm:$0xf] %vm250, %v482
        %v493 = vld [vmem:[#allocation2 + $0x10] sm:$0x3]
        %v494 = vsel %vm255, %v483, %v493
        %495 = vst [vmem:[#allocation2 + $0x10] sm:$0x3] %v494
        %v496 = vpack.c.bf16 %v431, %v431
        %v497 = vpack.c.bf16 %v432, %v432
        %vm498 = vsmask.f32 6416
        %vm499 = vmor %vm411, %vm498
        %v501 = vshrl.u32 %v496, 16
        %v503 = vrot.slane %v501, 5
        %v504 = vshll.u32 %v496, 16
        %v506 = vrot.slane %v504, 6
        %v507 = vor.u32 %v503, %v506
        %v508 = vrot.slane %v507, 4
        %v510 = vshrl.u32 %v497, 16
        %v512 = vrot.slane %v510, 5
        %v513 = vshll.u32 %v497, 16
        %v515 = vrot.slane %v513, 6
        %v516 = vor.u32 %v512, %v515
        %v517 = vsel %vm499, %v508, %v516
        %v518 = vrot.slane %v516, 4
        %vm522 = vmand %vm265, %vm404
        %v523 = vld [vmem:[#allocation2 + $0x10] sm:$0xc]
        %v524 = vsel %vm522, %v507, %v523
        %525 = vst [vmem:[#allocation2 + $0x10] sm:$0xc] %v524
        %526 = vst.msk [vmem:[#allocation2 + $0x14] sm:$0xf] %vm250, %v517
        %vm527 = vcmask 26624
        %vm528 = vmand %vm527, %vm411
        %v529 = vld [vmem:[#allocation2 + $0x18] sm:$0x7]
        %v530 = vsel %vm528, %v518, %v529
        %531 = vst [vmem:[#allocation2 + $0x18] sm:$0x7] %v530
        %v532 = vpack.c.bf16 %v433, %v433
        %v533 = vpack.c.bf16 %v434, %v434
        %vm534 = vsmask.f32 7440
        %vm535 = vmor %vm387, %vm534
        %v537 = vshll.u32 %v532, 16
        %v539 = vrot.slane %v537, 5
        %v540 = vshrl.u32 %v532, 16
        %v542 = vrot.slane %v540, 4
        %v543 = vor.u32 %v542, %v539
        %v544 = vrot.slane %v543, 4
        %v546 = vshll.u32 %v533, 16
        %v548 = vrot.slane %v546, 5
        %v549 = vsel %vm535, %v544, %v548
        %v550 = vshrl.u32 %v533, 16
        %v552 = vrot.slane %v550, 4
        %v553 = vor.u32 %v552, %v548
        %v554 = vrot.slane %v553, 4
        %v558 = vld [vmem:[#allocation2 + $0x18] sm:$0x8]
        %v559 = vsel %vm273, %v539, %v558
        %560 = vst [vmem:[#allocation2 + $0x18] sm:$0x8] %v559
        %561 = vst.msk [vmem:[#allocation2 + $0x1c] sm:$0xf] %vm250, %v549
        %vm562 = vmand %vm330, %vm387
        %v563 = vld [vmem:[#allocation2 + $0x20] sm:$0xf]
        %v564 = vsel %vm562, %v554, %v563
        %565 = vst [vmem:[#allocation2 + $0x20] sm:$0xf] %v564
        %v566 = vpack.c.bf16 %v435, %v435
        %v567 = vpack.c.bf16 %v436, %v436
        %vm568 = vsmask.f32 4368
        %vm569 = vmor %vm278, %vm568
        %v571 = vshrl.u32 %v566, 16
        %v573 = vrot.slane %v571, 7
        %v574 = vshll.u32 %v566, 16
        %v576 = vor.u32 %v573, %v574
        %v577 = vrot.slane %v573, 4
        %v579 = vshrl.u32 %v567, 16
        %v581 = vrot.slane %v579, 7
        %v582 = vshll.u32 %v567, 16
        %v584 = vor.u32 %v581, %v582
        %v585 = vsel %vm569, %v577, %v584
        %v586 = vrot.slane %v581, 4
        %v590 = vld [vmem:[#allocation2 + $0x24] sm:$0xf]
        %v591 = vsel %vm332, %v576, %v590
        %592 = vst [vmem:[#allocation2 + $0x24] sm:$0xf] %v591
        %593 = vst.msk [vmem:[#allocation2 + $0x28] sm:$0xf] %vm250, %v585
        %v594 = vld [vmem:[#allocation2 + $0x2c] sm:$0x1]
        %v595 = vsel %vm279, %v586, %v594
        %596 = vst [vmem:[#allocation2 + $0x2c] sm:$0x1] %v595
        %v597 = vpack.c.bf16 %v437, %v437
        %v598 = vpack.c.bf16 %v438, %v438
        %v600 = vshrl.u32 %v597, 16
        %v602 = vrot.slane %v600, 6
        %v603 = vshll.u32 %v597, 16
        %v605 = vrot.slane %v603, 7
        %v606 = vor.u32 %v602, %v605
        %v607 = vrot.slane %v606, 4
        %v609 = vshrl.u32 %v598, 16
        %v611 = vrot.slane %v609, 6
        %v612 = vshll.u32 %v598, 16
        %v614 = vrot.slane %v612, 7
        %v615 = vor.u32 %v611, %v614
        %v616 = vsel %vm464, %v607, %v615
        %v617 = vrot.slane %v615, 4
        %v621 = vld [vmem:[#allocation2 + $0x2c] sm:$0xe]
        %v622 = vsel %vm488, %v606, %v621
        %623 = vst [vmem:[#allocation2 + $0x2c] sm:$0xe] %v622
        %624 = vst.msk [vmem:[#allocation2 + $0x30] sm:$0xf] %vm250, %v616
        %v625 = vld [vmem:[#allocation2 + $0x34] sm:$0x3]
        %v626 = vsel %vm255, %v617, %v625
        %627 = vst [vmem:[#allocation2 + $0x34] sm:$0x3] %v626
        %v628 = vpack.c.bf16 %v439, %v439
        %v629 = vpack.c.bf16 %v440, %v440
        %v631 = vshrl.u32 %v628, 16
        %v633 = vrot.slane %v631, 5
        %v634 = vshll.u32 %v628, 16
        %v636 = vrot.slane %v634, 6
        %v637 = vor.u32 %v633, %v636
        %v638 = vrot.slane %v637, 4
        %v640 = vshrl.u32 %v629, 16
        %v642 = vrot.slane %v640, 5
        %v643 = vshll.u32 %v629, 16
        %v645 = vrot.slane %v643, 6
        %v646 = vor.u32 %v642, %v645
        %v647 = vsel %vm499, %v638, %v646
        %v648 = vrot.slane %v646, 4
        %v652 = vld [vmem:[#allocation2 + $0x34] sm:$0xc]
        %v653 = vsel %vm522, %v637, %v652
        %654 = vst [vmem:[#allocation2 + $0x34] sm:$0xc] %v653
        %655 = vst.msk [vmem:[#allocation2 + $0x38] sm:$0xf] %vm250, %v647
        %v656 = vld [vmem:[#allocation2 + $0x3c] sm:$0x7]
        %v657 = vsel %vm528, %v648, %v656
        %658 = vst [vmem:[#allocation2 + $0x3c] sm:$0x7] %v657
        %v659 = vpack.c.bf16 %v441, %v441
        %v660 = vpack.c.bf16 %v442, %v442
        %v662 = vshll.u32 %v659, 16
        %v664 = vrot.slane %v662, 5
        %v665 = vshrl.u32 %v659, 16
        %v667 = vrot.slane %v665, 4
        %v668 = vor.u32 %v667, %v664
        %v669 = vrot.slane %v668, 4
        %v671 = vshll.u32 %v660, 16
        %v673 = vrot.slane %v671, 5
        %v674 = vsel %vm535, %v669, %v673
        %v675 = vshrl.u32 %v660, 16
        %v677 = vrot.slane %v675, 4
        %v678 = vor.u32 %v677, %v673
        %v679 = vrot.slane %v678, 4
        %v683 = vld [vmem:[#allocation2 + $0x3c] sm:$0x8]
        %v684 = vsel %vm273, %v664, %v683
        %685 = vst [vmem:[#allocation2 + $0x3c] sm:$0x8] %v684
        %686 = vst.msk [vmem:[#allocation2 + $0x40] sm:$0xf] %vm250, %v674
        %v687 = vld [vmem:[#allocation2 + $0x44] sm:$0xf]
        %v688 = vsel %vm562, %v679, %v687
        %689 = vst [vmem:[#allocation2 + $0x44] sm:$0xf] %v688
        %v690 = vpack.c.bf16 %v443, %v443
        %v691 = vpack.c.bf16 %v444, %v444
        %v693 = vshrl.u32 %v690, 16
        %v695 = vrot.slane %v693, 7
        %v696 = vshll.u32 %v690, 16
        %v698 = vor.u32 %v695, %v696
        %v699 = vrot.slane %v695, 4
        %v701 = vshrl.u32 %v691, 16
        %v703 = vrot.slane %v701, 7
        %v704 = vshll.u32 %v691, 16
        %v706 = vor.u32 %v703, %v704
        %v707 = vsel %vm569, %v699, %v706
        %v708 = vrot.slane %v703, 4
        %v712 = vld [vmem:[#allocation2 + $0x48] sm:$0xf]
        %v713 = vsel %vm332, %v698, %v712
        %714 = vst [vmem:[#allocation2 + $0x48] sm:$0xf] %v713
        %715 = vst.msk [vmem:[#allocation2 + $0x4c] sm:$0xf] %vm250, %v707
        %v716 = vld [vmem:[#allocation2 + $0x50] sm:$0x1]
        %v717 = vsel %vm279, %v708, %v716
        %718 = vst [vmem:[#allocation2 + $0x50] sm:$0x1] %v717
        %v719 = vpack.c.bf16 %v445, %v445
        %v720 = vpack.c.bf16 %v446, %v446
        %v722 = vshrl.u32 %v719, 16
        %v724 = vrot.slane %v722, 6
        %v725 = vshll.u32 %v719, 16
        %v727 = vrot.slane %v725, 7
        %v728 = vor.u32 %v724, %v727
        %v729 = vrot.slane %v728, 4
        %v731 = vshrl.u32 %v720, 16
        %v733 = vrot.slane %v731, 6
        %v734 = vshll.u32 %v720, 16
        %v736 = vrot.slane %v734, 7
        %v737 = vor.u32 %v733, %v736
        %v738 = vsel %vm464, %v729, %v737
        %v739 = vrot.slane %v737, 4
        %v743 = vld [vmem:[#allocation2 + $0x50] sm:$0xe]
        %v744 = vsel %vm488, %v728, %v743
        %745 = vst [vmem:[#allocation2 + $0x50] sm:$0xe] %v744
        %746 = vst.msk [vmem:[#allocation2 + $0x54] sm:$0xf] %vm250, %v738
        %v747 = vld [vmem:[#allocation2 + $0x58] sm:$0x3]
        %v748 = vsel %vm255, %v739, %v747
        %749 = vst [vmem:[#allocation2 + $0x58] sm:$0x3] %v748
        %v750 = vpack.c.bf16 %v447, %v447
        %v751 = vpack.c.bf16 %v448, %v448
        %v753 = vshrl.u32 %v750, 16
        %v755 = vrot.slane %v753, 5
        %v756 = vshll.u32 %v750, 16
        %v758 = vrot.slane %v756, 6
        %v759 = vor.u32 %v755, %v758
        %v760 = vrot.slane %v759, 4
        %v762 = vshrl.u32 %v751, 16
        %v764 = vrot.slane %v762, 5
        %v765 = vshll.u32 %v751, 16
        %v767 = vrot.slane %v765, 6
        %v768 = vor.u32 %v764, %v767
        %v769 = vsel %vm499, %v760, %v768
        %v770 = vrot.slane %v768, 4
        %v774 = vld [vmem:[#allocation2 + $0x58] sm:$0xc]
        %v775 = vsel %vm522, %v759, %v774
        %776 = vst [vmem:[#allocation2 + $0x58] sm:$0xc] %v775
        %777 = vst.msk [vmem:[#allocation2 + $0x5c] sm:$0xf] %vm250, %v769
        %v778 = vld [vmem:[#allocation2 + $0x60] sm:$0x7]
        %v779 = vsel %vm528, %v770, %v778
        %780 = vst [vmem:[#allocation2 + $0x60] sm:$0x7] %v779
        %v781 = vpack.c.bf16 %v449, %v449
        %v782 = vpack.c.bf16 %v450, %v450
        %v784 = vshll.u32 %v781, 16
        %v786 = vrot.slane %v784, 5
        %v787 = vshrl.u32 %v781, 16
        %v789 = vrot.slane %v787, 4
        %v790 = vor.u32 %v789, %v786
        %v791 = vrot.slane %v790, 4
        %v793 = vshll.u32 %v782, 16
        %v795 = vrot.slane %v793, 5
        %v796 = vsel %vm535, %v791, %v795
        %v797 = vshrl.u32 %v782, 16
        %v799 = vrot.slane %v797, 4
        %v800 = vor.u32 %v799, %v795
        %v801 = vrot.slane %v800, 4
        %v805 = vld [vmem:[#allocation2 + $0x60] sm:$0x8]
        %v806 = vsel %vm273, %v786, %v805
        %807 = vst [vmem:[#allocation2 + $0x60] sm:$0x8] %v806
        %808 = vst.msk [vmem:[#allocation2 + $0x64] sm:$0xf] %vm250, %v796
        %v809 = vld [vmem:[#allocation2 + $0x68] sm:$0xf]
        %v810 = vsel %vm562, %v801, %v809
        %811 = vst [vmem:[#allocation2 + $0x68] sm:$0xf] %v810
        %v812 = vpack.c.bf16 %v451, %v451
        %v813 = vpack.c.bf16 %v452, %v452
        %v815 = vshrl.u32 %v812, 16
        %v817 = vrot.slane %v815, 7
        %v818 = vshll.u32 %v812, 16
        %v820 = vor.u32 %v817, %v818
        %v821 = vrot.slane %v817, 4
        %v823 = vshrl.u32 %v813, 16
        %v825 = vrot.slane %v823, 7
        %v826 = vshll.u32 %v813, 16
        %v828 = vor.u32 %v825, %v826
        %v829 = vsel %vm569, %v821, %v828
        %v830 = vrot.slane %v825, 4
        %v834 = vld [vmem:[#allocation2 + $0x6c] sm:$0xf]
        %v835 = vsel %vm332, %v820, %v834
        %836 = vst [vmem:[#allocation2 + $0x6c] sm:$0xf] %v835
        %837 = vst.msk [vmem:[#allocation2 + $0x70] sm:$0xf] %vm250, %v829
        %v838 = vld [vmem:[#allocation2 + $0x74] sm:$0x1]
        %v839 = vsel %vm279, %v830, %v838
        %840 = vst [vmem:[#allocation2 + $0x74] sm:$0x1] %v839
        %v841 = vpack.c.bf16 %v453, %v453
        %v842 = vpack.c.bf16 %v454, %v454
        %v844 = vshrl.u32 %v841, 16
        %v846 = vrot.slane %v844, 6
        %v847 = vshll.u32 %v841, 16
        %v849 = vrot.slane %v847, 7
        %v850 = vor.u32 %v846, %v849
        %v851 = vrot.slane %v850, 4
        %v853 = vshrl.u32 %v842, 16
        %v855 = vrot.slane %v853, 6
        %v856 = vshll.u32 %v842, 16
        %v858 = vrot.slane %v856, 7
        %v859 = vor.u32 %v855, %v858
        %v860 = vsel %vm464, %v851, %v859
        %v861 = vrot.slane %v859, 4
        %v865 = vld [vmem:[#allocation2 + $0x74] sm:$0xe]
        %v866 = vsel %vm488, %v850, %v865
        %867 = vst [vmem:[#allocation2 + $0x74] sm:$0xe] %v866
        %868 = vst.msk [vmem:[#allocation2 + $0x78] sm:$0xf] %vm250, %v860
        %v869 = vld [vmem:[#allocation2 + $0x7c] sm:$0x3]
        %v870 = vsel %vm255, %v861, %v869
        %871 = vst [vmem:[#allocation2 + $0x7c] sm:$0x3] %v870
        %v872 = vpack.c.bf16 %v455, %v455
        %v873 = vpack.c.bf16 %v456, %v456
        %v875 = vshrl.u32 %v872, 16
        %v877 = vrot.slane %v875, 5
        %v878 = vshll.u32 %v872, 16
        %v880 = vrot.slane %v878, 6
        %v881 = vor.u32 %v877, %v880
        %v882 = vrot.slane %v881, 4
        %v884 = vshrl.u32 %v873, 16
        %v886 = vrot.slane %v884, 5
        %v887 = vshll.u32 %v873, 16
        %v889 = vrot.slane %v887, 6
        %v890 = vor.u32 %v886, %v889
        %v891 = vsel %vm499, %v882, %v890
        %v892 = vrot.slane %v890, 4
        %v896 = vld [vmem:[#allocation2 + $0x7c] sm:$0xc]
        %v897 = vsel %vm522, %v881, %v896
        %898 = vst [vmem:[#allocation2 + $0x7c] sm:$0xc] %v897
        %899 = vst.msk [vmem:[#allocation2 + $0x80] sm:$0xf] %vm250, %v891
        %v900 = vld [vmem:[#allocation2 + $0x84] sm:$0x7]
        %v901 = vsel %vm528, %v892, %v900
        %902 = vst [vmem:[#allocation2 + $0x84] sm:$0x7] %v901
        %v903 = vpack.c.bf16 %v457, %v457
        %v904 = vpack.c.bf16 %v458, %v458
        %v906 = vshll.u32 %v903, 16
        %v908 = vrot.slane %v906, 5
        %v909 = vshrl.u32 %v903, 16
        %v911 = vrot.slane %v909, 4
        %v912 = vor.u32 %v911, %v908
        %v913 = vrot.slane %v912, 4
        %v915 = vshll.u32 %v904, 16
        %v917 = vrot.slane %v915, 5
        %v918 = vsel %vm535, %v913, %v917
        %v919 = vshrl.u32 %v904, 16
        %v921 = vrot.slane %v919, 4
        %v922 = vor.u32 %v921, %v917
        %v923 = vrot.slane %v922, 4
        %v927 = vld [vmem:[#allocation2 + $0x84] sm:$0x8]
        %v928 = vsel %vm273, %v908, %v927
        %929 = vst [vmem:[#allocation2 + $0x84] sm:$0x8] %v928
        %930 = vst.msk [vmem:[#allocation2 + $0x88] sm:$0xf] %vm250, %v918
        %v931 = vld [vmem:[#allocation2 + $0x8c] sm:$0xf]
        %v932 = vsel %vm562, %v923, %v931
        %933 = vst [vmem:[#allocation2 + $0x8c] sm:$0xf] %v932
        %v934 = vpack.c.bf16 %v459, %v459
        %v935 = vpack.c.bf16 %v460, %v460
        %v937 = vshrl.u32 %v934, 16
        %v939 = vrot.slane %v937, 7
        %v940 = vshll.u32 %v934, 16
        %v942 = vor.u32 %v939, %v940
        %v943 = vrot.slane %v939, 4
        %v945 = vshrl.u32 %v935, 16
        %v947 = vrot.slane %v945, 7
        %v948 = vshll.u32 %v935, 16
        %v950 = vor.u32 %v947, %v948
        %v951 = vsel %vm569, %v943, %v950
        %v952 = vrot.slane %v947, 4
        %v956 = vld [vmem:[#allocation2 + $0x90] sm:$0xf]
        %v957 = vsel %vm332, %v942, %v956
        %958 = vst [vmem:[#allocation2 + $0x90] sm:$0xf] %v957
        %959 = vst.msk [vmem:[#allocation2 + $0x94] sm:$0xf] %vm250, %v951
        %v960 = vld [vmem:[#allocation2 + $0x98] sm:$0x1]
        %v961 = vsel %vm279, %v952, %v960
        %962 = vst [vmem:[#allocation2 + $0x98] sm:$0x1] %v961
        %v963 = vld [vmem:[#allocation2] sm:$0xf]
        %v964 = vld [vmem:[#allocation2 + $0x4] sm:$0xf]
        %v965 = vld [vmem:[#allocation2 + $0x8] sm:$0xf]
        %v966 = vld [vmem:[#allocation2 + $0xc] sm:$0xf]
        %v967 = vld [vmem:[#allocation2 + $0x10] sm:$0xf]
        %v968 = vld [vmem:[#allocation2 + $0x14] sm:$0xf]
        %v969 = vld [vmem:[#allocation2 + $0x18] sm:$0xf]
        %v970 = vld [vmem:[#allocation2 + $0x1c] sm:$0xf]
        %v971 = vld [vmem:[#allocation2 + $0x20] sm:$0xf]
        %v972 = vld [vmem:[#allocation2 + $0x24] sm:$0xf]
        %v973 = vld [vmem:[#allocation2 + $0x28] sm:$0xf]
        %v974 = vld [vmem:[#allocation2 + $0x2c] sm:$0xf]
        %v975 = vld [vmem:[#allocation2 + $0x30] sm:$0xf]
        %v976 = vld [vmem:[#allocation2 + $0x34] sm:$0xf]
        %v977 = vld [vmem:[#allocation2 + $0x38] sm:$0xf]
        %v978 = vld [vmem:[#allocation2 + $0x3c] sm:$0xf]
        %v979 = vld [vmem:[#allocation2 + $0x40] sm:$0xf]
        %v980 = vld [vmem:[#allocation2 + $0x44] sm:$0xf]
        %v981 = vld [vmem:[#allocation2 + $0x48] sm:$0xf]
        %v982 = vld [vmem:[#allocation2 + $0x4c] sm:$0xf]
        %v983 = vld [vmem:[#allocation2 + $0x50] sm:$0xf]
        %v984 = vld [vmem:[#allocation2 + $0x54] sm:$0xf]
        %v985 = vld [vmem:[#allocation2 + $0x58] sm:$0xf]
        %v986 = vld [vmem:[#allocation2 + $0x5c] sm:$0xf]
        %v987 = vld [vmem:[#allocation2 + $0x60] sm:$0xf]
        %v988 = vld [vmem:[#allocation2 + $0x64] sm:$0xf]
        %v989 = vld [vmem:[#allocation2 + $0x68] sm:$0xf]
        %v990 = vld [vmem:[#allocation2 + $0x6c] sm:$0xf]
        %v991 = vld [vmem:[#allocation2 + $0x70] sm:$0xf]
        %v992 = vld [vmem:[#allocation2 + $0x74] sm:$0xf]
        %v993 = vld [vmem:[#allocation2 + $0x78] sm:$0xf]
        %v994 = vld [vmem:[#allocation2 + $0x7c] sm:$0xf]
        %v995 = vld [vmem:[#allocation2 + $0x80] sm:$0xf]
        %v996 = vld [vmem:[#allocation2 + $0x84] sm:$0xf]
        %v997 = vld [vmem:[#allocation2 + $0x88] sm:$0xf]
        %v998 = vld [vmem:[#allocation2 + $0x8c] sm:$0xf]
        %999 = vst.msk [vmem:[#allocation6] sm:$0xf] %vm250, %v963
        %1000 = vst.msk [vmem:[#allocation6 + $0x4] sm:$0xf] %vm250, %v964
        %1001 = vst.msk [vmem:[#allocation6 + $0x8] sm:$0xf] %vm250, %v965
        %1002 = vst.msk [vmem:[#allocation6 + $0xc] sm:$0xf] %vm250, %v966
        %1003 = vst.msk [vmem:[#allocation6 + $0x10] sm:$0xf] %vm250, %v967
        %1004 = vst.msk [vmem:[#allocation6 + $0x14] sm:$0xf] %vm250, %v968
        %1005 = vst.msk [vmem:[#allocation6 + $0x18] sm:$0xf] %vm250, %v969
        %1006 = vst.msk [vmem:[#allocation6 + $0x1c] sm:$0xf] %vm250, %v970
        %1007 = vst.msk [vmem:[#allocation6 + $0x20] sm:$0xf] %vm250, %v971
        %1008 = vst.msk [vmem:[#allocation6 + $0x24] sm:$0xf] %vm250, %v972
        %1009 = vst.msk [vmem:[#allocation6 + $0x28] sm:$0xf] %vm250, %v973
        %1010 = vst.msk [vmem:[#allocation6 + $0x2c] sm:$0xf] %vm250, %v974
        %1011 = vst.msk [vmem:[#allocation6 + $0x30] sm:$0xf] %vm250, %v975
        %1012 = vst.msk [vmem:[#allocation6 + $0x34] sm:$0xf] %vm250, %v976
        %1013 = vst.msk [vmem:[#allocation6 + $0x38] sm:$0xf] %vm250, %v977
        %1014 = vst.msk [vmem:[#allocation6 + $0x3c] sm:$0xf] %vm250, %v978
        %1015 = vst.msk [vmem:[#allocation6 + $0x40] sm:$0xf] %vm250, %v979
        %1016 = vst.msk [vmem:[#allocation6 + $0x44] sm:$0xf] %vm250, %v980
        %1017 = vst.msk [vmem:[#allocation6 + $0x48] sm:$0xf] %vm250, %v981
        %1018 = vst.msk [vmem:[#allocation6 + $0x4c] sm:$0xf] %vm250, %v982
        %1019 = vst.msk [vmem:[#allocation6 + $0x50] sm:$0xf] %vm250, %v983
        %1020 = vst.msk [vmem:[#allocation6 + $0x54] sm:$0xf] %vm250, %v984
        %1021 = vst.msk [vmem:[#allocation6 + $0x58] sm:$0xf] %vm250, %v985
        %1022 = vst.msk [vmem:[#allocation6 + $0x5c] sm:$0xf] %vm250, %v986
        %1023 = vst.msk [vmem:[#allocation6 + $0x60] sm:$0xf] %vm250, %v987
        %1024 = vst.msk [vmem:[#allocation6 + $0x64] sm:$0xf] %vm250, %v988
        %1025 = vst.msk [vmem:[#allocation6 + $0x68] sm:$0xf] %vm250, %v989
        %1026 = vst.msk [vmem:[#allocation6 + $0x6c] sm:$0xf] %vm250, %v990
        %1027 = vst.msk [vmem:[#allocation6 + $0x70] sm:$0xf] %vm250, %v991
        %1028 = vst.msk [vmem:[#allocation6 + $0x74] sm:$0xf] %vm250, %v992
        %1029 = vst.msk [vmem:[#allocation6 + $0x78] sm:$0xf] %vm250, %v993
        %1030 = vst.msk [vmem:[#allocation6 + $0x7c] sm:$0xf] %vm250, %v994
        %1031 = vst.msk [vmem:[#allocation6 + $0x80] sm:$0xf] %vm250, %v995
        %1032 = vst.msk [vmem:[#allocation6 + $0x84] sm:$0xf] %vm250, %v996
        %1033 = vst.msk [vmem:[#allocation6 + $0x88] sm:$0xf] %vm250, %v997
        %1034 = vst.msk [vmem:[#allocation6 + $0x8c] sm:$0xf] %vm250, %v998
        %v1035 = vld [vmem:[#allocation2] sm:$0xf]
        %v1036 = vld [vmem:[#allocation2 + $0x4] sm:$0xf]
        %v1037 = vld [vmem:[#allocation2 + $0x8] sm:$0xf]
        %v1038 = vld [vmem:[#allocation2 + $0xc] sm:$0xf]
        %v1039 = vld [vmem:[#allocation2 + $0x10] sm:$0xf]
        %v1040 = vld [vmem:[#allocation2 + $0x14] sm:$0xf]
        %v1041 = vld [vmem:[#allocation2 + $0x18] sm:$0xf]
        %v1042 = vld [vmem:[#allocation2 + $0x1c] sm:$0xf]
        %v1043 = vld [vmem:[#allocation2 + $0x20] sm:$0xf]
        %v1044 = vld [vmem:[#allocation2 + $0x24] sm:$0xf]
        %v1045 = vld [vmem:[#allocation2 + $0x28] sm:$0xf]
        %v1046 = vld [vmem:[#allocation2 + $0x2c] sm:$0xf]
        %v1047 = vld [vmem:[#allocation2 + $0x30] sm:$0xf]
        %v1048 = vld [vmem:[#allocation2 + $0x34] sm:$0xf]
        %v1049 = vld [vmem:[#allocation2 + $0x38] sm:$0xf]
        %v1050 = vld [vmem:[#allocation2 + $0x3c] sm:$0xf]
        %v1051 = vld [vmem:[#allocation2 + $0x40] sm:$0xf]
        %v1052 = vld [vmem:[#allocation2 + $0x44] sm:$0xf]
        %v1053 = vld [vmem:[#allocation2 + $0x48] sm:$0xf]
        %v1054 = vld [vmem:[#allocation2 + $0x4c] sm:$0xf]
        %v1055 = vld [vmem:[#allocation2 + $0x50] sm:$0xf]
        %v1056 = vld [vmem:[#allocation2 + $0x54] sm:$0xf]
        %v1057 = vld [vmem:[#allocation2 + $0x58] sm:$0xf]
        %v1058 = vld [vmem:[#allocation2 + $0x5c] sm:$0xf]
        %v1059 = vld [vmem:[#allocation2 + $0x60] sm:$0xf]
        %v1060 = vld [vmem:[#allocation2 + $0x64] sm:$0xf]
        %v1061 = vld [vmem:[#allocation2 + $0x68] sm:$0xf]
        %v1062 = vld [vmem:[#allocation2 + $0x6c] sm:$0xf]
        %v1063 = vld [vmem:[#allocation2 + $0x70] sm:$0xf]
        %v1064 = vld [vmem:[#allocation2 + $0x74] sm:$0xf]
        %v1065 = vld [vmem:[#allocation2 + $0x78] sm:$0xf]
        %v1066 = vld [vmem:[#allocation2 + $0x7c] sm:$0xf]
        %v1067 = vld [vmem:[#allocation2 + $0x80] sm:$0xf]
        %v1068 = vld [vmem:[#allocation2 + $0x84] sm:$0xf]
        %v1069 = vld [vmem:[#allocation2 + $0x88] sm:$0xf]
        %v1070 = vld [vmem:[#allocation2 + $0x8c] sm:$0xf]
        %v1071 = vld [vmem:[#allocation2 + $0x90] sm:$0x1]
        %v1073 = vshrl.u32 %v1035, 16
        %v1075 = vrot.slane %v1073, 4
        %v1076 = vshll.u32 %v1035, 16
        %v1078 = vrot.slane %v1076, 5
        %v1079 = vor.u32 %v1075, %v1078
        %v1080 = vrot.slane %v1079, 4
        %v1082 = vshll.u32 %v1036, 16
        %v1084 = vrot.slane %v1082, 5
        %v1085 = vsel %vm535, %v1080, %v1084
        %v1086 = vshrl.u32 %v1036, 16
        %v1088 = vrot.slane %v1086, 4
        %v1089 = vor.u32 %v1088, %v1084
        %v1090 = vrot.slane %v1089, 4
        %v1092 = vshll.u32 %v1037, 16
        %v1094 = vrot.slane %v1092, 5
        %v1095 = vsel %vm535, %v1090, %v1094
        %v1096 = vshrl.u32 %v1037, 16
        %v1098 = vrot.slane %v1096, 4
        %v1099 = vor.u32 %v1098, %v1094
        %v1100 = vrot.slane %v1099, 4
        %v1102 = vshll.u32 %v1038, 16
        %v1104 = vrot.slane %v1102, 5
        %v1105 = vsel %vm535, %v1100, %v1104
        %v1106 = vshrl.u32 %v1038, 16
        %v1108 = vrot.slane %v1106, 4
        %v1109 = vor.u32 %v1108, %v1104
        %v1110 = vrot.slane %v1109, 4
        %v1112 = vshll.u32 %v1039, 16
        %v1114 = vrot.slane %v1112, 5
        %v1115 = vsel %vm535, %v1110, %v1114
        %v1116 = vshrl.u32 %v1039, 16
        %v1118 = vrot.slane %v1116, 4
        %v1119 = vor.u32 %v1118, %v1114
        %v1120 = vrot.slane %v1119, 4
        %v1122 = vshll.u32 %v1040, 16
        %v1124 = vrot.slane %v1122, 5
        %v1125 = vsel %vm535, %v1120, %v1124
        %v1126 = vshrl.u32 %v1040, 16
        %v1128 = vrot.slane %v1126, 4
        %v1129 = vor.u32 %v1128, %v1124
        %v1130 = vrot.slane %v1129, 4
        %v1132 = vshll.u32 %v1041, 16
        %v1134 = vrot.slane %v1132, 5
        %v1135 = vsel %vm535, %v1130, %v1134
        %v1136 = vshrl.u32 %v1041, 16
        %v1138 = vrot.slane %v1136, 4
        %v1139 = vor.u32 %v1138, %v1134
        %v1140 = vrot.slane %v1139, 4
        %v1142 = vshll.u32 %v1042, 16
        %v1144 = vrot.slane %v1142, 5
        %v1145 = vsel %vm535, %v1140, %v1144
        %v1146 = vshrl.u32 %v1042, 16
        %v1148 = vrot.slane %v1146, 4
        %v1149 = vor.u32 %v1148, %v1144
        %v1150 = vrot.slane %v1149, 4
        %v1152 = vshll.u32 %v1043, 16
        %v1154 = vrot.slane %v1152, 5
        %v1155 = vsel %vm535, %v1150, %v1154
        %v1156 = vshrl.u32 %v1043, 16
        %v1158 = vrot.slane %v1156, 4
        %v1159 = vor.u32 %v1158, %v1154
        %v1160 = vrot.slane %v1159, 4
        %v1162 = vshll.u32 %v1044, 16
        %v1164 = vrot.slane %v1162, 5
        %v1165 = vsel %vm535, %v1160, %v1164
        %v1166 = vshrl.u32 %v1044, 16
        %v1168 = vrot.slane %v1166, 4
        %v1169 = vor.u32 %v1168, %v1164
        %v1170 = vrot.slane %v1169, 4
        %v1172 = vshll.u32 %v1045, 16
        %v1174 = vrot.slane %v1172, 5
        %v1175 = vsel %vm535, %v1170, %v1174
        %v1176 = vshrl.u32 %v1045, 16
        %v1178 = vrot.slane %v1176, 4
        %v1179 = vor.u32 %v1178, %v1174
        %v1180 = vrot.slane %v1179, 4
        %v1182 = vshll.u32 %v1046, 16
        %v1184 = vrot.slane %v1182, 5
        %v1185 = vsel %vm535, %v1180, %v1184
        %v1186 = vshrl.u32 %v1046, 16
        %v1188 = vrot.slane %v1186, 4
        %v1189 = vor.u32 %v1188, %v1184
        %v1190 = vrot.slane %v1189, 4
        %v1192 = vshll.u32 %v1047, 16
        %v1194 = vrot.slane %v1192, 5
        %v1195 = vsel %vm535, %v1190, %v1194
        %v1196 = vshrl.u32 %v1047, 16
        %v1198 = vrot.slane %v1196, 4
        %v1199 = vor.u32 %v1198, %v1194
        %v1200 = vrot.slane %v1199, 4
        %v1202 = vshll.u32 %v1048, 16
        %v1204 = vrot.slane %v1202, 5
        %v1205 = vsel %vm535, %v1200, %v1204
        %v1206 = vshrl.u32 %v1048, 16
        %v1208 = vrot.slane %v1206, 4
        %v1209 = vor.u32 %v1208, %v1204
        %v1210 = vrot.slane %v1209, 4
        %v1212 = vshll.u32 %v1049, 16
        %v1214 = vrot.slane %v1212, 5
        %v1215 = vsel %vm535, %v1210, %v1214
        %v1216 = vshrl.u32 %v1049, 16
        %v1218 = vrot.slane %v1216, 4
        %v1219 = vor.u32 %v1218, %v1214
        %v1220 = vrot.slane %v1219, 4
        %v1222 = vshll.u32 %v1050, 16
        %v1224 = vrot.slane %v1222, 5
        %v1225 = vsel %vm535, %v1220, %v1224
        %v1226 = vshrl.u32 %v1050, 16
        %v1228 = vrot.slane %v1226, 4
        %v1229 = vor.u32 %v1228, %v1224
        %v1230 = vrot.slane %v1229, 4
        %v1232 = vshll.u32 %v1051, 16
        %v1234 = vrot.slane %v1232, 5
        %v1235 = vsel %vm535, %v1230, %v1234
        %v1236 = vshrl.u32 %v1051, 16
        %v1238 = vrot.slane %v1236, 4
        %v1239 = vor.u32 %v1238, %v1234
        %v1240 = vrot.slane %v1239, 4
        %v1242 = vshll.u32 %v1052, 16
        %v1244 = vrot.slane %v1242, 5
        %v1245 = vsel %vm535, %v1240, %v1244
        %v1246 = vshrl.u32 %v1052, 16
        %v1248 = vrot.slane %v1246, 4
        %v1249 = vor.u32 %v1248, %v1244
        %v1250 = vrot.slane %v1249, 4
        %v1252 = vshll.u32 %v1053, 16
        %v1254 = vrot.slane %v1252, 5
        %v1255 = vsel %vm535, %v1250, %v1254
        %v1256 = vshrl.u32 %v1053, 16
        %v1258 = vrot.slane %v1256, 4
        %v1259 = vor.u32 %v1258, %v1254
        %v1260 = vrot.slane %v1259, 4
        %v1262 = vshll.u32 %v1054, 16
        %v1264 = vrot.slane %v1262, 5
        %v1265 = vsel %vm535, %v1260, %v1264
        %v1266 = vshrl.u32 %v1054, 16
        %v1268 = vrot.slane %v1266, 4
        %v1269 = vor.u32 %v1268, %v1264
        %v1270 = vrot.slane %v1269, 4
        %v1272 = vshll.u32 %v1055, 16
        %v1274 = vrot.slane %v1272, 5
        %v1275 = vsel %vm535, %v1270, %v1274
        %v1276 = vshrl.u32 %v1055, 16
        %v1278 = vrot.slane %v1276, 4
        %v1279 = vor.u32 %v1278, %v1274
        %v1280 = vrot.slane %v1279, 4
        %v1282 = vshll.u32 %v1056, 16
        %v1284 = vrot.slane %v1282, 5
        %v1285 = vsel %vm535, %v1280, %v1284
        %v1286 = vshrl.u32 %v1056, 16
        %v1288 = vrot.slane %v1286, 4
        %v1289 = vor.u32 %v1288, %v1284
        %v1290 = vrot.slane %v1289, 4
        %v1292 = vshll.u32 %v1057, 16
        %v1294 = vrot.slane %v1292, 5
        %v1295 = vsel %vm535, %v1290, %v1294
        %v1296 = vshrl.u32 %v1057, 16
        %v1298 = vrot.slane %v1296, 4
        %v1299 = vor.u32 %v1298, %v1294
        %v1300 = vrot.slane %v1299, 4
        %v1302 = vshll.u32 %v1058, 16
        %v1304 = vrot.slane %v1302, 5
        %v1305 = vsel %vm535, %v1300, %v1304
        %v1306 = vshrl.u32 %v1058, 16
        %v1308 = vrot.slane %v1306, 4
        %v1309 = vor.u32 %v1308, %v1304
        %v1310 = vrot.slane %v1309, 4
        %v1312 = vshll.u32 %v1059, 16
        %v1314 = vrot.slane %v1312, 5
        %v1315 = vsel %vm535, %v1310, %v1314
        %v1316 = vshrl.u32 %v1059, 16
        %v1318 = vrot.slane %v1316, 4
        %v1319 = vor.u32 %v1318, %v1314
        %v1320 = vrot.slane %v1319, 4
        %v1322 = vshll.u32 %v1060, 16
        %v1324 = vrot.slane %v1322, 5
        %v1325 = vsel %vm535, %v1320, %v1324
        %v1326 = vshrl.u32 %v1060, 16
        %v1328 = vrot.slane %v1326, 4
        %v1329 = vor.u32 %v1328, %v1324
        %v1330 = vrot.slane %v1329, 4
        %v1332 = vshll.u32 %v1061, 16
        %v1334 = vrot.slane %v1332, 5
        %v1335 = vsel %vm535, %v1330, %v1334
        %v1336 = vshrl.u32 %v1061, 16
        %v1338 = vrot.slane %v1336, 4
        %v1339 = vor.u32 %v1338, %v1334
        %v1340 = vrot.slane %v1339, 4
        %v1342 = vshll.u32 %v1062, 16
        %v1344 = vrot.slane %v1342, 5
        %v1345 = vsel %vm535, %v1340, %v1344
        %v1346 = vshrl.u32 %v1062, 16
        %v1348 = vrot.slane %v1346, 4
        %v1349 = vor.u32 %v1348, %v1344
        %v1350 = vrot.slane %v1349, 4
        %v1352 = vshll.u32 %v1063, 16
        %v1354 = vrot.slane %v1352, 5
        %v1355 = vsel %vm535, %v1350, %v1354
        %v1356 = vshrl.u32 %v1063, 16
        %v1358 = vrot.slane %v1356, 4
        %v1359 = vor.u32 %v1358, %v1354
        %v1360 = vrot.slane %v1359, 4
        %v1362 = vshll.u32 %v1064, 16
        %v1364 = vrot.slane %v1362, 5
        %v1365 = vsel %vm535, %v1360, %v1364
        %v1366 = vshrl.u32 %v1064, 16
        %v1368 = vrot.slane %v1366, 4
        %v1369 = vor.u32 %v1368, %v1364
        %v1370 = vrot.slane %v1369, 4
        %v1372 = vshll.u32 %v1065, 16
        %v1374 = vrot.slane %v1372, 5
        %v1375 = vsel %vm535, %v1370, %v1374
        %v1376 = vshrl.u32 %v1065, 16
        %v1378 = vrot.slane %v1376, 4
        %v1379 = vor.u32 %v1378, %v1374
        %v1380 = vrot.slane %v1379, 4
        %v1382 = vshll.u32 %v1066, 16
        %v1384 = vrot.slane %v1382, 5
        %v1385 = vsel %vm535, %v1380, %v1384
        %v1386 = vshrl.u32 %v1066, 16
        %v1388 = vrot.slane %v1386, 4
        %v1389 = vor.u32 %v1388, %v1384
        %v1390 = vrot.slane %v1389, 4
        %v1392 = vshll.u32 %v1067, 16
        %v1394 = vrot.slane %v1392, 5
        %v1395 = vsel %vm535, %v1390, %v1394
        %v1396 = vshrl.u32 %v1067, 16
        %v1398 = vrot.slane %v1396, 4
        %v1399 = vor.u32 %v1398, %v1394
        %v1400 = vrot.slane %v1399, 4
        %v1402 = vshll.u32 %v1068, 16
        %v1404 = vrot.slane %v1402, 5
        %v1405 = vsel %vm535, %v1400, %v1404
        %v1406 = vshrl.u32 %v1068, 16
        %v1408 = vrot.slane %v1406, 4
        %v1409 = vor.u32 %v1408, %v1404
        %v1410 = vrot.slane %v1409, 4
        %v1412 = vshll.u32 %v1069, 16
        %v1414 = vrot.slane %v1412, 5
        %v1415 = vsel %vm535, %v1410, %v1414
        %v1416 = vshrl.u32 %v1069, 16
        %v1418 = vrot.slane %v1416, 4
        %v1419 = vor.u32 %v1418, %v1414
        %v1420 = vrot.slane %v1419, 4
        %v1422 = vshll.u32 %v1070, 16
        %v1424 = vrot.slane %v1422, 5
        %v1425 = vsel %vm535, %v1420, %v1424
        %v1426 = vshrl.u32 %v1070, 16
        %v1428 = vrot.slane %v1426, 4
        %v1429 = vor.u32 %v1428, %v1424
        %v1430 = vrot.slane %v1429, 4
        %v1432 = vshll.u32 %v1071, 16
        %v1434 = vrot.slane %v1432, 5
        %v1435 = vsel %vm535, %v1430, %v1434
        %1436 = vrot.lane.b32.xlu0 %v1085, 4
        %v1437 = vpop.permute.xlu0 %1436
        %1438 = vrot.lane.b32.xlu0 %v1095, 4
        %v1439 = vpop.permute.xlu0 %1438
        %1440 = vrot.lane.b32.xlu0 %v1105, 4
        %v1441 = vpop.permute.xlu0 %1440
        %1442 = vrot.lane.b32.xlu0 %v1115, 4
        %v1443 = vpop.permute.xlu0 %1442
        %1444 = vrot.lane.b32.xlu0 %v1125, 4
        %v1445 = vpop.permute.xlu0 %1444
        %1446 = vrot.lane.b32.xlu0 %v1135, 4
        %v1447 = vpop.permute.xlu0 %1446
        %1448 = vrot.lane.b32.xlu0 %v1145, 4
        %v1449 = vpop.permute.xlu0 %1448
        %1450 = vrot.lane.b32.xlu0 %v1155, 4
        %v1451 = vpop.permute.xlu0 %1450
        %1452 = vrot.lane.b32.xlu0 %v1165, 4
        %v1453 = vpop.permute.xlu0 %1452
        %1454 = vrot.lane.b32.xlu0 %v1175, 4
        %v1455 = vpop.permute.xlu0 %1454
        %1456 = vrot.lane.b32.xlu0 %v1185, 4
        %v1457 = vpop.permute.xlu0 %1456
        %1458 = vrot.lane.b32.xlu0 %v1195, 4
        %v1459 = vpop.permute.xlu0 %1458
        %1460 = vrot.lane.b32.xlu0 %v1205, 4
        %v1461 = vpop.permute.xlu0 %1460
        %1462 = vrot.lane.b32.xlu0 %v1215, 4
        %v1463 = vpop.permute.xlu0 %1462
        %1464 = vrot.lane.b32.xlu0 %v1225, 4
        %v1465 = vpop.permute.xlu0 %1464
        %1466 = vrot.lane.b32.xlu0 %v1235, 4
        %v1467 = vpop.permute.xlu0 %1466
        %1468 = vrot.lane.b32.xlu0 %v1245, 4
        %v1469 = vpop.permute.xlu0 %1468
        %1470 = vrot.lane.b32.xlu0 %v1255, 4
        %v1471 = vpop.permute.xlu0 %1470
        %1472 = vrot.lane.b32.xlu0 %v1265, 4
        %v1473 = vpop.permute.xlu0 %1472
        %1474 = vrot.lane.b32.xlu0 %v1275, 4
        %v1475 = vpop.permute.xlu0 %1474
        %1476 = vrot.lane.b32.xlu0 %v1285, 4
        %v1477 = vpop.permute.xlu0 %1476
        %1478 = vrot.lane.b32.xlu0 %v1295, 4
        %v1479 = vpop.permute.xlu0 %1478
        %1480 = vrot.lane.b32.xlu0 %v1305, 4
        %v1481 = vpop.permute.xlu0 %1480
        %1482 = vrot.lane.b32.xlu0 %v1315, 4
        %v1483 = vpop.permute.xlu0 %1482
        %1484 = vrot.lane.b32.xlu0 %v1325, 4
        %v1485 = vpop.permute.xlu0 %1484
        %1486 = vrot.lane.b32.xlu0 %v1335, 4
        %v1487 = vpop.permute.xlu0 %1486
        %1488 = vrot.lane.b32.xlu0 %v1345, 4
        %v1489 = vpop.permute.xlu0 %1488
        %1490 = vrot.lane.b32.xlu0 %v1355, 4
        %v1491 = vpop.permute.xlu0 %1490
        %1492 = vrot.lane.b32.xlu0 %v1365, 4
        %v1493 = vpop.permute.xlu0 %1492
        %1494 = vrot.lane.b32.xlu0 %v1375, 4
        %v1495 = vpop.permute.xlu0 %1494
        %1496 = vrot.lane.b32.xlu0 %v1385, 4
        %v1497 = vpop.permute.xlu0 %1496
        %1498 = vrot.lane.b32.xlu0 %v1395, 4
        %v1499 = vpop.permute.xlu0 %1498
        %1500 = vrot.lane.b32.xlu0 %v1405, 4
        %v1501 = vpop.permute.xlu0 %1500
        %1502 = vrot.lane.b32.xlu0 %v1415, 4
        %v1503 = vpop.permute.xlu0 %1502
        %1504 = vrot.lane.b32.xlu0 %v1425, 4
        %v1505 = vpop.permute.xlu0 %1504
        %1506 = vrot.lane.b32.xlu0 %v1435, 4
        %v1507 = vpop.permute.xlu0 %1506
        %vm1544 = vcmask 60448
        %1545 = vst.msk [vmem:[#allocation6] sm:$0xf] %vm1544, %v1437
        %1546 = vst.msk [vmem:[#allocation6 + $0x4] sm:$0xf] %vm1544, %v1439
        %1547 = vst.msk [vmem:[#allocation6 + $0x8] sm:$0xf] %vm1544, %v1441
        %1548 = vst.msk [vmem:[#allocation6 + $0xc] sm:$0xf] %vm1544, %v1443
        %1549 = vst.msk [vmem:[#allocation6 + $0x10] sm:$0xf] %vm1544, %v1445
        %1550 = vst.msk [vmem:[#allocation6 + $0x14] sm:$0xf] %vm1544, %v1447
        %1551 = vst.msk [vmem:[#allocation6 + $0x18] sm:$0xf] %vm1544, %v1449
        %1552 = vst.msk [vmem:[#allocation6 + $0x1c] sm:$0xf] %vm1544, %v1451
        %1553 = vst.msk [vmem:[#allocation6 + $0x20] sm:$0xf] %vm1544, %v1453
        %1554 = vst.msk [vmem:[#allocation6 + $0x24] sm:$0xf] %vm1544, %v1455
        %1555 = vst.msk [vmem:[#allocation6 + $0x28] sm:$0xf] %vm1544, %v1457
        %1556 = vst.msk [vmem:[#allocation6 + $0x2c] sm:$0xf] %vm1544, %v1459
        %1557 = vst.msk [vmem:[#allocation6 + $0x30] sm:$0xf] %vm1544, %v1461
        %1558 = vst.msk [vmem:[#allocation6 + $0x34] sm:$0xf] %vm1544, %v1463
        %1559 = vst.msk [vmem:[#allocation6 + $0x38] sm:$0xf] %vm1544, %v1465
        %1560 = vst.msk [vmem:[#allocation6 + $0x3c] sm:$0xf] %vm1544, %v1467
        %1561 = vst.msk [vmem:[#allocation6 + $0x40] sm:$0xf] %vm1544, %v1469
        %1562 = vst.msk [vmem:[#allocation6 + $0x44] sm:$0xf] %vm1544, %v1471
        %1563 = vst.msk [vmem:[#allocation6 + $0x48] sm:$0xf] %vm1544, %v1473
        %1564 = vst.msk [vmem:[#allocation6 + $0x4c] sm:$0xf] %vm1544, %v1475
        %1565 = vst.msk [vmem:[#allocation6 + $0x50] sm:$0xf] %vm1544, %v1477
        %1566 = vst.msk [vmem:[#allocation6 + $0x54] sm:$0xf] %vm1544, %v1479
        %1567 = vst.msk [vmem:[#allocation6 + $0x58] sm:$0xf] %vm1544, %v1481
        %1568 = vst.msk [vmem:[#allocation6 + $0x5c] sm:$0xf] %vm1544, %v1483
        %1569 = vst.msk [vmem:[#allocation6 + $0x60] sm:$0xf] %vm1544, %v1485
        %1570 = vst.msk [vmem:[#allocation6 + $0x64] sm:$0xf] %vm1544, %v1487
        %1571 = vst.msk [vmem:[#allocation6 + $0x68] sm:$0xf] %vm1544, %v1489
        %1572 = vst.msk [vmem:[#allocation6 + $0x6c] sm:$0xf] %vm1544, %v1491
        %1573 = vst.msk [vmem:[#allocation6 + $0x70] sm:$0xf] %vm1544, %v1493
        %1574 = vst.msk [vmem:[#allocation6 + $0x74] sm:$0xf] %vm1544, %v1495
        %1575 = vst.msk [vmem:[#allocation6 + $0x78] sm:$0xf] %vm1544, %v1497
        %1576 = vst.msk [vmem:[#allocation6 + $0x7c] sm:$0xf] %vm1544, %v1499
        %1577 = vst.msk [vmem:[#allocation6 + $0x80] sm:$0xf] %vm1544, %v1501
        %1578 = vst.msk [vmem:[#allocation6 + $0x84] sm:$0xf] %vm1544, %v1503
        %1579 = vst.msk [vmem:[#allocation6 + $0x88] sm:$0xf] %vm1544, %v1505
        %1580 = vst.msk [vmem:[#allocation6 + $0x8c] sm:$0xf] %vm1544, %v1507
        %v1581 = vld [vmem:[#allocation2] sm:$0xe]
        %v1582 = vld [vmem:[#allocation2 + $0x4] sm:$0xf]
        %v1583 = vld [vmem:[#allocation2 + $0x8] sm:$0xf]
        %v1584 = vld [vmem:[#allocation2 + $0xc] sm:$0xf]
        %v1585 = vld [vmem:[#allocation2 + $0x10] sm:$0xf]
        %v1586 = vld [vmem:[#allocation2 + $0x14] sm:$0xf]
        %v1587 = vld [vmem:[#allocation2 + $0x18] sm:$0xf]
        %v1588 = vld [vmem:[#allocation2 + $0x1c] sm:$0xf]
        %v1589 = vld [vmem:[#allocation2 + $0x20] sm:$0xf]
        %v1590 = vld [vmem:[#allocation2 + $0x24] sm:$0xf]
        %v1591 = vld [vmem:[#allocation2 + $0x28] sm:$0xf]
        %v1592 = vld [vmem:[#allocation2 + $0x2c] sm:$0xf]
        %v1593 = vld [vmem:[#allocation2 + $0x30] sm:$0xf]
        %v1594 = vld [vmem:[#allocation2 + $0x34] sm:$0xf]
        %v1595 = vld [vmem:[#allocation2 + $0x38] sm:$0xf]
        %v1596 = vld [vmem:[#allocation2 + $0x3c] sm:$0xf]
        %v1597 = vld [vmem:[#allocation2 + $0x40] sm:$0xf]
        %v1598 = vld [vmem:[#allocation2 + $0x44] sm:$0xf]
        %v1599 = vld [vmem:[#allocation2 + $0x48] sm:$0xf]
        %v1600 = vld [vmem:[#allocation2 + $0x4c] sm:$0xf]
        %v1601 = vld [vmem:[#allocation2 + $0x50] sm:$0xf]
        %v1602 = vld [vmem:[#allocation2 + $0x54] sm:$0xf]
        %v1603 = vld [vmem:[#allocation2 + $0x58] sm:$0xf]
        %v1604 = vld [vmem:[#allocation2 + $0x5c] sm:$0xf]
        %v1605 = vld [vmem:[#allocation2 + $0x60] sm:$0xf]
        %v1606 = vld [vmem:[#allocation2 + $0x64] sm:$0xf]
        %v1607 = vld [vmem:[#allocation2 + $0x68] sm:$0xf]
        %v1608 = vld [vmem:[#allocation2 + $0x6c] sm:$0xf]
        %v1609 = vld [vmem:[#allocation2 + $0x70] sm:$0xf]
        %v1610 = vld [vmem:[#allocation2 + $0x74] sm:$0xf]
        %v1611 = vld [vmem:[#allocation2 + $0x78] sm:$0xf]
        %v1612 = vld [vmem:[#allocation2 + $0x7c] sm:$0xf]
        %v1613 = vld [vmem:[#allocation2 + $0x80] sm:$0xf]
        %v1614 = vld [vmem:[#allocation2 + $0x84] sm:$0xf]
        %v1615 = vld [vmem:[#allocation2 + $0x88] sm:$0xf]
        %v1616 = vld [vmem:[#allocation2 + $0x8c] sm:$0xf]
        %v1617 = vld [vmem:[#allocation2 + $0x90] sm:$0x1]
        %vm1655 = vcmask 1042432
        %vm1656 = vcmask 1046532
        %vm1657 = vmor %vm1655, %vm1656
        %v1658 = vrot.slane %v1581, 5
        %v1659 = vrot.slane %v1658, 4
        %v1660 = vrot.slane %v1582, 5
        %v1661 = vsel %vm1657, %v1659, %v1660
        %v1662 = vrot.slane %v1660, 4
        %v1663 = vrot.slane %v1583, 5
        %v1664 = vsel %vm1657, %v1662, %v1663
        %v1665 = vrot.slane %v1663, 4
        %v1666 = vrot.slane %v1584, 5
        %v1667 = vsel %vm1657, %v1665, %v1666
        %v1668 = vrot.slane %v1666, 4
        %v1669 = vrot.slane %v1585, 5
        %v1670 = vsel %vm1657, %v1668, %v1669
        %v1671 = vrot.slane %v1669, 4
        %v1672 = vrot.slane %v1586, 5
        %v1673 = vsel %vm1657, %v1671, %v1672
        %v1674 = vrot.slane %v1672, 4
        %v1675 = vrot.slane %v1587, 5
        %v1676 = vsel %vm1657, %v1674, %v1675
        %v1677 = vrot.slane %v1675, 4
        %v1678 = vrot.slane %v1588, 5
        %v1679 = vsel %vm1657, %v1677, %v1678
        %v1680 = vrot.slane %v1678, 4
        %v1681 = vrot.slane %v1589, 5
        %v1682 = vsel %vm1657, %v1680, %v1681
        %v1683 = vrot.slane %v1681, 4
        %v1684 = vrot.slane %v1590, 5
        %v1685 = vsel %vm1657, %v1683, %v1684
        %v1686 = vrot.slane %v1684, 4
        %v1687 = vrot.slane %v1591, 5
        %v1688 = vsel %vm1657, %v1686, %v1687
        %v1689 = vrot.slane %v1687, 4
        %v1690 = vrot.slane %v1592, 5
        %v1691 = vsel %vm1657, %v1689, %v1690
        %v1692 = vrot.slane %v1690, 4
        %v1693 = vrot.slane %v1593, 5
        %v1694 = vsel %vm1657, %v1692, %v1693
        %v1695 = vrot.slane %v1693, 4
        %v1696 = vrot.slane %v1594, 5
        %v1697 = vsel %vm1657, %v1695, %v1696
        %v1698 = vrot.slane %v1696, 4
        %v1699 = vrot.slane %v1595, 5
        %v1700 = vsel %vm1657, %v1698, %v1699
        %v1701 = vrot.slane %v1699, 4
        %v1702 = vrot.slane %v1596, 5
        %v1703 = vsel %vm1657, %v1701, %v1702
        %v1704 = vrot.slane %v1702, 4
        %v1705 = vrot.slane %v1597, 5
        %v1706 = vsel %vm1657, %v1704, %v1705
        %v1707 = vrot.slane %v1705, 4
        %v1708 = vrot.slane %v1598, 5
        %v1709 = vsel %vm1657, %v1707, %v1708
        %v1710 = vrot.slane %v1708, 4
        %v1711 = vrot.slane %v1599, 5
        %v1712 = vsel %vm1657, %v1710, %v1711
        %v1713 = vrot.slane %v1711, 4
        %v1714 = vrot.slane %v1600, 5
        %v1715 = vsel %vm1657, %v1713, %v1714
        %v1716 = vrot.slane %v1714, 4
        %v1717 = vrot.slane %v1601, 5
        %v1718 = vsel %vm1657, %v1716, %v1717
        %v1719 = vrot.slane %v1717, 4
        %v1720 = vrot.slane %v1602, 5
        %v1721 = vsel %vm1657, %v1719, %v1720
        %v1722 = vrot.slane %v1720, 4
        %v1723 = vrot.slane %v1603, 5
        %v1724 = vsel %vm1657, %v1722, %v1723
        %v1725 = vrot.slane %v1723, 4
        %v1726 = vrot.slane %v1604, 5
        %v1727 = vsel %vm1657, %v1725, %v1726
        %v1728 = vrot.slane %v1726, 4
        %v1729 = vrot.slane %v1605, 5
        %v1730 = vsel %vm1657, %v1728, %v1729
        %v1731 = vrot.slane %v1729, 4
        %v1732 = vrot.slane %v1606, 5
        %v1733 = vsel %vm1657, %v1731, %v1732
        %v1734 = vrot.slane %v1732, 4
        %v1735 = vrot.slane %v1607, 5
        %v1736 = vsel %vm1657, %v1734, %v1735
        %v1737 = vrot.slane %v1735, 4
        %v1738 = vrot.slane %v1608, 5
        %v1739 = vsel %vm1657, %v1737, %v1738
        %v1740 = vrot.slane %v1738, 4
        %v1741 = vrot.slane %v1609, 5
        %v1742 = vsel %vm1657, %v1740, %v1741
        %v1743 = vrot.slane %v1741, 4
        %v1744 = vrot.slane %v1610, 5
        %v1745 = vsel %vm1657, %v1743, %v1744
        %v1746 = vrot.slane %v1744, 4
        %v1747 = vrot.slane %v1611, 5
        %v1748 = vsel %vm1657, %v1746, %v1747
        %v1749 = vrot.slane %v1747, 4
        %v1750 = vrot.slane %v1612, 5
        %v1751 = vsel %vm1657, %v1749, %v1750
        %v1752 = vrot.slane %v1750, 4
        %v1753 = vrot.slane %v1613, 5
        %v1754 = vsel %vm1657, %v1752, %v1753
        %v1755 = vrot.slane %v1753, 4
        %v1756 = vrot.slane %v1614, 5
        %v1757 = vsel %vm1657, %v1755, %v1756
        %v1758 = vrot.slane %v1756, 4
        %v1759 = vrot.slane %v1615, 5
        %v1760 = vsel %vm1657, %v1758, %v1759
        %v1761 = vrot.slane %v1759, 4
        %v1762 = vrot.slane %v1616, 5
        %v1763 = vsel %vm1657, %v1761, %v1762
        %v1764 = vrot.slane %v1762, 4
        %v1765 = vrot.slane %v1617, 5
        %v1766 = vsel %vm1657, %v1764, %v1765
        %1767 = vrot.lane.b32.xlu0 %v1661, 8
        %v1768 = vpop.permute.xlu0 %1767
        %1769 = vrot.lane.b32.xlu0 %v1664, 8
        %v1770 = vpop.permute.xlu0 %1769
        %1771 = vrot.lane.b32.xlu0 %v1667, 8
        %v1772 = vpop.permute.xlu0 %1771
        %1773 = vrot.lane.b32.xlu0 %v1670, 8
        %v1774 = vpop.permute.xlu0 %1773
        %1775 = vrot.lane.b32.xlu0 %v1673, 8
        %v1776 = vpop.permute.xlu0 %1775
        %1777 = vrot.lane.b32.xlu0 %v1676, 8
        %v1778 = vpop.permute.xlu0 %1777
        %1779 = vrot.lane.b32.xlu0 %v1679, 8
        %v1780 = vpop.permute.xlu0 %1779
        %1781 = vrot.lane.b32.xlu0 %v1682, 8
        %v1782 = vpop.permute.xlu0 %1781
        %1783 = vrot.lane.b32.xlu0 %v1685, 8
        %v1784 = vpop.permute.xlu0 %1783
        %1785 = vrot.lane.b32.xlu0 %v1688, 8
        %v1786 = vpop.permute.xlu0 %1785
        %1787 = vrot.lane.b32.xlu0 %v1691, 8
        %v1788 = vpop.permute.xlu0 %1787
        %1789 = vrot.lane.b32.xlu0 %v1694, 8
        %v1790 = vpop.permute.xlu0 %1789
        %1791 = vrot.lane.b32.xlu0 %v1697, 8
        %v1792 = vpop.permute.xlu0 %1791
        %1793 = vrot.lane.b32.xlu0 %v1700, 8
        %v1794 = vpop.permute.xlu0 %1793
        %1795 = vrot.lane.b32.xlu0 %v1703, 8
        %v1796 = vpop.permute.xlu0 %1795
        %1797 = vrot.lane.b32.xlu0 %v1706, 8
        %v1798 = vpop.permute.xlu0 %1797
        %1799 = vrot.lane.b32.xlu0 %v1709, 8
        %v1800 = vpop.permute.xlu0 %1799
        %1801 = vrot.lane.b32.xlu0 %v1712, 8
        %v1802 = vpop.permute.xlu0 %1801
        %1803 = vrot.lane.b32.xlu0 %v1715, 8
        %v1804 = vpop.permute.xlu0 %1803
        %1805 = vrot.lane.b32.xlu0 %v1718, 8
        %v1806 = vpop.permute.xlu0 %1805
        %1807 = vrot.lane.b32.xlu0 %v1721, 8
        %v1808 = vpop.permute.xlu0 %1807
        %1809 = vrot.lane.b32.xlu0 %v1724, 8
        %v1810 = vpop.permute.xlu0 %1809
        %1811 = vrot.lane.b32.xlu0 %v1727, 8
        %v1812 = vpop.permute.xlu0 %1811
        %1813 = vrot.lane.b32.xlu0 %v1730, 8
        %v1814 = vpop.permute.xlu0 %1813
        %1815 = vrot.lane.b32.xlu0 %v1733, 8
        %v1816 = vpop.permute.xlu0 %1815
        %1817 = vrot.lane.b32.xlu0 %v1736, 8
        %v1818 = vpop.permute.xlu0 %1817
        %1819 = vrot.lane.b32.xlu0 %v1739, 8
        %v1820 = vpop.permute.xlu0 %1819
        %1821 = vrot.lane.b32.xlu0 %v1742, 8
        %v1822 = vpop.permute.xlu0 %1821
        %1823 = vrot.lane.b32.xlu0 %v1745, 8
        %v1824 = vpop.permute.xlu0 %1823
        %1825 = vrot.lane.b32.xlu0 %v1748, 8
        %v1826 = vpop.permute.xlu0 %1825
        %1827 = vrot.lane.b32.xlu0 %v1751, 8
        %v1828 = vpop.permute.xlu0 %1827
        %1829 = vrot.lane.b32.xlu0 %v1754, 8
        %v1830 = vpop.permute.xlu0 %1829
        %1831 = vrot.lane.b32.xlu0 %v1757, 8
        %v1832 = vpop.permute.xlu0 %1831
        %1833 = vrot.lane.b32.xlu0 %v1760, 8
        %v1834 = vpop.permute.xlu0 %1833
        %1835 = vrot.lane.b32.xlu0 %v1763, 8
        %v1836 = vpop.permute.xlu0 %1835
        %1837 = vrot.lane.b32.xlu0 %v1766, 8
        %v1838 = vpop.permute.xlu0 %1837
        %vm1875 = vcmask 93248
        %1876 = vst.msk [vmem:[#allocation6] sm:$0xf] %vm1875, %v1768
        %1877 = vst.msk [vmem:[#allocation6 + $0x4] sm:$0xf] %vm1875, %v1770
        %1878 = vst.msk [vmem:[#allocation6 + $0x8] sm:$0xf] %vm1875, %v1772
        %1879 = vst.msk [vmem:[#allocation6 + $0xc] sm:$0xf] %vm1875, %v1774
        %1880 = vst.msk [vmem:[#allocation6 + $0x10] sm:$0xf] %vm1875, %v1776
        %1881 = vst.msk [vmem:[#allocation6 + $0x14] sm:$0xf] %vm1875, %v1778
        %1882 = vst.msk [vmem:[#allocation6 + $0x18] sm:$0xf] %vm1875, %v1780
        %1883 = vst.msk [vmem:[#allocation6 + $0x1c] sm:$0xf] %vm1875, %v1782
        %1884 = vst.msk [vmem:[#allocation6 + $0x20] sm:$0xf] %vm1875, %v1784
        %1885 = vst.msk [vmem:[#allocation6 + $0x24] sm:$0xf] %vm1875, %v1786
        %1886 = vst.msk [vmem:[#allocation6 + $0x28] sm:$0xf] %vm1875, %v1788
        %1887 = vst.msk [vmem:[#allocation6 + $0x2c] sm:$0xf] %vm1875, %v1790
        %1888 = vst.msk [vmem:[#allocation6 + $0x30] sm:$0xf] %vm1875, %v1792
        %1889 = vst.msk [vmem:[#allocation6 + $0x34] sm:$0xf] %vm1875, %v1794
        %1890 = vst.msk [vmem:[#allocation6 + $0x38] sm:$0xf] %vm1875, %v1796
        %1891 = vst.msk [vmem:[#allocation6 + $0x3c] sm:$0xf] %vm1875, %v1798
        %1892 = vst.msk [vmem:[#allocation6 + $0x40] sm:$0xf] %vm1875, %v1800
        %1893 = vst.msk [vmem:[#allocation6 + $0x44] sm:$0xf] %vm1875, %v1802
        %1894 = vst.msk [vmem:[#allocation6 + $0x48] sm:$0xf] %vm1875, %v1804
        %1895 = vst.msk [vmem:[#allocation6 + $0x4c] sm:$0xf] %vm1875, %v1806
        %1896 = vst.msk [vmem:[#allocation6 + $0x50] sm:$0xf] %vm1875, %v1808
        %1897 = vst.msk [vmem:[#allocation6 + $0x54] sm:$0xf] %vm1875, %v1810
        %1898 = vst.msk [vmem:[#allocation6 + $0x58] sm:$0xf] %vm1875, %v1812
        %1899 = vst.msk [vmem:[#allocation6 + $0x5c] sm:$0xf] %vm1875, %v1814
        %1900 = vst.msk [vmem:[#allocation6 + $0x60] sm:$0xf] %vm1875, %v1816
        %1901 = vst.msk [vmem:[#allocation6 + $0x64] sm:$0xf] %vm1875, %v1818
        %1902 = vst.msk [vmem:[#allocation6 + $0x68] sm:$0xf] %vm1875, %v1820
        %1903 = vst.msk [vmem:[#allocation6 + $0x6c] sm:$0xf] %vm1875, %v1822
        %1904 = vst.msk [vmem:[#allocation6 + $0x70] sm:$0xf] %vm1875, %v1824
        %1905 = vst.msk [vmem:[#allocation6 + $0x74] sm:$0xf] %vm1875, %v1826
        %1906 = vst.msk [vmem:[#allocation6 + $0x78] sm:$0xf] %vm1875, %v1828
        %1907 = vst.msk [vmem:[#allocation6 + $0x7c] sm:$0xf] %vm1875, %v1830
        %1908 = vst.msk [vmem:[#allocation6 + $0x80] sm:$0xf] %vm1875, %v1832
        %1909 = vst.msk [vmem:[#allocation6 + $0x84] sm:$0xf] %vm1875, %v1834
        %1910 = vst.msk [vmem:[#allocation6 + $0x88] sm:$0xf] %vm1875, %v1836
        %1911 = vst.msk [vmem:[#allocation6 + $0x8c] sm:$0xf] %vm1875, %v1838
        %v1912 = vld [vmem:[#allocation2 + $0x8] sm:$0xe]
        %v1913 = vld [vmem:[#allocation2 + $0xc] sm:$0xf]
        %v1914 = vld [vmem:[#allocation2 + $0x10] sm:$0xf]
        %v1915 = vld [vmem:[#allocation2 + $0x14] sm:$0xf]
        %v1916 = vld [vmem:[#allocation2 + $0x18] sm:$0xf]
        %v1917 = vld [vmem:[#allocation2 + $0x1c] sm:$0xf]
        %v1918 = vld [vmem:[#allocation2 + $0x20] sm:$0xf]
        %v1919 = vld [vmem:[#allocation2 + $0x24] sm:$0xf]
        %v1920 = vld [vmem:[#allocation2 + $0x28] sm:$0xf]
        %v1921 = vld [vmem:[#allocation2 + $0x2c] sm:$0xf]
        %v1922 = vld [vmem:[#allocation2 + $0x30] sm:$0xf]
        %v1923 = vld [vmem:[#allocation2 + $0x34] sm:$0xf]
        %v1924 = vld [vmem:[#allocation2 + $0x38] sm:$0xf]
        %v1925 = vld [vmem:[#allocation2 + $0x3c] sm:$0xf]
        %v1926 = vld [vmem:[#allocation2 + $0x40] sm:$0xf]
        %v1927 = vld [vmem:[#allocation2 + $0x44] sm:$0xf]
        %v1928 = vld [vmem:[#allocation2 + $0x48] sm:$0xf]
        %v1929 = vld [vmem:[#allocation2 + $0x4c] sm:$0xf]
        %v1930 = vld [vmem:[#allocation2 + $0x50] sm:$0xf]
        %v1931 = vld [vmem:[#allocation2 + $0x54] sm:$0xf]
        %v1932 = vld [vmem:[#allocation2 + $0x58] sm:$0xf]
        %v1933 = vld [vmem:[#allocation2 + $0x5c] sm:$0xf]
        %v1934 = vld [vmem:[#allocation2 + $0x60] sm:$0xf]
        %v1935 = vld [vmem:[#allocation2 + $0x64] sm:$0xf]
        %v1936 = vld [vmem:[#allocation2 + $0x68] sm:$0xf]
        %v1937 = vld [vmem:[#allocation2 + $0x6c] sm:$0xf]
        %v1938 = vld [vmem:[#allocation2 + $0x70] sm:$0xf]
        %v1939 = vld [vmem:[#allocation2 + $0x74] sm:$0xf]
        %v1940 = vld [vmem:[#allocation2 + $0x78] sm:$0xf]
        %v1941 = vld [vmem:[#allocation2 + $0x7c] sm:$0xf]
        %v1942 = vld [vmem:[#allocation2 + $0x80] sm:$0xf]
        %v1943 = vld [vmem:[#allocation2 + $0x84] sm:$0xf]
        %v1944 = vld [vmem:[#allocation2 + $0x88] sm:$0xf]
        %v1945 = vld [vmem:[#allocation2 + $0x8c] sm:$0xf]
        %v1946 = vld [vmem:[#allocation2 + $0x90] sm:$0xf]
        %v1947 = vld [vmem:[#allocation2 + $0x94] sm:$0xf]
        %v1948 = vld [vmem:[#allocation2 + $0x98] sm:$0x1]
        %v1986 = vrot.slane %v1912, 5
        %v1987 = vrot.slane %v1986, 4
        %v1988 = vrot.slane %v1913, 5
        %v1989 = vsel %vm1657, %v1987, %v1988
        %v1990 = vrot.slane %v1988, 4
        %v1991 = vrot.slane %v1914, 5
        %v1992 = vsel %vm1657, %v1990, %v1991
        %v1993 = vrot.slane %v1991, 4
        %v1994 = vrot.slane %v1915, 5
        %v1995 = vsel %vm1657, %v1993, %v1994
        %v1996 = vrot.slane %v1994, 4
        %v1997 = vrot.slane %v1916, 5
        %v1998 = vsel %vm1657, %v1996, %v1997
        %v1999 = vrot.slane %v1997, 4
        %v2000 = vrot.slane %v1917, 5
        %v2001 = vsel %vm1657, %v1999, %v2000
        %v2002 = vrot.slane %v2000, 4
        %v2003 = vrot.slane %v1918, 5
        %v2004 = vsel %vm1657, %v2002, %v2003
        %v2005 = vrot.slane %v2003, 4
        %v2006 = vrot.slane %v1919, 5
        %v2007 = vsel %vm1657, %v2005, %v2006
        %v2008 = vrot.slane %v2006, 4
        %v2009 = vrot.slane %v1920, 5
        %v2010 = vsel %vm1657, %v2008, %v2009
        %v2011 = vrot.slane %v2009, 4
        %v2012 = vrot.slane %v1921, 5
        %v2013 = vsel %vm1657, %v2011, %v2012
        %v2014 = vrot.slane %v2012, 4
        %v2015 = vrot.slane %v1922, 5
        %v2016 = vsel %vm1657, %v2014, %v2015
        %v2017 = vrot.slane %v2015, 4
        %v2018 = vrot.slane %v1923, 5
        %v2019 = vsel %vm1657, %v2017, %v2018
        %v2020 = vrot.slane %v2018, 4
        %v2021 = vrot.slane %v1924, 5
        %v2022 = vsel %vm1657, %v2020, %v2021
        %v2023 = vrot.slane %v2021, 4
        %v2024 = vrot.slane %v1925, 5
        %v2025 = vsel %vm1657, %v2023, %v2024
        %v2026 = vrot.slane %v2024, 4
        %v2027 = vrot.slane %v1926, 5
        %v2028 = vsel %vm1657, %v2026, %v2027
        %v2029 = vrot.slane %v2027, 4
        %v2030 = vrot.slane %v1927, 5
        %v2031 = vsel %vm1657, %v2029, %v2030
        %v2032 = vrot.slane %v2030, 4
        %v2033 = vrot.slane %v1928, 5
        %v2034 = vsel %vm1657, %v2032, %v2033
        %v2035 = vrot.slane %v2033, 4
        %v2036 = vrot.slane %v1929, 5
        %v2037 = vsel %vm1657, %v2035, %v2036
        %v2038 = vrot.slane %v2036, 4
        %v2039 = vrot.slane %v1930, 5
        %v2040 = vsel %vm1657, %v2038, %v2039
        %v2041 = vrot.slane %v2039, 4
        %v2042 = vrot.slane %v1931, 5
        %v2043 = vsel %vm1657, %v2041, %v2042
        %v2044 = vrot.slane %v2042, 4
        %v2045 = vrot.slane %v1932, 5
        %v2046 = vsel %vm1657, %v2044, %v2045
        %v2047 = vrot.slane %v2045, 4
        %v2048 = vrot.slane %v1933, 5
        %v2049 = vsel %vm1657, %v2047, %v2048
        %v2050 = vrot.slane %v2048, 4
        %v2051 = vrot.slane %v1934, 5
        %v2052 = vsel %vm1657, %v2050, %v2051
        %v2053 = vrot.slane %v2051, 4
        %v2054 = vrot.slane %v1935, 5
        %v2055 = vsel %vm1657, %v2053, %v2054
        %v2056 = vrot.slane %v2054, 4
        %v2057 = vrot.slane %v1936, 5
        %v2058 = vsel %vm1657, %v2056, %v2057
        %v2059 = vrot.slane %v2057, 4
        %v2060 = vrot.slane %v1937, 5
        %v2061 = vsel %vm1657, %v2059, %v2060
        %v2062 = vrot.slane %v2060, 4
        %v2063 = vrot.slane %v1938, 5
        %v2064 = vsel %vm1657, %v2062, %v2063
        %v2065 = vrot.slane %v2063, 4
        %v2066 = vrot.slane %v1939, 5
        %v2067 = vsel %vm1657, %v2065, %v2066
        %v2068 = vrot.slane %v2066, 4
        %v2069 = vrot.slane %v1940, 5
        %v2070 = vsel %vm1657, %v2068, %v2069
        %v2071 = vrot.slane %v2069, 4
        %v2072 = vrot.slane %v1941, 5
        %v2073 = vsel %vm1657, %v2071, %v2072
        %v2074 = vrot.slane %v2072, 4
        %v2075 = vrot.slane %v1942, 5
        %v2076 = vsel %vm1657, %v2074, %v2075
        %v2077 = vrot.slane %v2075, 4
        %v2078 = vrot.slane %v1943, 5
        %v2079 = vsel %vm1657, %v2077, %v2078
        %v2080 = vrot.slane %v2078, 4
        %v2081 = vrot.slane %v1944, 5
        %v2082 = vsel %vm1657, %v2080, %v2081
        %v2083 = vrot.slane %v2081, 4
        %v2084 = vrot.slane %v1945, 5
        %v2085 = vsel %vm1657, %v2083, %v2084
        %v2086 = vrot.slane %v2084, 4
        %v2087 = vrot.slane %v1946, 5
        %v2088 = vsel %vm1657, %v2086, %v2087
        %v2089 = vrot.slane %v2087, 4
        %v2090 = vrot.slane %v1947, 5
        %v2091 = vsel %vm1657, %v2089, %v2090
        %v2092 = vrot.slane %v2090, 4
        %v2093 = vrot.slane %v1948, 5
        %v2094 = vsel %vm1657, %v2092, %v2093
        %2095 = vrot.lane.b32.xlu0 %v1989, 12
        %v2096 = vpop.permute.xlu0 %2095
        %2097 = vrot.lane.b32.xlu0 %v1992, 12
        %v2098 = vpop.permute.xlu0 %2097
        %2099 = vrot.lane.b32.xlu0 %v1995, 12
        %v2100 = vpop.permute.xlu0 %2099
        %2101 = vrot.lane.b32.xlu0 %v1998, 12
        %v2102 = vpop.permute.xlu0 %2101
        %2103 = vrot.lane.b32.xlu0 %v2001, 12
        %v2104 = vpop.permute.xlu0 %2103
        %2105 = vrot.lane.b32.xlu0 %v2004, 12
        %v2106 = vpop.permute.xlu0 %2105
        %2107 = vrot.lane.b32.xlu0 %v2007, 12
        %v2108 = vpop.permute.xlu0 %2107
        %2109 = vrot.lane.b32.xlu0 %v2010, 12
        %v2110 = vpop.permute.xlu0 %2109
        %2111 = vrot.lane.b32.xlu0 %v2013, 12
        %v2112 = vpop.permute.xlu0 %2111
        %2113 = vrot.lane.b32.xlu0 %v2016, 12
        %v2114 = vpop.permute.xlu0 %2113
        %2115 = vrot.lane.b32.xlu0 %v2019, 12
        %v2116 = vpop.permute.xlu0 %2115
        %2117 = vrot.lane.b32.xlu0 %v2022, 12
        %v2118 = vpop.permute.xlu0 %2117
        %2119 = vrot.lane.b32.xlu0 %v2025, 12
        %v2120 = vpop.permute.xlu0 %2119
        %2121 = vrot.lane.b32.xlu0 %v2028, 12
        %v2122 = vpop.permute.xlu0 %2121
        %2123 = vrot.lane.b32.xlu0 %v2031, 12
        %v2124 = vpop.permute.xlu0 %2123
        %2125 = vrot.lane.b32.xlu0 %v2034, 12
        %v2126 = vpop.permute.xlu0 %2125
        %2127 = vrot.lane.b32.xlu0 %v2037, 12
        %v2128 = vpop.permute.xlu0 %2127
        %2129 = vrot.lane.b32.xlu0 %v2040, 12
        %v2130 = vpop.permute.xlu0 %2129
        %2131 = vrot.lane.b32.xlu0 %v2043, 12
        %v2132 = vpop.permute.xlu0 %2131
        %2133 = vrot.lane.b32.xlu0 %v2046, 12
        %v2134 = vpop.permute.xlu0 %2133
        %2135 = vrot.lane.b32.xlu0 %v2049, 12
        %v2136 = vpop.permute.xlu0 %2135
        %2137 = vrot.lane.b32.xlu0 %v2052, 12
        %v2138 = vpop.permute.xlu0 %2137
        %2139 = vrot.lane.b32.xlu0 %v2055, 12
        %v2140 = vpop.permute.xlu0 %2139
        %2141 = vrot.lane.b32.xlu0 %v2058, 12
        %v2142 = vpop.permute.xlu0 %2141
        %2143 = vrot.lane.b32.xlu0 %v2061, 12
        %v2144 = vpop.permute.xlu0 %2143
        %2145 = vrot.lane.b32.xlu0 %v2064, 12
        %v2146 = vpop.permute.xlu0 %2145
        %2147 = vrot.lane.b32.xlu0 %v2067, 12
        %v2148 = vpop.permute.xlu0 %2147
        %2149 = vrot.lane.b32.xlu0 %v2070, 12
        %v2150 = vpop.permute.xlu0 %2149
        %2151 = vrot.lane.b32.xlu0 %v2073, 12
        %v2152 = vpop.permute.xlu0 %2151
        %2153 = vrot.lane.b32.xlu0 %v2076, 12
        %v2154 = vpop.permute.xlu0 %2153
        %2155 = vrot.lane.b32.xlu0 %v2079, 12
        %v2156 = vpop.permute.xlu0 %2155
        %2157 = vrot.lane.b32.xlu0 %v2082, 12
        %v2158 = vpop.permute.xlu0 %2157
        %2159 = vrot.lane.b32.xlu0 %v2085, 12
        %v2160 = vpop.permute.xlu0 %2159
        %2161 = vrot.lane.b32.xlu0 %v2088, 12
        %v2162 = vpop.permute.xlu0 %2161
        %2163 = vrot.lane.b32.xlu0 %v2091, 12
        %v2164 = vpop.permute.xlu0 %2163
        %2165 = vrot.lane.b32.xlu0 %v2094, 12
        %v2166 = vpop.permute.xlu0 %2165
        %vm2203 = vcmask 126048
        %2204 = vst.msk [vmem:[#allocation6] sm:$0xf] %vm2203, %v2096
        %2205 = vst.msk [vmem:[#allocation6 + $0x4] sm:$0xf] %vm2203, %v2098
        %2206 = vst.msk [vmem:[#allocation6 + $0x8] sm:$0xf] %vm2203, %v2100
        %2207 = vst.msk [vmem:[#allocation6 + $0xc] sm:$0xf] %vm2203, %v2102
        %2208 = vst.msk [vmem:[#allocation6 + $0x10] sm:$0xf] %vm2203, %v2104
        %2209 = vst.msk [vmem:[#allocation6 + $0x14] sm:$0xf] %vm2203, %v2106
        %2210 = vst.msk [vmem:[#allocation6 + $0x18] sm:$0xf] %vm2203, %v2108
        %2211 = vst.msk [vmem:[#allocation6 + $0x1c] sm:$0xf] %vm2203, %v2110
        %2212 = vst.msk [vmem:[#allocation6 + $0x20] sm:$0xf] %vm2203, %v2112
        %2213 = vst.msk [vmem:[#allocation6 + $0x24] sm:$0xf] %vm2203, %v2114
        %2214 = vst.msk [vmem:[#allocation6 + $0x28] sm:$0xf] %vm2203, %v2116
        %2215 = vst.msk [vmem:[#allocation6 + $0x2c] sm:$0xf] %vm2203, %v2118
        %2216 = vst.msk [vmem:[#allocation6 + $0x30] sm:$0xf] %vm2203, %v2120
        %2217 = vst.msk [vmem:[#allocation6 + $0x34] sm:$0xf] %vm2203, %v2122
        %2218 = vst.msk [vmem:[#allocation6 + $0x38] sm:$0xf] %vm2203, %v2124
        %2219 = vst.msk [vmem:[#allocation6 + $0x3c] sm:$0xf] %vm2203, %v2126
        %2220 = vst.msk [vmem:[#allocation6 + $0x40] sm:$0xf] %vm2203, %v2128
        %2221 = vst.msk [vmem:[#allocation6 + $0x44] sm:$0xf] %vm2203, %v2130
        %2222 = vst.msk [vmem:[#allocation6 + $0x48] sm:$0xf] %vm2203, %v2132
        %2223 = vst.msk [vmem:[#allocation6 + $0x4c] sm:$0xf] %vm2203, %v2134
        %2224 = vst.msk [vmem:[#allocation6 + $0x50] sm:$0xf] %vm2203, %v2136
        %2225 = vst.msk [vmem:[#allocation6 + $0x54] sm:$0xf] %vm2203, %v2138
        %2226 = vst.msk [vmem:[#allocation6 + $0x58] sm:$0xf] %vm2203, %v2140
        %2227 = vst.msk [vmem:[#allocation6 + $0x5c] sm:$0xf] %vm2203, %v2142
        %2228 = vst.msk [vmem:[#allocation6 + $0x60] sm:$0xf] %vm2203, %v2144
        %2229 = vst.msk [vmem:[#allocation6 + $0x64] sm:$0xf] %vm2203, %v2146
        %2230 = vst.msk [vmem:[#allocation6 + $0x68] sm:$0xf] %vm2203, %v2148
        %2231 = vst.msk [vmem:[#allocation6 + $0x6c] sm:$0xf] %vm2203, %v2150
        %2232 = vst.msk [vmem:[#allocation6 + $0x70] sm:$0xf] %vm2203, %v2152
        %2233 = vst.msk [vmem:[#allocation6 + $0x74] sm:$0xf] %vm2203, %v2154
        %2234 = vst.msk [vmem:[#allocation6 + $0x78] sm:$0xf] %vm2203, %v2156
        %2235 = vst.msk [vmem:[#allocation6 + $0x7c] sm:$0xf] %vm2203, %v2158
        %2236 = vst.msk [vmem:[#allocation6 + $0x80] sm:$0xf] %vm2203, %v2160
        %2237 = vst.msk [vmem:[#allocation6 + $0x84] sm:$0xf] %vm2203, %v2162
        %2238 = vst.msk [vmem:[#allocation6 + $0x88] sm:$0xf] %vm2203, %v2164
        %2239 = vst.msk [vmem:[#allocation6 + $0x8c] sm:$0xf] %vm2203, %v2166
        %v2240 = vld [vmem:[#allocation2 + $0x8] sm:$0xe]
        %v2241 = vld [vmem:[#allocation2 + $0xc] sm:$0xf]
        %v2242 = vld [vmem:[#allocation2 + $0x10] sm:$0xf]
        %v2243 = vld [vmem:[#allocation2 + $0x14] sm:$0xf]
        %v2244 = vld [vmem:[#allocation2 + $0x18] sm:$0xf]
        %v2245 = vld [vmem:[#allocation2 + $0x1c] sm:$0xf]
        %v2246 = vld [vmem:[#allocation2 + $0x20] sm:$0xf]
        %v2247 = vld [vmem:[#allocation2 + $0x24] sm:$0xf]
        %v2248 = vld [vmem:[#allocation2 + $0x28] sm:$0xf]
        %v2249 = vld [vmem:[#allocation2 + $0x2c] sm:$0xf]
        %v2250 = vld [vmem:[#allocation2 + $0x30] sm:$0xf]
        %v2251 = vld [vmem:[#allocation2 + $0x34] sm:$0xf]
        %v2252 = vld [vmem:[#allocation2 + $0x38] sm:$0xf]
        %v2253 = vld [vmem:[#allocation2 + $0x3c] sm:$0xf]
        %v2254 = vld [vmem:[#allocation2 + $0x40] sm:$0xf]
        %v2255 = vld [vmem:[#allocation2 + $0x44] sm:$0xf]
        %v2256 = vld [vmem:[#allocation2 + $0x48] sm:$0xf]
        %v2257 = vld [vmem:[#allocation2 + $0x4c] sm:$0xf]
        %v2258 = vld [vmem:[#allocation2 + $0x50] sm:$0xf]
        %v2259 = vld [vmem:[#allocation2 + $0x54] sm:$0xf]
        %v2260 = vld [vmem:[#allocation2 + $0x58] sm:$0xf]
        %v2261 = vld [vmem:[#allocation2 + $0x5c] sm:$0xf]
        %v2262 = vld [vmem:[#allocation2 + $0x60] sm:$0xf]
        %v2263 = vld [vmem:[#allocation2 + $0x64] sm:$0xf]
        %v2264 = vld [vmem:[#allocation2 + $0x68] sm:$0xf]
        %v2265 = vld [vmem:[#allocation2 + $0x6c] sm:$0xf]
        %v2266 = vld [vmem:[#allocation2 + $0x70] sm:$0xf]
        %v2267 = vld [vmem:[#allocation2 + $0x74] sm:$0xf]
        %v2268 = vld [vmem:[#allocation2 + $0x78] sm:$0xf]
        %v2269 = vld [vmem:[#allocation2 + $0x7c] sm:$0xf]
        %v2270 = vld [vmem:[#allocation2 + $0x80] sm:$0xf]
        %v2271 = vld [vmem:[#allocation2 + $0x84] sm:$0xf]
        %v2272 = vld [vmem:[#allocation2 + $0x88] sm:$0xf]
        %v2273 = vld [vmem:[#allocation2 + $0x8c] sm:$0xf]
        %v2274 = vld [vmem:[#allocation2 + $0x90] sm:$0xf]
        %v2275 = vld [vmem:[#allocation2 + $0x94] sm:$0xf]
        %v2276 = vld [vmem:[#allocation2 + $0x98] sm:$0x3]
        %v2278 = vshrl.u32 %v2240, 16
        %v2280 = vrot.slane %v2278, 5
        %v2281 = vshll.u32 %v2240, 16
        %v2283 = vrot.slane %v2281, 6
        %v2284 = vor.u32 %v2280, %v2283
        %v2285 = vrot.slane %v2284, 4
        %v2287 = vshrl.u32 %v2241, 16
        %v2289 = vrot.slane %v2287, 5
        %v2290 = vshll.u32 %v2241, 16
        %v2292 = vrot.slane %v2290, 6
        %v2293 = vor.u32 %v2289, %v2292
        %v2294 = vsel %vm499, %v2285, %v2293
        %v2295 = vrot.slane %v2293, 4
        %v2297 = vshrl.u32 %v2242, 16
        %v2299 = vrot.slane %v2297, 5
        %v2300 = vshll.u32 %v2242, 16
        %v2302 = vrot.slane %v2300, 6
        %v2303 = vor.u32 %v2299, %v2302
        %v2304 = vsel %vm499, %v2295, %v2303
        %v2305 = vrot.slane %v2303, 4
        %v2307 = vshrl.u32 %v2243, 16
        %v2309 = vrot.slane %v2307, 5
        %v2310 = vshll.u32 %v2243, 16
        %v2312 = vrot.slane %v2310, 6
        %v2313 = vor.u32 %v2309, %v2312
        %v2314 = vsel %vm499, %v2305, %v2313
        %v2315 = vrot.slane %v2313, 4
        %v2317 = vshrl.u32 %v2244, 16
        %v2319 = vrot.slane %v2317, 5
        %v2320 = vshll.u32 %v2244, 16
        %v2322 = vrot.slane %v2320, 6
        %v2323 = vor.u32 %v2319, %v2322
        %v2324 = vsel %vm499, %v2315, %v2323
        %v2325 = vrot.slane %v2323, 4
        %v2327 = vshrl.u32 %v2245, 16
        %v2329 = vrot.slane %v2327, 5
        %v2330 = vshll.u32 %v2245, 16
        %v2332 = vrot.slane %v2330, 6
        %v2333 = vor.u32 %v2329, %v2332
        %v2334 = vsel %vm499, %v2325, %v2333
        %v2335 = vrot.slane %v2333, 4
        %v2337 = vshrl.u32 %v2246, 16
        %v2339 = vrot.slane %v2337, 5
        %v2340 = vshll.u32 %v2246, 16
        %v2342 = vrot.slane %v2340, 6
        %v2343 = vor.u32 %v2339, %v2342
        %v2344 = vsel %vm499, %v2335, %v2343
        %v2345 = vrot.slane %v2343, 4
        %v2347 = vshrl.u32 %v2247, 16
        %v2349 = vrot.slane %v2347, 5
        %v2350 = vshll.u32 %v2247, 16
        %v2352 = vrot.slane %v2350, 6
        %v2353 = vor.u32 %v2349, %v2352
        %v2354 = vsel %vm499, %v2345, %v2353
        %v2355 = vrot.slane %v2353, 4
        %v2357 = vshrl.u32 %v2248, 16
        %v2359 = vrot.slane %v2357, 5
        %v2360 = vshll.u32 %v2248, 16
        %v2362 = vrot.slane %v2360, 6
        %v2363 = vor.u32 %v2359, %v2362
        %v2364 = vsel %vm499, %v2355, %v2363
        %v2365 = vrot.slane %v2363, 4
        %v2367 = vshrl.u32 %v2249, 16
        %v2369 = vrot.slane %v2367, 5
        %v2370 = vshll.u32 %v2249, 16
        %v2372 = vrot.slane %v2370, 6
        %v2373 = vor.u32 %v2369, %v2372
        %v2374 = vsel %vm499, %v2365, %v2373
        %v2375 = vrot.slane %v2373, 4
        %v2377 = vshrl.u32 %v2250, 16
        %v2379 = vrot.slane %v2377, 5
        %v2380 = vshll.u32 %v2250, 16
        %v2382 = vrot.slane %v2380, 6
        %v2383 = vor.u32 %v2379, %v2382
        %v2384 = vsel %vm499, %v2375, %v2383
        %v2385 = vrot.slane %v2383, 4
        %v2387 = vshrl.u32 %v2251, 16
        %v2389 = vrot.slane %v2387, 5
        %v2390 = vshll.u32 %v2251, 16
        %v2392 = vrot.slane %v2390, 6
        %v2393 = vor.u32 %v2389, %v2392
        %v2394 = vsel %vm499, %v2385, %v2393
        %v2395 = vrot.slane %v2393, 4
        %v2397 = vshrl.u32 %v2252, 16
        %v2399 = vrot.slane %v2397, 5
        %v2400 = vshll.u32 %v2252, 16
        %v2402 = vrot.slane %v2400, 6
        %v2403 = vor.u32 %v2399, %v2402
        %v2404 = vsel %vm499, %v2395, %v2403
        %v2405 = vrot.slane %v2403, 4
        %v2407 = vshrl.u32 %v2253, 16
        %v2409 = vrot.slane %v2407, 5
        %v2410 = vshll.u32 %v2253, 16
        %v2412 = vrot.slane %v2410, 6
        %v2413 = vor.u32 %v2409, %v2412
        %v2414 = vsel %vm499, %v2405, %v2413
        %v2415 = vrot.slane %v2413, 4
        %v2417 = vshrl.u32 %v2254, 16
        %v2419 = vrot.slane %v2417, 5
        %v2420 = vshll.u32 %v2254, 16
        %v2422 = vrot.slane %v2420, 6
        %v2423 = vor.u32 %v2419, %v2422
        %v2424 = vsel %vm499, %v2415, %v2423
        %v2425 = vrot.slane %v2423, 4
        %v2427 = vshrl.u32 %v2255, 16
        %v2429 = vrot.slane %v2427, 5
        %v2430 = vshll.u32 %v2255, 16
        %v2432 = vrot.slane %v2430, 6
        %v2433 = vor.u32 %v2429, %v2432
        %v2434 = vsel %vm499, %v2425, %v2433
        %v2435 = vrot.slane %v2433, 4
        %v2437 = vshrl.u32 %v2256, 16
        %v2439 = vrot.slane %v2437, 5
        %v2440 = vshll.u32 %v2256, 16
        %v2442 = vrot.slane %v2440, 6
        %v2443 = vor.u32 %v2439, %v2442
        %v2444 = vsel %vm499, %v2435, %v2443
        %v2445 = vrot.slane %v2443, 4
        %v2447 = vshrl.u32 %v2257, 16
        %v2449 = vrot.slane %v2447, 5
        %v2450 = vshll.u32 %v2257, 16
        %v2452 = vrot.slane %v2450, 6
        %v2453 = vor.u32 %v2449, %v2452
        %v2454 = vsel %vm499, %v2445, %v2453
        %v2455 = vrot.slane %v2453, 4
        %v2457 = vshrl.u32 %v2258, 16
        %v2459 = vrot.slane %v2457, 5
        %v2460 = vshll.u32 %v2258, 16
        %v2462 = vrot.slane %v2460, 6
        %v2463 = vor.u32 %v2459, %v2462
        %v2464 = vsel %vm499, %v2455, %v2463
        %v2465 = vrot.slane %v2463, 4
        %v2467 = vshrl.u32 %v2259, 16
        %v2469 = vrot.slane %v2467, 5
        %v2470 = vshll.u32 %v2259, 16
        %v2472 = vrot.slane %v2470, 6
        %v2473 = vor.u32 %v2469, %v2472
        %v2474 = vsel %vm499, %v2465, %v2473
        %v2475 = vrot.slane %v2473, 4
        %v2477 = vshrl.u32 %v2260, 16
        %v2479 = vrot.slane %v2477, 5
        %v2480 = vshll.u32 %v2260, 16
        %v2482 = vrot.slane %v2480, 6
        %v2483 = vor.u32 %v2479, %v2482
        %v2484 = vsel %vm499, %v2475, %v2483
        %v2485 = vrot.slane %v2483, 4
        %v2487 = vshrl.u32 %v2261, 16
        %v2489 = vrot.slane %v2487, 5
        %v2490 = vshll.u32 %v2261, 16
        %v2492 = vrot.slane %v2490, 6
        %v2493 = vor.u32 %v2489, %v2492
        %v2494 = vsel %vm499, %v2485, %v2493
        %v2495 = vrot.slane %v2493, 4
        %v2497 = vshrl.u32 %v2262, 16
        %v2499 = vrot.slane %v2497, 5
        %v2500 = vshll.u32 %v2262, 16
        %v2502 = vrot.slane %v2500, 6
        %v2503 = vor.u32 %v2499, %v2502
        %v2504 = vsel %vm499, %v2495, %v2503
        %v2505 = vrot.slane %v2503, 4
        %v2507 = vshrl.u32 %v2263, 16
        %v2509 = vrot.slane %v2507, 5
        %v2510 = vshll.u32 %v2263, 16
        %v2512 = vrot.slane %v2510, 6
        %v2513 = vor.u32 %v2509, %v2512
        %v2514 = vsel %vm499, %v2505, %v2513
        %v2515 = vrot.slane %v2513, 4
        %v2517 = vshrl.u32 %v2264, 16
        %v2519 = vrot.slane %v2517, 5
        %v2520 = vshll.u32 %v2264, 16
        %v2522 = vrot.slane %v2520, 6
        %v2523 = vor.u32 %v2519, %v2522
        %v2524 = vsel %vm499, %v2515, %v2523
        %v2525 = vrot.slane %v2523, 4
        %v2527 = vshrl.u32 %v2265, 16
        %v2529 = vrot.slane %v2527, 5
        %v2530 = vshll.u32 %v2265, 16
        %v2532 = vrot.slane %v2530, 6
        %v2533 = vor.u32 %v2529, %v2532
        %v2534 = vsel %vm499, %v2525, %v2533
        %v2535 = vrot.slane %v2533, 4
        %v2537 = vshrl.u32 %v2266, 16
        %v2539 = vrot.slane %v2537, 5
        %v2540 = vshll.u32 %v2266, 16
        %v2542 = vrot.slane %v2540, 6
        %v2543 = vor.u32 %v2539, %v2542
        %v2544 = vsel %vm499, %v2535, %v2543
        %v2545 = vrot.slane %v2543, 4
        %v2547 = vshrl.u32 %v2267, 16
        %v2549 = vrot.slane %v2547, 5
        %v2550 = vshll.u32 %v2267, 16
        %v2552 = vrot.slane %v2550, 6
        %v2553 = vor.u32 %v2549, %v2552
        %v2554 = vsel %vm499, %v2545, %v2553
        %v2555 = vrot.slane %v2553, 4
        %v2557 = vshrl.u32 %v2268, 16
        %v2559 = vrot.slane %v2557, 5
        %v2560 = vshll.u32 %v2268, 16
        %v2562 = vrot.slane %v2560, 6
        %v2563 = vor.u32 %v2559, %v2562
        %v2564 = vsel %vm499, %v2555, %v2563
        %v2565 = vrot.slane %v2563, 4
        %v2567 = vshrl.u32 %v2269, 16
        %v2569 = vrot.slane %v2567, 5
        %v2570 = vshll.u32 %v2269, 16
        %v2572 = vrot.slane %v2570, 6
        %v2573 = vor.u32 %v2569, %v2572
        %v2574 = vsel %vm499, %v2565, %v2573
        %v2575 = vrot.slane %v2573, 4
        %v2577 = vshrl.u32 %v2270, 16
        %v2579 = vrot.slane %v2577, 5
        %v2580 = vshll.u32 %v2270, 16
        %v2582 = vrot.slane %v2580, 6
        %v2583 = vor.u32 %v2579, %v2582
        %v2584 = vsel %vm499, %v2575, %v2583
        %v2585 = vrot.slane %v2583, 4
        %v2587 = vshrl.u32 %v2271, 16
        %v2589 = vrot.slane %v2587, 5
        %v2590 = vshll.u32 %v2271, 16
        %v2592 = vrot.slane %v2590, 6
        %v2593 = vor.u32 %v2589, %v2592
        %v2594 = vsel %vm499, %v2585, %v2593
        %v2595 = vrot.slane %v2593, 4
        %v2597 = vshrl.u32 %v2272, 16
        %v2599 = vrot.slane %v2597, 5
        %v2600 = vshll.u32 %v2272, 16
        %v2602 = vrot.slane %v2600, 6
        %v2603 = vor.u32 %v2599, %v2602
        %v2604 = vsel %vm499, %v2595, %v2603
        %v2605 = vrot.slane %v2603, 4
        %v2607 = vshrl.u32 %v2273, 16
        %v2609 = vrot.slane %v2607, 5
        %v2610 = vshll.u32 %v2273, 16
        %v2612 = vrot.slane %v2610, 6
        %v2613 = vor.u32 %v2609, %v2612
        %v2614 = vsel %vm499, %v2605, %v2613
        %v2615 = vrot.slane %v2613, 4
        %v2617 = vshrl.u32 %v2274, 16
        %v2619 = vrot.slane %v2617, 5
        %v2620 = vshll.u32 %v2274, 16
        %v2622 = vrot.slane %v2620, 6
        %v2623 = vor.u32 %v2619, %v2622
        %v2624 = vsel %vm499, %v2615, %v2623
        %v2625 = vrot.slane %v2623, 4
        %v2627 = vshrl.u32 %v2275, 16
        %v2629 = vrot.slane %v2627, 5
        %v2630 = vshll.u32 %v2275, 16
        %v2632 = vrot.slane %v2630, 6
        %v2633 = vor.u32 %v2629, %v2632
        %v2634 = vsel %vm499, %v2625, %v2633
        %v2635 = vrot.slane %v2633, 4
        %v2637 = vshrl.u32 %v2276, 16
        %v2639 = vrot.slane %v2637, 5
        %v2640 = vshll.u32 %v2276, 16
        %v2642 = vrot.slane %v2640, 6
        %v2643 = vor.u32 %v2639, %v2642
        %v2644 = vsel %vm499, %v2635, %v2643
        %2645 = vrot.lane.b32.xlu0 %v2294, 16
        %v2646 = vpop.permute.xlu0 %2645
        %2647 = vrot.lane.b32.xlu0 %v2304, 16
        %v2648 = vpop.permute.xlu0 %2647
        %2649 = vrot.lane.b32.xlu0 %v2314, 16
        %v2650 = vpop.permute.xlu0 %2649
        %2651 = vrot.lane.b32.xlu0 %v2324, 16
        %v2652 = vpop.permute.xlu0 %2651
        %2653 = vrot.lane.b32.xlu0 %v2334, 16
        %v2654 = vpop.permute.xlu0 %2653
        %2655 = vrot.lane.b32.xlu0 %v2344, 16
        %v2656 = vpop.permute.xlu0 %2655
        %2657 = vrot.lane.b32.xlu0 %v2354, 16
        %v2658 = vpop.permute.xlu0 %2657
        %2659 = vrot.lane.b32.xlu0 %v2364, 16
        %v2660 = vpop.permute.xlu0 %2659
        %2661 = vrot.lane.b32.xlu0 %v2374, 16
        %v2662 = vpop.permute.xlu0 %2661
        %2663 = vrot.lane.b32.xlu0 %v2384, 16
        %v2664 = vpop.permute.xlu0 %2663
        %2665 = vrot.lane.b32.xlu0 %v2394, 16
        %v2666 = vpop.permute.xlu0 %2665
        %2667 = vrot.lane.b32.xlu0 %v2404, 16
        %v2668 = vpop.permute.xlu0 %2667
        %2669 = vrot.lane.b32.xlu0 %v2414, 16
        %v2670 = vpop.permute.xlu0 %2669
        %2671 = vrot.lane.b32.xlu0 %v2424, 16
        %v2672 = vpop.permute.xlu0 %2671
        %2673 = vrot.lane.b32.xlu0 %v2434, 16
        %v2674 = vpop.permute.xlu0 %2673
        %2675 = vrot.lane.b32.xlu0 %v2444, 16
        %v2676 = vpop.permute.xlu0 %2675
        %2677 = vrot.lane.b32.xlu0 %v2454, 16
        %v2678 = vpop.permute.xlu0 %2677
        %2679 = vrot.lane.b32.xlu0 %v2464, 16
        %v2680 = vpop.permute.xlu0 %2679
        %2681 = vrot.lane.b32.xlu0 %v2474, 16
        %v2682 = vpop.permute.xlu0 %2681
        %2683 = vrot.lane.b32.xlu0 %v2484, 16
        %v2684 = vpop.permute.xlu0 %2683
        %2685 = vrot.lane.b32.xlu0 %v2494, 16
        %v2686 = vpop.permute.xlu0 %2685
        %2687 = vrot.lane.b32.xlu0 %v2504, 16
        %v2688 = vpop.permute.xlu0 %2687
        %2689 = vrot.lane.b32.xlu0 %v2514, 16
        %v2690 = vpop.permute.xlu0 %2689
        %2691 = vrot.lane.b32.xlu0 %v2524, 16
        %v2692 = vpop.permute.xlu0 %2691
        %2693 = vrot.lane.b32.xlu0 %v2534, 16
        %v2694 = vpop.permute.xlu0 %2693
        %2695 = vrot.lane.b32.xlu0 %v2544, 16
        %v2696 = vpop.permute.xlu0 %2695
        %2697 = vrot.lane.b32.xlu0 %v2554, 16
        %v2698 = vpop.permute.xlu0 %2697
        %2699 = vrot.lane.b32.xlu0 %v2564, 16
        %v2700 = vpop.permute.xlu0 %2699
        %2701 = vrot.lane.b32.xlu0 %v2574, 16
        %v2702 = vpop.permute.xlu0 %2701
        %2703 = vrot.lane.b32.xlu0 %v2584, 16
        %v2704 = vpop.permute.xlu0 %2703
        %2705 = vrot.lane.b32.xlu0 %v2594, 16
        %v2706 = vpop.permute.xlu0 %2705
        %2707 = vrot.lane.b32.xlu0 %v2604, 16
        %v2708 = vpop.permute.xlu0 %2707
        %2709 = vrot.lane.b32.xlu0 %v2614, 16
        %v2710 = vpop.permute.xlu0 %2709
        %2711 = vrot.lane.b32.xlu0 %v2624, 16
        %v2712 = vpop.permute.xlu0 %2711
        %2713 = vrot.lane.b32.xlu0 %v2634, 16
        %v2714 = vpop.permute.xlu0 %2713
        %2715 = vrot.lane.b32.xlu0 %v2644, 16
        %v2716 = vpop.permute.xlu0 %2715
        %vm2753 = vcmask 158848
        %2754 = vst.msk [vmem:[#allocation6] sm:$0xf] %vm2753, %v2646
        %2755 = vst.msk [vmem:[#allocation6 + $0x4] sm:$0xf] %vm2753, %v2648
        %2756 = vst.msk [vmem:[#allocation6 + $0x8] sm:$0xf] %vm2753, %v2650
        %2757 = vst.msk [vmem:[#allocation6 + $0xc] sm:$0xf] %vm2753, %v2652
        %2758 = vst.msk [vmem:[#allocation6 + $0x10] sm:$0xf] %vm2753, %v2654
        %2759 = vst.msk [vmem:[#allocation6 + $0x14] sm:$0xf] %vm2753, %v2656
        %2760 = vst.msk [vmem:[#allocation6 + $0x18] sm:$0xf] %vm2753, %v2658
        %2761 = vst.msk [vmem:[#allocation6 + $0x1c] sm:$0xf] %vm2753, %v2660
        %2762 = vst.msk [vmem:[#allocation6 + $0x20] sm:$0xf] %vm2753, %v2662
        %2763 = vst.msk [vmem:[#allocation6 + $0x24] sm:$0xf] %vm2753, %v2664
        %2764 = vst.msk [vmem:[#allocation6 + $0x28] sm:$0xf] %vm2753, %v2666
        %2765 = vst.msk [vmem:[#allocation6 + $0x2c] sm:$0xf] %vm2753, %v2668
        %2766 = vst.msk [vmem:[#allocation6 + $0x30] sm:$0xf] %vm2753, %v2670
        %2767 = vst.msk [vmem:[#allocation6 + $0x34] sm:$0xf] %vm2753, %v2672
        %2768 = vst.msk [vmem:[#allocation6 + $0x38] sm:$0xf] %vm2753, %v2674
        %2769 = vst.msk [vmem:[#allocation6 + $0x3c] sm:$0xf] %vm2753, %v2676
        %2770 = vst.msk [vmem:[#allocation6 + $0x40] sm:$0xf] %vm2753, %v2678
        %2771 = vst.msk [vmem:[#allocation6 + $0x44] sm:$0xf] %vm2753, %v2680
        %2772 = vst.msk [vmem:[#allocation6 + $0x48] sm:$0xf] %vm2753, %v2682
        %2773 = vst.msk [vmem:[#allocation6 + $0x4c] sm:$0xf] %vm2753, %v2684
        %2774 = vst.msk [vmem:[#allocation6 + $0x50] sm:$0xf] %vm2753, %v2686
        %2775 = vst.msk [vmem:[#allocation6 + $0x54] sm:$0xf] %vm2753, %v2688
        %2776 = vst.msk [vmem:[#allocation6 + $0x58] sm:$0xf] %vm2753, %v2690
        %2777 = vst.msk [vmem:[#allocation6 + $0x5c] sm:$0xf] %vm2753, %v2692
        %2778 = vst.msk [vmem:[#allocation6 + $0x60] sm:$0xf] %vm2753, %v2694
        %2779 = vst.msk [vmem:[#allocation6 + $0x64] sm:$0xf] %vm2753, %v2696
        %2780 = vst.msk [vmem:[#allocation6 + $0x68] sm:$0xf] %vm2753, %v2698
        %2781 = vst.msk [vmem:[#allocation6 + $0x6c] sm:$0xf] %vm2753, %v2700
        %2782 = vst.msk [vmem:[#allocation6 + $0x70] sm:$0xf] %vm2753, %v2702
        %2783 = vst.msk [vmem:[#allocation6 + $0x74] sm:$0xf] %vm2753, %v2704
        %2784 = vst.msk [vmem:[#allocation6 + $0x78] sm:$0xf] %vm2753, %v2706
        %2785 = vst.msk [vmem:[#allocation6 + $0x7c] sm:$0xf] %vm2753, %v2708
        %2786 = vst.msk [vmem:[#allocation6 + $0x80] sm:$0xf] %vm2753, %v2710
        %2787 = vst.msk [vmem:[#allocation6 + $0x84] sm:$0xf] %vm2753, %v2712
        %2788 = vst.msk [vmem:[#allocation6 + $0x88] sm:$0xf] %vm2753, %v2714
        %2789 = vst.msk [vmem:[#allocation6 + $0x8c] sm:$0xf] %vm2753, %v2716
        %v2790 = vld [vmem:[#allocation2 + $0x8] sm:$0xc]
        %v2791 = vld [vmem:[#allocation2 + $0xc] sm:$0xf]
        %v2792 = vld [vmem:[#allocation2 + $0x10] sm:$0xf]
        %v2793 = vld [vmem:[#allocation2 + $0x14] sm:$0xf]
        %v2794 = vld [vmem:[#allocation2 + $0x18] sm:$0xf]
        %v2795 = vld [vmem:[#allocation2 + $0x1c] sm:$0xf]
        %v2796 = vld [vmem:[#allocation2 + $0x20] sm:$0xf]
        %v2797 = vld [vmem:[#allocation2 + $0x24] sm:$0xf]
        %v2798 = vld [vmem:[#allocation2 + $0x28] sm:$0xf]
        %v2799 = vld [vmem:[#allocation2 + $0x2c] sm:$0xf]
        %v2800 = vld [vmem:[#allocation2 + $0x30] sm:$0xf]
        %v2801 = vld [vmem:[#allocation2 + $0x34] sm:$0xf]
        %v2802 = vld [vmem:[#allocation2 + $0x38] sm:$0xf]
        %v2803 = vld [vmem:[#allocation2 + $0x3c] sm:$0xf]
        %v2804 = vld [vmem:[#allocation2 + $0x40] sm:$0xf]
        %v2805 = vld [vmem:[#allocation2 + $0x44] sm:$0xf]
        %v2806 = vld [vmem:[#allocation2 + $0x48] sm:$0xf]
        %v2807 = vld [vmem:[#allocation2 + $0x4c] sm:$0xf]
        %v2808 = vld [vmem:[#allocation2 + $0x50] sm:$0xf]
        %v2809 = vld [vmem:[#allocation2 + $0x54] sm:$0xf]
        %v2810 = vld [vmem:[#allocation2 + $0x58] sm:$0xf]
        %v2811 = vld [vmem:[#allocation2 + $0x5c] sm:$0xf]
        %v2812 = vld [vmem:[#allocation2 + $0x60] sm:$0xf]
        %v2813 = vld [vmem:[#allocation2 + $0x64] sm:$0xf]
        %v2814 = vld [vmem:[#allocation2 + $0x68] sm:$0xf]
        %v2815 = vld [vmem:[#allocation2 + $0x6c] sm:$0xf]
        %v2816 = vld [vmem:[#allocation2 + $0x70] sm:$0xf]
        %v2817 = vld [vmem:[#allocation2 + $0x74] sm:$0xf]
        %v2818 = vld [vmem:[#allocation2 + $0x78] sm:$0xf]
        %v2819 = vld [vmem:[#allocation2 + $0x7c] sm:$0xf]
        %v2820 = vld [vmem:[#allocation2 + $0x80] sm:$0xf]
        %v2821 = vld [vmem:[#allocation2 + $0x84] sm:$0xf]
        %v2822 = vld [vmem:[#allocation2 + $0x88] sm:$0xf]
        %v2823 = vld [vmem:[#allocation2 + $0x8c] sm:$0xf]
        %v2824 = vld [vmem:[#allocation2 + $0x90] sm:$0xf]
        %v2825 = vld [vmem:[#allocation2 + $0x94] sm:$0xf]
        %v2826 = vld [vmem:[#allocation2 + $0x98] sm:$0x3]
        %vm2864 = vcmask 1041408
        %vm2865 = vcmask 1045508
        %vm2866 = vmor %vm2864, %vm2865
        %v2867 = vrot.slane %v2790, 6
        %v2868 = vrot.slane %v2867, 4
        %v2869 = vrot.slane %v2791, 6
        %v2870 = vsel %vm2866, %v2868, %v2869
        %v2871 = vrot.slane %v2869, 4
        %v2872 = vrot.slane %v2792, 6
        %v2873 = vsel %vm2866, %v2871, %v2872
        %v2874 = vrot.slane %v2872, 4
        %v2875 = vrot.slane %v2793, 6
        %v2876 = vsel %vm2866, %v2874, %v2875
        %v2877 = vrot.slane %v2875, 4
        %v2878 = vrot.slane %v2794, 6
        %v2879 = vsel %vm2866, %v2877, %v2878
        %v2880 = vrot.slane %v2878, 4
        %v2881 = vrot.slane %v2795, 6
        %v2882 = vsel %vm2866, %v2880, %v2881
        %v2883 = vrot.slane %v2881, 4
        %v2884 = vrot.slane %v2796, 6
        %v2885 = vsel %vm2866, %v2883, %v2884
        %v2886 = vrot.slane %v2884, 4
        %v2887 = vrot.slane %v2797, 6
        %v2888 = vsel %vm2866, %v2886, %v2887
        %v2889 = vrot.slane %v2887, 4
        %v2890 = vrot.slane %v2798, 6
        %v2891 = vsel %vm2866, %v2889, %v2890
        %v2892 = vrot.slane %v2890, 4
        %v2893 = vrot.slane %v2799, 6
        %v2894 = vsel %vm2866, %v2892, %v2893
        %v2895 = vrot.slane %v2893, 4
        %v2896 = vrot.slane %v2800, 6
        %v2897 = vsel %vm2866, %v2895, %v2896
        %v2898 = vrot.slane %v2896, 4
        %v2899 = vrot.slane %v2801, 6
        %v2900 = vsel %vm2866, %v2898, %v2899
        %v2901 = vrot.slane %v2899, 4
        %v2902 = vrot.slane %v2802, 6
        %v2903 = vsel %vm2866, %v2901, %v2902
        %v2904 = vrot.slane %v2902, 4
        %v2905 = vrot.slane %v2803, 6
        %v2906 = vsel %vm2866, %v2904, %v2905
        %v2907 = vrot.slane %v2905, 4
        %v2908 = vrot.slane %v2804, 6
        %v2909 = vsel %vm2866, %v2907, %v2908
        %v2910 = vrot.slane %v2908, 4
        %v2911 = vrot.slane %v2805, 6
        %v2912 = vsel %vm2866, %v2910, %v2911
        %v2913 = vrot.slane %v2911, 4
        %v2914 = vrot.slane %v2806, 6
        %v2915 = vsel %vm2866, %v2913, %v2914
        %v2916 = vrot.slane %v2914, 4
        %v2917 = vrot.slane %v2807, 6
        %v2918 = vsel %vm2866, %v2916, %v2917
        %v2919 = vrot.slane %v2917, 4
        %v2920 = vrot.slane %v2808, 6
        %v2921 = vsel %vm2866, %v2919, %v2920
        %v2922 = vrot.slane %v2920, 4
        %v2923 = vrot.slane %v2809, 6
        %v2924 = vsel %vm2866, %v2922, %v2923
        %v2925 = vrot.slane %v2923, 4
        %v2926 = vrot.slane %v2810, 6
        %v2927 = vsel %vm2866, %v2925, %v2926
        %v2928 = vrot.slane %v2926, 4
        %v2929 = vrot.slane %v2811, 6
        %v2930 = vsel %vm2866, %v2928, %v2929
        %v2931 = vrot.slane %v2929, 4
        %v2932 = vrot.slane %v2812, 6
        %v2933 = vsel %vm2866, %v2931, %v2932
        %v2934 = vrot.slane %v2932, 4
        %v2935 = vrot.slane %v2813, 6
        %v2936 = vsel %vm2866, %v2934, %v2935
        %v2937 = vrot.slane %v2935, 4
        %v2938 = vrot.slane %v2814, 6
        %v2939 = vsel %vm2866, %v2937, %v2938
        %v2940 = vrot.slane %v2938, 4
        %v2941 = vrot.slane %v2815, 6
        %v2942 = vsel %vm2866, %v2940, %v2941
        %v2943 = vrot.slane %v2941, 4
        %v2944 = vrot.slane %v2816, 6
        %v2945 = vsel %vm2866, %v2943, %v2944
        %v2946 = vrot.slane %v2944, 4
        %v2947 = vrot.slane %v2817, 6
        %v2948 = vsel %vm2866, %v2946, %v2947
        %v2949 = vrot.slane %v2947, 4
        %v2950 = vrot.slane %v2818, 6
        %v2951 = vsel %vm2866, %v2949, %v2950
        %v2952 = vrot.slane %v2950, 4
        %v2953 = vrot.slane %v2819, 6
        %v2954 = vsel %vm2866, %v2952, %v2953
        %v2955 = vrot.slane %v2953, 4
        %v2956 = vrot.slane %v2820, 6
        %v2957 = vsel %vm2866, %v2955, %v2956
        %v2958 = vrot.slane %v2956, 4
        %v2959 = vrot.slane %v2821, 6
        %v2960 = vsel %vm2866, %v2958, %v2959
        %v2961 = vrot.slane %v2959, 4
        %v2962 = vrot.slane %v2822, 6
        %v2963 = vsel %vm2866, %v2961, %v2962
        %v2964 = vrot.slane %v2962, 4
        %v2965 = vrot.slane %v2823, 6
        %v2966 = vsel %vm2866, %v2964, %v2965
        %v2967 = vrot.slane %v2965, 4
        %v2968 = vrot.slane %v2824, 6
        %v2969 = vsel %vm2866, %v2967, %v2968
        %v2970 = vrot.slane %v2968, 4
        %v2971 = vrot.slane %v2825, 6
        %v2972 = vsel %vm2866, %v2970, %v2971
        %v2973 = vrot.slane %v2971, 4
        %v2974 = vrot.slane %v2826, 6
        %v2975 = vsel %vm2866, %v2973, %v2974
        %2976 = vrot.lane.b32.xlu0 %v2870, 20
        %v2977 = vpop.permute.xlu0 %2976
        %2978 = vrot.lane.b32.xlu0 %v2873, 20
        %v2979 = vpop.permute.xlu0 %2978
        %2980 = vrot.lane.b32.xlu0 %v2876, 20
        %v2981 = vpop.permute.xlu0 %2980
        %2982 = vrot.lane.b32.xlu0 %v2879, 20
        %v2983 = vpop.permute.xlu0 %2982
        %2984 = vrot.lane.b32.xlu0 %v2882, 20
        %v2985 = vpop.permute.xlu0 %2984
        %2986 = vrot.lane.b32.xlu0 %v2885, 20
        %v2987 = vpop.permute.xlu0 %2986
        %2988 = vrot.lane.b32.xlu0 %v2888, 20
        %v2989 = vpop.permute.xlu0 %2988
        %2990 = vrot.lane.b32.xlu0 %v2891, 20
        %v2991 = vpop.permute.xlu0 %2990
        %2992 = vrot.lane.b32.xlu0 %v2894, 20
        %v2993 = vpop.permute.xlu0 %2992
        %2994 = vrot.lane.b32.xlu0 %v2897, 20
        %v2995 = vpop.permute.xlu0 %2994
        %2996 = vrot.lane.b32.xlu0 %v2900, 20
        %v2997 = vpop.permute.xlu0 %2996
        %2998 = vrot.lane.b32.xlu0 %v2903, 20
        %v2999 = vpop.permute.xlu0 %2998
        %3000 = vrot.lane.b32.xlu0 %v2906, 20
        %v3001 = vpop.permute.xlu0 %3000
        %3002 = vrot.lane.b32.xlu0 %v2909, 20
        %v3003 = vpop.permute.xlu0 %3002
        %3004 = vrot.lane.b32.xlu0 %v2912, 20
        %v3005 = vpop.permute.xlu0 %3004
        %3006 = vrot.lane.b32.xlu0 %v2915, 20
        %v3007 = vpop.permute.xlu0 %3006
        %3008 = vrot.lane.b32.xlu0 %v2918, 20
        %v3009 = vpop.permute.xlu0 %3008
        %3010 = vrot.lane.b32.xlu0 %v2921, 20
        %v3011 = vpop.permute.xlu0 %3010
        %3012 = vrot.lane.b32.xlu0 %v2924, 20
        %v3013 = vpop.permute.xlu0 %3012
        %3014 = vrot.lane.b32.xlu0 %v2927, 20
        %v3015 = vpop.permute.xlu0 %3014
        %3016 = vrot.lane.b32.xlu0 %v2930, 20
        %v3017 = vpop.permute.xlu0 %3016
        %3018 = vrot.lane.b32.xlu0 %v2933, 20
        %v3019 = vpop.permute.xlu0 %3018
        %3020 = vrot.lane.b32.xlu0 %v2936, 20
        %v3021 = vpop.permute.xlu0 %3020
        %3022 = vrot.lane.b32.xlu0 %v2939, 20
        %v3023 = vpop.permute.xlu0 %3022
        %3024 = vrot.lane.b32.xlu0 %v2942, 20
        %v3025 = vpop.permute.xlu0 %3024
        %3026 = vrot.lane.b32.xlu0 %v2945, 20
        %v3027 = vpop.permute.xlu0 %3026
        %3028 = vrot.lane.b32.xlu0 %v2948, 20
        %v3029 = vpop.permute.xlu0 %3028
        %3030 = vrot.lane.b32.xlu0 %v2951, 20
        %v3031 = vpop.permute.xlu0 %3030
        %3032 = vrot.lane.b32.xlu0 %v2954, 20
        %v3033 = vpop.permute.xlu0 %3032
        %3034 = vrot.lane.b32.xlu0 %v2957, 20
        %v3035 = vpop.permute.xlu0 %3034
        %3036 = vrot.lane.b32.xlu0 %v2960, 20
        %v3037 = vpop.permute.xlu0 %3036
        %3038 = vrot.lane.b32.xlu0 %v2963, 20
        %v3039 = vpop.permute.xlu0 %3038
        %3040 = vrot.lane.b32.xlu0 %v2966, 20
        %v3041 = vpop.permute.xlu0 %3040
        %3042 = vrot.lane.b32.xlu0 %v2969, 20
        %v3043 = vpop.permute.xlu0 %3042
        %3044 = vrot.lane.b32.xlu0 %v2972, 20
        %v3045 = vpop.permute.xlu0 %3044
        %3046 = vrot.lane.b32.xlu0 %v2975, 20
        %v3047 = vpop.permute.xlu0 %3046
        %vm3084 = vcmask 191648
        %3085 = vst.msk [vmem:[#allocation6] sm:$0xf] %vm3084, %v2977
        %3086 = vst.msk [vmem:[#allocation6 + $0x4] sm:$0xf] %vm3084, %v2979
        %3087 = vst.msk [vmem:[#allocation6 + $0x8] sm:$0xf] %vm3084, %v2981
        %3088 = vst.msk [vmem:[#allocation6 + $0xc] sm:$0xf] %vm3084, %v2983
        %3089 = vst.msk [vmem:[#allocation6 + $0x10] sm:$0xf] %vm3084, %v2985
        %3090 = vst.msk [vmem:[#allocation6 + $0x14] sm:$0xf] %vm3084, %v2987
        %3091 = vst.msk [vmem:[#allocation6 + $0x18] sm:$0xf] %vm3084, %v2989
        %3092 = vst.msk [vmem:[#allocation6 + $0x1c] sm:$0xf] %vm3084, %v2991
        %3093 = vst.msk [vmem:[#allocation6 + $0x20] sm:$0xf] %vm3084, %v2993
        %3094 = vst.msk [vmem:[#allocation6 + $0x24] sm:$0xf] %vm3084, %v2995
        %3095 = vst.msk [vmem:[#allocation6 + $0x28] sm:$0xf] %vm3084, %v2997
        %3096 = vst.msk [vmem:[#allocation6 + $0x2c] sm:$0xf] %vm3084, %v2999
        %3097 = vst.msk [vmem:[#allocation6 + $0x30] sm:$0xf] %vm3084, %v3001
        %3098 = vst.msk [vmem:[#allocation6 + $0x34] sm:$0xf] %vm3084, %v3003
        %3099 = vst.msk [vmem:[#allocation6 + $0x38] sm:$0xf] %vm3084, %v3005
        %3100 = vst.msk [vmem:[#allocation6 + $0x3c] sm:$0xf] %vm3084, %v3007
        %3101 = vst.msk [vmem:[#allocation6 + $0x40] sm:$0xf] %vm3084, %v3009
        %3102 = vst.msk [vmem:[#allocation6 + $0x44] sm:$0xf] %vm3084, %v3011
        %3103 = vst.msk [vmem:[#allocation6 + $0x48] sm:$0xf] %vm3084, %v3013
        %3104 = vst.msk [vmem:[#allocation6 + $0x4c] sm:$0xf] %vm3084, %v3015
        %3105 = vst.msk [vmem:[#allocation6 + $0x50] sm:$0xf] %vm3084, %v3017
        %3106 = vst.msk [vmem:[#allocation6 + $0x54] sm:$0xf] %vm3084, %v3019
        %3107 = vst.msk [vmem:[#allocation6 + $0x58] sm:$0xf] %vm3084, %v3021
        %3108 = vst.msk [vmem:[#allocation6 + $0x5c] sm:$0xf] %vm3084, %v3023
        %3109 = vst.msk [vmem:[#allocation6 + $0x60] sm:$0xf] %vm3084, %v3025
        %3110 = vst.msk [vmem:[#allocation6 + $0x64] sm:$0xf] %vm3084, %v3027
        %3111 = vst.msk [vmem:[#allocation6 + $0x68] sm:$0xf] %vm3084, %v3029
        %3112 = vst.msk [vmem:[#allocation6 + $0x6c] sm:$0xf] %vm3084, %v3031
        %3113 = vst.msk [vmem:[#allocation6 + $0x70] sm:$0xf] %vm3084, %v3033
        %3114 = vst.msk [vmem:[#allocation6 + $0x74] sm:$0xf] %vm3084, %v3035
        %3115 = vst.msk [vmem:[#allocation6 + $0x78] sm:$0xf] %vm3084, %v3037
        %3116 = vst.msk [vmem:[#allocation6 + $0x7c] sm:$0xf] %vm3084, %v3039
        %3117 = vst.msk [vmem:[#allocation6 + $0x80] sm:$0xf] %vm3084, %v3041
        %3118 = vst.msk [vmem:[#allocation6 + $0x84] sm:$0xf] %vm3084, %v3043
        %3119 = vst.msk [vmem:[#allocation6 + $0x88] sm:$0xf] %vm3084, %v3045
        %3120 = vst.msk [vmem:[#allocation6 + $0x8c] sm:$0xf] %vm3084, %v3047
        %v3121 = vld [vmem:[#allocation2 + $0x10] sm:$0xc]
        %v3122 = vld [vmem:[#allocation2 + $0x14] sm:$0xf]
        %v3123 = vld [vmem:[#allocation2 + $0x18] sm:$0xf]
        %v3124 = vld [vmem:[#allocation2 + $0x1c] sm:$0xf]
        %v3125 = vld [vmem:[#allocation2 + $0x20] sm:$0xf]
        %v3126 = vld [vmem:[#allocation2 + $0x24] sm:$0xf]
        %v3127 = vld [vmem:[#allocation2 + $0x28] sm:$0xf]
        %v3128 = vld [vmem:[#allocation2 + $0x2c] sm:$0xf]
        %v3129 = vld [vmem:[#allocation2 + $0x30] sm:$0xf]
        %v3130 = vld [vmem:[#allocation2 + $0x34] sm:$0xf]
        %v3131 = vld [vmem:[#allocation2 + $0x38] sm:$0xf]
        %v3132 = vld [vmem:[#allocation2 + $0x3c] sm:$0xf]
        %v3133 = vld [vmem:[#allocation2 + $0x40] sm:$0xf]
        %v3134 = vld [vmem:[#allocation2 + $0x44] sm:$0xf]
        %v3135 = vld [vmem:[#allocation2 + $0x48] sm:$0xf]
        %v3136 = vld [vmem:[#allocation2 + $0x4c] sm:$0xf]
        %v3137 = vld [vmem:[#allocation2 + $0x50] sm:$0xf]
        %v3138 = vld [vmem:[#allocation2 + $0x54] sm:$0xf]
        %v3139 = vld [vmem:[#allocation2 + $0x58] sm:$0xf]
        %v3140 = vld [vmem:[#allocation2 + $0x5c] sm:$0xf]
        %v3141 = vld [vmem:[#allocation2 + $0x60] sm:$0xf]
        %v3142 = vld [vmem:[#allocation2 + $0x64] sm:$0xf]
        %v3143 = vld [vmem:[#allocation2 + $0x68] sm:$0xf]
        %v3144 = vld [vmem:[#allocation2 + $0x6c] sm:$0xf]
        %v3145 = vld [vmem:[#allocation2 + $0x70] sm:$0xf]
        %v3146 = vld [vmem:[#allocation2 + $0x74] sm:$0xf]
        %v3147 = vld [vmem:[#allocation2 + $0x78] sm:$0xf]
        %v3148 = vld [vmem:[#allocation2 + $0x7c] sm:$0xf]
        %v3149 = vld [vmem:[#allocation2 + $0x80] sm:$0xf]
        %v3150 = vld [vmem:[#allocation2 + $0x84] sm:$0xf]
        %v3151 = vld [vmem:[#allocation2 + $0x88] sm:$0xf]
        %v3152 = vld [vmem:[#allocation2 + $0x8c] sm:$0xf]
        %v3153 = vld [vmem:[#allocation2 + $0x90] sm:$0xf]
        %v3154 = vld [vmem:[#allocation2 + $0x94] sm:$0xf]
        %v3155 = vld [vmem:[#allocation2 + $0x98] sm:$0xf]
        %v3156 = vld [vmem:[#allocation2 + $0x9c] sm:$0xf]
        %v3157 = vld [vmem:[#allocation2 + $0xa0] sm:$0x3]
        %v3195 = vrot.slane %v3121, 6
        %v3196 = vrot.slane %v3195, 4
        %v3197 = vrot.slane %v3122, 6
        %v3198 = vsel %vm2866, %v3196, %v3197
        %v3199 = vrot.slane %v3197, 4
        %v3200 = vrot.slane %v3123, 6
        %v3201 = vsel %vm2866, %v3199, %v3200
        %v3202 = vrot.slane %v3200, 4
        %v3203 = vrot.slane %v3124, 6
        %v3204 = vsel %vm2866, %v3202, %v3203
        %v3205 = vrot.slane %v3203, 4
        %v3206 = vrot.slane %v3125, 6
        %v3207 = vsel %vm2866, %v3205, %v3206
        %v3208 = vrot.slane %v3206, 4
        %v3209 = vrot.slane %v3126, 6
        %v3210 = vsel %vm2866, %v3208, %v3209
        %v3211 = vrot.slane %v3209, 4
        %v3212 = vrot.slane %v3127, 6
        %v3213 = vsel %vm2866, %v3211, %v3212
        %v3214 = vrot.slane %v3212, 4
        %v3215 = vrot.slane %v3128, 6
        %v3216 = vsel %vm2866, %v3214, %v3215
        %v3217 = vrot.slane %v3215, 4
        %v3218 = vrot.slane %v3129, 6
        %v3219 = vsel %vm2866, %v3217, %v3218
        %v3220 = vrot.slane %v3218, 4
        %v3221 = vrot.slane %v3130, 6
        %v3222 = vsel %vm2866, %v3220, %v3221
        %v3223 = vrot.slane %v3221, 4
        %v3224 = vrot.slane %v3131, 6
        %v3225 = vsel %vm2866, %v3223, %v3224
        %v3226 = vrot.slane %v3224, 4
        %v3227 = vrot.slane %v3132, 6
        %v3228 = vsel %vm2866, %v3226, %v3227
        %v3229 = vrot.slane %v3227, 4
        %v3230 = vrot.slane %v3133, 6
        %v3231 = vsel %vm2866, %v3229, %v3230
        %v3232 = vrot.slane %v3230, 4
        %v3233 = vrot.slane %v3134, 6
        %v3234 = vsel %vm2866, %v3232, %v3233
        %v3235 = vrot.slane %v3233, 4
        %v3236 = vrot.slane %v3135, 6
        %v3237 = vsel %vm2866, %v3235, %v3236
        %v3238 = vrot.slane %v3236, 4
        %v3239 = vrot.slane %v3136, 6
        %v3240 = vsel %vm2866, %v3238, %v3239
        %v3241 = vrot.slane %v3239, 4
        %v3242 = vrot.slane %v3137, 6
        %v3243 = vsel %vm2866, %v3241, %v3242
        %v3244 = vrot.slane %v3242, 4
        %v3245 = vrot.slane %v3138, 6
        %v3246 = vsel %vm2866, %v3244, %v3245
        %v3247 = vrot.slane %v3245, 4
        %v3248 = vrot.slane %v3139, 6
        %v3249 = vsel %vm2866, %v3247, %v3248
        %v3250 = vrot.slane %v3248, 4
        %v3251 = vrot.slane %v3140, 6
        %v3252 = vsel %vm2866, %v3250, %v3251
        %v3253 = vrot.slane %v3251, 4
        %v3254 = vrot.slane %v3141, 6
        %v3255 = vsel %vm2866, %v3253, %v3254
        %v3256 = vrot.slane %v3254, 4
        %v3257 = vrot.slane %v3142, 6
        %v3258 = vsel %vm2866, %v3256, %v3257
        %v3259 = vrot.slane %v3257, 4
        %v3260 = vrot.slane %v3143, 6
        %v3261 = vsel %vm2866, %v3259, %v3260
        %v3262 = vrot.slane %v3260, 4
        %v3263 = vrot.slane %v3144, 6
        %v3264 = vsel %vm2866, %v3262, %v3263
        %v3265 = vrot.slane %v3263, 4
        %v3266 = vrot.slane %v3145, 6
        %v3267 = vsel %vm2866, %v3265, %v3266
        %v3268 = vrot.slane %v3266, 4
        %v3269 = vrot.slane %v3146, 6
        %v3270 = vsel %vm2866, %v3268, %v3269
        %v3271 = vrot.slane %v3269, 4
        %v3272 = vrot.slane %v3147, 6
        %v3273 = vsel %vm2866, %v3271, %v3272
        %v3274 = vrot.slane %v3272, 4
        %v3275 = vrot.slane %v3148, 6
        %v3276 = vsel %vm2866, %v3274, %v3275
        %v3277 = vrot.slane %v3275, 4
        %v3278 = vrot.slane %v3149, 6
        %v3279 = vsel %vm2866, %v3277, %v3278
        %v3280 = vrot.slane %v3278, 4
        %v3281 = vrot.slane %v3150, 6
        %v3282 = vsel %vm2866, %v3280, %v3281
        %v3283 = vrot.slane %v3281, 4
        %v3284 = vrot.slane %v3151, 6
        %v3285 = vsel %vm2866, %v3283, %v3284
        %v3286 = vrot.slane %v3284, 4
        %v3287 = vrot.slane %v3152, 6
        %v3288 = vsel %vm2866, %v3286, %v3287
        %v3289 = vrot.slane %v3287, 4
        %v3290 = vrot.slane %v3153, 6
        %v3291 = vsel %vm2866, %v3289, %v3290
        %v3292 = vrot.slane %v3290, 4
        %v3293 = vrot.slane %v3154, 6
        %v3294 = vsel %vm2866, %v3292, %v3293
        %v3295 = vrot.slane %v3293, 4
        %v3296 = vrot.slane %v3155, 6
        %v3297 = vsel %vm2866, %v3295, %v3296
        %v3298 = vrot.slane %v3296, 4
        %v3299 = vrot.slane %v3156, 6
        %v3300 = vsel %vm2866, %v3298, %v3299
        %v3301 = vrot.slane %v3299, 4
        %v3302 = vrot.slane %v3157, 6
        %v3303 = vsel %vm2866, %v3301, %v3302
        %3304 = vrot.lane.b32.xlu0 %v3198, 24
        %v3305 = vpop.permute.xlu0 %3304
        %3306 = vrot.lane.b32.xlu0 %v3201, 24
        %v3307 = vpop.permute.xlu0 %3306
        %3308 = vrot.lane.b32.xlu0 %v3204, 24
        %v3309 = vpop.permute.xlu0 %3308
        %3310 = vrot.lane.b32.xlu0 %v3207, 24
        %v3311 = vpop.permute.xlu0 %3310
        %3312 = vrot.lane.b32.xlu0 %v3210, 24
        %v3313 = vpop.permute.xlu0 %3312
        %3314 = vrot.lane.b32.xlu0 %v3213, 24
        %v3315 = vpop.permute.xlu0 %3314
        %3316 = vrot.lane.b32.xlu0 %v3216, 24
        %v3317 = vpop.permute.xlu0 %3316
        %3318 = vrot.lane.b32.xlu0 %v3219, 24
        %v3319 = vpop.permute.xlu0 %3318
        %3320 = vrot.lane.b32.xlu0 %v3222, 24
        %v3321 = vpop.permute.xlu0 %3320
        %3322 = vrot.lane.b32.xlu0 %v3225, 24
        %v3323 = vpop.permute.xlu0 %3322
        %3324 = vrot.lane.b32.xlu0 %v3228, 24
        %v3325 = vpop.permute.xlu0 %3324
        %3326 = vrot.lane.b32.xlu0 %v3231, 24
        %v3327 = vpop.permute.xlu0 %3326
        %3328 = vrot.lane.b32.xlu0 %v3234, 24
        %v3329 = vpop.permute.xlu0 %3328
        %3330 = vrot.lane.b32.xlu0 %v3237, 24
        %v3331 = vpop.permute.xlu0 %3330
        %3332 = vrot.lane.b32.xlu0 %v3240, 24
        %v3333 = vpop.permute.xlu0 %3332
        %3334 = vrot.lane.b32.xlu0 %v3243, 24
        %v3335 = vpop.permute.xlu0 %3334
        %3336 = vrot.lane.b32.xlu0 %v3246, 24
        %v3337 = vpop.permute.xlu0 %3336
        %3338 = vrot.lane.b32.xlu0 %v3249, 24
        %v3339 = vpop.permute.xlu0 %3338
        %3340 = vrot.lane.b32.xlu0 %v3252, 24
        %v3341 = vpop.permute.xlu0 %3340
        %3342 = vrot.lane.b32.xlu0 %v3255, 24
        %v3343 = vpop.permute.xlu0 %3342
        %3344 = vrot.lane.b32.xlu0 %v3258, 24
        %v3345 = vpop.permute.xlu0 %3344
        %3346 = vrot.lane.b32.xlu0 %v3261, 24
        %v3347 = vpop.permute.xlu0 %3346
        %3348 = vrot.lane.b32.xlu0 %v3264, 24
        %v3349 = vpop.permute.xlu0 %3348
        %3350 = vrot.lane.b32.xlu0 %v3267, 24
        %v3351 = vpop.permute.xlu0 %3350
        %3352 = vrot.lane.b32.xlu0 %v3270, 24
        %v3353 = vpop.permute.xlu0 %3352
        %3354 = vrot.lane.b32.xlu0 %v3273, 24
        %v3355 = vpop.permute.xlu0 %3354
        %3356 = vrot.lane.b32.xlu0 %v3276, 24
        %v3357 = vpop.permute.xlu0 %3356
        %3358 = vrot.lane.b32.xlu0 %v3279, 24
        %v3359 = vpop.permute.xlu0 %3358
        %3360 = vrot.lane.b32.xlu0 %v3282, 24
        %v3361 = vpop.permute.xlu0 %3360
        %3362 = vrot.lane.b32.xlu0 %v3285, 24
        %v3363 = vpop.permute.xlu0 %3362
        %3364 = vrot.lane.b32.xlu0 %v3288, 24
        %v3365 = vpop.permute.xlu0 %3364
        %3366 = vrot.lane.b32.xlu0 %v3291, 24
        %v3367 = vpop.permute.xlu0 %3366
        %3368 = vrot.lane.b32.xlu0 %v3294, 24
        %v3369 = vpop.permute.xlu0 %3368
        %3370 = vrot.lane.b32.xlu0 %v3297, 24
        %v3371 = vpop.permute.xlu0 %3370
        %3372 = vrot.lane.b32.xlu0 %v3300, 24
        %v3373 = vpop.permute.xlu0 %3372
        %3374 = vrot.lane.b32.xlu0 %v3303, 24
        %v3375 = vpop.permute.xlu0 %3374
        %vm3412 = vcmask 224448
        %3413 = vst.msk [vmem:[#allocation6] sm:$0xf] %vm3412, %v3305
        %3414 = vst.msk [vmem:[#allocation6 + $0x4] sm:$0xf] %vm3412, %v3307
        %3415 = vst.msk [vmem:[#allocation6 + $0x8] sm:$0xf] %vm3412, %v3309
        %3416 = vst.msk [vmem:[#allocation6 + $0xc] sm:$0xf] %vm3412, %v3311
        %3417 = vst.msk [vmem:[#allocation6 + $0x10] sm:$0xf] %vm3412, %v3313
        %3418 = vst.msk [vmem:[#allocation6 + $0x14] sm:$0xf] %vm3412, %v3315
        %3419 = vst.msk [vmem:[#allocation6 + $0x18] sm:$0xf] %vm3412, %v3317
        %3420 = vst.msk [vmem:[#allocation6 + $0x1c] sm:$0xf] %vm3412, %v3319
        %3421 = vst.msk [vmem:[#allocation6 + $0x20] sm:$0xf] %vm3412, %v3321
        %3422 = vst.msk [vmem:[#allocation6 + $0x24] sm:$0xf] %vm3412, %v3323
        %3423 = vst.msk [vmem:[#allocation6 + $0x28] sm:$0xf] %vm3412, %v3325
        %3424 = vst.msk [vmem:[#allocation6 + $0x2c] sm:$0xf] %vm3412, %v3327
        %3425 = vst.msk [vmem:[#allocation6 + $0x30] sm:$0xf] %vm3412, %v3329
        %3426 = vst.msk [vmem:[#allocation6 + $0x34] sm:$0xf] %vm3412, %v3331
        %3427 = vst.msk [vmem:[#allocation6 + $0x38] sm:$0xf] %vm3412, %v3333
        %3428 = vst.msk [vmem:[#allocation6 + $0x3c] sm:$0xf] %vm3412, %v3335
        %3429 = vst.msk [vmem:[#allocation6 + $0x40] sm:$0xf] %vm3412, %v3337
        %3430 = vst.msk [vmem:[#allocation6 + $0x44] sm:$0xf] %vm3412, %v3339
        %3431 = vst.msk [vmem:[#allocation6 + $0x48] sm:$0xf] %vm3412, %v3341
        %3432 = vst.msk [vmem:[#allocation6 + $0x4c] sm:$0xf] %vm3412, %v3343
        %3433 = vst.msk [vmem:[#allocation6 + $0x50] sm:$0xf] %vm3412, %v3345
        %3434 = vst.msk [vmem:[#allocation6 + $0x54] sm:$0xf] %vm3412, %v3347
        %3435 = vst.msk [vmem:[#allocation6 + $0x58] sm:$0xf] %vm3412, %v3349
        %3436 = vst.msk [vmem:[#allocation6 + $0x5c] sm:$0xf] %vm3412, %v3351
        %3437 = vst.msk [vmem:[#allocation6 + $0x60] sm:$0xf] %vm3412, %v3353
        %3438 = vst.msk [vmem:[#allocation6 + $0x64] sm:$0xf] %vm3412, %v3355
        %3439 = vst.msk [vmem:[#allocation6 + $0x68] sm:$0xf] %vm3412, %v3357
        %3440 = vst.msk [vmem:[#allocation6 + $0x6c] sm:$0xf] %vm3412, %v3359
        %3441 = vst.msk [vmem:[#allocation6 + $0x70] sm:$0xf] %vm3412, %v3361
        %3442 = vst.msk [vmem:[#allocation6 + $0x74] sm:$0xf] %vm3412, %v3363
        %3443 = vst.msk [vmem:[#allocation6 + $0x78] sm:$0xf] %vm3412, %v3365
        %3444 = vst.msk [vmem:[#allocation6 + $0x7c] sm:$0xf] %vm3412, %v3367
        %3445 = vst.msk [vmem:[#allocation6 + $0x80] sm:$0xf] %vm3412, %v3369
        %3446 = vst.msk [vmem:[#allocation6 + $0x84] sm:$0xf] %vm3412, %v3371
        %3447 = vst.msk [vmem:[#allocation6 + $0x88] sm:$0xf] %vm3412, %v3373
        %3448 = vst.msk [vmem:[#allocation6 + $0x8c] sm:$0xf] %vm3412, %v3375
        %v3449 = vld [vmem:[#allocation2 + $0x10] sm:$0xc]
        %v3450 = vld [vmem:[#allocation2 + $0x14] sm:$0xf]
        %v3451 = vld [vmem:[#allocation2 + $0x18] sm:$0xf]
        %v3452 = vld [vmem:[#allocation2 + $0x1c] sm:$0xf]
        %v3453 = vld [vmem:[#allocation2 + $0x20] sm:$0xf]
        %v3454 = vld [vmem:[#allocation2 + $0x24] sm:$0xf]
        %v3455 = vld [vmem:[#allocation2 + $0x28] sm:$0xf]
        %v3456 = vld [vmem:[#allocation2 + $0x2c] sm:$0xf]
        %v3457 = vld [vmem:[#allocation2 + $0x30] sm:$0xf]
        %v3458 = vld [vmem:[#allocation2 + $0x34] sm:$0xf]
        %v3459 = vld [vmem:[#allocation2 + $0x38] sm:$0xf]
        %v3460 = vld [vmem:[#allocation2 + $0x3c] sm:$0xf]
        %v3461 = vld [vmem:[#allocation2 + $0x40] sm:$0xf]
        %v3462 = vld [vmem:[#allocation2 + $0x44] sm:$0xf]
        %v3463 = vld [vmem:[#allocation2 + $0x48] sm:$0xf]
        %v3464 = vld [vmem:[#allocation2 + $0x4c] sm:$0xf]
        %v3465 = vld [vmem:[#allocation2 + $0x50] sm:$0xf]
        %v3466 = vld [vmem:[#allocation2 + $0x54] sm:$0xf]
        %v3467 = vld [vmem:[#allocation2 + $0x58] sm:$0xf]
        %v3468 = vld [vmem:[#allocation2 + $0x5c] sm:$0xf]
        %v3469 = vld [vmem:[#allocation2 + $0x60] sm:$0xf]
        %v3470 = vld [vmem:[#allocation2 + $0x64] sm:$0xf]
        %v3471 = vld [vmem:[#allocation2 + $0x68] sm:$0xf]
        %v3472 = vld [vmem:[#allocation2 + $0x6c] sm:$0xf]
        %v3473 = vld [vmem:[#allocation2 + $0x70] sm:$0xf]
        %v3474 = vld [vmem:[#allocation2 + $0x74] sm:$0xf]
        %v3475 = vld [vmem:[#allocation2 + $0x78] sm:$0xf]
        %v3476 = vld [vmem:[#allocation2 + $0x7c] sm:$0xf]
        %v3477 = vld [vmem:[#allocation2 + $0x80] sm:$0xf]
        %v3478 = vld [vmem:[#allocation2 + $0x84] sm:$0xf]
        %v3479 = vld [vmem:[#allocation2 + $0x88] sm:$0xf]
        %v3480 = vld [vmem:[#allocation2 + $0x8c] sm:$0xf]
        %v3481 = vld [vmem:[#allocation2 + $0x90] sm:$0xf]
        %v3482 = vld [vmem:[#allocation2 + $0x94] sm:$0xf]
        %v3483 = vld [vmem:[#allocation2 + $0x98] sm:$0xf]
        %v3484 = vld [vmem:[#allocation2 + $0x9c] sm:$0xf]
        %v3485 = vld [vmem:[#allocation2 + $0xa0] sm:$0x7]
        %v3487 = vshrl.u32 %v3449, 16
        %v3489 = vrot.slane %v3487, 6
        %v3490 = vshll.u32 %v3449, 16
        %v3492 = vrot.slane %v3490, 7
        %v3493 = vor.u32 %v3489, %v3492
        %v3494 = vrot.slane %v3493, 4
        %v3496 = vshrl.u32 %v3450, 16
        %v3498 = vrot.slane %v3496, 6
        %v3499 = vshll.u32 %v3450, 16
        %v3501 = vrot.slane %v3499, 7
        %v3502 = vor.u32 %v3498, %v3501
        %v3503 = vsel %vm464, %v3494, %v3502
        %v3504 = vrot.slane %v3502, 4
        %v3506 = vshrl.u32 %v3451, 16
        %v3508 = vrot.slane %v3506, 6
        %v3509 = vshll.u32 %v3451, 16
        %v3511 = vrot.slane %v3509, 7
        %v3512 = vor.u32 %v3508, %v3511
        %v3513 = vsel %vm464, %v3504, %v3512
        %v3514 = vrot.slane %v3512, 4
        %v3516 = vshrl.u32 %v3452, 16
        %v3518 = vrot.slane %v3516, 6
        %v3519 = vshll.u32 %v3452, 16
        %v3521 = vrot.slane %v3519, 7
        %v3522 = vor.u32 %v3518, %v3521
        %v3523 = vsel %vm464, %v3514, %v3522
        %v3524 = vrot.slane %v3522, 4
        %v3526 = vshrl.u32 %v3453, 16
        %v3528 = vrot.slane %v3526, 6
        %v3529 = vshll.u32 %v3453, 16
        %v3531 = vrot.slane %v3529, 7
        %v3532 = vor.u32 %v3528, %v3531
        %v3533 = vsel %vm464, %v3524, %v3532
        %v3534 = vrot.slane %v3532, 4
        %v3536 = vshrl.u32 %v3454, 16
        %v3538 = vrot.slane %v3536, 6
        %v3539 = vshll.u32 %v3454, 16
        %v3541 = vrot.slane %v3539, 7
        %v3542 = vor.u32 %v3538, %v3541
        %v3543 = vsel %vm464, %v3534, %v3542
        %v3544 = vrot.slane %v3542, 4
        %v3546 = vshrl.u32 %v3455, 16
        %v3548 = vrot.slane %v3546, 6
        %v3549 = vshll.u32 %v3455, 16
        %v3551 = vrot.slane %v3549, 7
        %v3552 = vor.u32 %v3548, %v3551
        %v3553 = vsel %vm464, %v3544, %v3552
        %v3554 = vrot.slane %v3552, 4
        %v3556 = vshrl.u32 %v3456, 16
        %v3558 = vrot.slane %v3556, 6
        %v3559 = vshll.u32 %v3456, 16
        %v3561 = vrot.slane %v3559, 7
        %v3562 = vor.u32 %v3558, %v3561
        %v3563 = vsel %vm464, %v3554, %v3562
        %v3564 = vrot.slane %v3562, 4
        %v3566 = vshrl.u32 %v3457, 16
        %v3568 = vrot.slane %v3566, 6
        %v3569 = vshll.u32 %v3457, 16
        %v3571 = vrot.slane %v3569, 7
        %v3572 = vor.u32 %v3568, %v3571
        %v3573 = vsel %vm464, %v3564, %v3572
        %v3574 = vrot.slane %v3572, 4
        %v3576 = vshrl.u32 %v3458, 16
        %v3578 = vrot.slane %v3576, 6
        %v3579 = vshll.u32 %v3458, 16
        %v3581 = vrot.slane %v3579, 7
        %v3582 = vor.u32 %v3578, %v3581
        %v3583 = vsel %vm464, %v3574, %v3582
        %v3584 = vrot.slane %v3582, 4
        %v3586 = vshrl.u32 %v3459, 16
        %v3588 = vrot.slane %v3586, 6
        %v3589 = vshll.u32 %v3459, 16
        %v3591 = vrot.slane %v3589, 7
        %v3592 = vor.u32 %v3588, %v3591
        %v3593 = vsel %vm464, %v3584, %v3592
        %v3594 = vrot.slane %v3592, 4
        %v3596 = vshrl.u32 %v3460, 16
        %v3598 = vrot.slane %v3596, 6
        %v3599 = vshll.u32 %v3460, 16
        %v3601 = vrot.slane %v3599, 7
        %v3602 = vor.u32 %v3598, %v3601
        %v3603 = vsel %vm464, %v3594, %v3602
        %v3604 = vrot.slane %v3602, 4
        %v3606 = vshrl.u32 %v3461, 16
        %v3608 = vrot.slane %v3606, 6
        %v3609 = vshll.u32 %v3461, 16
        %v3611 = vrot.slane %v3609, 7
        %v3612 = vor.u32 %v3608, %v3611
        %v3613 = vsel %vm464, %v3604, %v3612
        %v3614 = vrot.slane %v3612, 4
        %v3616 = vshrl.u32 %v3462, 16
        %v3618 = vrot.slane %v3616, 6
        %v3619 = vshll.u32 %v3462, 16
        %v3621 = vrot.slane %v3619, 7
        %v3622 = vor.u32 %v3618, %v3621
        %v3623 = vsel %vm464, %v3614, %v3622
        %v3624 = vrot.slane %v3622, 4
        %v3626 = vshrl.u32 %v3463, 16
        %v3628 = vrot.slane %v3626, 6
        %v3629 = vshll.u32 %v3463, 16
        %v3631 = vrot.slane %v3629, 7
        %v3632 = vor.u32 %v3628, %v3631
        %v3633 = vsel %vm464, %v3624, %v3632
        %v3634 = vrot.slane %v3632, 4
        %v3636 = vshrl.u32 %v3464, 16
        %v3638 = vrot.slane %v3636, 6
        %v3639 = vshll.u32 %v3464, 16
        %v3641 = vrot.slane %v3639, 7
        %v3642 = vor.u32 %v3638, %v3641
        %v3643 = vsel %vm464, %v3634, %v3642
        %v3644 = vrot.slane %v3642, 4
        %v3646 = vshrl.u32 %v3465, 16
        %v3648 = vrot.slane %v3646, 6
        %v3649 = vshll.u32 %v3465, 16
        %v3651 = vrot.slane %v3649, 7
        %v3652 = vor.u32 %v3648, %v3651
        %v3653 = vsel %vm464, %v3644, %v3652
        %v3654 = vrot.slane %v3652, 4
        %v3656 = vshrl.u32 %v3466, 16
        %v3658 = vrot.slane %v3656, 6
        %v3659 = vshll.u32 %v3466, 16
        %v3661 = vrot.slane %v3659, 7
        %v3662 = vor.u32 %v3658, %v3661
        %v3663 = vsel %vm464, %v3654, %v3662
        %v3664 = vrot.slane %v3662, 4
        %v3666 = vshrl.u32 %v3467, 16
        %v3668 = vrot.slane %v3666, 6
        %v3669 = vshll.u32 %v3467, 16
        %v3671 = vrot.slane %v3669, 7
        %v3672 = vor.u32 %v3668, %v3671
        %v3673 = vsel %vm464, %v3664, %v3672
        %v3674 = vrot.slane %v3672, 4
        %v3676 = vshrl.u32 %v3468, 16
        %v3678 = vrot.slane %v3676, 6
        %v3679 = vshll.u32 %v3468, 16
        %v3681 = vrot.slane %v3679, 7
        %v3682 = vor.u32 %v3678, %v3681
        %v3683 = vsel %vm464, %v3674, %v3682
        %v3684 = vrot.slane %v3682, 4
        %v3686 = vshrl.u32 %v3469, 16
        %v3688 = vrot.slane %v3686, 6
        %v3689 = vshll.u32 %v3469, 16
        %v3691 = vrot.slane %v3689, 7
        %v3692 = vor.u32 %v3688, %v3691
        %v3693 = vsel %vm464, %v3684, %v3692
        %v3694 = vrot.slane %v3692, 4
        %v3696 = vshrl.u32 %v3470, 16
        %v3698 = vrot.slane %v3696, 6
        %v3699 = vshll.u32 %v3470, 16
        %v3701 = vrot.slane %v3699, 7
        %v3702 = vor.u32 %v3698, %v3701
        %v3703 = vsel %vm464, %v3694, %v3702
        %v3704 = vrot.slane %v3702, 4
        %v3706 = vshrl.u32 %v3471, 16
        %v3708 = vrot.slane %v3706, 6
        %v3709 = vshll.u32 %v3471, 16
        %v3711 = vrot.slane %v3709, 7
        %v3712 = vor.u32 %v3708, %v3711
        %v3713 = vsel %vm464, %v3704, %v3712
        %v3714 = vrot.slane %v3712, 4
        %v3716 = vshrl.u32 %v3472, 16
        %v3718 = vrot.slane %v3716, 6
        %v3719 = vshll.u32 %v3472, 16
        %v3721 = vrot.slane %v3719, 7
        %v3722 = vor.u32 %v3718, %v3721
        %v3723 = vsel %vm464, %v3714, %v3722
        %v3724 = vrot.slane %v3722, 4
        %v3726 = vshrl.u32 %v3473, 16
        %v3728 = vrot.slane %v3726, 6
        %v3729 = vshll.u32 %v3473, 16
        %v3731 = vrot.slane %v3729, 7
        %v3732 = vor.u32 %v3728, %v3731
        %v3733 = vsel %vm464, %v3724, %v3732
        %v3734 = vrot.slane %v3732, 4
        %v3736 = vshrl.u32 %v3474, 16
        %v3738 = vrot.slane %v3736, 6
        %v3739 = vshll.u32 %v3474, 16
        %v3741 = vrot.slane %v3739, 7
        %v3742 = vor.u32 %v3738, %v3741
        %v3743 = vsel %vm464, %v3734, %v3742
        %v3744 = vrot.slane %v3742, 4
        %v3746 = vshrl.u32 %v3475, 16
        %v3748 = vrot.slane %v3746, 6
        %v3749 = vshll.u32 %v3475, 16
        %v3751 = vrot.slane %v3749, 7
        %v3752 = vor.u32 %v3748, %v3751
        %v3753 = vsel %vm464, %v3744, %v3752
        %v3754 = vrot.slane %v3752, 4
        %v3756 = vshrl.u32 %v3476, 16
        %v3758 = vrot.slane %v3756, 6
        %v3759 = vshll.u32 %v3476, 16
        %v3761 = vrot.slane %v3759, 7
        %v3762 = vor.u32 %v3758, %v3761
        %v3763 = vsel %vm464, %v3754, %v3762
        %v3764 = vrot.slane %v3762, 4
        %v3766 = vshrl.u32 %v3477, 16
        %v3768 = vrot.slane %v3766, 6
        %v3769 = vshll.u32 %v3477, 16
        %v3771 = vrot.slane %v3769, 7
        %v3772 = vor.u32 %v3768, %v3771
        %v3773 = vsel %vm464, %v3764, %v3772
        %v3774 = vrot.slane %v3772, 4
        %v3776 = vshrl.u32 %v3478, 16
        %v3778 = vrot.slane %v3776, 6
        %v3779 = vshll.u32 %v3478, 16
        %v3781 = vrot.slane %v3779, 7
        %v3782 = vor.u32 %v3778, %v3781
        %v3783 = vsel %vm464, %v3774, %v3782
        %v3784 = vrot.slane %v3782, 4
        %v3786 = vshrl.u32 %v3479, 16
        %v3788 = vrot.slane %v3786, 6
        %v3789 = vshll.u32 %v3479, 16
        %v3791 = vrot.slane %v3789, 7
        %v3792 = vor.u32 %v3788, %v3791
        %v3793 = vsel %vm464, %v3784, %v3792
        %v3794 = vrot.slane %v3792, 4
        %v3796 = vshrl.u32 %v3480, 16
        %v3798 = vrot.slane %v3796, 6
        %v3799 = vshll.u32 %v3480, 16
        %v3801 = vrot.slane %v3799, 7
        %v3802 = vor.u32 %v3798, %v3801
        %v3803 = vsel %vm464, %v3794, %v3802
        %v3804 = vrot.slane %v3802, 4
        %v3806 = vshrl.u32 %v3481, 16
        %v3808 = vrot.slane %v3806, 6
        %v3809 = vshll.u32 %v3481, 16
        %v3811 = vrot.slane %v3809, 7
        %v3812 = vor.u32 %v3808, %v3811
        %v3813 = vsel %vm464, %v3804, %v3812
        %v3814 = vrot.slane %v3812, 4
        %v3816 = vshrl.u32 %v3482, 16
        %v3818 = vrot.slane %v3816, 6
        %v3819 = vshll.u32 %v3482, 16
        %v3821 = vrot.slane %v3819, 7
        %v3822 = vor.u32 %v3818, %v3821
        %v3823 = vsel %vm464, %v3814, %v3822
        %v3824 = vrot.slane %v3822, 4
        %v3826 = vshrl.u32 %v3483, 16
        %v3828 = vrot.slane %v3826, 6
        %v3829 = vshll.u32 %v3483, 16
        %v3831 = vrot.slane %v3829, 7
        %v3832 = vor.u32 %v3828, %v3831
        %v3833 = vsel %vm464, %v3824, %v3832
        %v3834 = vrot.slane %v3832, 4
        %v3836 = vshrl.u32 %v3484, 16
        %v3838 = vrot.slane %v3836, 6
        %v3839 = vshll.u32 %v3484, 16
        %v3841 = vrot.slane %v3839, 7
        %v3842 = vor.u32 %v3838, %v3841
        %v3843 = vsel %vm464, %v3834, %v3842
        %v3844 = vrot.slane %v3842, 4
        %v3846 = vshrl.u32 %v3485, 16
        %v3848 = vrot.slane %v3846, 6
        %v3849 = vshll.u32 %v3485, 16
        %v3851 = vrot.slane %v3849, 7
        %v3852 = vor.u32 %v3848, %v3851
        %v3853 = vsel %vm464, %v3844, %v3852
        %3854 = vrot.lane.b32.xlu0 %v3503, 28
        %v3855 = vpop.permute.xlu0 %3854
        %3856 = vrot.lane.b32.xlu0 %v3513, 28
        %v3857 = vpop.permute.xlu0 %3856
        %3858 = vrot.lane.b32.xlu0 %v3523, 28
        %v3859 = vpop.permute.xlu0 %3858
        %3860 = vrot.lane.b32.xlu0 %v3533, 28
        %v3861 = vpop.permute.xlu0 %3860
        %3862 = vrot.lane.b32.xlu0 %v3543, 28
        %v3863 = vpop.permute.xlu0 %3862
        %3864 = vrot.lane.b32.xlu0 %v3553, 28
        %v3865 = vpop.permute.xlu0 %3864
        %3866 = vrot.lane.b32.xlu0 %v3563, 28
        %v3867 = vpop.permute.xlu0 %3866
        %3868 = vrot.lane.b32.xlu0 %v3573, 28
        %v3869 = vpop.permute.xlu0 %3868
        %3870 = vrot.lane.b32.xlu0 %v3583, 28
        %v3871 = vpop.permute.xlu0 %3870
        %3872 = vrot.lane.b32.xlu0 %v3593, 28
        %v3873 = vpop.permute.xlu0 %3872
        %3874 = vrot.lane.b32.xlu0 %v3603, 28
        %v3875 = vpop.permute.xlu0 %3874
        %3876 = vrot.lane.b32.xlu0 %v3613, 28
        %v3877 = vpop.permute.xlu0 %3876
        %3878 = vrot.lane.b32.xlu0 %v3623, 28
        %v3879 = vpop.permute.xlu0 %3878
        %3880 = vrot.lane.b32.xlu0 %v3633, 28
        %v3881 = vpop.permute.xlu0 %3880
        %3882 = vrot.lane.b32.xlu0 %v3643, 28
        %v3883 = vpop.permute.xlu0 %3882
        %3884 = vrot.lane.b32.xlu0 %v3653, 28
        %v3885 = vpop.permute.xlu0 %3884
        %3886 = vrot.lane.b32.xlu0 %v3663, 28
        %v3887 = vpop.permute.xlu0 %3886
        %3888 = vrot.lane.b32.xlu0 %v3673, 28
        %v3889 = vpop.permute.xlu0 %3888
        %3890 = vrot.lane.b32.xlu0 %v3683, 28
        %v3891 = vpop.permute.xlu0 %3890
        %3892 = vrot.lane.b32.xlu0 %v3693, 28
        %v3893 = vpop.permute.xlu0 %3892
        %3894 = vrot.lane.b32.xlu0 %v3703, 28
        %v3895 = vpop.permute.xlu0 %3894
        %3896 = vrot.lane.b32.xlu0 %v3713, 28
        %v3897 = vpop.permute.xlu0 %3896
        %3898 = vrot.lane.b32.xlu0 %v3723, 28
        %v3899 = vpop.permute.xlu0 %3898
        %3900 = vrot.lane.b32.xlu0 %v3733, 28
        %v3901 = vpop.permute.xlu0 %3900
        %3902 = vrot.lane.b32.xlu0 %v3743, 28
        %v3903 = vpop.permute.xlu0 %3902
        %3904 = vrot.lane.b32.xlu0 %v3753, 28
        %v3905 = vpop.permute.xlu0 %3904
        %3906 = vrot.lane.b32.xlu0 %v3763, 28
        %v3907 = vpop.permute.xlu0 %3906
        %3908 = vrot.lane.b32.xlu0 %v3773, 28
        %v3909 = vpop.permute.xlu0 %3908
        %3910 = vrot.lane.b32.xlu0 %v3783, 28
        %v3911 = vpop.permute.xlu0 %3910
        %3912 = vrot.lane.b32.xlu0 %v3793, 28
        %v3913 = vpop.permute.xlu0 %3912
        %3914 = vrot.lane.b32.xlu0 %v3803, 28
        %v3915 = vpop.permute.xlu0 %3914
        %3916 = vrot.lane.b32.xlu0 %v3813, 28
        %v3917 = vpop.permute.xlu0 %3916
        %3918 = vrot.lane.b32.xlu0 %v3823, 28
        %v3919 = vpop.permute.xlu0 %3918
        %3920 = vrot.lane.b32.xlu0 %v3833, 28
        %v3921 = vpop.permute.xlu0 %3920
        %3922 = vrot.lane.b32.xlu0 %v3843, 28
        %v3923 = vpop.permute.xlu0 %3922
        %3924 = vrot.lane.b32.xlu0 %v3853, 28
        %v3925 = vpop.permute.xlu0 %3924
        %vm3962 = vcmask 257248
        %3963 = vst.msk [vmem:[#allocation6] sm:$0xf] %vm3962, %v3855
        %3964 = vst.msk [vmem:[#allocation6 + $0x4] sm:$0xf] %vm3962, %v3857
        %3965 = vst.msk [vmem:[#allocation6 + $0x8] sm:$0xf] %vm3962, %v3859
        %3966 = vst.msk [vmem:[#allocation6 + $0xc] sm:$0xf] %vm3962, %v3861
        %3967 = vst.msk [vmem:[#allocation6 + $0x10] sm:$0xf] %vm3962, %v3863
        %3968 = vst.msk [vmem:[#allocation6 + $0x14] sm:$0xf] %vm3962, %v3865
        %3969 = vst.msk [vmem:[#allocation6 + $0x18] sm:$0xf] %vm3962, %v3867
        %3970 = vst.msk [vmem:[#allocation6 + $0x1c] sm:$0xf] %vm3962, %v3869
        %3971 = vst.msk [vmem:[#allocation6 + $0x20] sm:$0xf] %vm3962, %v3871
        %3972 = vst.msk [vmem:[#allocation6 + $0x24] sm:$0xf] %vm3962, %v3873
        %3973 = vst.msk [vmem:[#allocation6 + $0x28] sm:$0xf] %vm3962, %v3875
        %3974 = vst.msk [vmem:[#allocation6 + $0x2c] sm:$0xf] %vm3962, %v3877
        %3975 = vst.msk [vmem:[#allocation6 + $0x30] sm:$0xf] %vm3962, %v3879
        %3976 = vst.msk [vmem:[#allocation6 + $0x34] sm:$0xf] %vm3962, %v3881
        %3977 = vst.msk [vmem:[#allocation6 + $0x38] sm:$0xf] %vm3962, %v3883
        %3978 = vst.msk [vmem:[#allocation6 + $0x3c] sm:$0xf] %vm3962, %v3885
        %3979 = vst.msk [vmem:[#allocation6 + $0x40] sm:$0xf] %vm3962, %v3887
        %3980 = vst.msk [vmem:[#allocation6 + $0x44] sm:$0xf] %vm3962, %v3889
        %3981 = vst.msk [vmem:[#allocation6 + $0x48] sm:$0xf] %vm3962, %v3891
        %3982 = vst.msk [vmem:[#allocation6 + $0x4c] sm:$0xf] %vm3962, %v3893
        %3983 = vst.msk [vmem:[#allocation6 + $0x50] sm:$0xf] %vm3962, %v3895
        %3984 = vst.msk [vmem:[#allocation6 + $0x54] sm:$0xf] %vm3962, %v3897
        %3985 = vst.msk [vmem:[#allocation6 + $0x58] sm:$0xf] %vm3962, %v3899
        %3986 = vst.msk [vmem:[#allocation6 + $0x5c] sm:$0xf] %vm3962, %v3901
        %3987 = vst.msk [vmem:[#allocation6 + $0x60] sm:$0xf] %vm3962, %v3903
        %3988 = vst.msk [vmem:[#allocation6 + $0x64] sm:$0xf] %vm3962, %v3905
        %3989 = vst.msk [vmem:[#allocation6 + $0x68] sm:$0xf] %vm3962, %v3907
        %3990 = vst.msk [vmem:[#allocation6 + $0x6c] sm:$0xf] %vm3962, %v3909
        %3991 = vst.msk [vmem:[#allocation6 + $0x70] sm:$0xf] %vm3962, %v3911
        %3992 = vst.msk [vmem:[#allocation6 + $0x74] sm:$0xf] %vm3962, %v3913
        %3993 = vst.msk [vmem:[#allocation6 + $0x78] sm:$0xf] %vm3962, %v3915
        %3994 = vst.msk [vmem:[#allocation6 + $0x7c] sm:$0xf] %vm3962, %v3917
        %3995 = vst.msk [vmem:[#allocation6 + $0x80] sm:$0xf] %vm3962, %v3919
        %3996 = vst.msk [vmem:[#allocation6 + $0x84] sm:$0xf] %vm3962, %v3921
        %3997 = vst.msk [vmem:[#allocation6 + $0x88] sm:$0xf] %vm3962, %v3923
        %3998 = vst.msk [vmem:[#allocation6 + $0x8c] sm:$0xf] %vm3962, %v3925
        %v3999 = vld [vmem:[#allocation2 + $0x10] sm:$0x8]
        %v4000 = vld [vmem:[#allocation2 + $0x14] sm:$0xf]
        %v4001 = vld [vmem:[#allocation2 + $0x18] sm:$0xf]
        %v4002 = vld [vmem:[#allocation2 + $0x1c] sm:$0xf]
        %v4003 = vld [vmem:[#allocation2 + $0x20] sm:$0xf]
        %v4004 = vld [vmem:[#allocation2 + $0x24] sm:$0xf]
        %v4005 = vld [vmem:[#allocation2 + $0x28] sm:$0xf]
        %v4006 = vld [vmem:[#allocation2 + $0x2c] sm:$0xf]
        %v4007 = vld [vmem:[#allocation2 + $0x30] sm:$0xf]
        %v4008 = vld [vmem:[#allocation2 + $0x34] sm:$0xf]
        %v4009 = vld [vmem:[#allocation2 + $0x38] sm:$0xf]
        %v4010 = vld [vmem:[#allocation2 + $0x3c] sm:$0xf]
        %v4011 = vld [vmem:[#allocation2 + $0x40] sm:$0xf]
        %v4012 = vld [vmem:[#allocation2 + $0x44] sm:$0xf]
        %v4013 = vld [vmem:[#allocation2 + $0x48] sm:$0xf]
        %v4014 = vld [vmem:[#allocation2 + $0x4c] sm:$0xf]
        %v4015 = vld [vmem:[#allocation2 + $0x50] sm:$0xf]
        %v4016 = vld [vmem:[#allocation2 + $0x54] sm:$0xf]
        %v4017 = vld [vmem:[#allocation2 + $0x58] sm:$0xf]
        %v4018 = vld [vmem:[#allocation2 + $0x5c] sm:$0xf]
        %v4019 = vld [vmem:[#allocation2 + $0x60] sm:$0xf]
        %v4020 = vld [vmem:[#allocation2 + $0x64] sm:$0xf]
        %v4021 = vld [vmem:[#allocation2 + $0x68] sm:$0xf]
        %v4022 = vld [vmem:[#allocation2 + $0x6c] sm:$0xf]
        %v4023 = vld [vmem:[#allocation2 + $0x70] sm:$0xf]
        %v4024 = vld [vmem:[#allocation2 + $0x74] sm:$0xf]
        %v4025 = vld [vmem:[#allocation2 + $0x78] sm:$0xf]
        %v4026 = vld [vmem:[#allocation2 + $0x7c] sm:$0xf]
        %v4027 = vld [vmem:[#allocation2 + $0x80] sm:$0xf]
        %v4028 = vld [vmem:[#allocation2 + $0x84] sm:$0xf]
        %v4029 = vld [vmem:[#allocation2 + $0x88] sm:$0xf]
        %v4030 = vld [vmem:[#allocation2 + $0x8c] sm:$0xf]
        %v4031 = vld [vmem:[#allocation2 + $0x90] sm:$0xf]
        %v4032 = vld [vmem:[#allocation2 + $0x94] sm:$0xf]
        %v4033 = vld [vmem:[#allocation2 + $0x98] sm:$0xf]
        %v4034 = vld [vmem:[#allocation2 + $0x9c] sm:$0xf]
        %v4035 = vld [vmem:[#allocation2 + $0xa0] sm:$0x7]
        %vm4073 = vcmask 1040384
        %vm4074 = vcmask 1044484
        %vm4075 = vmor %vm4073, %vm4074
        %v4076 = vrot.slane %v3999, 7
        %v4077 = vrot.slane %v4076, 4
        %v4078 = vrot.slane %v4000, 7
        %v4079 = vsel %vm4075, %v4077, %v4078
        %v4080 = vrot.slane %v4078, 4
        %v4081 = vrot.slane %v4001, 7
        %v4082 = vsel %vm4075, %v4080, %v4081
        %v4083 = vrot.slane %v4081, 4
        %v4084 = vrot.slane %v4002, 7
        %v4085 = vsel %vm4075, %v4083, %v4084
        %v4086 = vrot.slane %v4084, 4
        %v4087 = vrot.slane %v4003, 7
        %v4088 = vsel %vm4075, %v4086, %v4087
        %v4089 = vrot.slane %v4087, 4
        %v4090 = vrot.slane %v4004, 7
        %v4091 = vsel %vm4075, %v4089, %v4090
        %v4092 = vrot.slane %v4090, 4
        %v4093 = vrot.slane %v4005, 7
        %v4094 = vsel %vm4075, %v4092, %v4093
        %v4095 = vrot.slane %v4093, 4
        %v4096 = vrot.slane %v4006, 7
        %v4097 = vsel %vm4075, %v4095, %v4096
        %v4098 = vrot.slane %v4096, 4
        %v4099 = vrot.slane %v4007, 7
        %v4100 = vsel %vm4075, %v4098, %v4099
        %v4101 = vrot.slane %v4099, 4
        %v4102 = vrot.slane %v4008, 7
        %v4103 = vsel %vm4075, %v4101, %v4102
        %v4104 = vrot.slane %v4102, 4
        %v4105 = vrot.slane %v4009, 7
        %v4106 = vsel %vm4075, %v4104, %v4105
        %v4107 = vrot.slane %v4105, 4
        %v4108 = vrot.slane %v4010, 7
        %v4109 = vsel %vm4075, %v4107, %v4108
        %v4110 = vrot.slane %v4108, 4
        %v4111 = vrot.slane %v4011, 7
        %v4112 = vsel %vm4075, %v4110, %v4111
        %v4113 = vrot.slane %v4111, 4
        %v4114 = vrot.slane %v4012, 7
        %v4115 = vsel %vm4075, %v4113, %v4114
        %v4116 = vrot.slane %v4114, 4
        %v4117 = vrot.slane %v4013, 7
        %v4118 = vsel %vm4075, %v4116, %v4117
        %v4119 = vrot.slane %v4117, 4
        %v4120 = vrot.slane %v4014, 7
        %v4121 = vsel %vm4075, %v4119, %v4120
        %v4122 = vrot.slane %v4120, 4
        %v4123 = vrot.slane %v4015, 7
        %v4124 = vsel %vm4075, %v4122, %v4123
        %v4125 = vrot.slane %v4123, 4
        %v4126 = vrot.slane %v4016, 7
        %v4127 = vsel %vm4075, %v4125, %v4126
        %v4128 = vrot.slane %v4126, 4
        %v4129 = vrot.slane %v4017, 7
        %v4130 = vsel %vm4075, %v4128, %v4129
        %v4131 = vrot.slane %v4129, 4
        %v4132 = vrot.slane %v4018, 7
        %v4133 = vsel %vm4075, %v4131, %v4132
        %v4134 = vrot.slane %v4132, 4
        %v4135 = vrot.slane %v4019, 7
        %v4136 = vsel %vm4075, %v4134, %v4135
        %v4137 = vrot.slane %v4135, 4
        %v4138 = vrot.slane %v4020, 7
        %v4139 = vsel %vm4075, %v4137, %v4138
        %v4140 = vrot.slane %v4138, 4
        %v4141 = vrot.slane %v4021, 7
        %v4142 = vsel %vm4075, %v4140, %v4141
        %v4143 = vrot.slane %v4141, 4
        %v4144 = vrot.slane %v4022, 7
        %v4145 = vsel %vm4075, %v4143, %v4144
        %v4146 = vrot.slane %v4144, 4
        %v4147 = vrot.slane %v4023, 7
        %v4148 = vsel %vm4075, %v4146, %v4147
        %v4149 = vrot.slane %v4147, 4
        %v4150 = vrot.slane %v4024, 7
        %v4151 = vsel %vm4075, %v4149, %v4150
        %v4152 = vrot.slane %v4150, 4
        %v4153 = vrot.slane %v4025, 7
        %v4154 = vsel %vm4075, %v4152, %v4153
        %v4155 = vrot.slane %v4153, 4
        %v4156 = vrot.slane %v4026, 7
        %v4157 = vsel %vm4075, %v4155, %v4156
        %v4158 = vrot.slane %v4156, 4
        %v4159 = vrot.slane %v4027, 7
        %v4160 = vsel %vm4075, %v4158, %v4159
        %v4161 = vrot.slane %v4159, 4
        %v4162 = vrot.slane %v4028, 7
        %v4163 = vsel %vm4075, %v4161, %v4162
        %v4164 = vrot.slane %v4162, 4
        %v4165 = vrot.slane %v4029, 7
        %v4166 = vsel %vm4075, %v4164, %v4165
        %v4167 = vrot.slane %v4165, 4
        %v4168 = vrot.slane %v4030, 7
        %v4169 = vsel %vm4075, %v4167, %v4168
        %v4170 = vrot.slane %v4168, 4
        %v4171 = vrot.slane %v4031, 7
        %v4172 = vsel %vm4075, %v4170, %v4171
        %v4173 = vrot.slane %v4171, 4
        %v4174 = vrot.slane %v4032, 7
        %v4175 = vsel %vm4075, %v4173, %v4174
        %v4176 = vrot.slane %v4174, 4
        %v4177 = vrot.slane %v4033, 7
        %v4178 = vsel %vm4075, %v4176, %v4177
        %v4179 = vrot.slane %v4177, 4
        %v4180 = vrot.slane %v4034, 7
        %v4181 = vsel %vm4075, %v4179, %v4180
        %v4182 = vrot.slane %v4180, 4
        %v4183 = vrot.slane %v4035, 7
        %v4184 = vsel %vm4075, %v4182, %v4183
        %4185 = vrot.lane.b32.xlu0 %v4079, 32
        %v4186 = vpop.permute.xlu0 %4185
        %4187 = vrot.lane.b32.xlu0 %v4082, 32
        %v4188 = vpop.permute.xlu0 %4187
        %4189 = vrot.lane.b32.xlu0 %v4085, 32
        %v4190 = vpop.permute.xlu0 %4189
        %4191 = vrot.lane.b32.xlu0 %v4088, 32
        %v4192 = vpop.permute.xlu0 %4191
        %4193 = vrot.lane.b32.xlu0 %v4091, 32
        %v4194 = vpop.permute.xlu0 %4193
        %4195 = vrot.lane.b32.xlu0 %v4094, 32
        %v4196 = vpop.permute.xlu0 %4195
        %4197 = vrot.lane.b32.xlu0 %v4097, 32
        %v4198 = vpop.permute.xlu0 %4197
        %4199 = vrot.lane.b32.xlu0 %v4100, 32
        %v4200 = vpop.permute.xlu0 %4199
        %4201 = vrot.lane.b32.xlu0 %v4103, 32
        %v4202 = vpop.permute.xlu0 %4201
        %4203 = vrot.lane.b32.xlu0 %v4106, 32
        %v4204 = vpop.permute.xlu0 %4203
        %4205 = vrot.lane.b32.xlu0 %v4109, 32
        %v4206 = vpop.permute.xlu0 %4205
        %4207 = vrot.lane.b32.xlu0 %v4112, 32
        %v4208 = vpop.permute.xlu0 %4207
        %4209 = vrot.lane.b32.xlu0 %v4115, 32
        %v4210 = vpop.permute.xlu0 %4209
        %4211 = vrot.lane.b32.xlu0 %v4118, 32
        %v4212 = vpop.permute.xlu0 %4211
        %4213 = vrot.lane.b32.xlu0 %v4121, 32
        %v4214 = vpop.permute.xlu0 %4213
        %4215 = vrot.lane.b32.xlu0 %v4124, 32
        %v4216 = vpop.permute.xlu0 %4215
        %4217 = vrot.lane.b32.xlu0 %v4127, 32
        %v4218 = vpop.permute.xlu0 %4217
        %4219 = vrot.lane.b32.xlu0 %v4130, 32
        %v4220 = vpop.permute.xlu0 %4219
        %4221 = vrot.lane.b32.xlu0 %v4133, 32
        %v4222 = vpop.permute.xlu0 %4221
        %4223 = vrot.lane.b32.xlu0 %v4136, 32
        %v4224 = vpop.permute.xlu0 %4223
        %4225 = vrot.lane.b32.xlu0 %v4139, 32
        %v4226 = vpop.permute.xlu0 %4225
        %4227 = vrot.lane.b32.xlu0 %v4142, 32
        %v4228 = vpop.permute.xlu0 %4227
        %4229 = vrot.lane.b32.xlu0 %v4145, 32
        %v4230 = vpop.permute.xlu0 %4229
        %4231 = vrot.lane.b32.xlu0 %v4148, 32
        %v4232 = vpop.permute.xlu0 %4231
        %4233 = vrot.lane.b32.xlu0 %v4151, 32
        %v4234 = vpop.permute.xlu0 %4233
        %4235 = vrot.lane.b32.xlu0 %v4154, 32
        %v4236 = vpop.permute.xlu0 %4235
        %4237 = vrot.lane.b32.xlu0 %v4157, 32
        %v4238 = vpop.permute.xlu0 %4237
        %4239 = vrot.lane.b32.xlu0 %v4160, 32
        %v4240 = vpop.permute.xlu0 %4239
        %4241 = vrot.lane.b32.xlu0 %v4163, 32
        %v4242 = vpop.permute.xlu0 %4241
        %4243 = vrot.lane.b32.xlu0 %v4166, 32
        %v4244 = vpop.permute.xlu0 %4243
        %4245 = vrot.lane.b32.xlu0 %v4169, 32
        %v4246 = vpop.permute.xlu0 %4245
        %4247 = vrot.lane.b32.xlu0 %v4172, 32
        %v4248 = vpop.permute.xlu0 %4247
        %4249 = vrot.lane.b32.xlu0 %v4175, 32
        %v4250 = vpop.permute.xlu0 %4249
        %4251 = vrot.lane.b32.xlu0 %v4178, 32
        %v4252 = vpop.permute.xlu0 %4251
        %4253 = vrot.lane.b32.xlu0 %v4181, 32
        %v4254 = vpop.permute.xlu0 %4253
        %4255 = vrot.lane.b32.xlu0 %v4184, 32
        %v4256 = vpop.permute.xlu0 %4255
        %vm4293 = vcmask 290048
        %4294 = vst.msk [vmem:[#allocation6] sm:$0xf] %vm4293, %v4186
        %4295 = vst.msk [vmem:[#allocation6 + $0x4] sm:$0xf] %vm4293, %v4188
        %4296 = vst.msk [vmem:[#allocation6 + $0x8] sm:$0xf] %vm4293, %v4190
        %4297 = vst.msk [vmem:[#allocation6 + $0xc] sm:$0xf] %vm4293, %v4192
        %4298 = vst.msk [vmem:[#allocation6 + $0x10] sm:$0xf] %vm4293, %v4194
        %4299 = vst.msk [vmem:[#allocation6 + $0x14] sm:$0xf] %vm4293, %v4196
        %4300 = vst.msk [vmem:[#allocation6 + $0x18] sm:$0xf] %vm4293, %v4198
        %4301 = vst.msk [vmem:[#allocation6 + $0x1c] sm:$0xf] %vm4293, %v4200
        %4302 = vst.msk [vmem:[#allocation6 + $0x20] sm:$0xf] %vm4293, %v4202
        %4303 = vst.msk [vmem:[#allocation6 + $0x24] sm:$0xf] %vm4293, %v4204
        %4304 = vst.msk [vmem:[#allocation6 + $0x28] sm:$0xf] %vm4293, %v4206
        %4305 = vst.msk [vmem:[#allocation6 + $0x2c] sm:$0xf] %vm4293, %v4208
        %4306 = vst.msk [vmem:[#allocation6 + $0x30] sm:$0xf] %vm4293, %v4210
        %4307 = vst.msk [vmem:[#allocation6 + $0x34] sm:$0xf] %vm4293, %v4212
        %4308 = vst.msk [vmem:[#allocation6 + $0x38] sm:$0xf] %vm4293, %v4214
        %4309 = vst.msk [vmem:[#allocation6 + $0x3c] sm:$0xf] %vm4293, %v4216
        %4310 = vst.msk [vmem:[#allocation6 + $0x40] sm:$0xf] %vm4293, %v4218
        %4311 = vst.msk [vmem:[#allocation6 + $0x44] sm:$0xf] %vm4293, %v4220
        %4312 = vst.msk [vmem:[#allocation6 + $0x48] sm:$0xf] %vm4293, %v4222
        %4313 = vst.msk [vmem:[#allocation6 + $0x4c] sm:$0xf] %vm4293, %v4224
        %4314 = vst.msk [vmem:[#allocation6 + $0x50] sm:$0xf] %vm4293, %v4226
        %4315 = vst.msk [vmem:[#allocation6 + $0x54] sm:$0xf] %vm4293, %v4228
        %4316 = vst.msk [vmem:[#allocation6 + $0x58] sm:$0xf] %vm4293, %v4230
        %4317 = vst.msk [vmem:[#allocation6 + $0x5c] sm:$0xf] %vm4293, %v4232
        %4318 = vst.msk [vmem:[#allocation6 + $0x60] sm:$0xf] %vm4293, %v4234
        %4319 = vst.msk [vmem:[#allocation6 + $0x64] sm:$0xf] %vm4293, %v4236
        %4320 = vst.msk [vmem:[#allocation6 + $0x68] sm:$0xf] %vm4293, %v4238
        %4321 = vst.msk [vmem:[#allocation6 + $0x6c] sm:$0xf] %vm4293, %v4240
        %4322 = vst.msk [vmem:[#allocation6 + $0x70] sm:$0xf] %vm4293, %v4242
        %4323 = vst.msk [vmem:[#allocation6 + $0x74] sm:$0xf] %vm4293, %v4244
        %4324 = vst.msk [vmem:[#allocation6 + $0x78] sm:$0xf] %vm4293, %v4246
        %4325 = vst.msk [vmem:[#allocation6 + $0x7c] sm:$0xf] %vm4293, %v4248
        %4326 = vst.msk [vmem:[#allocation6 + $0x80] sm:$0xf] %vm4293, %v4250
        %4327 = vst.msk [vmem:[#allocation6 + $0x84] sm:$0xf] %vm4293, %v4252
        %4328 = vst.msk [vmem:[#allocation6 + $0x88] sm:$0xf] %vm4293, %v4254
        %4329 = vst.msk [vmem:[#allocation6 + $0x8c] sm:$0xf] %vm4293, %v4256
        %v4330 = vld [vmem:[#allocation6] sm:$0xf]
        %v4331 = vld [vmem:[#allocation6 + $0x4] sm:$0xf]
        %v4332 = vld [vmem:[#allocation6 + $0x8] sm:$0xf]
        %v4333 = vld [vmem:[#allocation6 + $0xc] sm:$0xf]
        %v4334 = vld [vmem:[#allocation6 + $0x10] sm:$0xf]
        %v4335 = vld [vmem:[#allocation6 + $0x14] sm:$0xf]
        %v4336 = vld [vmem:[#allocation6 + $0x18] sm:$0xf]
        %v4337 = vld [vmem:[#allocation6 + $0x1c] sm:$0xf]
        %v4338 = vld [vmem:[#allocation6 + $0x20] sm:$0xf]
        %v4339 = vld [vmem:[#allocation6 + $0x24] sm:$0xf]
        %v4340 = vld [vmem:[#allocation6 + $0x28] sm:$0xf]
        %v4341 = vld [vmem:[#allocation6 + $0x2c] sm:$0xf]
        %v4342 = vld [vmem:[#allocation6 + $0x30] sm:$0xf]
        %v4343 = vld [vmem:[#allocation6 + $0x34] sm:$0xf]
        %v4344 = vld [vmem:[#allocation6 + $0x38] sm:$0xf]
        %v4345 = vld [vmem:[#allocation6 + $0x3c] sm:$0xf]
        %v4346 = vld [vmem:[#allocation6 + $0x40] sm:$0xf]
        %v4347 = vld [vmem:[#allocation6 + $0x44] sm:$0xf]
        %v4348 = vld [vmem:[#allocation6 + $0x48] sm:$0xf]
        %v4349 = vld [vmem:[#allocation6 + $0x4c] sm:$0xf]
        %v4350 = vld [vmem:[#allocation6 + $0x50] sm:$0xf]
        %v4351 = vld [vmem:[#allocation6 + $0x54] sm:$0xf]
        %v4352 = vld [vmem:[#allocation6 + $0x58] sm:$0xf]
        %v4353 = vld [vmem:[#allocation6 + $0x5c] sm:$0xf]
        %v4354 = vld [vmem:[#allocation6 + $0x60] sm:$0xf]
        %v4355 = vld [vmem:[#allocation6 + $0x64] sm:$0xf]
        %v4356 = vld [vmem:[#allocation6 + $0x68] sm:$0xf]
        %v4357 = vld [vmem:[#allocation6 + $0x6c] sm:$0xf]
        %v4358 = vld [vmem:[#allocation6 + $0x70] sm:$0xf]
        %v4359 = vld [vmem:[#allocation6 + $0x74] sm:$0xf]
        %v4360 = vld [vmem:[#allocation6 + $0x78] sm:$0xf]
        %v4361 = vld [vmem:[#allocation6 + $0x7c] sm:$0xf]
        %v4362 = vld [vmem:[#allocation6 + $0x80] sm:$0xf]
        %v4363 = vld [vmem:[#allocation6 + $0x84] sm:$0xf]
        %v4364 = vld [vmem:[#allocation6 + $0x88] sm:$0xf]
        %v4365 = vld [vmem:[#allocation6 + $0x8c] sm:$0xf]
        %v4366 = vld [vmem:[%s1] sm:$0xf]
        %v4367 = vld [vmem:[%s1 + $0x4] sm:$0xf]
        %v4368 = vld [vmem:[%s1 + $0x8] sm:$0xf]
        %v4369 = vld [vmem:[%s1 + $0xc] sm:$0xf]
        %v4370 = vld [vmem:[%s1 + $0x10] sm:$0x3]
        %v4371 = vld [vmem:[%s5] sm:$0x7]
        %v4372 = vperm.slane %v4371, 0
        %v4409 = vunpack.c.l.b16 %v4330
        %v4410 = vunpack.c.l.b16 %v4331
        %v4411 = vunpack.c.l.b16 %v4332
        %v4412 = vunpack.c.l.b16 %v4333
        %v4413 = vunpack.c.l.b16 %v4334
        %v4414 = vunpack.c.l.b16 %v4335
        %v4415 = vunpack.c.l.b16 %v4336
        %v4416 = vunpack.c.l.b16 %v4337
        %v4417 = vunpack.c.l.b16 %v4338
        %v4418 = vunpack.c.l.b16 %v4339
        %v4419 = vunpack.c.l.b16 %v4340
        %v4420 = vunpack.c.l.b16 %v4341
        %v4421 = vunpack.c.l.b16 %v4342
        %v4422 = vunpack.c.l.b16 %v4343
        %v4423 = vunpack.c.l.b16 %v4344
        %v4424 = vunpack.c.l.b16 %v4345
        %v4425 = vunpack.c.l.b16 %v4346
        %v4426 = vunpack.c.l.b16 %v4347
        %v4427 = vunpack.c.l.b16 %v4348
        %v4428 = vunpack.c.l.b16 %v4349
        %v4429 = vunpack.c.l.b16 %v4350
        %v4430 = vunpack.c.l.b16 %v4351
        %v4431 = vunpack.c.l.b16 %v4352
        %v4432 = vunpack.c.l.b16 %v4353
        %v4433 = vunpack.c.l.b16 %v4354
        %v4434 = vunpack.c.l.b16 %v4355
        %v4435 = vunpack.c.l.b16 %v4356
        %v4436 = vunpack.c.l.b16 %v4357
        %v4437 = vunpack.c.l.b16 %v4358
        %v4438 = vunpack.c.l.b16 %v4359
        %v4439 = vunpack.c.l.b16 %v4360
        %v4440 = vunpack.c.l.b16 %v4361
        %v4441 = vunpack.c.l.b16 %v4362
        %v4442 = vunpack.c.l.b16 %v4363
        %v4443 = vunpack.c.l.b16 %v4364
        %v4444 = vunpack.c.l.b16 %v4365
        %v4445 = vpack.c.b16 %v4410, %v4409
        %v4446 = vpack.c.b16 %v4412, %v4411
        %v4447 = vpack.c.b16 %v4414, %v4413
        %v4448 = vpack.c.b16 %v4416, %v4415
        %v4449 = vpack.c.b16 %v4418, %v4417
        %v4450 = vpack.c.b16 %v4420, %v4419
        %v4451 = vpack.c.b16 %v4422, %v4421
        %v4452 = vpack.c.b16 %v4424, %v4423
        %v4453 = vpack.c.b16 %v4426, %v4425
        %v4454 = vpack.c.b16 %v4428, %v4427
        %v4455 = vpack.c.b16 %v4430, %v4429
        %v4456 = vpack.c.b16 %v4432, %v4431
        %v4457 = vpack.c.b16 %v4434, %v4433
        %v4458 = vpack.c.b16 %v4436, %v4435
        %v4459 = vpack.c.b16 %v4438, %v4437
        %v4460 = vpack.c.b16 %v4440, %v4439
        %v4461 = vpack.c.b16 %v4442, %v4441
        %v4462 = vpack.c.b16 %v4444, %v4443
        %v4468 = vunpack.c.l.b16 %v4366
        %v4469 = vunpack.c.l.b16 %v4367
        %v4470 = vunpack.c.l.b16 %v4368
        %v4471 = vunpack.c.l.b16 %v4369
        %v4472 = vunpack.c.l.b16 %v4370
        %v4473 = vpack.c.b16 %v4469, %v4468
        %v4474 = vpack.c.b16 %v4471, %v4470
        %v4475 = vpack.c.b16 %v4472, %v4472
        %vm4478 = vcmask 293888
        %v4480 = vsel %vm4478, %v4445, 0
        %v4483 = vsel %vm4478, %v4446, 0
        %v4486 = vsel %vm4478, %v4447, 0
        %v4489 = vsel %vm4478, %v4448, 0
        %v4492 = vsel %vm4478, %v4449, 0
        %v4495 = vsel %vm4478, %v4450, 0
        %v4498 = vsel %vm4478, %v4451, 0
        %v4501 = vsel %vm4478, %v4452, 0
        %v4504 = vsel %vm4478, %v4453, 0
        %v4507 = vsel %vm4478, %v4454, 0
        %v4510 = vsel %vm4478, %v4455, 0
        %v4513 = vsel %vm4478, %v4456, 0
        %v4516 = vsel %vm4478, %v4457, 0
        %v4519 = vsel %vm4478, %v4458, 0
        %v4522 = vsel %vm4478, %v4459, 0
        %v4525 = vsel %vm4478, %v4460, 0
        %v4528 = vsel %vm4478, %v4461, 0
        %v4531 = vsel %vm4478, %v4462, 0
        %vm4533 = vcmask 1041408
        %v4535 = vsel %vm4533, %v4475, 0
        %4537 = vmatpush.bf16.msra.mxu0 0
        %4538 = vmatpush.bf16.msra.mxu0 0
        %4539 = vmatpush.bf16.msra.mxu0 0
        %4540 = vmatpush.bf16.msra.mxu0 0
        %4541 = vmatpush.bf16.msra.mxu0 0
        %4542 = vmatpush.bf16.msra.mxu0 %v4535
        %4543 = vmatpush.bf16.msra.mxu0 %v4474
        %4544 = vmatpush.bf16.msra.mxu0 %v4473
        %4545 = vmatmul.bf16.gmra.mxu0 %v4480
        %v4546 = vpop.f32.mrf.mxu0
        %v4547 = vadd.f32 %v4372, %v4546
        %v4548 = vpop.f32.mrf.mxu0
        %v4549 = vadd.f32 %v4372, %v4548
        %4550 = vmatmul.bf16.gmra.mxu0 %v4483
        %v4551 = vpop.f32.mrf.mxu0
        %v4552 = vadd.f32 %v4372, %v4551
        %v4553 = vpop.f32.mrf.mxu0
        %v4554 = vadd.f32 %v4372, %v4553
        %4555 = vmatmul.bf16.gmra.mxu0 %v4486
        %v4556 = vpop.f32.mrf.mxu0
        %v4557 = vadd.f32 %v4372, %v4556
        %v4558 = vpop.f32.mrf.mxu0
        %v4559 = vadd.f32 %v4372, %v4558
        %4560 = vmatmul.bf16.gmra.mxu0 %v4489
        %v4561 = vpop.f32.mrf.mxu0
        %v4562 = vadd.f32 %v4372, %v4561
        %v4563 = vpop.f32.mrf.mxu0
        %v4564 = vadd.f32 %v4372, %v4563
        %4565 = vmatmul.bf16.gmra.mxu0 %v4492
        %v4566 = vpop.f32.mrf.mxu0
        %v4567 = vadd.f32 %v4372, %v4566
        %v4568 = vpop.f32.mrf.mxu0
        %v4569 = vadd.f32 %v4372, %v4568
        %4570 = vmatmul.bf16.gmra.mxu0 %v4495
        %v4571 = vpop.f32.mrf.mxu0
        %v4572 = vadd.f32 %v4372, %v4571
        %v4573 = vpop.f32.mrf.mxu0
        %v4574 = vadd.f32 %v4372, %v4573
        %4575 = vmatmul.bf16.gmra.mxu0 %v4498
        %v4576 = vpop.f32.mrf.mxu0
        %v4577 = vadd.f32 %v4372, %v4576
        %v4578 = vpop.f32.mrf.mxu0
        %v4579 = vadd.f32 %v4372, %v4578
        %4580 = vmatmul.bf16.gmra.mxu0 %v4501
        %v4581 = vpop.f32.mrf.mxu0
        %v4582 = vadd.f32 %v4372, %v4581
        %v4583 = vpop.f32.mrf.mxu0
        %v4584 = vadd.f32 %v4372, %v4583
        %4585 = vmatmul.bf16.gmra.mxu0 %v4504
        %v4586 = vpop.f32.mrf.mxu0
        %v4587 = vadd.f32 %v4372, %v4586
        %v4588 = vpop.f32.mrf.mxu0
        %v4589 = vadd.f32 %v4372, %v4588
        %4590 = vmatmul.bf16.gmra.mxu0 %v4507
        %v4591 = vpop.f32.mrf.mxu0
        %v4592 = vadd.f32 %v4372, %v4591
        %v4593 = vpop.f32.mrf.mxu0
        %v4594 = vadd.f32 %v4372, %v4593
        %4595 = vmatmul.bf16.gmra.mxu0 %v4510
        %v4596 = vpop.f32.mrf.mxu0
        %v4597 = vadd.f32 %v4372, %v4596
        %v4598 = vpop.f32.mrf.mxu0
        %v4599 = vadd.f32 %v4372, %v4598
        %4600 = vmatmul.bf16.gmra.mxu0 %v4513
        %v4601 = vpop.f32.mrf.mxu0
        %v4602 = vadd.f32 %v4372, %v4601
        %v4603 = vpop.f32.mrf.mxu0
        %v4604 = vadd.f32 %v4372, %v4603
        %4605 = vmatmul.bf16.gmra.mxu0 %v4516
        %v4606 = vpop.f32.mrf.mxu0
        %v4607 = vadd.f32 %v4372, %v4606
        %v4608 = vpop.f32.mrf.mxu0
        %v4609 = vadd.f32 %v4372, %v4608
        %4610 = vmatmul.bf16.gmra.mxu0 %v4519
        %v4611 = vpop.f32.mrf.mxu0
        %v4612 = vadd.f32 %v4372, %v4611
        %v4613 = vpop.f32.mrf.mxu0
        %v4614 = vadd.f32 %v4372, %v4613
        %4615 = vmatmul.bf16.gmra.mxu0 %v4522
        %v4616 = vpop.f32.mrf.mxu0
        %v4617 = vadd.f32 %v4372, %v4616
        %v4618 = vpop.f32.mrf.mxu0
        %v4619 = vadd.f32 %v4372, %v4618
        %4620 = vmatmul.bf16.gmra.mxu0 %v4525
        %v4621 = vpop.f32.mrf.mxu0
        %v4622 = vadd.f32 %v4372, %v4621
        %v4623 = vpop.f32.mrf.mxu0
        %v4624 = vadd.f32 %v4372, %v4623
        %4625 = vmatmul.bf16.gmra.mxu0 %v4528
        %v4626 = vpop.f32.mrf.mxu0
        %v4627 = vadd.f32 %v4372, %v4626
        %v4628 = vpop.f32.mrf.mxu0
        %v4629 = vadd.f32 %v4372, %v4628
        %4630 = vmatmul.bf16.gmra.mxu0 %v4531
        %v4631 = vpop.f32.mrf.mxu0
        %v4632 = vadd.f32 %v4372, %v4631
        %v4633 = vpop.f32.mrf.mxu0
        %v4634 = vadd.f32 %v4372, %v4633
        %4635 = vdwg.mxu0
        %v4636 = vmax.f32 %v4547, 0.0
        %v4637 = vmax.f32 %v4549, 0.0
        %v4638 = vmax.f32 %v4552, 0.0
        %v4639 = vmax.f32 %v4554, 0.0
        %v4640 = vmax.f32 %v4557, 0.0
        %v4641 = vmax.f32 %v4559, 0.0
        %v4642 = vmax.f32 %v4562, 0.0
        %v4643 = vmax.f32 %v4564, 0.0
        %v4644 = vmax.f32 %v4567, 0.0
        %v4645 = vmax.f32 %v4569, 0.0
        %v4646 = vmax.f32 %v4572, 0.0
        %v4647 = vmax.f32 %v4574, 0.0
        %v4648 = vmax.f32 %v4577, 0.0
        %v4649 = vmax.f32 %v4579, 0.0
        %v4650 = vmax.f32 %v4582, 0.0
        %v4651 = vmax.f32 %v4584, 0.0
        %v4652 = vmax.f32 %v4587, 0.0
        %v4653 = vmax.f32 %v4589, 0.0
        %v4654 = vmax.f32 %v4592, 0.0
        %v4655 = vmax.f32 %v4594, 0.0
        %v4656 = vmax.f32 %v4597, 0.0
        %v4657 = vmax.f32 %v4599, 0.0
        %v4658 = vmax.f32 %v4602, 0.0
        %v4659 = vmax.f32 %v4604, 0.0
        %v4660 = vmax.f32 %v4607, 0.0
        %v4661 = vmax.f32 %v4609, 0.0
        %v4662 = vmax.f32 %v4612, 0.0
        %v4663 = vmax.f32 %v4614, 0.0
        %v4664 = vmax.f32 %v4617, 0.0
        %v4665 = vmax.f32 %v4619, 0.0
        %v4666 = vmax.f32 %v4622, 0.0
        %v4667 = vmax.f32 %v4624, 0.0
        %v4668 = vmax.f32 %v4627, 0.0
        %v4669 = vmax.f32 %v4629, 0.0
        %v4670 = vmax.f32 %v4632, 0.0
        %v4671 = vmax.f32 %v4634, 0.0
        %v4672 = vperm.slane %v4371, 1
        %v4673 = vmul.f32 %v4636, %v4672
        %v4674 = vmul.f32 %v4637, %v4672
        %v4675 = vmul.f32 %v4638, %v4672
        %v4676 = vmul.f32 %v4639, %v4672
        %v4677 = vmul.f32 %v4640, %v4672
        %v4678 = vmul.f32 %v4641, %v4672
        %v4679 = vmul.f32 %v4642, %v4672
        %v4680 = vmul.f32 %v4643, %v4672
        %v4681 = vmul.f32 %v4644, %v4672
        %v4682 = vmul.f32 %v4645, %v4672
        %v4683 = vmul.f32 %v4646, %v4672
        %v4684 = vmul.f32 %v4647, %v4672
        %v4685 = vmul.f32 %v4648, %v4672
        %v4686 = vmul.f32 %v4649, %v4672
        %v4687 = vmul.f32 %v4650, %v4672
        %v4688 = vmul.f32 %v4651, %v4672
        %v4689 = vmul.f32 %v4652, %v4672
        %v4690 = vmul.f32 %v4653, %v4672
        %v4691 = vmul.f32 %v4654, %v4672
        %v4692 = vmul.f32 %v4655, %v4672
        %v4693 = vmul.f32 %v4656, %v4672
        %v4694 = vmul.f32 %v4657, %v4672
        %v4695 = vmul.f32 %v4658, %v4672
        %v4696 = vmul.f32 %v4659, %v4672
        %v4697 = vmul.f32 %v4660, %v4672
        %v4698 = vmul.f32 %v4661, %v4672
        %v4699 = vmul.f32 %v4662, %v4672
        %v4700 = vmul.f32 %v4663, %v4672
        %v4701 = vmul.f32 %v4664, %v4672
        %v4702 = vmul.f32 %v4665, %v4672
        %v4703 = vmul.f32 %v4666, %v4672
        %v4704 = vmul.f32 %v4667, %v4672
        %v4705 = vmul.f32 %v4668, %v4672
        %v4706 = vmul.f32 %v4669, %v4672
        %v4707 = vmul.f32 %v4670, %v4672
        %v4708 = vmul.f32 %v4671, %v4672
        %v4709 = vperm.slane %v4371, 2
        %v4710 = vadd.f32 %v4673, %v4709
        %v4711 = vadd.f32 %v4674, %v4709
        %v4712 = vadd.f32 %v4675, %v4709
        %v4713 = vadd.f32 %v4676, %v4709
        %v4714 = vadd.f32 %v4677, %v4709
        %v4715 = vadd.f32 %v4678, %v4709
        %v4716 = vadd.f32 %v4679, %v4709
        %v4717 = vadd.f32 %v4680, %v4709
        %v4718 = vadd.f32 %v4681, %v4709
        %v4719 = vadd.f32 %v4682, %v4709
        %v4720 = vadd.f32 %v4683, %v4709
        %v4721 = vadd.f32 %v4684, %v4709
        %v4722 = vadd.f32 %v4685, %v4709
        %v4723 = vadd.f32 %v4686, %v4709
        %v4724 = vadd.f32 %v4687, %v4709
        %v4725 = vadd.f32 %v4688, %v4709
        %v4726 = vadd.f32 %v4689, %v4709
        %v4727 = vadd.f32 %v4690, %v4709
        %v4728 = vadd.f32 %v4691, %v4709
        %v4729 = vadd.f32 %v4692, %v4709
        %v4730 = vadd.f32 %v4693, %v4709
        %v4731 = vadd.f32 %v4694, %v4709
        %v4732 = vadd.f32 %v4695, %v4709
        %v4733 = vadd.f32 %v4696, %v4709
        %v4734 = vadd.f32 %v4697, %v4709
        %v4735 = vadd.f32 %v4698, %v4709
        %v4736 = vadd.f32 %v4699, %v4709
        %v4737 = vadd.f32 %v4700, %v4709
        %v4738 = vadd.f32 %v4701, %v4709
        %v4739 = vadd.f32 %v4702, %v4709
        %v4740 = vadd.f32 %v4703, %v4709
        %v4741 = vadd.f32 %v4704, %v4709
        %v4742 = vadd.f32 %v4705, %v4709
        %v4743 = vadd.f32 %v4706, %v4709
        %v4744 = vadd.f32 %v4707, %v4709
        %v4745 = vadd.f32 %v4708, %v4709
        %vm4749 = vcmask 1045504
        %v4750 = vrot.slane %v4712, 2
        %v4751 = vrot.slane %v4713, 2
        %v4752 = vsel %vm4749, %v4750, %v4751
        %v4753 = vrot.slane %v4714, 2
        %v4754 = vsel %vm4749, %v4751, %v4753
        %v4757 = vmax.f32 %v4710, %v4752
        %v4758 = vmax.f32 %v4711, %v4754
        %v4761 = vrot.slane %v4757, 2
        %v4762 = vrot.slane %v4757, 4
        %v4763 = vrot.slane %v4757, 6
        %v4764 = vrot.slane %v4758, 2
        %v4765 = vrot.slane %v4758, 4
        %v4766 = vrot.slane %v4758, 6
        %v4773 = vrot.slane %v4757, 7
        %v4774 = vrot.slane %v4773, 2
        %v4775 = vrot.slane %v4761, 7
        %v4776 = vrot.slane %v4775, 2
        %v4777 = vrot.slane %v4762, 7
        %v4778 = vrot.slane %v4777, 2
        %v4779 = vrot.slane %v4763, 7
        %v4780 = vrot.slane %v4779, 2
        %v4781 = vrot.slane %v4758, 7
        %v4782 = vrot.slane %v4781, 2
        %v4783 = vrot.slane %v4764, 7
        %v4784 = vrot.slane %v4783, 2
        %v4785 = vrot.slane %v4765, 7
        %v4786 = vrot.slane %v4785, 2
        %v4787 = vrot.slane %v4766, 7
        %v4788 = vrot.slane %v4787, 2
        %v4797 = vmax.f32 %v4757, %v4774
        %v4798 = vmax.f32 %v4761, %v4776
        %v4799 = vmax.f32 %v4762, %v4778
        %v4800 = vmax.f32 %v4763, %v4780
        %v4801 = vmax.f32 %v4758, %v4782
        %v4802 = vmax.f32 %v4764, %v4784
        %v4803 = vmax.f32 %v4765, %v4786
        %v4804 = vmax.f32 %v4766, %v4788
        %v4808 = vrot.slane %v4716, 2
        %v4809 = vrot.slane %v4717, 2
        %v4810 = vsel %vm4749, %v4808, %v4809
        %v4811 = vrot.slane %v4718, 2
        %v4812 = vsel %vm4749, %v4809, %v4811
        %v4816 = vmax.f32 %v4714, %v4810
        %v4817 = vmax.f32 %v4715, %v4812
        %v4818 = vmax.f32 %v4716, %v4811
        %4822 = vst.sshfl [vmem:[#allocation1] sm:$0xff pattern:$0x73625140] %v4816
        %4823 = vst.sshfl [vmem:[#allocation1 + $0x20] sm:$0xff pattern:$0x73625140] %v4817
        %s4824 = scalar_lea.vmem [#allocation1], 2
        %v4825 = vld [vmem:[%s4824] ss:$4 sm:$0xff]
        %s4826 = scalar_lea.vmem [#allocation1], 3
        %v4827 = vld [vmem:[%s4826] ss:$4 sm:$0xff]
        %s4828 = scalar_lea.vmem [#allocation1], 32
        %v4829 = vld [vmem:[%s4828] ss:$4 sm:$0xff]
        %s4830 = scalar_lea.vmem [#allocation1], 33
        %v4831 = vld [vmem:[%s4830] ss:$4 sm:$0xff]
        %s4832 = scalar_lea.vmem [#allocation1], 34
        %v4833 = vld [vmem:[%s4832] ss:$4 sm:$0xff]
        %s4834 = scalar_lea.vmem [#allocation1], 35
        %v4835 = vld [vmem:[%s4834] ss:$4 sm:$0xff]
        %4836 = vst.sshfl [vmem:[#allocation1] sm:$0xff pattern:$0x73625140] %v4818
        %v4837 = vld [vmem:[#allocation1] ss:$4 sm:$0xff]
        %s4838 = scalar_lea.vmem [#allocation1], 1
        %v4839 = vld [vmem:[%s4838] ss:$4 sm:$0xff]
        %v4848 = vrot.slane %v4825, 7
        %v4849 = vrot.slane %v4848, 2
        %v4850 = vrot.slane %v4827, 7
        %v4851 = vrot.slane %v4850, 2
        %v4852 = vrot.slane %v4829, 7
        %v4853 = vrot.slane %v4852, 2
        %v4854 = vrot.slane %v4831, 7
        %v4855 = vrot.slane %v4854, 2
        %v4856 = vrot.slane %v4833, 7
        %v4857 = vrot.slane %v4856, 2
        %v4858 = vrot.slane %v4835, 7
        %v4859 = vrot.slane %v4858, 2
        %v4860 = vrot.slane %v4837, 7
        %v4861 = vrot.slane %v4860, 2
        %v4862 = vrot.slane %v4839, 7
        %v4863 = vrot.slane %v4862, 2
        %v4872 = vmax.f32 %v4825, %v4849
        %v4873 = vmax.f32 %v4827, %v4851
        %v4874 = vmax.f32 %v4829, %v4853
        %v4875 = vmax.f32 %v4831, %v4855
        %v4876 = vmax.f32 %v4833, %v4857
        %v4877 = vmax.f32 %v4835, %v4859
        %v4878 = vmax.f32 %v4837, %v4861
        %v4879 = vmax.f32 %v4839, %v4863
        %v4883 = vrot.slane %v4721, 2
        %v4884 = vrot.slane %v4722, 2
        %v4885 = vsel %vm4749, %v4883, %v4884
        %v4886 = vrot.slane %v4723, 2
        %v4887 = vsel %vm4749, %v4884, %v4886
        %v4890 = vmax.f32 %v4719, %v4885
        %v4891 = vmax.f32 %v4720, %v4887
        %v4894 = vrot.slane %v4890, 2
        %v4895 = vrot.slane %v4890, 4
        %v4896 = vrot.slane %v4890, 6
        %v4897 = vrot.slane %v4891, 2
        %v4898 = vrot.slane %v4891, 4
        %v4899 = vrot.slane %v4891, 6
        %v4906 = vrot.slane %v4890, 7
        %v4907 = vrot.slane %v4906, 2
        %v4908 = vrot.slane %v4894, 7
        %v4909 = vrot.slane %v4908, 2
        %v4910 = vrot.slane %v4895, 7
        %v4911 = vrot.slane %v4910, 2
        %v4912 = vrot.slane %v4896, 7
        %v4913 = vrot.slane %v4912, 2
        %v4914 = vrot.slane %v4891, 7
        %v4915 = vrot.slane %v4914, 2
        %v4916 = vrot.slane %v4897, 7
        %v4917 = vrot.slane %v4916, 2
        %v4918 = vrot.slane %v4898, 7
        %v4919 = vrot.slane %v4918, 2
        %v4920 = vrot.slane %v4899, 7
        %v4921 = vrot.slane %v4920, 2
        %v4930 = vmax.f32 %v4890, %v4907
        %v4931 = vmax.f32 %v4894, %v4909
        %v4932 = vmax.f32 %v4895, %v4911
        %v4933 = vmax.f32 %v4896, %v4913
        %v4934 = vmax.f32 %v4891, %v4915
        %v4935 = vmax.f32 %v4897, %v4917
        %v4936 = vmax.f32 %v4898, %v4919
        %v4937 = vmax.f32 %v4899, %v4921
        %v4941 = vrot.slane %v4725, 2
        %v4942 = vrot.slane %v4726, 2
        %v4943 = vsel %vm4749, %v4941, %v4942
        %v4944 = vrot.slane %v4727, 2
        %v4945 = vsel %vm4749, %v4942, %v4944
        %v4949 = vmax.f32 %v4723, %v4943
        %v4950 = vmax.f32 %v4724, %v4945
        %v4951 = vmax.f32 %v4725, %v4944
        %4955 = vst.sshfl [vmem:[#allocation1] sm:$0xff pattern:$0x73625140] %v4949
        %4956 = vst.sshfl [vmem:[#allocation1 + $0x20] sm:$0xff pattern:$0x73625140] %v4950
        %s4957 = scalar_lea.vmem [#allocation1], 2
        %v4958 = vld [vmem:[%s4957] ss:$4 sm:$0xff]
        %s4959 = scalar_lea.vmem [#allocation1], 3
        %v4960 = vld [vmem:[%s4959] ss:$4 sm:$0xff]
        %s4961 = scalar_lea.vmem [#allocation1], 32
        %v4962 = vld [vmem:[%s4961] ss:$4 sm:$0xff]
        %s4963 = scalar_lea.vmem [#allocation1], 33
        %v4964 = vld [vmem:[%s4963] ss:$4 sm:$0xff]
        %s4965 = scalar_lea.vmem [#allocation1], 34
        %v4966 = vld [vmem:[%s4965] ss:$4 sm:$0xff]
        %s4967 = scalar_lea.vmem [#allocation1], 35
        %v4968 = vld [vmem:[%s4967] ss:$4 sm:$0xff]
        %4969 = vst.sshfl [vmem:[#allocation1] sm:$0xff pattern:$0x73625140] %v4951
        %v4970 = vld [vmem:[#allocation1] ss:$4 sm:$0xff]
        %s4971 = scalar_lea.vmem [#allocation1], 1
        %v4972 = vld [vmem:[%s4971] ss:$4 sm:$0xff]
        %v4981 = vrot.slane %v4958, 7
        %v4982 = vrot.slane %v4981, 2
        %v4983 = vrot.slane %v4960, 7
        %v4984 = vrot.slane %v4983, 2
        %v4985 = vrot.slane %v4962, 7
        %v4986 = vrot.slane %v4985, 2
        %v4987 = vrot.slane %v4964, 7
        %v4988 = vrot.slane %v4987, 2
        %v4989 = vrot.slane %v4966, 7
        %v4990 = vrot.slane %v4989, 2
        %v4991 = vrot.slane %v4968, 7
        %v4992 = vrot.slane %v4991, 2
        %v4993 = vrot.slane %v4970, 7
        %v4994 = vrot.slane %v4993, 2
        %v4995 = vrot.slane %v4972, 7
        %v4996 = vrot.slane %v4995, 2
        %v5005 = vmax.f32 %v4958, %v4982
        %v5006 = vmax.f32 %v4960, %v4984
        %v5007 = vmax.f32 %v4962, %v4986
        %v5008 = vmax.f32 %v4964, %v4988
        %v5009 = vmax.f32 %v4966, %v4990
        %v5010 = vmax.f32 %v4968, %v4992
        %v5011 = vmax.f32 %v4970, %v4994
        %v5012 = vmax.f32 %v4972, %v4996
        %v5016 = vrot.slane %v4730, 2
        %v5017 = vrot.slane %v4731, 2
        %v5018 = vsel %vm4749, %v5016, %v5017
        %v5019 = vrot.slane %v4732, 2
        %v5020 = vsel %vm4749, %v5017, %v5019
        %v5023 = vmax.f32 %v4728, %v5018
        %v5024 = vmax.f32 %v4729, %v5020
        %v5027 = vrot.slane %v5023, 2
        %v5028 = vrot.slane %v5023, 4
        %v5029 = vrot.slane %v5023, 6
        %v5030 = vrot.slane %v5024, 2
        %v5031 = vrot.slane %v5024, 4
        %v5032 = vrot.slane %v5024, 6
        %v5039 = vrot.slane %v5023, 7
        %v5040 = vrot.slane %v5039, 2
        %v5041 = vrot.slane %v5027, 7
        %v5042 = vrot.slane %v5041, 2
        %v5043 = vrot.slane %v5028, 7
        %v5044 = vrot.slane %v5043, 2
        %v5045 = vrot.slane %v5029, 7
        %v5046 = vrot.slane %v5045, 2
        %v5047 = vrot.slane %v5024, 7
        %v5048 = vrot.slane %v5047, 2
        %v5049 = vrot.slane %v5030, 7
        %v5050 = vrot.slane %v5049, 2
        %v5051 = vrot.slane %v5031, 7
        %v5052 = vrot.slane %v5051, 2
        %v5053 = vrot.slane %v5032, 7
        %v5054 = vrot.slane %v5053, 2
        %v5063 = vmax.f32 %v5023, %v5040
        %v5064 = vmax.f32 %v5027, %v5042
        %v5065 = vmax.f32 %v5028, %v5044
        %v5066 = vmax.f32 %v5029, %v5046
        %v5067 = vmax.f32 %v5024, %v5048
        %v5068 = vmax.f32 %v5030, %v5050
        %v5069 = vmax.f32 %v5031, %v5052
        %v5070 = vmax.f32 %v5032, %v5054
        %v5074 = vrot.slane %v4734, 2
        %v5075 = vrot.slane %v4735, 2
        %v5076 = vsel %vm4749, %v5074, %v5075
        %v5077 = vrot.slane %v4736, 2
        %v5078 = vsel %vm4749, %v5075, %v5077
        %v5082 = vmax.f32 %v4732, %v5076
        %v5083 = vmax.f32 %v4733, %v5078
        %v5084 = vmax.f32 %v4734, %v5077
        %5088 = vst.sshfl [vmem:[#allocation1] sm:$0xff pattern:$0x73625140] %v5082
        %5089 = vst.sshfl [vmem:[#allocation1 + $0x20] sm:$0xff pattern:$0x73625140] %v5083
        %s5090 = scalar_lea.vmem [#allocation1], 2
        %v5091 = vld [vmem:[%s5090] ss:$4 sm:$0xff]
        %s5092 = scalar_lea.vmem [#allocation1], 3
        %v5093 = vld [vmem:[%s5092] ss:$4 sm:$0xff]
        %s5094 = scalar_lea.vmem [#allocation1], 32
        %v5095 = vld [vmem:[%s5094] ss:$4 sm:$0xff]
        %s5096 = scalar_lea.vmem [#allocation1], 33
        %v5097 = vld [vmem:[%s5096] ss:$4 sm:$0xff]
        %s5098 = scalar_lea.vmem [#allocation1], 34
        %v5099 = vld [vmem:[%s5098] ss:$4 sm:$0xff]
        %s5100 = scalar_lea.vmem [#allocation1], 35
        %v5101 = vld [vmem:[%s5100] ss:$4 sm:$0xff]
        %5102 = vst.sshfl [vmem:[#allocation1] sm:$0xff pattern:$0x73625140] %v5084
        %v5103 = vld [vmem:[#allocation1] ss:$4 sm:$0xff]
        %s5104 = scalar_lea.vmem [#allocation1], 1
        %v5105 = vld [vmem:[%s5104] ss:$4 sm:$0xff]
        %v5114 = vrot.slane %v5091, 7
        %v5115 = vrot.slane %v5114, 2
        %v5116 = vrot.slane %v5093, 7
        %v5117 = vrot.slane %v5116, 2
        %v5118 = vrot.slane %v5095, 7
        %v5119 = vrot.slane %v5118, 2
        %v5120 = vrot.slane %v5097, 7
        %v5121 = vrot.slane %v5120, 2
        %v5122 = vrot.slane %v5099, 7
        %v5123 = vrot.slane %v5122, 2
        %v5124 = vrot.slane %v5101, 7
        %v5125 = vrot.slane %v5124, 2
        %v5126 = vrot.slane %v5103, 7
        %v5127 = vrot.slane %v5126, 2
        %v5128 = vrot.slane %v5105, 7
        %v5129 = vrot.slane %v5128, 2
        %v5138 = vmax.f32 %v5091, %v5115
        %v5139 = vmax.f32 %v5093, %v5117
        %v5140 = vmax.f32 %v5095, %v5119
        %v5141 = vmax.f32 %v5097, %v5121
        %v5142 = vmax.f32 %v5099, %v5123
        %v5143 = vmax.f32 %v5101, %v5125
        %v5144 = vmax.f32 %v5103, %v5127
        %v5145 = vmax.f32 %v5105, %v5129
        %v5149 = vrot.slane %v4739, 2
        %v5150 = vrot.slane %v4740, 2
        %v5151 = vsel %vm4749, %v5149, %v5150
        %v5152 = vrot.slane %v4741, 2
        %v5153 = vsel %vm4749, %v5150, %v5152
        %v5156 = vmax.f32 %v4737, %v5151
        %v5157 = vmax.f32 %v4738, %v5153
        %v5160 = vrot.slane %v5156, 2
        %v5161 = vrot.slane %v5156, 4
        %v5162 = vrot.slane %v5156, 6
        %v5163 = vrot.slane %v5157, 2
        %v5164 = vrot.slane %v5157, 4
        %v5165 = vrot.slane %v5157, 6
        %v5172 = vrot.slane %v5156, 7
        %v5173 = vrot.slane %v5172, 2
        %v5174 = vrot.slane %v5160, 7
        %v5175 = vrot.slane %v5174, 2
        %v5176 = vrot.slane %v5161, 7
        %v5177 = vrot.slane %v5176, 2
        %v5178 = vrot.slane %v5162, 7
        %v5179 = vrot.slane %v5178, 2
        %v5180 = vrot.slane %v5157, 7
        %v5181 = vrot.slane %v5180, 2
        %v5182 = vrot.slane %v5163, 7
        %v5183 = vrot.slane %v5182, 2
        %v5184 = vrot.slane %v5164, 7
        %v5185 = vrot.slane %v5184, 2
        %v5186 = vrot.slane %v5165, 7
        %v5187 = vrot.slane %v5186, 2
        %v5196 = vmax.f32 %v5156, %v5173
        %v5197 = vmax.f32 %v5160, %v5175
        %v5198 = vmax.f32 %v5161, %v5177
        %v5199 = vmax.f32 %v5162, %v5179
        %v5200 = vmax.f32 %v5157, %v5181
        %v5201 = vmax.f32 %v5163, %v5183
        %v5202 = vmax.f32 %v5164, %v5185
        %v5203 = vmax.f32 %v5165, %v5187
        %v5207 = vrot.slane %v4743, 2
        %v5208 = vrot.slane %v4744, 2
        %v5209 = vsel %vm4749, %v5207, %v5208
        %v5210 = vrot.slane %v4745, 2
        %v5211 = vsel %vm4749, %v5208, %v5210
        %v5215 = vmax.f32 %v4741, %v5209
        %v5216 = vmax.f32 %v4742, %v5211
        %v5217 = vmax.f32 %v4743, %v5210
        %5221 = vst.sshfl [vmem:[#allocation1] sm:$0xff pattern:$0x73625140] %v5215
        %5222 = vst.sshfl [vmem:[#allocation1 + $0x20] sm:$0xff pattern:$0x73625140] %v5216
        %s5223 = scalar_lea.vmem [#allocation1], 2
        %v5224 = vld [vmem:[%s5223] ss:$4 sm:$0xff]
        %s5225 = scalar_lea.vmem [#allocation1], 3
        %v5226 = vld [vmem:[%s5225] ss:$4 sm:$0xff]
        %s5227 = scalar_lea.vmem [#allocation1], 32
        %v5228 = vld [vmem:[%s5227] ss:$4 sm:$0xff]
        %s5229 = scalar_lea.vmem [#allocation1], 33
        %v5230 = vld [vmem:[%s5229] ss:$4 sm:$0xff]
        %s5231 = scalar_lea.vmem [#allocation1], 34
        %v5232 = vld [vmem:[%s5231] ss:$4 sm:$0xff]
        %s5233 = scalar_lea.vmem [#allocation1], 35
        %v5234 = vld [vmem:[%s5233] ss:$4 sm:$0xff]
        %5235 = vst.sshfl [vmem:[#allocation1] sm:$0xff pattern:$0x73625140] %v5217
        %v5236 = vld [vmem:[#allocation1] ss:$4 sm:$0xff]
        %s5237 = scalar_lea.vmem [#allocation1], 1
        %v5238 = vld [vmem:[%s5237] ss:$4 sm:$0xff]
        %v5247 = vrot.slane %v5224, 7
        %v5248 = vrot.slane %v5247, 2
        %v5249 = vrot.slane %v5226, 7
        %v5250 = vrot.slane %v5249, 2
        %v5251 = vrot.slane %v5228, 7
        %v5252 = vrot.slane %v5251, 2
        %v5253 = vrot.slane %v5230, 7
        %v5254 = vrot.slane %v5253, 2
        %v5255 = vrot.slane %v5232, 7
        %v5256 = vrot.slane %v5255, 2
        %v5257 = vrot.slane %v5234, 7
        %v5258 = vrot.slane %v5257, 2
        %v5259 = vrot.slane %v5236, 7
        %v5260 = vrot.slane %v5259, 2
        %v5261 = vrot.slane %v5238, 7
        %v5262 = vrot.slane %v5261, 2
        %v5271 = vmax.f32 %v5224, %v5248
        %v5272 = vmax.f32 %v5226, %v5250
        %v5273 = vmax.f32 %v5228, %v5252
        %v5274 = vmax.f32 %v5230, %v5254
        %v5275 = vmax.f32 %v5232, %v5256
        %v5276 = vmax.f32 %v5234, %v5258
        %v5277 = vmax.f32 %v5236, %v5260
        %v5278 = vmax.f32 %v5238, %v5262
        %v5279 = vpack.c.bf16 %v4797, %v4797
        %v5280 = vpack.c.bf16 %v4798, %v4798
        %v5281 = vpack.c.bf16 %v4799, %v4799
        %v5282 = vpack.c.bf16 %v4800, %v4800
        %v5283 = vpack.c.bf16 %v4801, %v4801
        %v5284 = vpack.c.bf16 %v4802, %v4802
        %v5285 = vpack.c.bf16 %v4803, %v4803
        %v5286 = vpack.c.bf16 %v4804, %v4804
        %v5295 = vunpack.c.l.b16 %v5279
        %v5296 = vunpack.c.l.b16 %v5280
        %v5297 = vunpack.c.l.b16 %v5281
        %v5298 = vunpack.c.l.b16 %v5282
        %v5299 = vunpack.c.l.b16 %v5283
        %v5300 = vunpack.c.l.b16 %v5284
        %v5301 = vunpack.c.l.b16 %v5285
        %v5302 = vunpack.c.l.b16 %v5286
        %v5303 = vrot.slane %v5295, 5
        %v5304 = vrot.slane %v5296, 4
        %vm5305 = vcmask 1044484
        %v5306 = vsel %vm5305, %v5304, %v5303
        %v5307 = vrot.slane %v5297, 3
        %vm5308 = vcmask 1045509
        %v5309 = vsel %vm5308, %v5307, %v5306
        %v5310 = vrot.slane %v5298, 2
        %vm5311 = vcmask 1046534
        %v5312 = vsel %vm5311, %v5310, %v5309
        %v5313 = vrot.slane %v5299, 1
        %vm5314 = vcmask 1047559
        %v5315 = vsel %vm5314, %v5313, %v5312
        %v5316 = vrot.slane %v5301, 7
        %vm5317 = vcmask 1041409
        %v5318 = vsel %vm5317, %v5316, %v5300
        %v5319 = vrot.slane %v5302, 6
        %vm5320 = vcmask 1042434
        %v5321 = vsel %vm5320, %v5319, %v5318
        %v5322 = vpack.c.b16 %v5315, %v5315
        %v5323 = vpack.c.b16 %v5321, %v5321
        %v5326 = vld [vmem:[#allocation3 + $0x4] sm:$0xe]
        %v5327 = vsel %vm424, %v5322, %v5326
        %5328 = vst [vmem:[#allocation3 + $0x4] sm:$0xe] %v5327
        %v5329 = vld [vmem:[#allocation3 + $0x8] sm:$0x3]
        %v5330 = vsel %vm341, %v5323, %v5329
        %5331 = vst [vmem:[#allocation3 + $0x8] sm:$0x3] %v5330
        %v5332 = vpack.c.bf16 %v4872, %v4872
        %v5333 = vpack.c.bf16 %v4873, %v4873
        %v5334 = vpack.c.bf16 %v4874, %v4874
        %v5335 = vpack.c.bf16 %v4875, %v4875
        %v5336 = vpack.c.bf16 %v4876, %v4876
        %v5337 = vpack.c.bf16 %v4877, %v4877
        %v5338 = vpack.c.bf16 %v4878, %v4878
        %v5339 = vpack.c.bf16 %v4879, %v4879
        %v5348 = vunpack.c.l.b16 %v5332
        %v5349 = vunpack.c.l.b16 %v5333
        %v5350 = vunpack.c.l.b16 %v5334
        %v5351 = vunpack.c.l.b16 %v5335
        %v5352 = vunpack.c.l.b16 %v5336
        %v5353 = vunpack.c.l.b16 %v5337
        %v5354 = vunpack.c.l.b16 %v5338
        %v5355 = vunpack.c.l.b16 %v5339
        %v5356 = vrot.slane %v5348, 3
        %v5357 = vrot.slane %v5349, 2
        %v5358 = vsel %vm5311, %v5357, %v5356
        %v5359 = vrot.slane %v5350, 1
        %v5360 = vsel %vm5314, %v5359, %v5358
        %v5361 = vrot.slane %v5352, 7
        %v5362 = vsel %vm5317, %v5361, %v5351
        %v5363 = vrot.slane %v5353, 6
        %v5364 = vsel %vm5320, %v5363, %v5362
        %v5365 = vrot.slane %v5354, 5
        %vm5366 = vcmask 1043459
        %v5367 = vsel %vm5366, %v5365, %v5364
        %v5368 = vrot.slane %v5355, 4
        %v5369 = vsel %vm5305, %v5368, %v5367
        %v5370 = vpack.c.b16 %v5360, %v5360
        %v5371 = vpack.c.b16 %v5369, %v5369
        %v5374 = vld [vmem:[#allocation3 + $0x8] sm:$0xc]
        %v5375 = vsel %vm405, %v5370, %v5374
        %5376 = vst [vmem:[#allocation3 + $0x8] sm:$0xc] %v5375
        %v5377 = vld [vmem:[#allocation3 + $0xc] sm:$0x7]
        %v5378 = vsel %vm412, %v5371, %v5377
        %5379 = vst [vmem:[#allocation3 + $0xc] sm:$0x7] %v5378
        %v5380 = vpack.c.bf16 %v4930, %v4930
        %v5381 = vpack.c.bf16 %v4931, %v4931
        %v5382 = vpack.c.bf16 %v4932, %v4932
        %v5383 = vpack.c.bf16 %v4933, %v4933
        %v5384 = vpack.c.bf16 %v4934, %v4934
        %v5385 = vpack.c.bf16 %v4935, %v4935
        %v5386 = vpack.c.bf16 %v4936, %v4936
        %v5387 = vpack.c.bf16 %v4937, %v4937
        %v5396 = vunpack.c.l.b16 %v5380
        %v5397 = vunpack.c.l.b16 %v5381
        %v5398 = vunpack.c.l.b16 %v5382
        %v5399 = vunpack.c.l.b16 %v5383
        %v5400 = vunpack.c.l.b16 %v5384
        %v5401 = vunpack.c.l.b16 %v5385
        %v5402 = vunpack.c.l.b16 %v5386
        %v5403 = vunpack.c.l.b16 %v5387
        %v5404 = vrot.slane %v5396, 1
        %v5405 = vrot.slane %v5398, 7
        %v5406 = vsel %vm5317, %v5405, %v5397
        %v5407 = vrot.slane %v5399, 6
        %v5408 = vsel %vm5320, %v5407, %v5406
        %v5409 = vrot.slane %v5400, 5
        %v5410 = vsel %vm5366, %v5409, %v5408
        %v5411 = vrot.slane %v5401, 4
        %v5412 = vsel %vm5305, %v5411, %v5410
        %v5413 = vrot.slane %v5402, 3
        %v5414 = vsel %vm5308, %v5413, %v5412
        %v5415 = vrot.slane %v5403, 2
        %v5416 = vsel %vm5311, %v5415, %v5414
        %v5417 = vpack.c.b16 %v5404, %v5404
        %v5418 = vpack.c.b16 %v5416, %v5416
        %v5421 = vld [vmem:[#allocation3 + $0xc] sm:$0x8]
        %v5422 = vsel %vm356, %v5417, %v5421
        %5423 = vst [vmem:[#allocation3 + $0xc] sm:$0x8] %v5422
        %v5424 = vld [vmem:[#allocation3 + $0x10] sm:$0xf]
        %v5425 = vsel %vm388, %v5418, %v5424
        %5426 = vst [vmem:[#allocation3 + $0x10] sm:$0xf] %v5425
        %v5427 = vpack.c.bf16 %v5005, %v5005
        %v5428 = vpack.c.bf16 %v5006, %v5006
        %v5429 = vpack.c.bf16 %v5007, %v5007
        %v5430 = vpack.c.bf16 %v5008, %v5008
        %v5431 = vpack.c.bf16 %v5009, %v5009
        %v5432 = vpack.c.bf16 %v5010, %v5010
        %v5433 = vpack.c.bf16 %v5011, %v5011
        %v5434 = vpack.c.bf16 %v5012, %v5012
        %v5443 = vunpack.c.l.b16 %v5427
        %v5444 = vunpack.c.l.b16 %v5428
        %v5445 = vunpack.c.l.b16 %v5429
        %v5446 = vunpack.c.l.b16 %v5430
        %v5447 = vunpack.c.l.b16 %v5431
        %v5448 = vunpack.c.l.b16 %v5432
        %v5449 = vunpack.c.l.b16 %v5433
        %v5450 = vunpack.c.l.b16 %v5434
        %v5451 = vrot.slane %v5443, 7
        %v5452 = vrot.slane %v5444, 6
        %v5453 = vsel %vm5320, %v5452, %v5451
        %v5454 = vrot.slane %v5445, 5
        %v5455 = vsel %vm5366, %v5454, %v5453
        %v5456 = vrot.slane %v5446, 4
        %v5457 = vsel %vm5305, %v5456, %v5455
        %v5458 = vrot.slane %v5447, 3
        %v5459 = vsel %vm5308, %v5458, %v5457
        %v5460 = vrot.slane %v5448, 2
        %v5461 = vsel %vm5311, %v5460, %v5459
        %v5462 = vrot.slane %v5449, 1
        %v5463 = vsel %vm5314, %v5462, %v5461
        %v5464 = vpack.c.b16 %v5463, %v5463
        %v5465 = vpack.c.b16 %v5450, %v5450
        %v5468 = vld [vmem:[#allocation3 + $0x14] sm:$0xf]
        %v5469 = vsel %vm382, %v5464, %v5468
        %5470 = vst [vmem:[#allocation3 + $0x14] sm:$0xf] %v5469
        %v5471 = vld [vmem:[#allocation3 + $0x18] sm:$0x1]
        %v5472 = vsel %vm361, %v5465, %v5471
        %5473 = vst [vmem:[#allocation3 + $0x18] sm:$0x1] %v5472
        %v5474 = vpack.c.bf16 %v5063, %v5063
        %v5475 = vpack.c.bf16 %v5064, %v5064
        %v5476 = vpack.c.bf16 %v5065, %v5065
        %v5477 = vpack.c.bf16 %v5066, %v5066
        %v5478 = vpack.c.bf16 %v5067, %v5067
        %v5479 = vpack.c.bf16 %v5068, %v5068
        %v5480 = vpack.c.bf16 %v5069, %v5069
        %v5481 = vpack.c.bf16 %v5070, %v5070
        %v5490 = vunpack.c.l.b16 %v5474
        %v5491 = vunpack.c.l.b16 %v5475
        %v5492 = vunpack.c.l.b16 %v5476
        %v5493 = vunpack.c.l.b16 %v5477
        %v5494 = vunpack.c.l.b16 %v5478
        %v5495 = vunpack.c.l.b16 %v5479
        %v5496 = vunpack.c.l.b16 %v5480
        %v5497 = vunpack.c.l.b16 %v5481
        %v5498 = vrot.slane %v5490, 5
        %v5499 = vrot.slane %v5491, 4
        %v5500 = vsel %vm5305, %v5499, %v5498
        %v5501 = vrot.slane %v5492, 3
        %v5502 = vsel %vm5308, %v5501, %v5500
        %v5503 = vrot.slane %v5493, 2
        %v5504 = vsel %vm5311, %v5503, %v5502
        %v5505 = vrot.slane %v5494, 1
        %v5506 = vsel %vm5314, %v5505, %v5504
        %v5507 = vrot.slane %v5496, 7
        %v5508 = vsel %vm5317, %v5507, %v5495
        %v5509 = vrot.slane %v5497, 6
        %v5510 = vsel %vm5320, %v5509, %v5508
        %v5511 = vpack.c.b16 %v5506, %v5506
        %v5512 = vpack.c.b16 %v5510, %v5510
        %v5515 = vld [vmem:[#allocation3 + $0x18] sm:$0xe]
        %v5516 = vsel %vm424, %v5511, %v5515
        %5517 = vst [vmem:[#allocation3 + $0x18] sm:$0xe] %v5516
        %v5518 = vld [vmem:[#allocation3 + $0x1c] sm:$0x3]
        %v5519 = vsel %vm341, %v5512, %v5518
        %5520 = vst [vmem:[#allocation3 + $0x1c] sm:$0x3] %v5519
        %v5521 = vpack.c.bf16 %v5138, %v5138
        %v5522 = vpack.c.bf16 %v5139, %v5139
        %v5523 = vpack.c.bf16 %v5140, %v5140
        %v5524 = vpack.c.bf16 %v5141, %v5141
        %v5525 = vpack.c.bf16 %v5142, %v5142
        %v5526 = vpack.c.bf16 %v5143, %v5143
        %v5527 = vpack.c.bf16 %v5144, %v5144
        %v5528 = vpack.c.bf16 %v5145, %v5145
        %v5537 = vunpack.c.l.b16 %v5521
        %v5538 = vunpack.c.l.b16 %v5522
        %v5539 = vunpack.c.l.b16 %v5523
        %v5540 = vunpack.c.l.b16 %v5524
        %v5541 = vunpack.c.l.b16 %v5525
        %v5542 = vunpack.c.l.b16 %v5526
        %v5543 = vunpack.c.l.b16 %v5527
        %v5544 = vunpack.c.l.b16 %v5528
        %v5545 = vrot.slane %v5537, 3
        %v5546 = vrot.slane %v5538, 2
        %v5547 = vsel %vm5311, %v5546, %v5545
        %v5548 = vrot.slane %v5539, 1
        %v5549 = vsel %vm5314, %v5548, %v5547
        %v5550 = vrot.slane %v5541, 7
        %v5551 = vsel %vm5317, %v5550, %v5540
        %v5552 = vrot.slane %v5542, 6
        %v5553 = vsel %vm5320, %v5552, %v5551
        %v5554 = vrot.slane %v5543, 5
        %v5555 = vsel %vm5366, %v5554, %v5553
        %v5556 = vrot.slane %v5544, 4
        %v5557 = vsel %vm5305, %v5556, %v5555
        %v5558 = vpack.c.b16 %v5549, %v5549
        %v5559 = vpack.c.b16 %v5557, %v5557
        %v5562 = vld [vmem:[#allocation3 + $0x1c] sm:$0xc]
        %v5563 = vsel %vm405, %v5558, %v5562
        %5564 = vst [vmem:[#allocation3 + $0x1c] sm:$0xc] %v5563
        %v5565 = vld [vmem:[#allocation3 + $0x20] sm:$0x7]
        %v5566 = vsel %vm412, %v5559, %v5565
        %5567 = vst [vmem:[#allocation3 + $0x20] sm:$0x7] %v5566
        %v5568 = vpack.c.bf16 %v5196, %v5196
        %v5569 = vpack.c.bf16 %v5197, %v5197
        %v5570 = vpack.c.bf16 %v5198, %v5198
        %v5571 = vpack.c.bf16 %v5199, %v5199
        %v5572 = vpack.c.bf16 %v5200, %v5200
        %v5573 = vpack.c.bf16 %v5201, %v5201
        %v5574 = vpack.c.bf16 %v5202, %v5202
        %v5575 = vpack.c.bf16 %v5203, %v5203
        %v5584 = vunpack.c.l.b16 %v5568
        %v5585 = vunpack.c.l.b16 %v5569
        %v5586 = vunpack.c.l.b16 %v5570
        %v5587 = vunpack.c.l.b16 %v5571
        %v5588 = vunpack.c.l.b16 %v5572
        %v5589 = vunpack.c.l.b16 %v5573
        %v5590 = vunpack.c.l.b16 %v5574
        %v5591 = vunpack.c.l.b16 %v5575
        %v5592 = vrot.slane %v5584, 1
        %v5593 = vrot.slane %v5586, 7
        %v5594 = vsel %vm5317, %v5593, %v5585
        %v5595 = vrot.slane %v5587, 6
        %v5596 = vsel %vm5320, %v5595, %v5594
        %v5597 = vrot.slane %v5588, 5
        %v5598 = vsel %vm5366, %v5597, %v5596
        %v5599 = vrot.slane %v5589, 4
        %v5600 = vsel %vm5305, %v5599, %v5598
        %v5601 = vrot.slane %v5590, 3
        %v5602 = vsel %vm5308, %v5601, %v5600
        %v5603 = vrot.slane %v5591, 2
        %v5604 = vsel %vm5311, %v5603, %v5602
        %v5605 = vpack.c.b16 %v5592, %v5592
        %v5606 = vpack.c.b16 %v5604, %v5604
        %v5609 = vld [vmem:[#allocation3 + $0x20] sm:$0x8]
        %v5610 = vsel %vm356, %v5605, %v5609
        %5611 = vst [vmem:[#allocation3 + $0x20] sm:$0x8] %v5610
        %v5612 = vld [vmem:[#allocation3 + $0x24] sm:$0xf]
        %v5613 = vsel %vm388, %v5606, %v5612
        %5614 = vst [vmem:[#allocation3 + $0x24] sm:$0xf] %v5613
        %v5615 = vpack.c.bf16 %v5271, %v5271
        %v5616 = vpack.c.bf16 %v5272, %v5272
        %v5617 = vpack.c.bf16 %v5273, %v5273
        %v5618 = vpack.c.bf16 %v5274, %v5274
        %v5619 = vpack.c.bf16 %v5275, %v5275
        %v5620 = vpack.c.bf16 %v5276, %v5276
        %v5621 = vpack.c.bf16 %v5277, %v5277
        %v5622 = vpack.c.bf16 %v5278, %v5278
        %v5631 = vunpack.c.l.b16 %v5615
        %v5632 = vunpack.c.l.b16 %v5616
        %v5633 = vunpack.c.l.b16 %v5617
        %v5634 = vunpack.c.l.b16 %v5618
        %v5635 = vunpack.c.l.b16 %v5619
        %v5636 = vunpack.c.l.b16 %v5620
        %v5637 = vunpack.c.l.b16 %v5621
        %v5638 = vunpack.c.l.b16 %v5622
        %v5639 = vrot.slane %v5631, 7
        %v5640 = vrot.slane %v5632, 6
        %v5641 = vsel %vm5320, %v5640, %v5639
        %v5642 = vrot.slane %v5633, 5
        %v5643 = vsel %vm5366, %v5642, %v5641
        %v5644 = vrot.slane %v5634, 4
        %v5645 = vsel %vm5305, %v5644, %v5643
        %v5646 = vrot.slane %v5635, 3
        %v5647 = vsel %vm5308, %v5646, %v5645
        %v5648 = vrot.slane %v5636, 2
        %v5649 = vsel %vm5311, %v5648, %v5647
        %v5650 = vrot.slane %v5637, 1
        %v5651 = vsel %vm5314, %v5650, %v5649
        %v5652 = vpack.c.b16 %v5651, %v5651
        %v5653 = vpack.c.b16 %v5638, %v5638
        %v5656 = vld [vmem:[#allocation3 + $0x28] sm:$0xf]
        %v5657 = vsel %vm382, %v5652, %v5656
        %5658 = vst [vmem:[#allocation3 + $0x28] sm:$0xf] %v5657
        %v5659 = vld [vmem:[#allocation3 + $0x2c] sm:$0x1]
        %v5660 = vsel %vm361, %v5653, %v5659
        %5661 = vst [vmem:[#allocation3 + $0x2c] sm:$0x1] %v5660
        %v5662 = vld [vmem:[#allocation3] sm:$0xf]
        %v5663 = vld [vmem:[#allocation3 + $0x4] sm:$0xf]
        %v5664 = vld [vmem:[#allocation3 + $0x8] sm:$0xf]
        %v5665 = vld [vmem:[#allocation3 + $0xc] sm:$0xf]
        %v5666 = vld [vmem:[#allocation3 + $0x10] sm:$0xf]
        %v5667 = vld [vmem:[#allocation3 + $0x14] sm:$0xf]
        %v5668 = vld [vmem:[#allocation3 + $0x18] sm:$0xf]
        %v5669 = vld [vmem:[#allocation3 + $0x1c] sm:$0xf]
        %v5670 = vld [vmem:[#allocation3 + $0x20] sm:$0xf]
        %v5671 = vld [vmem:[#allocation3 + $0x24] sm:$0xf]
        %5672 = vst.msk [vmem:[#allocation7] sm:$0xf] %vm338, %v5662
        %5673 = vst.msk [vmem:[#allocation7 + $0xc] sm:$0xf] %vm338, %v5663
        %5674 = vst.msk [vmem:[#allocation7 + $0x18] sm:$0xf] %vm338, %v5664
        %5675 = vst.msk [vmem:[#allocation7 + $0x24] sm:$0xf] %vm338, %v5665
        %5676 = vst.msk [vmem:[#allocation7 + $0x30] sm:$0xf] %vm338, %v5666
        %5677 = vst.msk [vmem:[#allocation7 + $0x3c] sm:$0xf] %vm338, %v5667
        %5678 = vst.msk [vmem:[#allocation7 + $0x48] sm:$0xf] %vm338, %v5668
        %5679 = vst.msk [vmem:[#allocation7 + $0x54] sm:$0xf] %vm338, %v5669
        %5680 = vst.msk [vmem:[#allocation7 + $0x60] sm:$0xf] %vm338, %v5670
        %5681 = vst.msk [vmem:[#allocation7 + $0x6c] sm:$0xf] %vm338, %v5671
        %v5682 = vld [vmem:[#allocation3] sm:$0xf]
        %v5683 = vld [vmem:[#allocation3 + $0x4] sm:$0xf]
        %v5684 = vld [vmem:[#allocation3 + $0x8] sm:$0xf]
        %v5685 = vld [vmem:[#allocation3 + $0xc] sm:$0xf]
        %v5686 = vld [vmem:[#allocation3 + $0x10] sm:$0xf]
        %v5687 = vld [vmem:[#allocation3 + $0x14] sm:$0xf]
        %v5688 = vld [vmem:[#allocation3 + $0x18] sm:$0xf]
        %v5689 = vld [vmem:[#allocation3 + $0x1c] sm:$0xf]
        %v5690 = vld [vmem:[#allocation3 + $0x20] sm:$0xf]
        %v5691 = vld [vmem:[#allocation3 + $0x24] sm:$0xf]
        %v5692 = vld [vmem:[#allocation3 + $0x28] sm:$0x1]
        %v5694 = vshrl.u32 %v5682, 16
        %v5696 = vrot.slane %v5694, 4
        %v5697 = vshll.u32 %v5682, 16
        %v5699 = vrot.slane %v5697, 5
        %v5700 = vor.u32 %v5696, %v5699
        %v5701 = vrot.slane %v5700, 4
        %v5703 = vshll.u32 %v5683, 16
        %v5705 = vrot.slane %v5703, 5
        %v5706 = vsel %vm535, %v5701, %v5705
        %v5707 = vshrl.u32 %v5683, 16
        %v5709 = vrot.slane %v5707, 4
        %v5710 = vor.u32 %v5709, %v5705
        %v5711 = vrot.slane %v5710, 4
        %v5713 = vshll.u32 %v5684, 16
        %v5715 = vrot.slane %v5713, 5
        %v5716 = vsel %vm535, %v5711, %v5715
        %v5717 = vshrl.u32 %v5684, 16
        %v5719 = vrot.slane %v5717, 4
        %v5720 = vor.u32 %v5719, %v5715
        %v5721 = vrot.slane %v5720, 4
        %v5723 = vshll.u32 %v5685, 16
        %v5725 = vrot.slane %v5723, 5
        %v5726 = vsel %vm535, %v5721, %v5725
        %v5727 = vshrl.u32 %v5685, 16
        %v5729 = vrot.slane %v5727, 4
        %v5730 = vor.u32 %v5729, %v5725
        %v5731 = vrot.slane %v5730, 4
        %v5733 = vshll.u32 %v5686, 16
        %v5735 = vrot.slane %v5733, 5
        %v5736 = vsel %vm535, %v5731, %v5735
        %v5737 = vshrl.u32 %v5686, 16
        %v5739 = vrot.slane %v5737, 4
        %v5740 = vor.u32 %v5739, %v5735
        %v5741 = vrot.slane %v5740, 4
        %v5743 = vshll.u32 %v5687, 16
        %v5745 = vrot.slane %v5743, 5
        %v5746 = vsel %vm535, %v5741, %v5745
        %v5747 = vshrl.u32 %v5687, 16
        %v5749 = vrot.slane %v5747, 4
        %v5750 = vor.u32 %v5749, %v5745
        %v5751 = vrot.slane %v5750, 4
        %v5753 = vshll.u32 %v5688, 16
        %v5755 = vrot.slane %v5753, 5
        %v5756 = vsel %vm535, %v5751, %v5755
        %v5757 = vshrl.u32 %v5688, 16
        %v5759 = vrot.slane %v5757, 4
        %v5760 = vor.u32 %v5759, %v5755
        %v5761 = vrot.slane %v5760, 4
        %v5763 = vshll.u32 %v5689, 16
        %v5765 = vrot.slane %v5763, 5
        %v5766 = vsel %vm535, %v5761, %v5765
        %v5767 = vshrl.u32 %v5689, 16
        %v5769 = vrot.slane %v5767, 4
        %v5770 = vor.u32 %v5769, %v5765
        %v5771 = vrot.slane %v5770, 4
        %v5773 = vshll.u32 %v5690, 16
        %v5775 = vrot.slane %v5773, 5
        %v5776 = vsel %vm535, %v5771, %v5775
        %v5777 = vshrl.u32 %v5690, 16
        %v5779 = vrot.slane %v5777, 4
        %v5780 = vor.u32 %v5779, %v5775
        %v5781 = vrot.slane %v5780, 4
        %v5783 = vshll.u32 %v5691, 16
        %v5785 = vrot.slane %v5783, 5
        %v5786 = vsel %vm535, %v5781, %v5785
        %v5787 = vshrl.u32 %v5691, 16
        %v5789 = vrot.slane %v5787, 4
        %v5790 = vor.u32 %v5789, %v5785
        %v5791 = vrot.slane %v5790, 4
        %v5793 = vshll.u32 %v5692, 16
        %v5795 = vrot.slane %v5793, 5
        %v5796 = vsel %vm535, %v5791, %v5795
        %5797 = vrot.lane.b32.xlu0 %v5706, 32
        %v5798 = vpop.permute.xlu0 %5797
        %5799 = vrot.lane.b32.xlu0 %v5716, 32
        %v5800 = vpop.permute.xlu0 %5799
        %5801 = vrot.lane.b32.xlu0 %v5726, 32
        %v5802 = vpop.permute.xlu0 %5801
        %5803 = vrot.lane.b32.xlu0 %v5736, 32
        %v5804 = vpop.permute.xlu0 %5803
        %5805 = vrot.lane.b32.xlu0 %v5746, 32
        %v5806 = vpop.permute.xlu0 %5805
        %5807 = vrot.lane.b32.xlu0 %v5756, 32
        %v5808 = vpop.permute.xlu0 %5807
        %5809 = vrot.lane.b32.xlu0 %v5766, 32
        %v5810 = vpop.permute.xlu0 %5809
        %5811 = vrot.lane.b32.xlu0 %v5776, 32
        %v5812 = vpop.permute.xlu0 %5811
        %5813 = vrot.lane.b32.xlu0 %v5786, 32
        %v5814 = vpop.permute.xlu0 %5813
        %5815 = vrot.lane.b32.xlu0 %v5796, 32
        %v5816 = vpop.permute.xlu0 %5815
        %vm5827 = vcmask 519424
        %5828 = vst.msk [vmem:[#allocation7] sm:$0xf] %vm5827, %v5798
        %5829 = vst.msk [vmem:[#allocation7 + $0xc] sm:$0xf] %vm5827, %v5800
        %5830 = vst.msk [vmem:[#allocation7 + $0x18] sm:$0xf] %vm5827, %v5802
        %5831 = vst.msk [vmem:[#allocation7 + $0x24] sm:$0xf] %vm5827, %v5804
        %5832 = vst.msk [vmem:[#allocation7 + $0x30] sm:$0xf] %vm5827, %v5806
        %5833 = vst.msk [vmem:[#allocation7 + $0x3c] sm:$0xf] %vm5827, %v5808
        %5834 = vst.msk [vmem:[#allocation7 + $0x48] sm:$0xf] %vm5827, %v5810
        %5835 = vst.msk [vmem:[#allocation7 + $0x54] sm:$0xf] %vm5827, %v5812
        %5836 = vst.msk [vmem:[#allocation7 + $0x60] sm:$0xf] %vm5827, %v5814
        %5837 = vst.msk [vmem:[#allocation7 + $0x6c] sm:$0xf] %vm5827, %v5816
        %v5838 = vld [vmem:[#allocation3] sm:$0xe]
        %v5839 = vld [vmem:[#allocation3 + $0x4] sm:$0xf]
        %v5840 = vld [vmem:[#allocation3 + $0x8] sm:$0xf]
        %v5841 = vld [vmem:[#allocation3 + $0xc] sm:$0xf]
        %v5842 = vld [vmem:[#allocation3 + $0x10] sm:$0xf]
        %v5843 = vld [vmem:[#allocation3 + $0x14] sm:$0xf]
        %v5844 = vld [vmem:[#allocation3 + $0x18] sm:$0xf]
        %v5845 = vld [vmem:[#allocation3 + $0x1c] sm:$0xf]
        %v5846 = vld [vmem:[#allocation3 + $0x20] sm:$0xf]
        %v5847 = vld [vmem:[#allocation3 + $0x24] sm:$0xf]
        %v5848 = vld [vmem:[#allocation3 + $0x28] sm:$0x1]
        %v5860 = vrot.slane %v5838, 5
        %v5861 = vrot.slane %v5860, 4
        %v5862 = vrot.slane %v5839, 5
        %v5863 = vsel %vm1657, %v5861, %v5862
        %v5864 = vrot.slane %v5862, 4
        %v5865 = vrot.slane %v5840, 5
        %v5866 = vsel %vm1657, %v5864, %v5865
        %v5867 = vrot.slane %v5865, 4
        %v5868 = vrot.slane %v5841, 5
        %v5869 = vsel %vm1657, %v5867, %v5868
        %v5870 = vrot.slane %v5868, 4
        %v5871 = vrot.slane %v5842, 5
        %v5872 = vsel %vm1657, %v5870, %v5871
        %v5873 = vrot.slane %v5871, 4
        %v5874 = vrot.slane %v5843, 5
        %v5875 = vsel %vm1657, %v5873, %v5874
        %v5876 = vrot.slane %v5874, 4
        %v5877 = vrot.slane %v5844, 5
        %v5878 = vsel %vm1657, %v5876, %v5877
        %v5879 = vrot.slane %v5877, 4
        %v5880 = vrot.slane %v5845, 5
        %v5881 = vsel %vm1657, %v5879, %v5880
        %v5882 = vrot.slane %v5880, 4
        %v5883 = vrot.slane %v5846, 5
        %v5884 = vsel %vm1657, %v5882, %v5883
        %v5885 = vrot.slane %v5883, 4
        %v5886 = vrot.slane %v5847, 5
        %v5887 = vsel %vm1657, %v5885, %v5886
        %v5888 = vrot.slane %v5886, 4
        %v5889 = vrot.slane %v5848, 5
        %v5890 = vsel %vm1657, %v5888, %v5889
        %5891 = vrot.lane.b32.xlu0 %v5863, 64
        %v5892 = vpop.permute.xlu0 %5891
        %5893 = vrot.lane.b32.xlu0 %v5866, 64
        %v5894 = vpop.permute.xlu0 %5893
        %5895 = vrot.lane.b32.xlu0 %v5869, 64
        %v5896 = vpop.permute.xlu0 %5895
        %5897 = vrot.lane.b32.xlu0 %v5872, 64
        %v5898 = vpop.permute.xlu0 %5897
        %5899 = vrot.lane.b32.xlu0 %v5875, 64
        %v5900 = vpop.permute.xlu0 %5899
        %5901 = vrot.lane.b32.xlu0 %v5878, 64
        %v5902 = vpop.permute.xlu0 %5901
        %5903 = vrot.lane.b32.xlu0 %v5881, 64
        %v5904 = vpop.permute.xlu0 %5903
        %5905 = vrot.lane.b32.xlu0 %v5884, 64
        %v5906 = vpop.permute.xlu0 %5905
        %5907 = vrot.lane.b32.xlu0 %v5887, 64
        %v5908 = vpop.permute.xlu0 %5907
        %5909 = vrot.lane.b32.xlu0 %v5890, 64
        %v5910 = vpop.permute.xlu0 %5909
        %vm5921 = vcmask 781824
        %5922 = vst.msk [vmem:[#allocation7] sm:$0xf] %vm5921, %v5892
        %5923 = vst.msk [vmem:[#allocation7 + $0xc] sm:$0xf] %vm5921, %v5894
        %5924 = vst.msk [vmem:[#allocation7 + $0x18] sm:$0xf] %vm5921, %v5896
        %5925 = vst.msk [vmem:[#allocation7 + $0x24] sm:$0xf] %vm5921, %v5898
        %5926 = vst.msk [vmem:[#allocation7 + $0x30] sm:$0xf] %vm5921, %v5900
        %5927 = vst.msk [vmem:[#allocation7 + $0x3c] sm:$0xf] %vm5921, %v5902
        %5928 = vst.msk [vmem:[#allocation7 + $0x48] sm:$0xf] %vm5921, %v5904
        %5929 = vst.msk [vmem:[#allocation7 + $0x54] sm:$0xf] %vm5921, %v5906
        %5930 = vst.msk [vmem:[#allocation7 + $0x60] sm:$0xf] %vm5921, %v5908
        %5931 = vst.msk [vmem:[#allocation7 + $0x6c] sm:$0xf] %vm5921, %v5910
        %v5932 = vld [vmem:[#allocation3 + $0x4] sm:$0xe]
        %v5933 = vld [vmem:[#allocation3 + $0x8] sm:$0xf]
        %v5934 = vld [vmem:[#allocation3 + $0xc] sm:$0xf]
        %v5935 = vld [vmem:[#allocation3 + $0x10] sm:$0xf]
        %v5936 = vld [vmem:[#allocation3 + $0x14] sm:$0xf]
        %v5937 = vld [vmem:[#allocation3 + $0x18] sm:$0xf]
        %v5938 = vld [vmem:[#allocation3 + $0x1c] sm:$0xf]
        %v5939 = vld [vmem:[#allocation3 + $0x20] sm:$0xf]
        %v5940 = vld [vmem:[#allocation3 + $0x24] sm:$0xf]
        %v5941 = vld [vmem:[#allocation3 + $0x28] sm:$0xf]
        %v5942 = vld [vmem:[#allocation3 + $0x2c] sm:$0x1]
        %v5954 = vrot.slane %v5932, 5
        %v5955 = vrot.slane %v5954, 4
        %v5956 = vrot.slane %v5933, 5
        %v5957 = vsel %vm1657, %v5955, %v5956
        %v5958 = vrot.slane %v5956, 4
        %v5959 = vrot.slane %v5934, 5
        %v5960 = vsel %vm1657, %v5958, %v5959
        %v5961 = vrot.slane %v5959, 4
        %v5962 = vrot.slane %v5935, 5
        %v5963 = vsel %vm1657, %v5961, %v5962
        %v5964 = vrot.slane %v5962, 4
        %v5965 = vrot.slane %v5936, 5
        %v5966 = vsel %vm1657, %v5964, %v5965
        %v5967 = vrot.slane %v5965, 4
        %v5968 = vrot.slane %v5937, 5
        %v5969 = vsel %vm1657, %v5967, %v5968
        %v5970 = vrot.slane %v5968, 4
        %v5971 = vrot.slane %v5938, 5
        %v5972 = vsel %vm1657, %v5970, %v5971
        %v5973 = vrot.slane %v5971, 4
        %v5974 = vrot.slane %v5939, 5
        %v5975 = vsel %vm1657, %v5973, %v5974
        %v5976 = vrot.slane %v5974, 4
        %v5977 = vrot.slane %v5940, 5
        %v5978 = vsel %vm1657, %v5976, %v5977
        %v5979 = vrot.slane %v5977, 4
        %v5980 = vrot.slane %v5941, 5
        %v5981 = vsel %vm1657, %v5979, %v5980
        %v5982 = vrot.slane %v5980, 4
        %v5983 = vrot.slane %v5942, 5
        %v5984 = vsel %vm1657, %v5982, %v5983
        %5985 = vrot.lane.b32.xlu0 %v5957, 96
        %v5986 = vpop.permute.xlu0 %5985
        %5987 = vrot.lane.b32.xlu0 %v5960, 96
        %v5988 = vpop.permute.xlu0 %5987
        %5989 = vrot.lane.b32.xlu0 %v5963, 96
        %v5990 = vpop.permute.xlu0 %5989
        %5991 = vrot.lane.b32.xlu0 %v5966, 96
        %v5992 = vpop.permute.xlu0 %5991
        %5993 = vrot.lane.b32.xlu0 %v5969, 96
        %v5994 = vpop.permute.xlu0 %5993
        %5995 = vrot.lane.b32.xlu0 %v5972, 96
        %v5996 = vpop.permute.xlu0 %5995
        %5997 = vrot.lane.b32.xlu0 %v5975, 96
        %v5998 = vpop.permute.xlu0 %5997
        %5999 = vrot.lane.b32.xlu0 %v5978, 96
        %v6000 = vpop.permute.xlu0 %5999
        %6001 = vrot.lane.b32.xlu0 %v5981, 96
        %v6002 = vpop.permute.xlu0 %6001
        %6003 = vrot.lane.b32.xlu0 %v5984, 96
        %v6004 = vpop.permute.xlu0 %6003
        %vm6015 = vcmask 1044224
        %6016 = vst.msk [vmem:[#allocation7] sm:$0xf] %vm6015, %v5986
        %6017 = vst.msk [vmem:[#allocation7 + $0xc] sm:$0xf] %vm6015, %v5988
        %6018 = vst.msk [vmem:[#allocation7 + $0x18] sm:$0xf] %vm6015, %v5990
        %6019 = vst.msk [vmem:[#allocation7 + $0x24] sm:$0xf] %vm6015, %v5992
        %6020 = vst.msk [vmem:[#allocation7 + $0x30] sm:$0xf] %vm6015, %v5994
        %6021 = vst.msk [vmem:[#allocation7 + $0x3c] sm:$0xf] %vm6015, %v5996
        %6022 = vst.msk [vmem:[#allocation7 + $0x48] sm:$0xf] %vm6015, %v5998
        %6023 = vst.msk [vmem:[#allocation7 + $0x54] sm:$0xf] %vm6015, %v6000
        %6024 = vst.msk [vmem:[#allocation7 + $0x60] sm:$0xf] %vm6015, %v6002
        %6025 = vst.msk [vmem:[#allocation7 + $0x6c] sm:$0xf] %vm6015, %v6004
        %v6026 = vld [vmem:[#allocation3 + $0x4] sm:$0xe]
        %v6027 = vld [vmem:[#allocation3 + $0x8] sm:$0xf]
        %v6028 = vld [vmem:[#allocation3 + $0xc] sm:$0xf]
        %v6029 = vld [vmem:[#allocation3 + $0x10] sm:$0xf]
        %v6030 = vld [vmem:[#allocation3 + $0x14] sm:$0xf]
        %v6031 = vld [vmem:[#allocation3 + $0x18] sm:$0xf]
        %v6032 = vld [vmem:[#allocation3 + $0x1c] sm:$0xf]
        %v6033 = vld [vmem:[#allocation3 + $0x20] sm:$0xf]
        %v6034 = vld [vmem:[#allocation3 + $0x24] sm:$0xf]
        %v6035 = vld [vmem:[#allocation3 + $0x28] sm:$0xf]
        %v6036 = vld [vmem:[#allocation3 + $0x2c] sm:$0x3]
        %v6038 = vshrl.u32 %v6026, 16
        %v6040 = vrot.slane %v6038, 5
        %v6041 = vshll.u32 %v6026, 16
        %v6043 = vrot.slane %v6041, 6
        %v6044 = vor.u32 %v6040, %v6043
        %v6045 = vrot.slane %v6044, 4
        %v6047 = vshrl.u32 %v6027, 16
        %v6049 = vrot.slane %v6047, 5
        %v6050 = vshll.u32 %v6027, 16
        %v6052 = vrot.slane %v6050, 6
        %v6053 = vor.u32 %v6049, %v6052
        %v6054 = vsel %vm499, %v6045, %v6053
        %v6055 = vrot.slane %v6053, 4
        %v6057 = vshrl.u32 %v6028, 16
        %v6059 = vrot.slane %v6057, 5
        %v6060 = vshll.u32 %v6028, 16
        %v6062 = vrot.slane %v6060, 6
        %v6063 = vor.u32 %v6059, %v6062
        %v6064 = vsel %vm499, %v6055, %v6063
        %v6065 = vrot.slane %v6063, 4
        %v6067 = vshrl.u32 %v6029, 16
        %v6069 = vrot.slane %v6067, 5
        %v6070 = vshll.u32 %v6029, 16
        %v6072 = vrot.slane %v6070, 6
        %v6073 = vor.u32 %v6069, %v6072
        %v6074 = vsel %vm499, %v6065, %v6073
        %v6075 = vrot.slane %v6073, 4
        %v6077 = vshrl.u32 %v6030, 16
        %v6079 = vrot.slane %v6077, 5
        %v6080 = vshll.u32 %v6030, 16
        %v6082 = vrot.slane %v6080, 6
        %v6083 = vor.u32 %v6079, %v6082
        %v6084 = vsel %vm499, %v6075, %v6083
        %v6085 = vrot.slane %v6083, 4
        %v6087 = vshrl.u32 %v6031, 16
        %v6089 = vrot.slane %v6087, 5
        %v6090 = vshll.u32 %v6031, 16
        %v6092 = vrot.slane %v6090, 6
        %v6093 = vor.u32 %v6089, %v6092
        %v6094 = vsel %vm499, %v6085, %v6093
        %v6095 = vrot.slane %v6093, 4
        %v6097 = vshrl.u32 %v6032, 16
        %v6099 = vrot.slane %v6097, 5
        %v6100 = vshll.u32 %v6032, 16
        %v6102 = vrot.slane %v6100, 6
        %v6103 = vor.u32 %v6099, %v6102
        %v6104 = vsel %vm499, %v6095, %v6103
        %v6105 = vrot.slane %v6103, 4
        %v6107 = vshrl.u32 %v6033, 16
        %v6109 = vrot.slane %v6107, 5
        %v6110 = vshll.u32 %v6033, 16
        %v6112 = vrot.slane %v6110, 6
        %v6113 = vor.u32 %v6109, %v6112
        %v6114 = vsel %vm499, %v6105, %v6113
        %v6115 = vrot.slane %v6113, 4
        %v6117 = vshrl.u32 %v6034, 16
        %v6119 = vrot.slane %v6117, 5
        %v6120 = vshll.u32 %v6034, 16
        %v6122 = vrot.slane %v6120, 6
        %v6123 = vor.u32 %v6119, %v6122
        %v6124 = vsel %vm499, %v6115, %v6123
        %v6125 = vrot.slane %v6123, 4
        %v6127 = vshrl.u32 %v6035, 16
        %v6129 = vrot.slane %v6127, 5
        %v6130 = vshll.u32 %v6035, 16
        %v6132 = vrot.slane %v6130, 6
        %v6133 = vor.u32 %v6129, %v6132
        %v6134 = vsel %vm499, %v6125, %v6133
        %v6135 = vrot.slane %v6133, 4
        %v6137 = vshrl.u32 %v6036, 16
        %v6139 = vrot.slane %v6137, 5
        %v6140 = vshll.u32 %v6036, 16
        %v6142 = vrot.slane %v6140, 6
        %v6143 = vor.u32 %v6139, %v6142
        %v6144 = vsel %vm499, %v6135, %v6143
        %6155 = vst.msk [vmem:[#allocation7 + $0x4] sm:$0xf] %vm338, %v6054
        %6156 = vst.msk [vmem:[#allocation7 + $0x10] sm:$0xf] %vm338, %v6064
        %6157 = vst.msk [vmem:[#allocation7 + $0x1c] sm:$0xf] %vm338, %v6074
        %6158 = vst.msk [vmem:[#allocation7 + $0x28] sm:$0xf] %vm338, %v6084
        %6159 = vst.msk [vmem:[#allocation7 + $0x34] sm:$0xf] %vm338, %v6094
        %6160 = vst.msk [vmem:[#allocation7 + $0x40] sm:$0xf] %vm338, %v6104
        %6161 = vst.msk [vmem:[#allocation7 + $0x4c] sm:$0xf] %vm338, %v6114
        %6162 = vst.msk [vmem:[#allocation7 + $0x58] sm:$0xf] %vm338, %v6124
        %6163 = vst.msk [vmem:[#allocation7 + $0x64] sm:$0xf] %vm338, %v6134
        %6164 = vst.msk [vmem:[#allocation7 + $0x70] sm:$0xf] %vm338, %v6144
        %v6165 = vld [vmem:[#allocation3 + $0x4] sm:$0xc]
        %v6166 = vld [vmem:[#allocation3 + $0x8] sm:$0xf]
        %v6167 = vld [vmem:[#allocation3 + $0xc] sm:$0xf]
        %v6168 = vld [vmem:[#allocation3 + $0x10] sm:$0xf]
        %v6169 = vld [vmem:[#allocation3 + $0x14] sm:$0xf]
        %v6170 = vld [vmem:[#allocation3 + $0x18] sm:$0xf]
        %v6171 = vld [vmem:[#allocation3 + $0x1c] sm:$0xf]
        %v6172 = vld [vmem:[#allocation3 + $0x20] sm:$0xf]
        %v6173 = vld [vmem:[#allocation3 + $0x24] sm:$0xf]
        %v6174 = vld [vmem:[#allocation3 + $0x28] sm:$0xf]
        %v6175 = vld [vmem:[#allocation3 + $0x2c] sm:$0x3]
        %v6187 = vrot.slane %v6165, 6
        %v6188 = vrot.slane %v6187, 4
        %v6189 = vrot.slane %v6166, 6
        %v6190 = vsel %vm2866, %v6188, %v6189
        %v6191 = vrot.slane %v6189, 4
        %v6192 = vrot.slane %v6167, 6
        %v6193 = vsel %vm2866, %v6191, %v6192
        %v6194 = vrot.slane %v6192, 4
        %v6195 = vrot.slane %v6168, 6
        %v6196 = vsel %vm2866, %v6194, %v6195
        %v6197 = vrot.slane %v6195, 4
        %v6198 = vrot.slane %v6169, 6
        %v6199 = vsel %vm2866, %v6197, %v6198
        %v6200 = vrot.slane %v6198, 4
        %v6201 = vrot.slane %v6170, 6
        %v6202 = vsel %vm2866, %v6200, %v6201
        %v6203 = vrot.slane %v6201, 4
        %v6204 = vrot.slane %v6171, 6
        %v6205 = vsel %vm2866, %v6203, %v6204
        %v6206 = vrot.slane %v6204, 4
        %v6207 = vrot.slane %v6172, 6
        %v6208 = vsel %vm2866, %v6206, %v6207
        %v6209 = vrot.slane %v6207, 4
        %v6210 = vrot.slane %v6173, 6
        %v6211 = vsel %vm2866, %v6209, %v6210
        %v6212 = vrot.slane %v6210, 4
        %v6213 = vrot.slane %v6174, 6
        %v6214 = vsel %vm2866, %v6212, %v6213
        %v6215 = vrot.slane %v6213, 4
        %v6216 = vrot.slane %v6175, 6
        %v6217 = vsel %vm2866, %v6215, %v6216
        %6218 = vrot.lane.b32.xlu0 %v6190, 32
        %v6219 = vpop.permute.xlu0 %6218
        %6220 = vrot.lane.b32.xlu0 %v6193, 32
        %v6221 = vpop.permute.xlu0 %6220
        %6222 = vrot.lane.b32.xlu0 %v6196, 32
        %v6223 = vpop.permute.xlu0 %6222
        %6224 = vrot.lane.b32.xlu0 %v6199, 32
        %v6225 = vpop.permute.xlu0 %6224
        %6226 = vrot.lane.b32.xlu0 %v6202, 32
        %v6227 = vpop.permute.xlu0 %6226
        %6228 = vrot.lane.b32.xlu0 %v6205, 32
        %v6229 = vpop.permute.xlu0 %6228
        %6230 = vrot.lane.b32.xlu0 %v6208, 32
        %v6231 = vpop.permute.xlu0 %6230
        %6232 = vrot.lane.b32.xlu0 %v6211, 32
        %v6233 = vpop.permute.xlu0 %6232
        %6234 = vrot.lane.b32.xlu0 %v6214, 32
        %v6235 = vpop.permute.xlu0 %6234
        %6236 = vrot.lane.b32.xlu0 %v6217, 32
        %v6237 = vpop.permute.xlu0 %6236
        %6248 = vst.msk [vmem:[#allocation7 + $0x4] sm:$0xf] %vm5827, %v6219
        %6249 = vst.msk [vmem:[#allocation7 + $0x10] sm:$0xf] %vm5827, %v6221
        %6250 = vst.msk [vmem:[#allocation7 + $0x1c] sm:$0xf] %vm5827, %v6223
        %6251 = vst.msk [vmem:[#allocation7 + $0x28] sm:$0xf] %vm5827, %v6225
        %6252 = vst.msk [vmem:[#allocation7 + $0x34] sm:$0xf] %vm5827, %v6227
        %6253 = vst.msk [vmem:[#allocation7 + $0x40] sm:$0xf] %vm5827, %v6229
        %6254 = vst.msk [vmem:[#allocation7 + $0x4c] sm:$0xf] %vm5827, %v6231
        %6255 = vst.msk [vmem:[#allocation7 + $0x58] sm:$0xf] %vm5827, %v6233
        %6256 = vst.msk [vmem:[#allocation7 + $0x64] sm:$0xf] %vm5827, %v6235
        %6257 = vst.msk [vmem:[#allocation7 + $0x70] sm:$0xf] %vm5827, %v6237
        %v6258 = vld [vmem:[#allocation3 + $0x8] sm:$0xc]
        %v6259 = vld [vmem:[#allocation3 + $0xc] sm:$0xf]
        %v6260 = vld [vmem:[#allocation3 + $0x10] sm:$0xf]
        %v6261 = vld [vmem:[#allocation3 + $0x14] sm:$0xf]
        %v6262 = vld [vmem:[#allocation3 + $0x18] sm:$0xf]
        %v6263 = vld [vmem:[#allocation3 + $0x1c] sm:$0xf]
        %v6264 = vld [vmem:[#allocation3 + $0x20] sm:$0xf]
        %v6265 = vld [vmem:[#allocation3 + $0x24] sm:$0xf]
        %v6266 = vld [vmem:[#allocation3 + $0x28] sm:$0xf]
        %v6267 = vld [vmem:[#allocation3 + $0x2c] sm:$0xf]
        %v6268 = vld [vmem:[#allocation3 + $0x30] sm:$0x3]
        %v6280 = vrot.slane %v6258, 6
        %v6281 = vrot.slane %v6280, 4
        %v6282 = vrot.slane %v6259, 6
        %v6283 = vsel %vm2866, %v6281, %v6282
        %v6284 = vrot.slane %v6282, 4
        %v6285 = vrot.slane %v6260, 6
        %v6286 = vsel %vm2866, %v6284, %v6285
        %v6287 = vrot.slane %v6285, 4
        %v6288 = vrot.slane %v6261, 6
        %v6289 = vsel %vm2866, %v6287, %v6288
        %v6290 = vrot.slane %v6288, 4
        %v6291 = vrot.slane %v6262, 6
        %v6292 = vsel %vm2866, %v6290, %v6291
        %v6293 = vrot.slane %v6291, 4
        %v6294 = vrot.slane %v6263, 6
        %v6295 = vsel %vm2866, %v6293, %v6294
        %v6296 = vrot.slane %v6294, 4
        %v6297 = vrot.slane %v6264, 6
        %v6298 = vsel %vm2866, %v6296, %v6297
        %v6299 = vrot.slane %v6297, 4
        %v6300 = vrot.slane %v6265, 6
        %v6301 = vsel %vm2866, %v6299, %v6300
        %v6302 = vrot.slane %v6300, 4
        %v6303 = vrot.slane %v6266, 6
        %v6304 = vsel %vm2866, %v6302, %v6303
        %v6305 = vrot.slane %v6303, 4
        %v6306 = vrot.slane %v6267, 6
        %v6307 = vsel %vm2866, %v6305, %v6306
        %v6308 = vrot.slane %v6306, 4
        %v6309 = vrot.slane %v6268, 6
        %v6310 = vsel %vm2866, %v6308, %v6309
        %6311 = vrot.lane.b32.xlu0 %v6283, 64
        %v6312 = vpop.permute.xlu0 %6311
        %6313 = vrot.lane.b32.xlu0 %v6286, 64
        %v6314 = vpop.permute.xlu0 %6313
        %6315 = vrot.lane.b32.xlu0 %v6289, 64
        %v6316 = vpop.permute.xlu0 %6315
        %6317 = vrot.lane.b32.xlu0 %v6292, 64
        %v6318 = vpop.permute.xlu0 %6317
        %6319 = vrot.lane.b32.xlu0 %v6295, 64
        %v6320 = vpop.permute.xlu0 %6319
        %6321 = vrot.lane.b32.xlu0 %v6298, 64
        %v6322 = vpop.permute.xlu0 %6321
        %6323 = vrot.lane.b32.xlu0 %v6301, 64
        %v6324 = vpop.permute.xlu0 %6323
        %6325 = vrot.lane.b32.xlu0 %v6304, 64
        %v6326 = vpop.permute.xlu0 %6325
        %6327 = vrot.lane.b32.xlu0 %v6307, 64
        %v6328 = vpop.permute.xlu0 %6327
        %6329 = vrot.lane.b32.xlu0 %v6310, 64
        %v6330 = vpop.permute.xlu0 %6329
        %6341 = vst.msk [vmem:[#allocation7 + $0x4] sm:$0xf] %vm5921, %v6312
        %6342 = vst.msk [vmem:[#allocation7 + $0x10] sm:$0xf] %vm5921, %v6314
        %6343 = vst.msk [vmem:[#allocation7 + $0x1c] sm:$0xf] %vm5921, %v6316
        %6344 = vst.msk [vmem:[#allocation7 + $0x28] sm:$0xf] %vm5921, %v6318
        %6345 = vst.msk [vmem:[#allocation7 + $0x34] sm:$0xf] %vm5921, %v6320
        %6346 = vst.msk [vmem:[#allocation7 + $0x40] sm:$0xf] %vm5921, %v6322
        %6347 = vst.msk [vmem:[#allocation7 + $0x4c] sm:$0xf] %vm5921, %v6324
        %6348 = vst.msk [vmem:[#allocation7 + $0x58] sm:$0xf] %vm5921, %v6326
        %6349 = vst.msk [vmem:[#allocation7 + $0x64] sm:$0xf] %vm5921, %v6328
        %6350 = vst.msk [vmem:[#allocation7 + $0x70] sm:$0xf] %vm5921, %v6330
        %v6351 = vld [vmem:[#allocation3 + $0x8] sm:$0xc]
        %v6352 = vld [vmem:[#allocation3 + $0xc] sm:$0xf]
        %v6353 = vld [vmem:[#allocation3 + $0x10] sm:$0xf]
        %v6354 = vld [vmem:[#allocation3 + $0x14] sm:$0xf]
        %v6355 = vld [vmem:[#allocation3 + $0x18] sm:$0xf]
        %v6356 = vld [vmem:[#allocation3 + $0x1c] sm:$0xf]
        %v6357 = vld [vmem:[#allocation3 + $0x20] sm:$0xf]
        %v6358 = vld [vmem:[#allocation3 + $0x24] sm:$0xf]
        %v6359 = vld [vmem:[#allocation3 + $0x28] sm:$0xf]
        %v6360 = vld [vmem:[#allocation3 + $0x2c] sm:$0xf]
        %v6361 = vld [vmem:[#allocation3 + $0x30] sm:$0x7]
        %v6363 = vshrl.u32 %v6351, 16
        %v6365 = vrot.slane %v6363, 6
        %v6366 = vshll.u32 %v6351, 16
        %v6368 = vrot.slane %v6366, 7
        %v6369 = vor.u32 %v6365, %v6368
        %v6370 = vrot.slane %v6369, 4
        %v6372 = vshrl.u32 %v6352, 16
        %v6374 = vrot.slane %v6372, 6
        %v6375 = vshll.u32 %v6352, 16
        %v6377 = vrot.slane %v6375, 7
        %v6378 = vor.u32 %v6374, %v6377
        %v6379 = vsel %vm464, %v6370, %v6378
        %v6380 = vrot.slane %v6378, 4
        %v6382 = vshrl.u32 %v6353, 16
        %v6384 = vrot.slane %v6382, 6
        %v6385 = vshll.u32 %v6353, 16
        %v6387 = vrot.slane %v6385, 7
        %v6388 = vor.u32 %v6384, %v6387
        %v6389 = vsel %vm464, %v6380, %v6388
        %v6390 = vrot.slane %v6388, 4
        %v6392 = vshrl.u32 %v6354, 16
        %v6394 = vrot.slane %v6392, 6
        %v6395 = vshll.u32 %v6354, 16
        %v6397 = vrot.slane %v6395, 7
        %v6398 = vor.u32 %v6394, %v6397
        %v6399 = vsel %vm464, %v6390, %v6398
        %v6400 = vrot.slane %v6398, 4
        %v6402 = vshrl.u32 %v6355, 16
        %v6404 = vrot.slane %v6402, 6
        %v6405 = vshll.u32 %v6355, 16
        %v6407 = vrot.slane %v6405, 7
        %v6408 = vor.u32 %v6404, %v6407
        %v6409 = vsel %vm464, %v6400, %v6408
        %v6410 = vrot.slane %v6408, 4
        %v6412 = vshrl.u32 %v6356, 16
        %v6414 = vrot.slane %v6412, 6
        %v6415 = vshll.u32 %v6356, 16
        %v6417 = vrot.slane %v6415, 7
        %v6418 = vor.u32 %v6414, %v6417
        %v6419 = vsel %vm464, %v6410, %v6418
        %v6420 = vrot.slane %v6418, 4
        %v6422 = vshrl.u32 %v6357, 16
        %v6424 = vrot.slane %v6422, 6
        %v6425 = vshll.u32 %v6357, 16
        %v6427 = vrot.slane %v6425, 7
        %v6428 = vor.u32 %v6424, %v6427
        %v6429 = vsel %vm464, %v6420, %v6428
        %v6430 = vrot.slane %v6428, 4
        %v6432 = vshrl.u32 %v6358, 16
        %v6434 = vrot.slane %v6432, 6
        %v6435 = vshll.u32 %v6358, 16
        %v6437 = vrot.slane %v6435, 7
        %v6438 = vor.u32 %v6434, %v6437
        %v6439 = vsel %vm464, %v6430, %v6438
        %v6440 = vrot.slane %v6438, 4
        %v6442 = vshrl.u32 %v6359, 16
        %v6444 = vrot.slane %v6442, 6
        %v6445 = vshll.u32 %v6359, 16
        %v6447 = vrot.slane %v6445, 7
        %v6448 = vor.u32 %v6444, %v6447
        %v6449 = vsel %vm464, %v6440, %v6448
        %v6450 = vrot.slane %v6448, 4
        %v6452 = vshrl.u32 %v6360, 16
        %v6454 = vrot.slane %v6452, 6
        %v6455 = vshll.u32 %v6360, 16
        %v6457 = vrot.slane %v6455, 7
        %v6458 = vor.u32 %v6454, %v6457
        %v6459 = vsel %vm464, %v6450, %v6458
        %v6460 = vrot.slane %v6458, 4
        %v6462 = vshrl.u32 %v6361, 16
        %v6464 = vrot.slane %v6462, 6
        %v6465 = vshll.u32 %v6361, 16
        %v6467 = vrot.slane %v6465, 7
        %v6468 = vor.u32 %v6464, %v6467
        %v6469 = vsel %vm464, %v6460, %v6468
        %6470 = vrot.lane.b32.xlu0 %v6379, 96
        %v6471 = vpop.permute.xlu0 %6470
        %6472 = vrot.lane.b32.xlu0 %v6389, 96
        %v6473 = vpop.permute.xlu0 %6472
        %6474 = vrot.lane.b32.xlu0 %v6399, 96
        %v6475 = vpop.permute.xlu0 %6474
        %6476 = vrot.lane.b32.xlu0 %v6409, 96
        %v6477 = vpop.permute.xlu0 %6476
        %6478 = vrot.lane.b32.xlu0 %v6419, 96
        %v6479 = vpop.permute.xlu0 %6478
        %6480 = vrot.lane.b32.xlu0 %v6429, 96
        %v6481 = vpop.permute.xlu0 %6480
        %6482 = vrot.lane.b32.xlu0 %v6439, 96
        %v6483 = vpop.permute.xlu0 %6482
        %6484 = vrot.lane.b32.xlu0 %v6449, 96
        %v6485 = vpop.permute.xlu0 %6484
        %6486 = vrot.lane.b32.xlu0 %v6459, 96
        %v6487 = vpop.permute.xlu0 %6486
        %6488 = vrot.lane.b32.xlu0 %v6469, 96
        %v6489 = vpop.permute.xlu0 %6488
        %6500 = vst.msk [vmem:[#allocation7 + $0x4] sm:$0xf] %vm6015, %v6471
        %6501 = vst.msk [vmem:[#allocation7 + $0x10] sm:$0xf] %vm6015, %v6473
        %6502 = vst.msk [vmem:[#allocation7 + $0x1c] sm:$0xf] %vm6015, %v6475
        %6503 = vst.msk [vmem:[#allocation7 + $0x28] sm:$0xf] %vm6015, %v6477
        %6504 = vst.msk [vmem:[#allocation7 + $0x34] sm:$0xf] %vm6015, %v6479
        %6505 = vst.msk [vmem:[#allocation7 + $0x40] sm:$0xf] %vm6015, %v6481
        %6506 = vst.msk [vmem:[#allocation7 + $0x4c] sm:$0xf] %vm6015, %v6483
        %6507 = vst.msk [vmem:[#allocation7 + $0x58] sm:$0xf] %vm6015, %v6485
        %6508 = vst.msk [vmem:[#allocation7 + $0x64] sm:$0xf] %vm6015, %v6487
        %6509 = vst.msk [vmem:[#allocation7 + $0x70] sm:$0xf] %vm6015, %v6489
        %v6510 = vld [vmem:[#allocation3 + $0x8] sm:$0x8]
        %v6511 = vld [vmem:[#allocation3 + $0xc] sm:$0xf]
        %v6512 = vld [vmem:[#allocation3 + $0x10] sm:$0xf]
        %v6513 = vld [vmem:[#allocation3 + $0x14] sm:$0xf]
        %v6514 = vld [vmem:[#allocation3 + $0x18] sm:$0xf]
        %v6515 = vld [vmem:[#allocation3 + $0x1c] sm:$0xf]
        %v6516 = vld [vmem:[#allocation3 + $0x20] sm:$0xf]
        %v6517 = vld [vmem:[#allocation3 + $0x24] sm:$0xf]
        %v6518 = vld [vmem:[#allocation3 + $0x28] sm:$0xf]
        %v6519 = vld [vmem:[#allocation3 + $0x2c] sm:$0xf]
        %v6520 = vld [vmem:[#allocation3 + $0x30] sm:$0x7]
        %v6532 = vrot.slane %v6510, 7
        %v6533 = vrot.slane %v6532, 4
        %v6534 = vrot.slane %v6511, 7
        %v6535 = vsel %vm4075, %v6533, %v6534
        %v6536 = vrot.slane %v6534, 4
        %v6537 = vrot.slane %v6512, 7
        %v6538 = vsel %vm4075, %v6536, %v6537
        %v6539 = vrot.slane %v6537, 4
        %v6540 = vrot.slane %v6513, 7
        %v6541 = vsel %vm4075, %v6539, %v6540
        %v6542 = vrot.slane %v6540, 4
        %v6543 = vrot.slane %v6514, 7
        %v6544 = vsel %vm4075, %v6542, %v6543
        %v6545 = vrot.slane %v6543, 4
        %v6546 = vrot.slane %v6515, 7
        %v6547 = vsel %vm4075, %v6545, %v6546
        %v6548 = vrot.slane %v6546, 4
        %v6549 = vrot.slane %v6516, 7
        %v6550 = vsel %vm4075, %v6548, %v6549
        %v6551 = vrot.slane %v6549, 4
        %v6552 = vrot.slane %v6517, 7
        %v6553 = vsel %vm4075, %v6551, %v6552
        %v6554 = vrot.slane %v6552, 4
        %v6555 = vrot.slane %v6518, 7
        %v6556 = vsel %vm4075, %v6554, %v6555
        %v6557 = vrot.slane %v6555, 4
        %v6558 = vrot.slane %v6519, 7
        %v6559 = vsel %vm4075, %v6557, %v6558
        %v6560 = vrot.slane %v6558, 4
        %v6561 = vrot.slane %v6520, 7
        %v6562 = vsel %vm4075, %v6560, %v6561
        %6573 = vst.msk [vmem:[#allocation7 + $0x8] sm:$0xf] %vm338, %v6535
        %6574 = vst.msk [vmem:[#allocation7 + $0x14] sm:$0xf] %vm338, %v6538
        %6575 = vst.msk [vmem:[#allocation7 + $0x20] sm:$0xf] %vm338, %v6541
        %6576 = vst.msk [vmem:[#allocation7 + $0x2c] sm:$0xf] %vm338, %v6544
        %6577 = vst.msk [vmem:[#allocation7 + $0x38] sm:$0xf] %vm338, %v6547
        %6578 = vst.msk [vmem:[#allocation7 + $0x44] sm:$0xf] %vm338, %v6550
        %6579 = vst.msk [vmem:[#allocation7 + $0x50] sm:$0xf] %vm338, %v6553
        %6580 = vst.msk [vmem:[#allocation7 + $0x5c] sm:$0xf] %vm338, %v6556
        %6581 = vst.msk [vmem:[#allocation7 + $0x68] sm:$0xf] %vm338, %v6559
        %6582 = vst.msk [vmem:[#allocation7 + $0x74] sm:$0xf] %vm338, %v6562
        %v6583 = vld [vmem:[#allocation7] sm:$0xff]
        %v6584 = vld [vmem:[#allocation7 + $0x8] sm:$0xf]
        %v6585 = vld [vmem:[#allocation7 + $0xc] sm:$0xff]
        %v6586 = vld [vmem:[#allocation7 + $0x14] sm:$0xf]
        %v6587 = vld [vmem:[#allocation7 + $0x18] sm:$0xff]
        %v6588 = vld [vmem:[#allocation7 + $0x20] sm:$0xf]
        %v6589 = vld [vmem:[#allocation7 + $0x24] sm:$0xff]
        %v6590 = vld [vmem:[#allocation7 + $0x2c] sm:$0xf]
        %v6591 = vld [vmem:[#allocation7 + $0x30] sm:$0xff]
        %v6592 = vld [vmem:[#allocation7 + $0x38] sm:$0xf]
        %v6593 = vld [vmem:[#allocation7 + $0x3c] sm:$0xff]
        %v6594 = vld [vmem:[#allocation7 + $0x44] sm:$0xf]
        %v6595 = vld [vmem:[#allocation7 + $0x48] sm:$0xff]
        %v6596 = vld [vmem:[#allocation7 + $0x50] sm:$0xf]
        %v6597 = vld [vmem:[#allocation7 + $0x54] sm:$0xff]
        %v6598 = vld [vmem:[#allocation7 + $0x5c] sm:$0xf]
        %v6599 = vld [vmem:[#allocation7 + $0x60] sm:$0xff]
        %v6600 = vld [vmem:[#allocation7 + $0x68] sm:$0xf]
        %v6601 = vld [vmem:[#allocation7 + $0x6c] sm:$0xff]
        %v6602 = vld [vmem:[#allocation7 + $0x74] sm:$0xf]
        %v6603 = vld [vmem:[%s2] sm:$0xf]
        %v6604 = vld [vmem:[%s2 + $0x4] sm:$0xf]
        %v6605 = vld [vmem:[%s2 + $0x8] sm:$0xf]
        %v6606 = vld [vmem:[%s2 + $0xc] sm:$0xf]
        %v6607 = vld [vmem:[%s2 + $0x10] sm:$0xf]
        %v6608 = vld [vmem:[%s2 + $0x14] sm:$0xf]
        %v6609 = vld [vmem:[%s2 + $0x18] sm:$0xf]
        %v6610 = vld [vmem:[%s2 + $0x1c] sm:$0xf]
        %v6611 = vld [vmem:[%s2 + $0x20] sm:$0xf]
        %v6612 = vld [vmem:[%s2 + $0x24] sm:$0xf]
        %v6613 = vld [vmem:[%s2 + $0x28] sm:$0xf]
        %v6614 = vld [vmem:[%s2 + $0x2c] sm:$0xf]
        %v6615 = vld [vmem:[%s2 + $0x30] sm:$0xf]
        %v6616 = vld [vmem:[%s2 + $0x34] sm:$0xf]
        %v6617 = vld [vmem:[%s2 + $0x38] sm:$0xf]
        %v6618 = vld [vmem:[%s2 + $0x3c] sm:$0xf]
        %v6619 = vld [vmem:[%s2 + $0x40] sm:$0xf]
        %v6620 = vld [vmem:[%s2 + $0x44] sm:$0xf]
        %v6621 = vld [vmem:[%s2 + $0x48] sm:$0xf]
        %v6622 = vld [vmem:[%s2 + $0x4c] sm:$0xf]
        %v6623 = vld [vmem:[%s2 + $0x50] sm:$0xf]
        %v6624 = vld [vmem:[%s2 + $0x54] sm:$0xf]
        %v6625 = vld [vmem:[%s2 + $0x58] sm:$0xf]
        %v6626 = vld [vmem:[%s2 + $0x5c] sm:$0xf]
        %v6627 = vld [vmem:[%s2 + $0x60] sm:$0xf]
        %v6628 = vld [vmem:[%s2 + $0x64] sm:$0xf]
        %v6629 = vld [vmem:[%s2 + $0x68] sm:$0xf]
        %v6630 = vld [vmem:[%s2 + $0x6c] sm:$0xf]
        %v6631 = vld [vmem:[%s2 + $0x70] sm:$0xf]
        %v6632 = vld [vmem:[%s2 + $0x74] sm:$0xf]
        %v6633 = vld [vmem:[%s2 + $0x78] sm:$0xf]
        %v6634 = vld [vmem:[%s2 + $0x7c] sm:$0xf]
        %v6635 = vld [vmem:[%s2 + $0x80] sm:$0xf]
        %v6636 = vld [vmem:[%s2 + $0x84] sm:$0xf]
        %v6637 = vld [vmem:[%s2 + $0x88] sm:$0xf]
        %v6638 = vld [vmem:[%s2 + $0x8c] sm:$0xf]
        %s6639 = scalar_lea.vmem %s5, 4
        %v6640 = vld [vmem:[%s6639] sm:$0x7]
        %v6641 = vperm.slane %v6640, 0
        %v6662 = vunpack.c.l.b16 %v6583
        %v6663 = vunpack.c.h.b16 %v6583
        %v6664 = vunpack.c.l.b16 %v6584
        %v6665 = vunpack.c.l.b16 %v6585
        %v6666 = vunpack.c.h.b16 %v6585
        %v6667 = vunpack.c.l.b16 %v6586
        %v6668 = vunpack.c.l.b16 %v6587
        %v6669 = vunpack.c.h.b16 %v6587
        %v6670 = vunpack.c.l.b16 %v6588
        %v6671 = vunpack.c.l.b16 %v6589
        %v6672 = vunpack.c.h.b16 %v6589
        %v6673 = vunpack.c.l.b16 %v6590
        %v6674 = vunpack.c.l.b16 %v6591
        %v6675 = vunpack.c.h.b16 %v6591
        %v6676 = vunpack.c.l.b16 %v6592
        %v6677 = vunpack.c.l.b16 %v6593
        %v6678 = vunpack.c.h.b16 %v6593
        %v6679 = vunpack.c.l.b16 %v6594
        %v6680 = vunpack.c.l.b16 %v6595
        %v6681 = vunpack.c.h.b16 %v6595
        %v6682 = vunpack.c.l.b16 %v6596
        %v6683 = vunpack.c.l.b16 %v6597
        %v6684 = vunpack.c.h.b16 %v6597
        %v6685 = vunpack.c.l.b16 %v6598
        %v6686 = vunpack.c.l.b16 %v6599
        %v6687 = vunpack.c.h.b16 %v6599
        %v6688 = vunpack.c.l.b16 %v6600
        %v6689 = vunpack.c.l.b16 %v6601
        %v6690 = vunpack.c.h.b16 %v6601
        %v6691 = vunpack.c.l.b16 %v6602
        %v6692 = vpack.c.b16 %v6665, %v6662
        %v6693 = vpack.c.b16 %v6666, %v6663
        %v6694 = vpack.c.b16 %v6667, %v6664
        %v6695 = vpack.c.b16 %v6671, %v6668
        %v6696 = vpack.c.b16 %v6672, %v6669
        %v6697 = vpack.c.b16 %v6673, %v6670
        %v6698 = vpack.c.b16 %v6677, %v6674
        %v6699 = vpack.c.b16 %v6678, %v6675
        %v6700 = vpack.c.b16 %v6679, %v6676
        %v6701 = vpack.c.b16 %v6683, %v6680
        %v6702 = vpack.c.b16 %v6684, %v6681
        %v6703 = vpack.c.b16 %v6685, %v6682
        %v6704 = vpack.c.b16 %v6689, %v6686
        %v6705 = vpack.c.b16 %v6690, %v6687
        %v6706 = vpack.c.b16 %v6691, %v6688
        %v6753 = vunpack.c.l.b16 %v6603
        %v6754 = vunpack.c.l.b16 %v6604
        %v6755 = vunpack.c.l.b16 %v6605
        %v6756 = vunpack.c.l.b16 %v6606
        %v6757 = vunpack.c.l.b16 %v6607
        %v6758 = vunpack.c.l.b16 %v6608
        %v6759 = vunpack.c.l.b16 %v6609
        %v6760 = vunpack.c.l.b16 %v6610
        %v6761 = vunpack.c.l.b16 %v6611
        %v6762 = vunpack.c.l.b16 %v6612
        %v6763 = vunpack.c.l.b16 %v6613
        %v6764 = vunpack.c.l.b16 %v6614
        %v6765 = vunpack.c.l.b16 %v6615
        %v6766 = vunpack.c.l.b16 %v6616
        %v6767 = vunpack.c.l.b16 %v6617
        %v6768 = vunpack.c.l.b16 %v6618
        %v6769 = vunpack.c.l.b16 %v6619
        %v6770 = vunpack.c.l.b16 %v6620
        %v6771 = vunpack.c.l.b16 %v6621
        %v6772 = vunpack.c.l.b16 %v6622
        %v6773 = vunpack.c.l.b16 %v6623
        %v6774 = vunpack.c.l.b16 %v6624
        %v6775 = vunpack.c.l.b16 %v6625
        %v6776 = vunpack.c.l.b16 %v6626
        %v6777 = vunpack.c.l.b16 %v6627
        %v6778 = vunpack.c.l.b16 %v6628
        %v6779 = vunpack.c.l.b16 %v6629
        %v6780 = vunpack.c.l.b16 %v6630
        %v6781 = vunpack.c.l.b16 %v6631
        %v6782 = vunpack.c.l.b16 %v6632
        %v6783 = vunpack.c.l.b16 %v6633
        %v6784 = vunpack.c.l.b16 %v6634
        %v6785 = vunpack.c.l.b16 %v6635
        %v6786 = vunpack.c.l.b16 %v6636
        %v6787 = vunpack.c.l.b16 %v6637
        %v6788 = vunpack.c.l.b16 %v6638
        %v6789 = vpack.c.b16 %v6754, %v6753
        %v6790 = vpack.c.b16 %v6756, %v6755
        %v6791 = vpack.c.b16 %v6758, %v6757
        %v6792 = vpack.c.b16 %v6760, %v6759
        %v6793 = vpack.c.b16 %v6762, %v6761
        %v6794 = vpack.c.b16 %v6764, %v6763
        %v6795 = vpack.c.b16 %v6766, %v6765
        %v6796 = vpack.c.b16 %v6768, %v6767
        %v6797 = vpack.c.b16 %v6770, %v6769
        %v6798 = vpack.c.b16 %v6772, %v6771
        %v6799 = vpack.c.b16 %v6774, %v6773
        %v6800 = vpack.c.b16 %v6776, %v6775
        %v6801 = vpack.c.b16 %v6778, %v6777
        %v6802 = vpack.c.b16 %v6780, %v6779
        %v6803 = vpack.c.b16 %v6782, %v6781
        %v6804 = vpack.c.b16 %v6784, %v6783
        %v6805 = vpack.c.b16 %v6786, %v6785
        %v6806 = vpack.c.b16 %v6788, %v6787
        %vm6825 = vcmask 261120
        %v6827 = vsel %vm6825, %v6694, 0
        %v6830 = vsel %vm6825, %v6697, 0
        %v6833 = vsel %vm6825, %v6700, 0
        %v6836 = vsel %vm6825, %v6703, 0
        %v6839 = vsel %vm6825, %v6706, 0
        %6841 = vmatpush.bf16.msra.mxu0 %v6796
        %6842 = vmatpush.bf16.msra.mxu0 %v6795
        %6843 = vmatpush.bf16.msra.mxu0 %v6794
        %6844 = vmatpush.bf16.msra.mxu0 %v6793
        %6845 = vmatpush.bf16.msra.mxu0 %v6792
        %6846 = vmatpush.bf16.msra.mxu0 %v6791
        %6847 = vmatpush.bf16.msra.mxu0 %v6790
        %6848 = vmatpush.bf16.msra.mxu0 %v6789
        %6849 = vmatmul.bf16.gmra.mxu0 %v6692
        %v6850 = vpop.f32.mrf.mxu0
        %v6851 = vadd.f32 %v6641, %v6850
        %v6852 = vpop.f32.mrf.mxu0
        %v6853 = vadd.f32 %v6641, %v6852
        %6854 = vmatmul.bf16.gmra.mxu0 %v6695
        %v6855 = vpop.f32.mrf.mxu0
        %v6856 = vadd.f32 %v6641, %v6855
        %v6857 = vpop.f32.mrf.mxu0
        %v6858 = vadd.f32 %v6641, %v6857
        %6859 = vmatmul.bf16.gmra.mxu0 %v6698
        %v6860 = vpop.f32.mrf.mxu0
        %v6861 = vadd.f32 %v6641, %v6860
        %v6862 = vpop.f32.mrf.mxu0
        %v6863 = vadd.f32 %v6641, %v6862
        %6864 = vmatmul.bf16.gmra.mxu0 %v6701
        %v6865 = vpop.f32.mrf.mxu0
        %v6866 = vadd.f32 %v6641, %v6865
        %v6867 = vpop.f32.mrf.mxu0
        %v6868 = vadd.f32 %v6641, %v6867
        %6869 = vmatmul.bf16.gmra.mxu0 %v6704
        %v6870 = vpop.f32.mrf.mxu0
        %v6871 = vadd.f32 %v6641, %v6870
        %v6872 = vpop.f32.mrf.mxu0
        %v6873 = vadd.f32 %v6641, %v6872
        %6874 = vdwg.mxu0
        %6875 = vmatpush.bf16.msra.mxu0 %v6804
        %6876 = vmatpush.bf16.msra.mxu0 %v6803
        %6877 = vmatpush.bf16.msra.mxu0 %v6802
        %6878 = vmatpush.bf16.msra.mxu0 %v6801
        %6879 = vmatpush.bf16.msra.mxu0 %v6800
        %6880 = vmatpush.bf16.msra.mxu0 %v6799
        %6881 = vmatpush.bf16.msra.mxu0 %v6798
        %6882 = vmatpush.bf16.msra.mxu0 %v6797
        %6883 = vmatmul.bf16.gmra.mxu0 %v6693
        %v6884 = vpop.f32.mrf.mxu0
        %v6885 = vadd.f32 %v6851, %v6884
        %v6886 = vpop.f32.mrf.mxu0
        %v6887 = vadd.f32 %v6853, %v6886
        %6888 = vmatmul.bf16.gmra.mxu0 %v6696
        %v6889 = vpop.f32.mrf.mxu0
        %v6890 = vadd.f32 %v6856, %v6889
        %v6891 = vpop.f32.mrf.mxu0
        %v6892 = vadd.f32 %v6858, %v6891
        %6893 = vmatmul.bf16.gmra.mxu0 %v6699
        %v6894 = vpop.f32.mrf.mxu0
        %v6895 = vadd.f32 %v6861, %v6894
        %v6896 = vpop.f32.mrf.mxu0
        %v6897 = vadd.f32 %v6863, %v6896
        %6898 = vmatmul.bf16.gmra.mxu0 %v6702
        %v6899 = vpop.f32.mrf.mxu0
        %v6900 = vadd.f32 %v6866, %v6899
        %v6901 = vpop.f32.mrf.mxu0
        %v6902 = vadd.f32 %v6868, %v6901
        %6903 = vmatmul.bf16.gmra.mxu0 %v6705
        %v6904 = vpop.f32.mrf.mxu0
        %v6905 = vadd.f32 %v6871, %v6904
        %v6906 = vpop.f32.mrf.mxu0
        %v6907 = vadd.f32 %v6873, %v6906
        %6908 = vdwg.mxu0
        %6909 = vmatpush.bf16.msra.mxu0 0
        %6910 = vmatpush.bf16.msra.mxu0 0
        %6911 = vmatpush.bf16.msra.mxu0 0
        %6912 = vmatpush.bf16.msra.mxu0 0
        %6913 = vmatpush.bf16.msra.mxu0 0
        %6914 = vmatpush.bf16.msra.mxu0 0
        %6915 = vmatpush.bf16.msra.mxu0 %v6806
        %6916 = vmatpush.bf16.msra.mxu0 %v6805
        %6917 = vmatmul.bf16.gmra.mxu0 %v6827
        %v6918 = vpop.f32.mrf.mxu0
        %v6919 = vadd.f32 %v6885, %v6918
        %v6920 = vpop.f32.mrf.mxu0
        %v6921 = vadd.f32 %v6887, %v6920
        %6922 = vmatmul.bf16.gmra.mxu0 %v6830
        %v6923 = vpop.f32.mrf.mxu0
        %v6924 = vadd.f32 %v6890, %v6923
        %v6925 = vpop.f32.mrf.mxu0
        %v6926 = vadd.f32 %v6892, %v6925
        %6927 = vmatmul.bf16.gmra.mxu0 %v6833
        %v6928 = vpop.f32.mrf.mxu0
        %v6929 = vadd.f32 %v6895, %v6928
        %v6930 = vpop.f32.mrf.mxu0
        %v6931 = vadd.f32 %v6897, %v6930
        %6932 = vmatmul.bf16.gmra.mxu0 %v6836
        %v6933 = vpop.f32.mrf.mxu0
        %v6934 = vadd.f32 %v6900, %v6933
        %v6935 = vpop.f32.mrf.mxu0
        %v6936 = vadd.f32 %v6902, %v6935
        %6937 = vmatmul.bf16.gmra.mxu0 %v6839
        %v6938 = vpop.f32.mrf.mxu0
        %v6939 = vadd.f32 %v6905, %v6938
        %v6940 = vpop.f32.mrf.mxu0
        %v6941 = vadd.f32 %v6907, %v6940
        %6942 = vdwg.mxu0
        %v6943 = vmax.f32 %v6919, 0.0
        %v6944 = vmax.f32 %v6921, 0.0
        %v6945 = vmax.f32 %v6924, 0.0
        %v6946 = vmax.f32 %v6926, 0.0
        %v6947 = vmax.f32 %v6929, 0.0
        %v6948 = vmax.f32 %v6931, 0.0
        %v6949 = vmax.f32 %v6934, 0.0
        %v6950 = vmax.f32 %v6936, 0.0
        %v6951 = vmax.f32 %v6939, 0.0
        %v6952 = vmax.f32 %v6941, 0.0
        %v6953 = vperm.slane %v6640, 1
        %v6954 = vmul.f32 %v6943, %v6953
        %v6955 = vmul.f32 %v6944, %v6953
        %v6956 = vmul.f32 %v6945, %v6953
        %v6957 = vmul.f32 %v6946, %v6953
        %v6958 = vmul.f32 %v6947, %v6953
        %v6959 = vmul.f32 %v6948, %v6953
        %v6960 = vmul.f32 %v6949, %v6953
        %v6961 = vmul.f32 %v6950, %v6953
        %v6962 = vmul.f32 %v6951, %v6953
        %v6963 = vmul.f32 %v6952, %v6953
        %v6964 = vperm.slane %v6640, 2
        %v6965 = vadd.f32 %v6954, %v6964
        %v6966 = vadd.f32 %v6955, %v6964
        %v6967 = vadd.f32 %v6956, %v6964
        %v6968 = vadd.f32 %v6957, %v6964
        %v6969 = vadd.f32 %v6958, %v6964
        %v6970 = vadd.f32 %v6959, %v6964
        %v6971 = vadd.f32 %v6960, %v6964
        %v6972 = vadd.f32 %v6961, %v6964
        %v6973 = vadd.f32 %v6962, %v6964
        %v6974 = vadd.f32 %v6963, %v6964
        %v6977 = vrot.slane %v6966, 2
        %v6978 = vrot.slane %v6967, 2
        %v6979 = vsel %vm4749, %v6977, %v6978
        %v6981 = vmax.f32 %v6965, %v6979
        %v6983 = vrot.slane %v6981, 2
        %v6984 = vrot.slane %v6981, 4
        %v6985 = vrot.slane %v6981, 6
        %v6989 = vrot.slane %v6981, 7
        %v6990 = vrot.slane %v6989, 2
        %v6991 = vrot.slane %v6983, 7
        %v6992 = vrot.slane %v6991, 2
        %v6993 = vrot.slane %v6984, 7
        %v6994 = vrot.slane %v6993, 2
        %v6995 = vrot.slane %v6985, 7
        %v6996 = vrot.slane %v6995, 2
        %v7001 = vmax.f32 %v6981, %v6990
        %v7002 = vmax.f32 %v6983, %v6992
        %v7003 = vmax.f32 %v6984, %v6994
        %v7004 = vmax.f32 %v6985, %v6996
        %v7007 = vrot.slane %v6968, 2
        %v7008 = vrot.slane %v6969, 2
        %v7009 = vsel %vm4749, %v7007, %v7008
        %v7012 = vmax.f32 %v6967, %v7009
        %v7013 = vmax.f32 %v6968, %v7008
        %7016 = vst.sshfl [vmem:[#allocation1] sm:$0xff pattern:$0x73625140] %v7012
        %7017 = vst.sshfl [vmem:[#allocation1 + $0x20] sm:$0xff pattern:$0x73625140] %v7013
        %s7018 = scalar_lea.vmem [#allocation1], 2
        %v7019 = vld [vmem:[%s7018] ss:$4 sm:$0xff]
        %s7020 = scalar_lea.vmem [#allocation1], 3
        %v7021 = vld [vmem:[%s7020] ss:$4 sm:$0xff]
        %s7022 = scalar_lea.vmem [#allocation1], 32
        %v7023 = vld [vmem:[%s7022] ss:$4 sm:$0xff]
        %s7024 = scalar_lea.vmem [#allocation1], 33
        %v7025 = vld [vmem:[%s7024] ss:$4 sm:$0xff]
        %v7030 = vrot.slane %v7019, 7
        %v7031 = vrot.slane %v7030, 2
        %v7032 = vrot.slane %v7021, 7
        %v7033 = vrot.slane %v7032, 2
        %v7034 = vrot.slane %v7023, 7
        %v7035 = vrot.slane %v7034, 2
        %v7036 = vrot.slane %v7025, 7
        %v7037 = vrot.slane %v7036, 2
        %v7042 = vmax.f32 %v7019, %v7031
        %v7043 = vmax.f32 %v7021, %v7033
        %v7044 = vmax.f32 %v7023, %v7035
        %v7045 = vmax.f32 %v7025, %v7037
        %v7048 = vrot.slane %v6971, 2
        %v7049 = vrot.slane %v6972, 2
        %v7050 = vsel %vm4749, %v7048, %v7049
        %v7052 = vmax.f32 %v6970, %v7050
        %v7054 = vrot.slane %v7052, 2
        %v7055 = vrot.slane %v7052, 4
        %v7056 = vrot.slane %v7052, 6
        %v7060 = vrot.slane %v7052, 7
        %v7061 = vrot.slane %v7060, 2
        %v7062 = vrot.slane %v7054, 7
        %v7063 = vrot.slane %v7062, 2
        %v7064 = vrot.slane %v7055, 7
        %v7065 = vrot.slane %v7064, 2
        %v7066 = vrot.slane %v7056, 7
        %v7067 = vrot.slane %v7066, 2
        %v7072 = vmax.f32 %v7052, %v7061
        %v7073 = vmax.f32 %v7054, %v7063
        %v7074 = vmax.f32 %v7055, %v7065
        %v7075 = vmax.f32 %v7056, %v7067
        %v7078 = vrot.slane %v6973, 2
        %v7079 = vrot.slane %v6974, 2
        %v7080 = vsel %vm4749, %v7078, %v7079
        %v7083 = vmax.f32 %v6972, %v7080
        %v7084 = vmax.f32 %v6973, %v7079
        %7087 = vst.sshfl [vmem:[#allocation1] sm:$0xff pattern:$0x73625140] %v7083
        %7088 = vst.sshfl [vmem:[#allocation1 + $0x20] sm:$0xff pattern:$0x73625140] %v7084
        %s7089 = scalar_lea.vmem [#allocation1], 2
        %v7090 = vld [vmem:[%s7089] ss:$4 sm:$0xff]
        %s7091 = scalar_lea.vmem [#allocation1], 3
        %v7092 = vld [vmem:[%s7091] ss:$4 sm:$0xff]
        %s7093 = scalar_lea.vmem [#allocation1], 32
        %v7094 = vld [vmem:[%s7093] ss:$4 sm:$0xff]
        %s7095 = scalar_lea.vmem [#allocation1], 33
        %v7096 = vld [vmem:[%s7095] ss:$4 sm:$0xff]
        %v7101 = vrot.slane %v7090, 7
        %v7102 = vrot.slane %v7101, 2
        %v7103 = vrot.slane %v7092, 7
        %v7104 = vrot.slane %v7103, 2
        %v7105 = vrot.slane %v7094, 7
        %v7106 = vrot.slane %v7105, 2
        %v7107 = vrot.slane %v7096, 7
        %v7108 = vrot.slane %v7107, 2
        %v7113 = vmax.f32 %v7090, %v7102
        %v7114 = vmax.f32 %v7092, %v7104
        %v7115 = vmax.f32 %v7094, %v7106
        %v7116 = vmax.f32 %v7096, %v7108
        %v7117 = vpack.c.bf16 %v7001, %v7001
        %v7118 = vpack.c.bf16 %v7002, %v7002
        %v7119 = vpack.c.bf16 %v7003, %v7003
        %v7120 = vpack.c.bf16 %v7004, %v7004
        %v7125 = vunpack.c.l.b16 %v7117
        %v7126 = vunpack.c.l.b16 %v7118
        %v7127 = vunpack.c.l.b16 %v7119
        %v7128 = vunpack.c.l.b16 %v7120
        %v7129 = vrot.slane %v7125, 1
        %v7130 = vrot.slane %v7127, 7
        %v7131 = vsel %vm5317, %v7130, %v7126
        %v7132 = vrot.slane %v7128, 6
        %v7133 = vsel %vm5320, %v7132, %v7131
        %v7134 = vpack.c.b16 %v7129, %v7129
        %v7135 = vpack.c.b16 %v7133, %v7133
        %v7138 = vld [vmem:[#allocation4] sm:$0x8]
        %v7139 = vsel %vm356, %v7134, %v7138
        %7140 = vst [vmem:[#allocation4] sm:$0x8] %v7139
        %v7141 = vld [vmem:[#allocation4 + $0x4] sm:$0x3]
        %v7142 = vsel %vm341, %v7135, %v7141
        %7143 = vst [vmem:[#allocation4 + $0x4] sm:$0x3] %v7142
        %v7144 = vpack.c.bf16 %v7042, %v7042
        %v7145 = vpack.c.bf16 %v7043, %v7043
        %v7146 = vpack.c.bf16 %v7044, %v7044
        %v7147 = vpack.c.bf16 %v7045, %v7045
        %v7152 = vunpack.c.l.b16 %v7144
        %v7153 = vunpack.c.l.b16 %v7145
        %v7154 = vunpack.c.l.b16 %v7146
        %v7155 = vunpack.c.l.b16 %v7147
        %v7156 = vrot.slane %v7152, 3
        %v7157 = vrot.slane %v7153, 2
        %v7158 = vsel %vm5311, %v7157, %v7156
        %v7159 = vrot.slane %v7154, 1
        %v7160 = vsel %vm5314, %v7159, %v7158
        %v7161 = vpack.c.b16 %v7160, %v7160
        %v7162 = vpack.c.b16 %v7155, %v7155
        %v7165 = vld [vmem:[#allocation4 + $0x4] sm:$0xc]
        %v7166 = vsel %vm405, %v7161, %v7165
        %7167 = vst [vmem:[#allocation4 + $0x4] sm:$0xc] %v7166
        %v7168 = vld [vmem:[#allocation4 + $0x8] sm:$0x1]
        %v7169 = vsel %vm361, %v7162, %v7168
        %7170 = vst [vmem:[#allocation4 + $0x8] sm:$0x1] %v7169
        %v7171 = vpack.c.bf16 %v7072, %v7072
        %v7172 = vpack.c.bf16 %v7073, %v7073
        %v7173 = vpack.c.bf16 %v7074, %v7074
        %v7174 = vpack.c.bf16 %v7075, %v7075
        %v7179 = vunpack.c.l.b16 %v7171
        %v7180 = vunpack.c.l.b16 %v7172
        %v7181 = vunpack.c.l.b16 %v7173
        %v7182 = vunpack.c.l.b16 %v7174
        %v7183 = vrot.slane %v7179, 5
        %v7184 = vrot.slane %v7180, 4
        %v7185 = vsel %vm5305, %v7184, %v7183
        %v7186 = vrot.slane %v7181, 3
        %v7187 = vsel %vm5308, %v7186, %v7185
        %v7188 = vrot.slane %v7182, 2
        %v7189 = vsel %vm5311, %v7188, %v7187
        %v7190 = vpack.c.b16 %v7189, %v7189
        %vm7192 = vsmask.f32 3334
        %vm7193 = vmand %vm422, %vm7192
        %v7194 = vld [vmem:[#allocation4 + $0x8] sm:$0xe]
        %v7195 = vsel %vm7193, %v7190, %v7194
        %7196 = vst [vmem:[#allocation4 + $0x8] sm:$0xe] %v7195
        %v7197 = vpack.c.bf16 %v7113, %v7113
        %v7198 = vpack.c.bf16 %v7114, %v7114
        %v7199 = vpack.c.bf16 %v7115, %v7115
        %v7200 = vpack.c.bf16 %v7116, %v7116
        %v7205 = vunpack.c.l.b16 %v7197
        %v7206 = vunpack.c.l.b16 %v7198
        %v7207 = vunpack.c.l.b16 %v7199
        %v7208 = vunpack.c.l.b16 %v7200
        %v7209 = vrot.slane %v7205, 7
        %v7210 = vrot.slane %v7206, 6
        %v7211 = vsel %vm5320, %v7210, %v7209
        %v7212 = vrot.slane %v7207, 5
        %v7213 = vsel %vm5366, %v7212, %v7211
        %v7214 = vrot.slane %v7208, 4
        %v7215 = vsel %vm5305, %v7214, %v7213
        %v7216 = vpack.c.b16 %v7215, %v7215
        %vm7218 = vsmask.f32 2306
        %vm7219 = vmand %vm410, %vm7218
        %v7220 = vld [vmem:[#allocation4 + $0xc] sm:$0x7]
        %v7221 = vsel %vm7219, %v7216, %v7220
        %7222 = vst [vmem:[#allocation4 + $0xc] sm:$0x7] %v7221
        %v7223 = vld [vmem:[#allocation4] sm:$0xf]
        %v7224 = vld [vmem:[#allocation4 + $0x4] sm:$0xf]
        %v7225 = vld [vmem:[#allocation4 + $0x8] sm:$0xf]
        %7226 = vst.msk [vmem:[#allocation8] sm:$0xf] %vm338, %v7223
        %7227 = vst.msk [vmem:[#allocation8 + $0xc] sm:$0xf] %vm338, %v7224
        %7228 = vst.msk [vmem:[#allocation8 + $0x18] sm:$0xf] %vm338, %v7225
        %v7229 = vld [vmem:[#allocation4] sm:$0xf]
        %v7230 = vld [vmem:[#allocation4 + $0x4] sm:$0xf]
        %v7231 = vld [vmem:[#allocation4 + $0x8] sm:$0xf]
        %v7232 = vld [vmem:[#allocation4 + $0xc] sm:$0x1]
        %v7234 = vshrl.u32 %v7229, 16
        %v7236 = vrot.slane %v7234, 4
        %v7237 = vshll.u32 %v7229, 16
        %v7239 = vrot.slane %v7237, 5
        %v7240 = vor.u32 %v7236, %v7239
        %v7241 = vrot.slane %v7240, 4
        %v7243 = vshll.u32 %v7230, 16
        %v7245 = vrot.slane %v7243, 5
        %v7246 = vsel %vm535, %v7241, %v7245
        %v7247 = vshrl.u32 %v7230, 16
        %v7249 = vrot.slane %v7247, 4
        %v7250 = vor.u32 %v7249, %v7245
        %v7251 = vrot.slane %v7250, 4
        %v7253 = vshll.u32 %v7231, 16
        %v7255 = vrot.slane %v7253, 5
        %v7256 = vsel %vm535, %v7251, %v7255
        %v7257 = vshrl.u32 %v7231, 16
        %v7259 = vrot.slane %v7257, 4
        %v7260 = vor.u32 %v7259, %v7255
        %v7261 = vrot.slane %v7260, 4
        %v7263 = vshll.u32 %v7232, 16
        %v7265 = vrot.slane %v7263, 5
        %v7266 = vsel %vm535, %v7261, %v7265
        %7267 = vrot.lane.b32.xlu0 %v7246, 32
        %v7268 = vpop.permute.xlu0 %7267
        %7269 = vrot.lane.b32.xlu0 %v7256, 32
        %v7270 = vpop.permute.xlu0 %7269
        %7271 = vrot.lane.b32.xlu0 %v7266, 32
        %v7272 = vpop.permute.xlu0 %7271
        %7276 = vst.msk [vmem:[#allocation8] sm:$0xf] %vm5827, %v7268
        %7277 = vst.msk [vmem:[#allocation8 + $0xc] sm:$0xf] %vm5827, %v7270
        %7278 = vst.msk [vmem:[#allocation8 + $0x18] sm:$0xf] %vm5827, %v7272
        %v7279 = vld [vmem:[#allocation4] sm:$0xe]
        %v7280 = vld [vmem:[#allocation4 + $0x4] sm:$0xf]
        %v7281 = vld [vmem:[#allocation4 + $0x8] sm:$0xf]
        %v7282 = vld [vmem:[#allocation4 + $0xc] sm:$0x1]
        %v7287 = vrot.slane %v7279, 5
        %v7288 = vrot.slane %v7287, 4
        %v7289 = vrot.slane %v7280, 5
        %v7290 = vsel %vm1657, %v7288, %v7289
        %v7291 = vrot.slane %v7289, 4
        %v7292 = vrot.slane %v7281, 5
        %v7293 = vsel %vm1657, %v7291, %v7292
        %v7294 = vrot.slane %v7292, 4
        %v7295 = vrot.slane %v7282, 5
        %v7296 = vsel %vm1657, %v7294, %v7295
        %7297 = vrot.lane.b32.xlu0 %v7290, 64
        %v7298 = vpop.permute.xlu0 %7297
        %7299 = vrot.lane.b32.xlu0 %v7293, 64
        %v7300 = vpop.permute.xlu0 %7299
        %7301 = vrot.lane.b32.xlu0 %v7296, 64
        %v7302 = vpop.permute.xlu0 %7301
        %7306 = vst.msk [vmem:[#allocation8] sm:$0xf] %vm5921, %v7298
        %7307 = vst.msk [vmem:[#allocation8 + $0xc] sm:$0xf] %vm5921, %v7300
        %7308 = vst.msk [vmem:[#allocation8 + $0x18] sm:$0xf] %vm5921, %v7302
        %v7309 = vld [vmem:[#allocation4] sm:$0x8]
        %v7310 = vld [vmem:[#allocation4 + $0x4] sm:$0xf]
        %v7311 = vld [vmem:[#allocation4 + $0x8] sm:$0xf]
        %v7312 = vld [vmem:[#allocation4 + $0xc] sm:$0x7]
        %v7317 = vrot.slane %v7309, 7
        %v7318 = vrot.slane %v7317, 4
        %v7319 = vrot.slane %v7310, 7
        %v7320 = vsel %vm4075, %v7318, %v7319
        %v7321 = vrot.slane %v7319, 4
        %v7322 = vrot.slane %v7311, 7
        %v7323 = vsel %vm4075, %v7321, %v7322
        %v7324 = vrot.slane %v7322, 4
        %v7325 = vrot.slane %v7312, 7
        %v7326 = vsel %vm4075, %v7324, %v7325
        %7327 = vrot.lane.b32.xlu0 %v7320, 96
        %v7328 = vpop.permute.xlu0 %7327
        %7329 = vrot.lane.b32.xlu0 %v7323, 96
        %v7330 = vpop.permute.xlu0 %7329
        %7331 = vrot.lane.b32.xlu0 %v7326, 96
        %v7332 = vpop.permute.xlu0 %7331
        %7336 = vst.msk [vmem:[#allocation8] sm:$0xf] %vm6015, %v7328
        %7337 = vst.msk [vmem:[#allocation8 + $0xc] sm:$0xf] %vm6015, %v7330
        %7338 = vst.msk [vmem:[#allocation8 + $0x18] sm:$0xf] %vm6015, %v7332
        %v7339 = vld [vmem:[#allocation4] sm:$0x8]
        %v7340 = vld [vmem:[#allocation4 + $0x4] sm:$0xf]
        %v7341 = vld [vmem:[#allocation4 + $0x8] sm:$0xf]
        %v7342 = vld [vmem:[#allocation4 + $0xc] sm:$0xf]
        %v7344 = vshrl.u32 %v7339, 16
        %v7346 = vrot.slane %v7344, 7
        %v7347 = vrot.slane %v7346, 4
        %v7349 = vshrl.u32 %v7340, 16
        %v7351 = vrot.slane %v7349, 7
        %v7352 = vshll.u32 %v7340, 16
        %v7354 = vor.u32 %v7351, %v7352
        %v7355 = vsel %vm569, %v7347, %v7354
        %v7356 = vrot.slane %v7351, 4
        %v7358 = vshrl.u32 %v7341, 16
        %v7360 = vrot.slane %v7358, 7
        %v7361 = vshll.u32 %v7341, 16
        %v7363 = vor.u32 %v7360, %v7361
        %v7364 = vsel %vm569, %v7356, %v7363
        %v7365 = vrot.slane %v7360, 4
        %v7367 = vshrl.u32 %v7342, 16
        %v7369 = vrot.slane %v7367, 7
        %v7370 = vshll.u32 %v7342, 16
        %v7372 = vor.u32 %v7369, %v7370
        %v7373 = vsel %vm569, %v7365, %v7372
        %7377 = vst.msk [vmem:[#allocation8 + $0x4] sm:$0xf] %vm338, %v7355
        %7378 = vst.msk [vmem:[#allocation8 + $0x10] sm:$0xf] %vm338, %v7364
        %7379 = vst.msk [vmem:[#allocation8 + $0x1c] sm:$0xf] %vm338, %v7373
        %v7380 = vld [vmem:[#allocation4 + $0x4] sm:$0xf]
        %v7381 = vld [vmem:[#allocation4 + $0x8] sm:$0xf]
        %v7382 = vld [vmem:[#allocation4 + $0xc] sm:$0xf]
        %7386 = vrot.lane.b32.xlu0 %v7380, 32
        %v7387 = vpop.permute.xlu0 %7386
        %7388 = vrot.lane.b32.xlu0 %v7381, 32
        %v7389 = vpop.permute.xlu0 %7388
        %7390 = vrot.lane.b32.xlu0 %v7382, 32
        %v7391 = vpop.permute.xlu0 %7390
        %7395 = vst.msk [vmem:[#allocation8 + $0x4] sm:$0xf] %vm5827, %v7387
        %7396 = vst.msk [vmem:[#allocation8 + $0x10] sm:$0xf] %vm5827, %v7389
        %7397 = vst.msk [vmem:[#allocation8 + $0x1c] sm:$0xf] %vm5827, %v7391
        %v7398 = vld [vmem:[#allocation4 + $0x4] sm:$0xc]
        %v7399 = vld [vmem:[#allocation4 + $0x8] sm:$0xf]
        %v7400 = vld [vmem:[#allocation4 + $0xc] sm:$0xf]
        %v7401 = vld [vmem:[#allocation4 + $0x10] sm:$0x3]
        %v7406 = vrot.slane %v7398, 6
        %v7407 = vrot.slane %v7406, 4
        %v7408 = vrot.slane %v7399, 6
        %v7409 = vsel %vm2866, %v7407, %v7408
        %v7410 = vrot.slane %v7408, 4
        %v7411 = vrot.slane %v7400, 6
        %v7412 = vsel %vm2866, %v7410, %v7411
        %v7413 = vrot.slane %v7411, 4
        %v7414 = vrot.slane %v7401, 6
        %v7415 = vsel %vm2866, %v7413, %v7414
        %7416 = vrot.lane.b32.xlu0 %v7409, 64
        %v7417 = vpop.permute.xlu0 %7416
        %7418 = vrot.lane.b32.xlu0 %v7412, 64
        %v7419 = vpop.permute.xlu0 %7418
        %7420 = vrot.lane.b32.xlu0 %v7415, 64
        %v7421 = vpop.permute.xlu0 %7420
        %7425 = vst.msk [vmem:[#allocation8 + $0x4] sm:$0xf] %vm5921, %v7417
        %7426 = vst.msk [vmem:[#allocation8 + $0x10] sm:$0xf] %vm5921, %v7419
        %7427 = vst.msk [vmem:[#allocation8 + $0x1c] sm:$0xf] %vm5921, %v7421
        %v7428 = vld [vmem:[#allocation4 + $0x4] sm:$0xc]
        %v7429 = vld [vmem:[#allocation4 + $0x8] sm:$0xf]
        %v7430 = vld [vmem:[#allocation4 + $0xc] sm:$0xf]
        %v7431 = vld [vmem:[#allocation4 + $0x10] sm:$0x7]
        %v7433 = vshrl.u32 %v7428, 16
        %v7435 = vrot.slane %v7433, 6
        %v7436 = vshll.u32 %v7428, 16
        %v7438 = vrot.slane %v7436, 7
        %v7439 = vor.u32 %v7435, %v7438
        %v7440 = vrot.slane %v7439, 4
        %v7442 = vshrl.u32 %v7429, 16
        %v7444 = vrot.slane %v7442, 6
        %v7445 = vshll.u32 %v7429, 16
        %v7447 = vrot.slane %v7445, 7
        %v7448 = vor.u32 %v7444, %v7447
        %v7449 = vsel %vm464, %v7440, %v7448
        %v7450 = vrot.slane %v7448, 4
        %v7452 = vshrl.u32 %v7430, 16
        %v7454 = vrot.slane %v7452, 6
        %v7455 = vshll.u32 %v7430, 16
        %v7457 = vrot.slane %v7455, 7
        %v7458 = vor.u32 %v7454, %v7457
        %v7459 = vsel %vm464, %v7450, %v7458
        %v7460 = vrot.slane %v7458, 4
        %v7462 = vshrl.u32 %v7431, 16
        %v7464 = vrot.slane %v7462, 6
        %v7465 = vshll.u32 %v7431, 16
        %v7467 = vrot.slane %v7465, 7
        %v7468 = vor.u32 %v7464, %v7467
        %v7469 = vsel %vm464, %v7460, %v7468
        %7470 = vrot.lane.b32.xlu0 %v7449, 96
        %v7471 = vpop.permute.xlu0 %7470
        %7472 = vrot.lane.b32.xlu0 %v7459, 96
        %v7473 = vpop.permute.xlu0 %7472
        %7474 = vrot.lane.b32.xlu0 %v7469, 96
        %v7475 = vpop.permute.xlu0 %7474
        %7479 = vst.msk [vmem:[#allocation8 + $0x4] sm:$0xf] %vm6015, %v7471
        %7480 = vst.msk [vmem:[#allocation8 + $0x10] sm:$0xf] %vm6015, %v7473
        %7481 = vst.msk [vmem:[#allocation8 + $0x1c] sm:$0xf] %vm6015, %v7475
        %v7482 = vld [vmem:[#allocation4 + $0x4] sm:$0x8]
        %v7483 = vld [vmem:[#allocation4 + $0x8] sm:$0xf]
        %v7484 = vld [vmem:[#allocation4 + $0xc] sm:$0xf]
        %v7485 = vld [vmem:[#allocation4 + $0x10] sm:$0x7]
        %v7490 = vrot.slane %v7482, 7
        %v7491 = vrot.slane %v7490, 4
        %v7492 = vrot.slane %v7483, 7
        %v7493 = vsel %vm4075, %v7491, %v7492
        %v7494 = vrot.slane %v7492, 4
        %v7495 = vrot.slane %v7484, 7
        %v7496 = vsel %vm4075, %v7494, %v7495
        %v7497 = vrot.slane %v7495, 4
        %v7498 = vrot.slane %v7485, 7
        %v7499 = vsel %vm4075, %v7497, %v7498
        %7503 = vst.msk [vmem:[#allocation8 + $0x8] sm:$0xf] %vm338, %v7493
        %7504 = vst.msk [vmem:[#allocation8 + $0x14] sm:$0xf] %vm338, %v7496
        %7505 = vst.msk [vmem:[#allocation8 + $0x20] sm:$0xf] %vm338, %v7499
        %v7506 = vld [vmem:[#allocation8] sm:$0xff]
        %v7507 = vld [vmem:[#allocation8 + $0x8] sm:$0xf]
        %v7508 = vld [vmem:[#allocation8 + $0xc] sm:$0xff]
        %v7509 = vld [vmem:[#allocation8 + $0x14] sm:$0xf]
        %v7510 = vld [vmem:[#allocation8 + $0x18] sm:$0xff]
        %v7511 = vld [vmem:[#allocation8 + $0x20] sm:$0xf]
        %v7512 = vld [vmem:[%s3] sm:$0xf]
        %v7513 = vld [vmem:[%s3 + $0x4] sm:$0xf]
        %v7514 = vld [vmem:[%s3 + $0x8] sm:$0xf]
        %v7515 = vld [vmem:[%s3 + $0xc] sm:$0xf]
        %v7516 = vld [vmem:[%s3 + $0x10] sm:$0xf]
        %v7517 = vld [vmem:[%s3 + $0x14] sm:$0xf]
        %v7518 = vld [vmem:[%s3 + $0x18] sm:$0xf]
        %v7519 = vld [vmem:[%s3 + $0x1c] sm:$0xf]
        %v7520 = vld [vmem:[%s3 + $0x20] sm:$0xf]
        %v7521 = vld [vmem:[%s3 + $0x24] sm:$0xf]
        %v7522 = vld [vmem:[%s3 + $0x28] sm:$0xf]
        %v7523 = vld [vmem:[%s3 + $0x2c] sm:$0xf]
        %v7524 = vld [vmem:[%s3 + $0x30] sm:$0xf]
        %v7525 = vld [vmem:[%s3 + $0x34] sm:$0xf]
        %v7526 = vld [vmem:[%s3 + $0x38] sm:$0xf]
        %v7527 = vld [vmem:[%s3 + $0x3c] sm:$0xf]
        %v7528 = vld [vmem:[%s3 + $0x40] sm:$0xf]
        %v7529 = vld [vmem:[%s3 + $0x44] sm:$0xf]
        %v7530 = vld [vmem:[%s3 + $0x48] sm:$0xf]
        %v7531 = vld [vmem:[%s3 + $0x4c] sm:$0xf]
        %v7532 = vld [vmem:[%s3 + $0x50] sm:$0xf]
        %v7533 = vld [vmem:[%s3 + $0x54] sm:$0xf]
        %v7534 = vld [vmem:[%s3 + $0x58] sm:$0xf]
        %v7535 = vld [vmem:[%s3 + $0x5c] sm:$0xf]
        %v7536 = vld [vmem:[%s3 + $0x60] sm:$0xf]
        %v7537 = vld [vmem:[%s3 + $0x64] sm:$0xf]
        %v7538 = vld [vmem:[%s3 + $0x68] sm:$0xf]
        %v7539 = vld [vmem:[%s3 + $0x6c] sm:$0xf]
        %v7540 = vld [vmem:[%s3 + $0x70] sm:$0xf]
        %v7541 = vld [vmem:[%s3 + $0x74] sm:$0xf]
        %v7542 = vld [vmem:[%s3 + $0x78] sm:$0xf]
        %v7543 = vld [vmem:[%s3 + $0x7c] sm:$0xf]
        %v7544 = vld [vmem:[%s3 + $0x80] sm:$0xf]
        %v7545 = vld [vmem:[%s3 + $0x84] sm:$0xf]
        %v7546 = vld [vmem:[%s3 + $0x88] sm:$0xf]
        %v7547 = vld [vmem:[%s3 + $0x8c] sm:$0xf]
        %s7548 = scalar_lea.vmem %s5, 8
        %v7549 = vld [vmem:[%s7548] sm:$0x7]
        %v7550 = vperm.slane %v7549, 0
        %v7557 = vunpack.c.l.b16 %v7506
        %v7558 = vunpack.c.h.b16 %v7506
        %v7559 = vunpack.c.l.b16 %v7507
        %v7560 = vunpack.c.l.b16 %v7508
        %v7561 = vunpack.c.h.b16 %v7508
        %v7562 = vunpack.c.l.b16 %v7509
        %v7563 = vunpack.c.l.b16 %v7510
        %v7564 = vunpack.c.h.b16 %v7510
        %v7565 = vunpack.c.l.b16 %v7511
        %v7566 = vpack.c.b16 %v7560, %v7557
        %v7567 = vpack.c.b16 %v7561, %v7558
        %v7568 = vpack.c.b16 %v7562, %v7559
        %v7569 = vpack.c.b16 %v7563, %v7563
        %v7570 = vpack.c.b16 %v7564, %v7564
        %v7571 = vpack.c.b16 %v7565, %v7565
        %v7612 = vunpack.c.l.b16 %v7512
        %v7613 = vunpack.c.l.b16 %v7513
        %v7614 = vunpack.c.l.b16 %v7514
        %v7615 = vunpack.c.l.b16 %v7515
        %v7616 = vunpack.c.l.b16 %v7516
        %v7617 = vunpack.c.l.b16 %v7517
        %v7618 = vunpack.c.l.b16 %v7518
        %v7619 = vunpack.c.l.b16 %v7519
        %v7620 = vunpack.c.l.b16 %v7520
        %v7621 = vunpack.c.l.b16 %v7521
        %v7622 = vunpack.c.l.b16 %v7522
        %v7623 = vunpack.c.l.b16 %v7523
        %v7624 = vunpack.c.l.b16 %v7524
        %v7625 = vunpack.c.l.b16 %v7525
        %v7626 = vunpack.c.l.b16 %v7526
        %v7627 = vunpack.c.l.b16 %v7527
        %v7628 = vunpack.c.l.b16 %v7528
        %v7629 = vunpack.c.l.b16 %v7529
        %v7630 = vunpack.c.l.b16 %v7530
        %v7631 = vunpack.c.l.b16 %v7531
        %v7632 = vunpack.c.l.b16 %v7532
        %v7633 = vunpack.c.l.b16 %v7533
        %v7634 = vunpack.c.l.b16 %v7534
        %v7635 = vunpack.c.l.b16 %v7535
        %v7636 = vunpack.c.l.b16 %v7536
        %v7637 = vunpack.c.l.b16 %v7537
        %v7638 = vunpack.c.l.b16 %v7538
        %v7639 = vunpack.c.l.b16 %v7539
        %v7640 = vunpack.c.l.b16 %v7540
        %v7641 = vunpack.c.l.b16 %v7541
        %v7642 = vunpack.c.l.b16 %v7542
        %v7643 = vunpack.c.l.b16 %v7543
        %v7644 = vunpack.c.l.b16 %v7544
        %v7645 = vunpack.c.l.b16 %v7545
        %v7646 = vunpack.c.l.b16 %v7546
        %v7647 = vunpack.c.l.b16 %v7547
        %v7648 = vpack.c.b16 %v7613, %v7612
        %v7649 = vpack.c.b16 %v7615, %v7614
        %v7650 = vpack.c.b16 %v7617, %v7616
        %v7651 = vpack.c.b16 %v7619, %v7618
        %v7652 = vpack.c.b16 %v7621, %v7620
        %v7653 = vpack.c.b16 %v7623, %v7622
        %v7654 = vpack.c.b16 %v7625, %v7624
        %v7655 = vpack.c.b16 %v7627, %v7626
        %v7656 = vpack.c.b16 %v7629, %v7628
        %v7657 = vpack.c.b16 %v7631, %v7630
        %v7658 = vpack.c.b16 %v7633, %v7632
        %v7659 = vpack.c.b16 %v7635, %v7634
        %v7660 = vpack.c.b16 %v7637, %v7636
        %v7661 = vpack.c.b16 %v7639, %v7638
        %v7662 = vpack.c.b16 %v7641, %v7640
        %v7663 = vpack.c.b16 %v7643, %v7642
        %v7664 = vpack.c.b16 %v7645, %v7644
        %v7665 = vpack.c.b16 %v7647, %v7646
        %v7685 = vsel %vm6825, %v7568, 0
        %v7688 = vsel %vm6825, %v7571, 0
        %7690 = vmatpush.bf16.msra.mxu0 %v7655
        %7691 = vmatpush.bf16.msra.mxu0 %v7654
        %7692 = vmatpush.bf16.msra.mxu0 %v7653
        %7693 = vmatpush.bf16.msra.mxu0 %v7652
        %7694 = vmatpush.bf16.msra.mxu0 %v7651
        %7695 = vmatpush.bf16.msra.mxu0 %v7650
        %7696 = vmatpush.bf16.msra.mxu0 %v7649
        %7697 = vmatpush.bf16.msra.mxu0 %v7648
        %7698 = vmatmul.bf16.gmra.mxu0 %v7566
        %v7699 = vpop.f32.mrf.mxu0
        %v7700 = vadd.f32 %v7550, %v7699
        %v7701 = vpop.f32.mrf.mxu0
        %v7702 = vadd.f32 %v7550, %v7701
        %7703 = vmatmul.bf16.gmra.mxu0 %v7569
        %v7704 = vpop.f32.mrf.mxu0
        %v7705 = vadd.f32 %v7550, %v7704
        %v7706 = vpop.f32.mrf.mxu0
        %7707 = vdwg.mxu0
        %7708 = vmatpush.bf16.msra.mxu0 %v7663
        %7709 = vmatpush.bf16.msra.mxu0 %v7662
        %7710 = vmatpush.bf16.msra.mxu0 %v7661
        %7711 = vmatpush.bf16.msra.mxu0 %v7660
        %7712 = vmatpush.bf16.msra.mxu0 %v7659
        %7713 = vmatpush.bf16.msra.mxu0 %v7658
        %7714 = vmatpush.bf16.msra.mxu0 %v7657
        %7715 = vmatpush.bf16.msra.mxu0 %v7656
        %7716 = vmatmul.bf16.gmra.mxu0 %v7567
        %v7717 = vpop.f32.mrf.mxu0
        %v7718 = vadd.f32 %v7700, %v7717
        %v7719 = vpop.f32.mrf.mxu0
        %v7720 = vadd.f32 %v7702, %v7719
        %7721 = vmatmul.bf16.gmra.mxu0 %v7570
        %v7722 = vpop.f32.mrf.mxu0
        %v7723 = vadd.f32 %v7705, %v7722
        %v7724 = vpop.f32.mrf.mxu0
        %7725 = vdwg.mxu0
        %7726 = vmatpush.bf16.msra.mxu0 0
        %7727 = vmatpush.bf16.msra.mxu0 0
        %7728 = vmatpush.bf16.msra.mxu0 0
        %7729 = vmatpush.bf16.msra.mxu0 0
        %7730 = vmatpush.bf16.msra.mxu0 0
        %7731 = vmatpush.bf16.msra.mxu0 0
        %7732 = vmatpush.bf16.msra.mxu0 %v7665
        %7733 = vmatpush.bf16.msra.mxu0 %v7664
        %7734 = vmatmul.bf16.gmra.mxu0 %v7685
        %v7735 = vpop.f32.mrf.mxu0
        %v7736 = vadd.f32 %v7718, %v7735
        %v7737 = vpop.f32.mrf.mxu0
        %v7738 = vadd.f32 %v7720, %v7737
        %7739 = vmatmul.bf16.gmra.mxu0 %v7688
        %v7740 = vpop.f32.mrf.mxu0
        %v7741 = vadd.f32 %v7723, %v7740
        %v7742 = vpop.f32.mrf.mxu0
        %7743 = vdwg.mxu0
        %v7744 = vmax.f32 %v7736, 0.0
        %v7745 = vmax.f32 %v7738, 0.0
        %v7746 = vmax.f32 %v7741, 0.0
        %v7747 = vperm.slane %v7549, 1
        %v7748 = vmul.f32 %v7744, %v7747
        %v7749 = vmul.f32 %v7745, %v7747
        %v7750 = vmul.f32 %v7746, %v7747
        %v7751 = vperm.slane %v7549, 2
        %v7752 = vadd.f32 %v7748, %v7751
        %v7753 = vadd.f32 %v7749, %v7751
        %v7754 = vadd.f32 %v7750, %v7751
        %v7757 = vrot.slane %v7752, 6
        %v7758 = vrot.slane %v7753, 6
        %v7759 = vsel %vm4533, %v7757, %v7758
        %v7761 = vmax.f32 %v7752, %v7759
        %v7763 = vrot.slane %v7761, 2
        %v7765 = vrot.slane %v7761, 7
        %v7766 = vrot.slane %v7765, 2
        %v7767 = vrot.slane %v7763, 7
        %v7768 = vrot.slane %v7767, 2
        %v7771 = vmax.f32 %v7761, %v7766
        %v7772 = vmax.f32 %v7763, %v7768
        %v7774 = vrot.slane %v7754, 6
        %v7776 = vmax.f32 %v7753, %v7774
        %7778 = vst.sshfl [vmem:[#allocation1] sm:$0xff pattern:$0x73625140] %v7776
        %s7779 = scalar_lea.vmem [#allocation1], 2
        %v7780 = vld [vmem:[%s7779] ss:$4 sm:$0xff]
        %s7781 = scalar_lea.vmem [#allocation1], 3
        %v7782 = vld [vmem:[%s7781] ss:$4 sm:$0xff]
        %v7785 = vrot.slane %v7780, 7
        %v7786 = vrot.slane %v7785, 2
        %v7787 = vrot.slane %v7782, 7
        %v7788 = vrot.slane %v7787, 2
        %v7791 = vmax.f32 %v7780, %v7786
        %v7792 = vmax.f32 %v7782, %v7788
        %v7793 = vpack.c.bf16 %v7771, %v7771
        %v7794 = vpack.c.bf16 %v7772, %v7772
        %v7797 = vunpack.c.l.b16 %v7793
        %v7798 = vunpack.c.l.b16 %v7794
        %v7799 = vrot.slane %v7797, 3
        %v7800 = vrot.slane %v7798, 2
        %v7801 = vsel %vm5311, %v7800, %v7799
        %v7802 = vpack.c.b16 %v7801, %v7801
        %v7804 = vld [vmem:[#allocation5] sm:$0xc]
        %v7805 = vsel %vm351, %v7802, %v7804
        %7806 = vst [vmem:[#allocation5] sm:$0xc] %v7805
        %v7807 = vpack.c.bf16 %v7791, %v7791
        %v7808 = vpack.c.bf16 %v7792, %v7792
        %v7811 = vunpack.c.l.b16 %v7807
        %v7812 = vunpack.c.l.b16 %v7808
        %v7813 = vrot.slane %v7811, 7
        %v7814 = vrot.slane %v7812, 6
        %v7815 = vsel %vm5320, %v7814, %v7813
        %v7816 = vpack.c.b16 %v7815, %v7815
        %v7818 = vld [vmem:[#allocation5 + $0x4] sm:$0x3]
        %v7819 = vsel %vm365, %v7816, %v7818
        %7820 = vst [vmem:[#allocation5 + $0x4] sm:$0x3] %v7819
        %v7821 = vld [vmem:[#allocation5] sm:$0xf]
        %7822 = vst.msk [vmem:[#allocation9] sm:$0xf] %vm338, %v7821
        %v7823 = vld [vmem:[#allocation5] sm:$0xf]
        %v7824 = vld [vmem:[#allocation5 + $0x4] sm:$0x1]
        %v7826 = vshrl.u32 %v7823, 16
        %v7828 = vrot.slane %v7826, 4
        %v7829 = vshll.u32 %v7823, 16
        %v7831 = vrot.slane %v7829, 5
        %v7832 = vor.u32 %v7828, %v7831
        %v7833 = vrot.slane %v7832, 4
        %v7835 = vshll.u32 %v7824, 16
        %v7837 = vrot.slane %v7835, 5
        %v7838 = vsel %vm535, %v7833, %v7837
        %7839 = vrot.lane.b32.xlu0 %v7838, 32
        %v7840 = vpop.permute.xlu0 %7839
        %7842 = vst.msk [vmem:[#allocation9] sm:$0xf] %vm5827, %v7840
        %v7843 = vld [vmem:[#allocation5] sm:$0xe]
        %v7844 = vld [vmem:[#allocation5 + $0x4] sm:$0x1]
        %v7847 = vrot.slane %v7843, 5
        %v7848 = vrot.slane %v7847, 4
        %v7849 = vrot.slane %v7844, 5
        %v7850 = vsel %vm1657, %v7848, %v7849
        %7851 = vrot.lane.b32.xlu0 %v7850, 64
        %v7852 = vpop.permute.xlu0 %7851
        %7854 = vst.msk [vmem:[#allocation9] sm:$0xf] %vm5921, %v7852
        %v7855 = vld [vmem:[#allocation5] sm:$0xc]
        %v7856 = vld [vmem:[#allocation5 + $0x4] sm:$0x3]
        %v7859 = vrot.slane %v7855, 6
        %v7860 = vrot.slane %v7859, 4
        %v7861 = vrot.slane %v7856, 6
        %v7862 = vsel %vm2866, %v7860, %v7861
        %7863 = vrot.lane.b32.xlu0 %v7862, 96
        %v7864 = vpop.permute.xlu0 %7863
        %7866 = vst.msk [vmem:[#allocation9] sm:$0xf] %vm6015, %v7864
        %v7867 = vld [vmem:[#allocation5] sm:$0xc]
        %v7868 = vld [vmem:[#allocation5 + $0x4] sm:$0x7]
        %v7870 = vshrl.u32 %v7867, 16
        %v7872 = vrot.slane %v7870, 6
        %v7873 = vshll.u32 %v7867, 16
        %v7875 = vrot.slane %v7873, 7
        %v7876 = vor.u32 %v7872, %v7875
        %v7877 = vrot.slane %v7876, 4
        %v7879 = vshrl.u32 %v7868, 16
        %v7881 = vrot.slane %v7879, 6
        %v7882 = vshll.u32 %v7868, 16
        %v7884 = vrot.slane %v7882, 7
        %v7885 = vor.u32 %v7881, %v7884
        %v7886 = vsel %vm464, %v7877, %v7885
        %7888 = vst.msk [vmem:[#allocation9 + $0x4] sm:$0xf] %vm338, %v7886
        %v7889 = vld [vmem:[#allocation5] sm:$0x8]
        %v7890 = vld [vmem:[#allocation5 + $0x4] sm:$0x7]
        %v7893 = vrot.slane %v7889, 7
        %v7894 = vrot.slane %v7893, 4
        %v7895 = vrot.slane %v7890, 7
        %v7896 = vsel %vm4075, %v7894, %v7895
        %7897 = vrot.lane.b32.xlu0 %v7896, 32
        %v7898 = vpop.permute.xlu0 %7897
        %7900 = vst.msk [vmem:[#allocation9 + $0x4] sm:$0xf] %vm5827, %v7898
        %v7901 = vld [vmem:[#allocation5 + $0x4] sm:$0xf]
        %7903 = vrot.lane.b32.xlu0 %v7901, 64
        %v7904 = vpop.permute.xlu0 %7903
        %7906 = vst.msk [vmem:[#allocation9 + $0x4] sm:$0xf] %vm5921, %v7904
        %v7907 = vld [vmem:[#allocation5 + $0x4] sm:$0xf]
        %v7908 = vld [vmem:[#allocation5 + $0x8] sm:$0x1]
        %v7910 = vshrl.u32 %v7907, 16
        %v7912 = vrot.slane %v7910, 4
        %v7913 = vshll.u32 %v7907, 16
        %v7915 = vrot.slane %v7913, 5
        %v7916 = vor.u32 %v7912, %v7915
        %v7917 = vrot.slane %v7916, 4
        %v7919 = vshll.u32 %v7908, 16
        %v7921 = vrot.slane %v7919, 5
        %v7922 = vsel %vm535, %v7917, %v7921
        %7923 = vrot.lane.b32.xlu0 %v7922, 96
        %v7924 = vpop.permute.xlu0 %7923
        %7926 = vst.msk [vmem:[#allocation9 + $0x4] sm:$0xf] %vm6015, %v7924
        %v7927 = vld [vmem:[#allocation5 + $0x4] sm:$0xe]
        %v7928 = vld [vmem:[#allocation5 + $0x8] sm:$0x1]
        %v7931 = vrot.slane %v7927, 5
        %v7932 = vrot.slane %v7931, 4
        %v7933 = vrot.slane %v7928, 5
        %v7934 = vsel %vm1657, %v7932, %v7933
        %7936 = vst.msk [vmem:[#allocation9 + $0x8] sm:$0xf] %vm338, %v7934
        %v7937 = vld [vmem:[#allocation9] sm:$0xff]
        %v7938 = vld [vmem:[#allocation9 + $0x8] sm:$0xf]
        %v7939 = vld [vmem:[%s4] sm:$0xf]
        %v7940 = vld [vmem:[%s4 + $0x4] sm:$0xf]
        %v7941 = vld [vmem:[%s4 + $0x8] sm:$0xf]
        %v7942 = vld [vmem:[%s4 + $0xc] sm:$0xf]
        %v7943 = vld [vmem:[%s4 + $0x10] sm:$0xf]
        %v7944 = vld [vmem:[%s4 + $0x14] sm:$0xf]
        %v7945 = vld [vmem:[%s4 + $0x18] sm:$0xf]
        %v7946 = vld [vmem:[%s4 + $0x1c] sm:$0xf]
        %v7947 = vld [vmem:[%s4 + $0x20] sm:$0xf]
        %v7948 = vld [vmem:[%s4 + $0x24] sm:$0xf]
        %v7949 = vld [vmem:[%s4 + $0x28] sm:$0xf]
        %v7950 = vld [vmem:[%s4 + $0x2c] sm:$0xf]
        %v7951 = vld [vmem:[%s4 + $0x30] sm:$0xf]
        %v7952 = vld [vmem:[%s4 + $0x34] sm:$0xf]
        %v7953 = vld [vmem:[%s4 + $0x38] sm:$0xf]
        %v7954 = vld [vmem:[%s4 + $0x3c] sm:$0xf]
        %v7955 = vld [vmem:[%s4 + $0x40] sm:$0xf]
        %v7956 = vld [vmem:[%s4 + $0x44] sm:$0xf]
        %v7957 = vld [vmem:[%s4 + $0x48] sm:$0xf]
        %v7958 = vld [vmem:[%s4 + $0x4c] sm:$0xf]
        %v7959 = vld [vmem:[%s4 + $0x50] sm:$0xf]
        %v7960 = vld [vmem:[%s4 + $0x54] sm:$0xf]
        %v7961 = vld [vmem:[%s4 + $0x58] sm:$0xf]
        %v7962 = vld [vmem:[%s4 + $0x5c] sm:$0xf]
        %v7963 = vld [vmem:[%s4 + $0x60] sm:$0xf]
        %v7964 = vld [vmem:[%s4 + $0x64] sm:$0xf]
        %v7965 = vld [vmem:[%s4 + $0x68] sm:$0xf]
        %v7966 = vld [vmem:[%s4 + $0x6c] sm:$0xf]
        %v7967 = vld [vmem:[%s4 + $0x70] sm:$0xf]
        %v7968 = vld [vmem:[%s4 + $0x74] sm:$0xf]
        %v7969 = vld [vmem:[%s4 + $0x78] sm:$0xf]
        %v7970 = vld [vmem:[%s4 + $0x7c] sm:$0xf]
        %v7971 = vld [vmem:[%s4 + $0x80] sm:$0xf]
        %v7972 = vld [vmem:[%s4 + $0x84] sm:$0xf]
        %v7973 = vld [vmem:[%s4 + $0x88] sm:$0xf]
        %v7974 = vld [vmem:[%s4 + $0x8c] sm:$0xf]
        %s7975 = scalar_lea.vmem %s5, 12
        %v7976 = vld [vmem:[%s7975] sm:$0x7]
        %v7977 = vperm.slane %v7976, 0
        %v7980 = vunpack.c.l.b16 %v7937
        %v7981 = vunpack.c.h.b16 %v7937
        %v7982 = vunpack.c.l.b16 %v7938
        %v7983 = vpack.c.b16 %v7980, %v7980
        %v7984 = vpack.c.b16 %v7981, %v7981
        %v7985 = vpack.c.b16 %v7982, %v7982
        %v8024 = vunpack.c.l.b16 %v7939
        %v8025 = vunpack.c.l.b16 %v7940
        %v8026 = vunpack.c.l.b16 %v7941
        %v8027 = vunpack.c.l.b16 %v7942
        %v8028 = vunpack.c.l.b16 %v7943
        %v8029 = vunpack.c.l.b16 %v7944
        %v8030 = vunpack.c.l.b16 %v7945
        %v8031 = vunpack.c.l.b16 %v7946
        %v8032 = vunpack.c.l.b16 %v7947
        %v8033 = vunpack.c.l.b16 %v7948
        %v8034 = vunpack.c.l.b16 %v7949
        %v8035 = vunpack.c.l.b16 %v7950
        %v8036 = vunpack.c.l.b16 %v7951
        %v8037 = vunpack.c.l.b16 %v7952
        %v8038 = vunpack.c.l.b16 %v7953
        %v8039 = vunpack.c.l.b16 %v7954
        %v8040 = vunpack.c.l.b16 %v7955
        %v8041 = vunpack.c.l.b16 %v7956
        %v8042 = vunpack.c.l.b16 %v7957
        %v8043 = vunpack.c.l.b16 %v7958
        %v8044 = vunpack.c.l.b16 %v7959
        %v8045 = vunpack.c.l.b16 %v7960
        %v8046 = vunpack.c.l.b16 %v7961
        %v8047 = vunpack.c.l.b16 %v7962
        %v8048 = vunpack.c.l.b16 %v7963
        %v8049 = vunpack.c.l.b16 %v7964
        %v8050 = vunpack.c.l.b16 %v7965
        %v8051 = vunpack.c.l.b16 %v7966
        %v8052 = vunpack.c.l.b16 %v7967
        %v8053 = vunpack.c.l.b16 %v7968
        %v8054 = vunpack.c.l.b16 %v7969
        %v8055 = vunpack.c.l.b16 %v7970
        %v8056 = vunpack.c.l.b16 %v7971
        %v8057 = vunpack.c.l.b16 %v7972
        %v8058 = vunpack.c.l.b16 %v7973
        %v8059 = vunpack.c.l.b16 %v7974
        %v8060 = vpack.c.b16 %v8025, %v8024
        %v8061 = vpack.c.b16 %v8027, %v8026
        %v8062 = vpack.c.b16 %v8029, %v8028
        %v8063 = vpack.c.b16 %v8031, %v8030
        %v8064 = vpack.c.b16 %v8033, %v8032
        %v8065 = vpack.c.b16 %v8035, %v8034
        %v8066 = vpack.c.b16 %v8037, %v8036
        %v8067 = vpack.c.b16 %v8039, %v8038
        %v8068 = vpack.c.b16 %v8041, %v8040
        %v8069 = vpack.c.b16 %v8043, %v8042
        %v8070 = vpack.c.b16 %v8045, %v8044
        %v8071 = vpack.c.b16 %v8047, %v8046
        %v8072 = vpack.c.b16 %v8049, %v8048
        %v8073 = vpack.c.b16 %v8051, %v8050
        %v8074 = vpack.c.b16 %v8053, %v8052
        %v8075 = vpack.c.b16 %v8055, %v8054
        %v8076 = vpack.c.b16 %v8057, %v8056
        %v8077 = vpack.c.b16 %v8059, %v8058
        %v8097 = vsel %vm6825, %v7985, 0
        %8099 = vmatpush.bf16.msra.mxu0 %v8067
        %8100 = vmatpush.bf16.msra.mxu0 %v8066
        %8101 = vmatpush.bf16.msra.mxu0 %v8065
        %8102 = vmatpush.bf16.msra.mxu0 %v8064
        %8103 = vmatpush.bf16.msra.mxu0 %v8063
        %8104 = vmatpush.bf16.msra.mxu0 %v8062
        %8105 = vmatpush.bf16.msra.mxu0 %v8061
        %8106 = vmatpush.bf16.msra.mxu0 %v8060
        %8107 = vmatmul.bf16.gmra.mxu0 %v7983
        %v8108 = vpop.f32.mrf.mxu0
        %v8109 = vadd.f32 %v7977, %v8108
        %v8110 = vpop.f32.mrf.mxu0
        %8111 = vdwg.mxu0
        %8112 = vmatpush.bf16.msra.mxu0 %v8075
        %8113 = vmatpush.bf16.msra.mxu0 %v8074
        %8114 = vmatpush.bf16.msra.mxu0 %v8073
        %8115 = vmatpush.bf16.msra.mxu0 %v8072
        %8116 = vmatpush.bf16.msra.mxu0 %v8071
        %8117 = vmatpush.bf16.msra.mxu0 %v8070
        %8118 = vmatpush.bf16.msra.mxu0 %v8069
        %8119 = vmatpush.bf16.msra.mxu0 %v8068
        %8120 = vmatmul.bf16.gmra.mxu0 %v7984
        %v8121 = vpop.f32.mrf.mxu0
        %v8122 = vadd.f32 %v8109, %v8121
        %v8123 = vpop.f32.mrf.mxu0
        %8124 = vdwg.mxu0
        %8125 = vmatpush.bf16.msra.mxu0 0
        %8126 = vmatpush.bf16.msra.mxu0 0
        %8127 = vmatpush.bf16.msra.mxu0 0
        %8128 = vmatpush.bf16.msra.mxu0 0
        %8129 = vmatpush.bf16.msra.mxu0 0
        %8130 = vmatpush.bf16.msra.mxu0 0
        %8131 = vmatpush.bf16.msra.mxu0 %v8077
        %8132 = vmatpush.bf16.msra.mxu0 %v8076
        %8133 = vmatmul.bf16.gmra.mxu0 %v8097
        %v8134 = vpop.f32.mrf.mxu0
        %v8135 = vadd.f32 %v8122, %v8134
        %v8136 = vpop.f32.mrf.mxu0
        %8137 = vdwg.mxu0
        %v8138 = vmax.f32 %v8135, 0.0
        %v8139 = vperm.slane %v7976, 1
        %v8140 = vmul.f32 %v8138, %v8139
        %v8141 = vperm.slane %v7976, 2
        %v8142 = vadd.f32 %v8140, %v8141
        %v8144 = vrot.slane %v8142, 4
        %v8146 = vmax.f32 %v8142, %v8144
        %v8148 = vrot.slane %v8146, 1
        %v8150 = vmax.f32 %v8146, %v8148
        %vm8151 = vcmask 253952
        %8152 = vst.msk [vmem:[%s243] sm:$0x1] %vm8151, %v8150
        %s8153 = sand.u32 %s159, 1
        %s8154 = scalar_lea.sflag [#allocation11], %s8153
        %s8155 = sand.u32 %s159, 1
        %s8156 = scalar_lea.vmem [#allocation10], %s8155
        // Predicated region
        $region45: #{tpu_custom_call.1} parent=43 // pred_check
          %p8157 = pneg %p169
        $region46: #{tpu_custom_call.1} parent=43 // pred_check_branch
          %8159 = sbr.rel (%p8157) target = $region48
        $region47: #{tpu_custom_call.1} parent=43 // pred_region
          %8161 = vsyncadd %s8154, 0
          %s8162 = scalar_lea.hbm %s6, %s20
          %s8164 = sshll.u32 %s8156, 4
          %s8165 = int_to_ptr.vmem [resolvable:$true] %s8164
          %s8166 = sshll.u32 %s8162, 4
          %s8167 = int_to_ptr.hbm [resolvable:$true] %s8166
          %8169 = dma.vmem_to_hbm [thread:$0]  %s8165, 16, %s8167, %s8154
        $region48: #{tpu_custom_call.1} parent=43 // pred_fallthru
          _
      $region44: #{tpu_custom_call.1} parent=5 // pred_fallthru
        _
      %p8170 = scmp.le.s32.totalorder 2, %s15
      // Predicated region
      $region49: #{tpu_custom_call.1} parent=5 // pred_check
        %p8171 = pneg %p8170
      $region50: #{tpu_custom_call.1} parent=5 // pred_check_branch
        %8173 = sbr.rel (%p8171) target = $region52
      $region51: #{tpu_custom_call.1} parent=5 // pred_region
        %s8174 = ssub.s32 %s15, 2
        // Predicated region
        $region53: #{tpu_custom_call.1} parent=51 // pred_check
          %p8175 = pneg %p175
        $region54: #{tpu_custom_call.1} parent=51 // pred_check_branch
          %8177 = sbr.rel (%p8175) target = $region56
        $region55: #{tpu_custom_call.1} parent=51 // pred_region
          %s8178 = sand.u32 %s160, 1
          %s8179 = scalar_lea.sflag [#allocation11], %s8178
          %s8180 = sand.u32 %s160, 1
          %s8181 = scalar_lea.vmem [#allocation10], %s8180
          %8183 = dma.done %s8179, 16
        $region56: #{tpu_custom_call.1} parent=51 // pred_fallthru
          _
      $region52: #{tpu_custom_call.1} parent=5 // pred_fallthru
        _
    $region6: #{tpu_custom_call.1} parent=1 // loop_footer
      %s19 = sadd.s32 1, %s15
    $region7: #{tpu_custom_call.1} parent=1 // loop_footer_branch
      %14 = sbr.rel target = $region3
    $region8: #{tpu_custom_call.1} parent=1 // loop_exit
      _
    %8184 = vsyncpa [#allocation11], 1
    %s8185 = scalar_lea.sflag [#allocation11], 1
    %8186 = vsyncpa %s8185, 1

</llo_original>
